<compile_context>
chip_gen: v5e
topology: v5e:2x2
jax: 0.10.0
libtpu: 0.0.40
codegen_flags: <defaults>
</compile_context>

<pallas_src>
import functools

import jax
import jax.numpy as jnp
from jax.experimental import pallas as pl
from jax.experimental.pallas import tpu as pltpu


# -----------------------------------------------------------------------------
# One-time on-device probe: verify pltpu.roll lowers for the shift amounts we
# need and follows the jnp.roll convention.  Falls back to slice+concat if not.
# -----------------------------------------------------------------------------
def _depthwise_shift_amounts(H, W):
    S = H * W
    return tuple(sorted({(-(dy * W + dx)) % S
                         for dy in (-1, 0, 1) for dx in (-1, 0, 1)} - {0}))


@functools.lru_cache(maxsize=None)
def _roll_supported(S, shifts):
    try:
        x = jnp.arange(8 * S, dtype=jnp.float32).reshape(8, S)

        def probe_kernel(x_ref, o_ref):
            xv = x_ref[...]
            for i, s in enumerate(shifts):
                o_ref[i] = pltpu.roll(xv, shift=s, axis=1)

        out = pl.pallas_call(
            probe_kernel,
            out_shape=jax.ShapeDtypeStruct((len(shifts), 8, S), jnp.float32),
        )(x)
        ref = jnp.stack([jnp.roll(x, s, axis=1) for s in shifts])
        return bool(jnp.array_equal(out, ref))
    except Exception:
        return False


# -----------------------------------------------------------------------------
# Fused node kernel: weighted fusion -> Swish -> depthwise 3x3 -> pointwise 1x1
# -----------------------------------------------------------------------------
def _make_fuse_dsconv_kernel(num_inputs, H, W):
    S = H * W
    use_roll = _roll_supported(S, _depthwise_shift_amounts(H, W))

    def shift_spatial(x, d):
        # y[:, s] = x[:, (s + d) % S]; wrap-around entries are masked by caller.
        k = d % S
        if k == 0:
            return x
        if use_roll:
            # pltpu.roll follows the jnp.roll convention (verified by the probe
            # above): a positive shift moves elements toward higher indices, so
            # reading x[s + k] is a roll by S - k (runs on the XLU slot).
            return pltpu.roll(x, shift=S - k, axis=1)
        return jnp.concatenate([x[:, k:], x[:, :k]], axis=1)

    def kernel(w_ref, *refs):
        x_refs = refs[:num_inputs]
        col_ref, dw_ref, pw_ref, pwb_ref, out_ref = refs[num_inputs:]

        # ---- weighted feature fusion (normalized scalar weights in SMEM) ----
        fused = w_ref[0] * x_refs[0][0]
        for i in range(1, num_inputs):
            fused = fused + w_ref[i] * x_refs[i][0]

        # ---- Swish (VPU + EUP) ----
        act = fused * jax.nn.sigmoid(fused)                    # (C, S) f32

        # ---- depthwise 3x3, stride 1, zero pad 1 (shift + mask, no scratch) --
        pos = jax.lax.broadcasted_iota(jnp.int32, (1, S), 1)   # flat spatial idx
        col = col_ref[...]                                     # w coordinate (1, S)
        h_ok = {-1: pos >= W, 0: None, 1: pos < (H - 1) * W}
        w_ok = {-1: col >= 1, 0: None, 1: col <= W - 2}

        dw_all = dw_ref[...]                                   # (C, 9), loaded once
        acc = jnp.zeros_like(act)
        for ky in range(3):
            dy = ky - 1
            for kx in range(3):
                dx = kx - 1
                t = shift_spatial(act, dy * W + dx)
                mask = h_ok[dy]
                if w_ok[dx] is not None:
                    mask = w_ok[dx] if mask is None else jnp.logical_and(mask, w_ok[dx])
                if mask is not None:
                    t = jnp.where(mask, t, 0.0)
                tap = ky * 3 + kx
                acc = acc + t * dw_all[:, tap:tap + 1]

        # ---- pointwise 1x1 conv on the MXU + bias ----
        out = jnp.dot(pw_ref[...], acc, preferred_element_type=jnp.float32)
        out_ref[0] = (out + pwb_ref[...]).astype(out_ref.dtype)

    return kernel


def fuse_dsconv(fusion_w, inputs, conv_params):
    """One BiFPN node: weighted fusion + Swish + depthwise-separable conv."""
    B, C, H, W = inputs[0].shape
    S = H * W
    n = len(inputs)
    dw, pw, pwb = conv_params

    xs = [x.reshape(B, C, S) for x in inputs]
    col = jnp.tile(jnp.arange(W, dtype=jnp.int32), H).reshape(1, S)

    kernel = _make_fuse_dsconv_kernel(n, H, W)
    feat_spec = pl.BlockSpec((1, C, S), lambda b: (b, 0, 0))
    const2d = lambda b: (0, 0)

    out = pl.pallas_call(
        kernel,
        out_shape=jax.ShapeDtypeStruct((B, C, S), inputs[0].dtype),
        grid=(B,),
        in_specs=(
            [pl.BlockSpec(memory_space=pltpu.MemorySpace.SMEM)]   # fusion weights
            + [feat_spec] * n                                     # feature maps
            + [pl.BlockSpec((1, S), const2d),                     # w coordinates
               pl.BlockSpec((C, 9), const2d),                     # depthwise taps
               pl.BlockSpec((C, C), const2d),                     # pointwise weight
               pl.BlockSpec((C, 1), const2d)]                     # pointwise bias
        ),
        out_specs=pl.BlockSpec((1, C, S), lambda b: (b, 0, 0)),
        compiler_params=pltpu.CompilerParams(
            dimension_semantics=("parallel",)),
    )(fusion_w, *xs, col, dw, pw, pwb)
    return out.reshape(B, C, H, W)


# -----------------------------------------------------------------------------
# Plain-JAX glue (resampling + parameter prep)
# -----------------------------------------------------------------------------
def upsample2x(x):
    # nn.Upsample(scale_factor=2, mode='nearest') on NCHW.
    B, C, H, W = x.shape
    x = jnp.broadcast_to(x[:, :, :, None, :, None], (B, C, H, 2, W, 2))
    return x.reshape(B, C, 2 * H, 2 * W)


def maxpool3x3s2(x):
    # nn.MaxPool2d(kernel_size=3, stride=2, padding=1) on NCHW (-inf padding).
    return jax.lax.reduce_window(
        x, -jnp.inf, jax.lax.max,
        window_dimensions=(1, 1, 3, 3),
        window_strides=(1, 1, 2, 2),
        padding=((0, 0), (0, 0), (1, 1), (1, 1)),
    )


def _norm_fusion_weights(w_param, eps):
    w = jax.nn.relu(w_param)
    return w / (jnp.sum(w, axis=0) + eps)


def init_bifpn_params(num_features, key):
    """Deterministic synthetic parameters for the 8 depthwise-separable convs."""
    names = ["P6_1", "P5_1", "P4_1", "P3_2", "P4_2", "P5_2", "P6_2", "P7_2"]
    params = {}
    keys = jax.random.split(key, len(names) * 3)
    C = num_features
    for i, name in enumerate(names):
        kd, kp, kb = keys[3 * i], keys[3 * i + 1], keys[3 * i + 2]
        dw = 0.1 * jax.random.normal(kd, (C, 9), jnp.float32)      # 3x3 taps (row-major ky*3+kx)
        pw = 0.1 * jax.random.normal(kp, (C, C), jnp.float32)      # [out, in]
        pwb = 0.01 * jax.random.normal(kb, (C, 1), jnp.float32)
        params[name + "_conv"] = (dw, pw, pwb)
    for name, n in [("P6_1", 2), ("P5_1", 2), ("P4_1", 2), ("P3_2", 2),
                    ("P4_2", 3), ("P5_2", 3), ("P6_2", 3), ("P7_2", 2)]:
        params[name + "_weight"] = jnp.ones((n,), jnp.float32)
    return params


@jax.jit
def bifpn_layer_forward(p3, p4, p5, p6, p7, params):
    eps = 0.001

    def fw(name):
        return _norm_fusion_weights(params[name + "_weight"], eps)

    def cp(name):
        return params[name + "_conv"]

    # Top-down pathway (2-input fusions).
    P6_1 = fuse_dsconv(fw("P6_1"), [p6, upsample2x(p7)], cp("P6_1"))
    P5_1 = fuse_dsconv(fw("P5_1"), [p5, upsample2x(P6_1)], cp("P5_1"))
    P4_1 = fuse_dsconv(fw("P4_1"), [p4, upsample2x(P5_1)], cp("P4_1"))
    P3_2 = fuse_dsconv(fw("P3_2"), [p3, upsample2x(P4_1)], cp("P3_2"))

    # Bottom-up pathway (3-input fusions; P7_2 is a 2-input fusion).
    P4_2 = fuse_dsconv(fw("P4_2"), [p4, P4_1, maxpool3x3s2(P3_2)], cp("P4_2"))
    P5_2 = fuse_dsconv(fw("P5_2"), [p5, P5_1, maxpool3x3s2(P4_2)], cp("P5_2"))
    P6_2 = fuse_dsconv(fw("P6_2"), [p6, P6_1, maxpool3x3s2(P5_2)], cp("P6_2"))
    P7_2 = fuse_dsconv(fw("P7_2"), [p7, maxpool3x3s2(P6_2)], cp("P7_2"))

    return P3_2, P4_2, P5_2, P6_2, P7_2


# -----------------------------------------------------------------------------
# Demo
# -----------------------------------------------------------------------------
if __name__ == "__main__":
    B = 2
    NUM_FEATURES = 8
    LEVEL_SIZES = (32, 16, 8, 4, 2)

    # Probe the shift primitive for every pyramid level once, outside jit.
    for hw in LEVEL_SIZES:
        _roll_supported(hw * hw, _depthwise_shift_amounts(hw, hw))

    key = jax.random.PRNGKey(0)
    k3, k4, k5, k6, k7, kp = jax.random.split(key, 6)

    p3 = jax.random.normal(k3, (B, NUM_FEATURES, 32, 32), jnp.float32)
    p4 = jax.random.normal(k4, (B, NUM_FEATURES, 16, 16), jnp.float32)
    p5 = jax.random.normal(k5, (B, NUM_FEATURES, 8, 8), jnp.float32)
    p6 = jax.random.normal(k6, (B, NUM_FEATURES, 4, 4), jnp.float32)
    p7 = jax.random.normal(k7, (B, NUM_FEATURES, 2, 2), jnp.float32)

    params = init_bifpn_params(NUM_FEATURES, kp)

    outs = jax.block_until_ready(bifpn_layer_forward(p3, p4, p5, p6, p7, params))

    for o, ref in zip(outs, (p3, p4, p5, p6, p7)):
        assert o.shape == ref.shape, (o.shape, ref.shape)
        assert bool(jnp.all(jnp.isfinite(o)))

    print("KERNEL_OK")
</pallas_src>

<mosaic_0001>
module attributes {stable_mosaic.version = 11 : i64} {
  func.func @probe_kernel(%arg0: memref<8x1024xf32, #tpu.memory_space<vmem>>, %arg1: memref<8x8x1024xf32, #tpu.memory_space<vmem>>) attributes {dimension_semantics = [], scalar_prefetch = 0 : i64, scratch_operands = 0 : i64, tpu.core_type = #tpu.core_type<tc>} {
    %c0 = arith.constant 0 : index
    %c0_0 = arith.constant 0 : index
    %0 = vector.load %arg0[%c0, %c0_0] : memref<8x1024xf32, #tpu.memory_space<vmem>>, vector<8x1024xf32>
    %c1_i32 = arith.constant 1 : i32
    %1 = tpu.dynamic_rotate %0 by %c1_i32 dim 1 : vector<8x1024xf32>, i32 -> vector<8x1024xf32>
    %c0_1 = arith.constant 0 : index
    %c0_2 = arith.constant 0 : index
    %c0_3 = arith.constant 0 : index
    %2 = vector.load %arg1[%c0_1, %c0_2, %c0_3] : memref<8x8x1024xf32, #tpu.memory_space<vmem>>, vector<1x8x1024xf32>
    %3 = vector.shape_cast %2 : vector<1x8x1024xf32> to vector<8x1024xf32>
    %4 = vector.shape_cast %1 : vector<8x1024xf32> to vector<1x8x1024xf32>
    tpu.vector_store %arg1[%c0_1, %c0_2, %c0_3], %4 {strides = array<i32>} : memref<8x8x1024xf32, #tpu.memory_space<vmem>>, vector<1x8x1024xf32>,
    %c31_i32 = arith.constant 31 : i32
    %5 = tpu.dynamic_rotate %0 by %c31_i32 dim 1 : vector<8x1024xf32>, i32 -> vector<8x1024xf32>
    %c1 = arith.constant 1 : index
    %c0_4 = arith.constant 0 : index
    %c0_5 = arith.constant 0 : index
    %6 = vector.load %arg1[%c1, %c0_4, %c0_5] : memref<8x8x1024xf32, #tpu.memory_space<vmem>>, vector<1x8x1024xf32>
    %7 = vector.shape_cast %6 : vector<1x8x1024xf32> to vector<8x1024xf32>
    %8 = vector.shape_cast %5 : vector<8x1024xf32> to vector<1x8x1024xf32>
    tpu.vector_store %arg1[%c1, %c0_4, %c0_5], %8 {strides = array<i32>} : memref<8x8x1024xf32, #tpu.memory_space<vmem>>, vector<1x8x1024xf32>,
    %c32_i32 = arith.constant 32 : i32
    %9 = tpu.dynamic_rotate %0 by %c32_i32 dim 1 : vector<8x1024xf32>, i32 -> vector<8x1024xf32>
    %c2 = arith.constant 2 : index
    %c0_6 = arith.constant 0 : index
    %c0_7 = arith.constant 0 : index
    %10 = vector.load %arg1[%c2, %c0_6, %c0_7] : memref<8x8x1024xf32, #tpu.memory_space<vmem>>, vector<1x8x1024xf32>
    %11 = vector.shape_cast %10 : vector<1x8x1024xf32> to vector<8x1024xf32>
    %12 = vector.shape_cast %9 : vector<8x1024xf32> to vector<1x8x1024xf32>
    tpu.vector_store %arg1[%c2, %c0_6, %c0_7], %12 {strides = array<i32>} : memref<8x8x1024xf32, #tpu.memory_space<vmem>>, vector<1x8x1024xf32>,
    %c33_i32 = arith.constant 33 : i32
    %13 = tpu.dynamic_rotate %0 by %c33_i32 dim 1 : vector<8x1024xf32>, i32 -> vector<8x1024xf32>
    %c3 = arith.constant 3 : index
    %c0_8 = arith.constant 0 : index
    %c0_9 = arith.constant 0 : index
    %14 = vector.load %arg1[%c3, %c0_8, %c0_9] : memref<8x8x1024xf32, #tpu.memory_space<vmem>>, vector<1x8x1024xf32>
    %15 = vector.shape_cast %14 : vector<1x8x1024xf32> to vector<8x1024xf32>
    %16 = vector.shape_cast %13 : vector<8x1024xf32> to vector<1x8x1024xf32>
    tpu.vector_store %arg1[%c3, %c0_8, %c0_9], %16 {strides = array<i32>} : memref<8x8x1024xf32, #tpu.memory_space<vmem>>, vector<1x8x1024xf32>,
    %c991_i32 = arith.constant 991 : i32
    %17 = tpu.dynamic_rotate %0 by %c991_i32 dim 1 : vector<8x1024xf32>, i32 -> vector<8x1024xf32>
    %c4 = arith.constant 4 : index
    %c0_10 = arith.constant 0 : index
    %c0_11 = arith.constant 0 : index
    %18 = vector.load %arg1[%c4, %c0_10, %c0_11] : memref<8x8x1024xf32, #tpu.memory_space<vmem>>, vector<1x8x1024xf32>
    %19 = vector.shape_cast %18 : vector<1x8x1024xf32> to vector<8x1024xf32>
    %20 = vector.shape_cast %17 : vector<8x1024xf32> to vector<1x8x1024xf32>
    tpu.vector_store %arg1[%c4, %c0_10, %c0_11], %20 {strides = array<i32>} : memref<8x8x1024xf32, #tpu.memory_space<vmem>>, vector<1x8x1024xf32>,
    %c992_i32 = arith.constant 992 : i32
    %21 = tpu.dynamic_rotate %0 by %c992_i32 dim 1 : vector<8x1024xf32>, i32 -> vector<8x1024xf32>
    %c5 = arith.constant 5 : index
    %c0_12 = arith.constant 0 : index
    %c0_13 = arith.constant 0 : index
    %22 = vector.load %arg1[%c5, %c0_12, %c0_13] : memref<8x8x1024xf32, #tpu.memory_space<vmem>>, vector<1x8x1024xf32>
    %23 = vector.shape_cast %22 : vector<1x8x1024xf32> to vector<8x1024xf32>
    %24 = vector.shape_cast %21 : vector<8x1024xf32> to vector<1x8x1024xf32>
    tpu.vector_store %arg1[%c5, %c0_12, %c0_13], %24 {strides = array<i32>} : memref<8x8x1024xf32, #tpu.memory_space<vmem>>, vector<1x8x1024xf32>,
    %c993_i32 = arith.constant 993 : i32
    %25 = tpu.dynamic_rotate %0 by %c993_i32 dim 1 : vector<8x1024xf32>, i32 -> vector<8x1024xf32>
    %c6 = arith.constant 6 : index
    %c0_14 = arith.constant 0 : index
    %c0_15 = arith.constant 0 : index
    %26 = vector.load %arg1[%c6, %c0_14, %c0_15] : memref<8x8x1024xf32, #tpu.memory_space<vmem>>, vector<1x8x1024xf32>
    %27 = vector.shape_cast %26 : vector<1x8x1024xf32> to vector<8x1024xf32>
    %28 = vector.shape_cast %25 : vector<8x1024xf32> to vector<1x8x1024xf32>
    tpu.vector_store %arg1[%c6, %c0_14, %c0_15], %28 {strides = array<i32>} : memref<8x8x1024xf32, #tpu.memory_space<vmem>>, vector<1x8x1024xf32>,
    %c1023_i32 = arith.constant 1023 : i32
    %29 = tpu.dynamic_rotate %0 by %c1023_i32 dim 1 : vector<8x1024xf32>, i32 -> vector<8x1024xf32>
    %c7 = arith.constant 7 : index
    %c0_16 = arith.constant 0 : index
    %c0_17 = arith.constant 0 : index
    %30 = vector.load %arg1[%c7, %c0_16, %c0_17] : memref<8x8x1024xf32, #tpu.memory_space<vmem>>, vector<1x8x1024xf32>
    %31 = vector.shape_cast %30 : vector<1x8x1024xf32> to vector<8x1024xf32>
    %32 = vector.shape_cast %29 : vector<8x1024xf32> to vector<1x8x1024xf32>
    tpu.vector_store %arg1[%c7, %c0_16, %c0_17], %32 {strides = array<i32>} : memref<8x8x1024xf32, #tpu.memory_space<vmem>>, vector<1x8x1024xf32>,
    return
  }
}

module attributes {stable_mosaic.version = 11 : i64} {
  func.func @probe_kernel(%arg0: memref<8x256xf32, #tpu.memory_space<vmem>>, %arg1: memref<8x8x256xf32, #tpu.memory_space<vmem>>) attributes {dimension_semantics = [], scalar_prefetch = 0 : i64, scratch_operands = 0 : i64, tpu.core_type = #tpu.core_type<tc>} {
    %c0 = arith.constant 0 : index
    %c0_0 = arith.constant 0 : index
    %0 = vector.load %arg0[%c0, %c0_0] : memref<8x256xf32, #tpu.memory_space<vmem>>, vector<8x256xf32>
    %c1_i32 = arith.constant 1 : i32
    %1 = tpu.dynamic_rotate %0 by %c1_i32 dim 1 : vector<8x256xf32>, i32 -> vector<8x256xf32>
    %c0_1 = arith.constant 0 : index
    %c0_2 = arith.constant 0 : index
    %c0_3 = arith.constant 0 : index
    %2 = vector.load %arg1[%c0_1, %c0_2, %c0_3] : memref<8x8x256xf32, #tpu.memory_space<vmem>>, vector<1x8x256xf32>
    %3 = vector.shape_cast %2 : vector<1x8x256xf32> to vector<8x256xf32>
    %4 = vector.shape_cast %1 : vector<8x256xf32> to vector<1x8x256xf32>
    tpu.vector_store %arg1[%c0_1, %c0_2, %c0_3], %4 {strides = array<i32>} : memref<8x8x256xf32, #tpu.memory_space<vmem>>, vector<1x8x256xf32>,
    %c15_i32 = arith.constant 15 : i32
    %5 = tpu.dynamic_rotate %0 by %c15_i32 dim 1 : vector<8x256xf32>, i32 -> vector<8x256xf32>
    %c1 = arith.constant 1 : index
    %c0_4 = arith.constant 0 : index
    %c0_5 = arith.constant 0 : index
    %6 = vector.load %arg1[%c1, %c0_4, %c0_5] : memref<8x8x256xf32, #tpu.memory_space<vmem>>, vector<1x8x256xf32>
    %7 = vector.shape_cast %6 : vector<1x8x256xf32> to vector<8x256xf32>
    %8 = vector.shape_cast %5 : vector<8x256xf32> to vector<1x8x256xf32>
    tpu.vector_store %arg1[%c1, %c0_4, %c0_5], %8 {strides = array<i32>} : memref<8x8x256xf32, #tpu.memory_space<vmem>>, vector<1x8x256xf32>,
    %c16_i32 = arith.constant 16 : i32
    %9 = tpu.dynamic_rotate %0 by %c16_i32 dim 1 : vector<8x256xf32>, i32 -> vector<8x256xf32>
    %c2 = arith.constant 2 : index
    %c0_6 = arith.constant 0 : index
    %c0_7 = arith.constant 0 : index
    %10 = vector.load %arg1[%c2, %c0_6, %c0_7] : memref<8x8x256xf32, #tpu.memory_space<vmem>>, vector<1x8x256xf32>
    %11 = vector.shape_cast %10 : vector<1x8x256xf32> to vector<8x256xf32>
    %12 = vector.shape_cast %9 : vector<8x256xf32> to vector<1x8x256xf32>
    tpu.vector_store %arg1[%c2, %c0_6, %c0_7], %12 {strides = array<i32>} : memref<8x8x256xf32, #tpu.memory_space<vmem>>, vector<1x8x256xf32>,
    %c17_i32 = arith.constant 17 : i32
    %13 = tpu.dynamic_rotate %0 by %c17_i32 dim 1 : vector<8x256xf32>, i32 -> vector<8x256xf32>
    %c3 = arith.constant 3 : index
    %c0_8 = arith.constant 0 : index
    %c0_9 = arith.constant 0 : index
    %14 = vector.load %arg1[%c3, %c0_8, %c0_9] : memref<8x8x256xf32, #tpu.memory_space<vmem>>, vector<1x8x256xf32>
    %15 = vector.shape_cast %14 : vector<1x8x256xf32> to vector<8x256xf32>
    %16 = vector.shape_cast %13 : vector<8x256xf32> to vector<1x8x256xf32>
    tpu.vector_store %arg1[%c3, %c0_8, %c0_9], %16 {strides = array<i32>} : memref<8x8x256xf32, #tpu.memory_space<vmem>>, vector<1x8x256xf32>,
    %c239_i32 = arith.constant 239 : i32
    %17 = tpu.dynamic_rotate %0 by %c239_i32 dim 1 : vector<8x256xf32>, i32 -> vector<8x256xf32>
    %c4 = arith.constant 4 : index
    %c0_10 = arith.constant 0 : index
    %c0_11 = arith.constant 0 : index
    %18 = vector.load %arg1[%c4, %c0_10, %c0_11] : memref<8x8x256xf32, #tpu.memory_space<vmem>>, vector<1x8x256xf32>
    %19 = vector.shape_cast %18 : vector<1x8x256xf32> to vector<8x256xf32>
    %20 = vector.shape_cast %17 : vector<8x256xf32> to vector<1x8x256xf32>
    tpu.vector_store %arg1[%c4, %c0_10, %c0_11], %20 {strides = array<i32>} : memref<8x8x256xf32, #tpu.memory_space<vmem>>, vector<1x8x256xf32>,
    %c240_i32 = arith.constant 240 : i32
    %21 = tpu.dynamic_rotate %0 by %c240_i32 dim 1 : vector<8x256xf32>, i32 -> vector<8x256xf32>
    %c5 = arith.constant 5 : index
    %c0_12 = arith.constant 0 : index
    %c0_13 = arith.constant 0 : index
    %22 = vector.load %arg1[%c5, %c0_12, %c0_13] : memref<8x8x256xf32, #tpu.memory_space<vmem>>, vector<1x8x256xf32>
    %23 = vector.shape_cast %22 : vector<1x8x256xf32> to vector<8x256xf32>
    %24 = vector.shape_cast %21 : vector<8x256xf32> to vector<1x8x256xf32>
    tpu.vector_store %arg1[%c5, %c0_12, %c0_13], %24 {strides = array<i32>} : memref<8x8x256xf32, #tpu.memory_space<vmem>>, vector<1x8x256xf32>,
    %c241_i32 = arith.constant 241 : i32
    %25 = tpu.dynamic_rotate %0 by %c241_i32 dim 1 : vector<8x256xf32>, i32 -> vector<8x256xf32>
    %c6 = arith.constant 6 : index
    %c0_14 = arith.constant 0 : index
    %c0_15 = arith.constant 0 : index
    %26 = vector.load %arg1[%c6, %c0_14, %c0_15] : memref<8x8x256xf32, #tpu.memory_space<vmem>>, vector<1x8x256xf32>
    %27 = vector.shape_cast %26 : vector<1x8x256xf32> to vector<8x256xf32>
    %28 = vector.shape_cast %25 : vector<8x256xf32> to vector<1x8x256xf32>
    tpu.vector_store %arg1[%c6, %c0_14, %c0_15], %28 {strides = array<i32>} : memref<8x8x256xf32, #tpu.memory_space<vmem>>, vector<1x8x256xf32>,
    %c255_i32 = arith.constant 255 : i32
    %29 = tpu.dynamic_rotate %0 by %c255_i32 dim 1 : vector<8x256xf32>, i32 -> vector<8x256xf32>
    %c7 = arith.constant 7 : index
    %c0_16 = arith.constant 0 : index
    %c0_17 = arith.constant 0 : index
    %30 = vector.load %arg1[%c7, %c0_16, %c0_17] : memref<8x8x256xf32, #tpu.memory_space<vmem>>, vector<1x8x256xf32>
    %31 = vector.shape_cast %30 : vector<1x8x256xf32> to vector<8x256xf32>
    %32 = vector.shape_cast %29 : vector<8x256xf32> to vector<1x8x256xf32>
    tpu.vector_store %arg1[%c7, %c0_16, %c0_17], %32 {strides = array<i32>} : memref<8x8x256xf32, #tpu.memory_space<vmem>>, vector<1x8x256xf32>,
    return
  }
}

module attributes {stable_mosaic.version = 11 : i64} {
  func.func @probe_kernel(%arg0: memref<8x64xf32, #tpu.memory_space<vmem>>, %arg1: memref<8x8x64xf32, #tpu.memory_space<vmem>>) attributes {dimension_semantics = [], scalar_prefetch = 0 : i64, scratch_operands = 0 : i64, tpu.core_type = #tpu.core_type<tc>} {
    %c0 = arith.constant 0 : index
    %c0_0 = arith.constant 0 : index
    %0 = vector.load %arg0[%c0, %c0_0] : memref<8x64xf32, #tpu.memory_space<vmem>>, vector<8x64xf32>
    %c1_i32 = arith.constant 1 : i32
    %1 = tpu.dynamic_rotate %0 by %c1_i32 dim 1 : vector<8x64xf32>, i32 -> vector<8x64xf32>
    %c0_1 = arith.constant 0 : index
    %c0_2 = arith.constant 0 : index
    %c0_3 = arith.constant 0 : index
    %2 = vector.load %arg1[%c0_1, %c0_2, %c0_3] : memref<8x8x64xf32, #tpu.memory_space<vmem>>, vector<1x8x64xf32>
    %3 = vector.shape_cast %2 : vector<1x8x64xf32> to vector<8x64xf32>
    %4 = vector.shape_cast %1 : vector<8x64xf32> to vector<1x8x64xf32>
    tpu.vector_store %arg1[%c0_1, %c0_2, %c0_3], %4 {strides = array<i32>} : memref<8x8x64xf32, #tpu.memory_space<vmem>>, vector<1x8x64xf32>,
    %c7_i32 = arith.constant 7 : i32
    %5 = tpu.dynamic_rotate %0 by %c7_i32 dim 1 : vector<8x64xf32>, i32 -> vector<8x64xf32>
    %c1 = arith.constant 1 : index
    %c0_4 = arith.constant 0 : index
    %c0_5 = arith.constant 0 : index
    %6 = vector.load %arg1[%c1, %c0_4, %c0_5] : memref<8x8x64xf32, #tpu.memory_space<vmem>>, vector<1x8x64xf32>
    %7 = vector.shape_cast %6 : vector<1x8x64xf32> to vector<8x64xf32>
    %8 = vector.shape_cast %5 : vector<8x64xf32> to vector<1x8x64xf32>
    tpu.vector_store %arg1[%c1, %c0_4, %c0_5], %8 {strides = array<i32>} : memref<8x8x64xf32, #tpu.memory_space<vmem>>, vector<1x8x64xf32>,
    %c8_i32 = arith.constant 8 : i32
    %9 = tpu.dynamic_rotate %0 by %c8_i32 dim 1 : vector<8x64xf32>, i32 -> vector<8x64xf32>
    %c2 = arith.constant 2 : index
    %c0_6 = arith.constant 0 : index
    %c0_7 = arith.constant 0 : index
    %10 = vector.load %arg1[%c2, %c0_6, %c0_7] : memref<8x8x64xf32, #tpu.memory_space<vmem>>, vector<1x8x64xf32>
    %11 = vector.shape_cast %10 : vector<1x8x64xf32> to vector<8x64xf32>
    %12 = vector.shape_cast %9 : vector<8x64xf32> to vector<1x8x64xf32>
    tpu.vector_store %arg1[%c2, %c0_6, %c0_7], %12 {strides = array<i32>} : memref<8x8x64xf32, #tpu.memory_space<vmem>>, vector<1x8x64xf32>,
    %c9_i32 = arith.constant 9 : i32
    %13 = tpu.dynamic_rotate %0 by %c9_i32 dim 1 : vector<8x64xf32>, i32 -> vector<8x64xf32>
    %c3 = arith.constant 3 : index
    %c0_8 = arith.constant 0 : index
    %c0_9 = arith.constant 0 : index
    %14 = vector.load %arg1[%c3, %c0_8, %c0_9] : memref<8x8x64xf32, #tpu.memory_space<vmem>>, vector<1x8x64xf32>
    %15 = vector.shape_cast %14 : vector<1x8x64xf32> to vector<8x64xf32>
    %16 = vector.shape_cast %13 : vector<8x64xf32> to vector<1x8x64xf32>
    tpu.vector_store %arg1[%c3, %c0_8, %c0_9], %16 {strides = array<i32>} : memref<8x8x64xf32, #tpu.memory_space<vmem>>, vector<1x8x64xf32>,
    %c55_i32 = arith.constant 55 : i32
    %17 = tpu.dynamic_rotate %0 by %c55_i32 dim 1 : vector<8x64xf32>, i32 -> vector<8x64xf32>
    %c4 = arith.constant 4 : index
    %c0_10 = arith.constant 0 : index
    %c0_11 = arith.constant 0 : index
    %18 = vector.load %arg1[%c4, %c0_10, %c0_11] : memref<8x8x64xf32, #tpu.memory_space<vmem>>, vector<1x8x64xf32>
    %19 = vector.shape_cast %18 : vector<1x8x64xf32> to vector<8x64xf32>
    %20 = vector.shape_cast %17 : vector<8x64xf32> to vector<1x8x64xf32>
    tpu.vector_store %arg1[%c4, %c0_10, %c0_11], %20 {strides = array<i32>} : memref<8x8x64xf32, #tpu.memory_space<vmem>>, vector<1x8x64xf32>,
    %c56_i32 = arith.constant 56 : i32
    %21 = tpu.dynamic_rotate %0 by %c56_i32 dim 1 : vector<8x64xf32>, i32 -> vector<8x64xf32>
    %c5 = arith.constant 5 : index
    %c0_12 = arith.constant 0 : index
    %c0_13 = arith.constant 0 : index
    %22 = vector.load %arg1[%c5, %c0_12, %c0_13] : memref<8x8x64xf32, #tpu.memory_space<vmem>>, vector<1x8x64xf32>
    %23 = vector.shape_cast %22 : vector<1x8x64xf32> to vector<8x64xf32>
    %24 = vector.shape_cast %21 : vector<8x64xf32> to vector<1x8x64xf32>
    tpu.vector_store %arg1[%c5, %c0_12, %c0_13], %24 {strides = array<i32>} : memref<8x8x64xf32, #tpu.memory_space<vmem>>, vector<1x8x64xf32>,
    %c57_i32 = arith.constant 57 : i32
    %25 = tpu.dynamic_rotate %0 by %c57_i32 dim 1 : vector<8x64xf32>, i32 -> vector<8x64xf32>
    %c6 = arith.constant 6 : index
    %c0_14 = arith.constant 0 : index
    %c0_15 = arith.constant 0 : index
    %26 = vector.load %arg1[%c6, %c0_14, %c0_15] : memref<8x8x64xf32, #tpu.memory_space<vmem>>, vector<1x8x64xf32>
    %27 = vector.shape_cast %26 : vector<1x8x64xf32> to vector<8x64xf32>
    %28 = vector.shape_cast %25 : vector<8x64xf32> to vector<1x8x64xf32>
    tpu.vector_store %arg1[%c6, %c0_14, %c0_15], %28 {strides = array<i32>} : memref<8x8x64xf32, #tpu.memory_space<vmem>>, vector<1x8x64xf32>,
    %c63_i32 = arith.constant 63 : i32
    %29 = tpu.dynamic_rotate %0 by %c63_i32 dim 1 : vector<8x64xf32>, i32 -> vector<8x64xf32>
    %c7 = arith.constant 7 : index
    %c0_16 = arith.constant 0 : index
    %c0_17 = arith.constant 0 : index
    %30 = vector.load %arg1[%c7, %c0_16, %c0_17] : memref<8x8x64xf32, #tpu.memory_space<vmem>>, vector<1x8x64xf32>
    %31 = vector.shape_cast %30 : vector<1x8x64xf32> to vector<8x64xf32>
    %32 = vector.shape_cast %29 : vector<8x64xf32> to vector<1x8x64xf32>
    tpu.vector_store %arg1[%c7, %c0_16, %c0_17], %32 {strides = array<i32>} : memref<8x8x64xf32, #tpu.memory_space<vmem>>, vector<1x8x64xf32>,
    return
  }
}

module attributes {stable_mosaic.version = 11 : i64} {
  func.func @probe_kernel(%arg0: memref<8x16xf32, #tpu.memory_space<vmem>>, %arg1: memref<8x8x16xf32, #tpu.memory_space<vmem>>) attributes {dimension_semantics = [], scalar_prefetch = 0 : i64, scratch_operands = 0 : i64, tpu.core_type = #tpu.core_type<tc>} {
    %c0 = arith.constant 0 : index
    %c0_0 = arith.constant 0 : index
    %0 = vector.load %arg0[%c0, %c0_0] : memref<8x16xf32, #tpu.memory_space<vmem>>, vector<8x16xf32>
    %c1_i32 = arith.constant 1 : i32
    %1 = tpu.dynamic_rotate %0 by %c1_i32 dim 1 : vector<8x16xf32>, i32 -> vector<8x16xf32>
    %c0_1 = arith.constant 0 : index
    %c0_2 = arith.constant 0 : index
    %c0_3 = arith.constant 0 : index
    %2 = vector.load %arg1[%c0_1, %c0_2, %c0_3] : memref<8x8x16xf32, #tpu.memory_space<vmem>>, vector<1x8x16xf32>
    %3 = vector.shape_cast %2 : vector<1x8x16xf32> to vector<8x16xf32>
    %4 = vector.shape_cast %1 : vector<8x16xf32> to vector<1x8x16xf32>
    tpu.vector_store %arg1[%c0_1, %c0_2, %c0_3], %4 {strides = array<i32>} : memref<8x8x16xf32, #tpu.memory_space<vmem>>, vector<1x8x16xf32>,
    %c3_i32 = arith.constant 3 : i32
    %5 = tpu.dynamic_rotate %0 by %c3_i32 dim 1 : vector<8x16xf32>, i32 -> vector<8x16xf32>
    %c1 = arith.constant 1 : index
    %c0_4 = arith.constant 0 : index
    %c0_5 = arith.constant 0 : index
    %6 = vector.load %arg1[%c1, %c0_4, %c0_5] : memref<8x8x16xf32, #tpu.memory_space<vmem>>, vector<1x8x16xf32>
    %7 = vector.shape_cast %6 : vector<1x8x16xf32> to vector<8x16xf32>
    %8 = vector.shape_cast %5 : vector<8x16xf32> to vector<1x8x16xf32>
    tpu.vector_store %arg1[%c1, %c0_4, %c0_5], %8 {strides = array<i32>} : memref<8x8x16xf32, #tpu.memory_space<vmem>>, vector<1x8x16xf32>,
    %c4_i32 = arith.constant 4 : i32
    %9 = tpu.dynamic_rotate %0 by %c4_i32 dim 1 : vector<8x16xf32>, i32 -> vector<8x16xf32>
    %c2 = arith.constant 2 : index
    %c0_6 = arith.constant 0 : index
    %c0_7 = arith.constant 0 : index
    %10 = vector.load %arg1[%c2, %c0_6, %c0_7] : memref<8x8x16xf32, #tpu.memory_space<vmem>>, vector<1x8x16xf32>
    %11 = vector.shape_cast %10 : vector<1x8x16xf32> to vector<8x16xf32>
    %12 = vector.shape_cast %9 : vector<8x16xf32> to vector<1x8x16xf32>
    tpu.vector_store %arg1[%c2, %c0_6, %c0_7], %12 {strides = array<i32>} : memref<8x8x16xf32, #tpu.memory_space<vmem>>, vector<1x8x16xf32>,
    %c5_i32 = arith.constant 5 : i32
    %13 = tpu.dynamic_rotate %0 by %c5_i32 dim 1 : vector<8x16xf32>, i32 -> vector<8x16xf32>
    %c3 = arith.constant 3 : index
    %c0_8 = arith.constant 0 : index
    %c0_9 = arith.constant 0 : index
    %14 = vector.load %arg1[%c3, %c0_8, %c0_9] : memref<8x8x16xf32, #tpu.memory_space<vmem>>, vector<1x8x16xf32>
    %15 = vector.shape_cast %14 : vector<1x8x16xf32> to vector<8x16xf32>
    %16 = vector.shape_cast %13 : vector<8x16xf32> to vector<1x8x16xf32>
    tpu.vector_store %arg1[%c3, %c0_8, %c0_9], %16 {strides = array<i32>} : memref<8x8x16xf32, #tpu.memory_space<vmem>>, vector<1x8x16xf32>,
    %c11_i32 = arith.constant 11 : i32
    %17 = tpu.dynamic_rotate %0 by %c11_i32 dim 1 : vector<8x16xf32>, i32 -> vector<8x16xf32>
    %c4 = arith.constant 4 : index
    %c0_10 = arith.constant 0 : index
    %c0_11 = arith.constant 0 : index
    %18 = vector.load %arg1[%c4, %c0_10, %c0_11] : memref<8x8x16xf32, #tpu.memory_space<vmem>>, vector<1x8x16xf32>
    %19 = vector.shape_cast %18 : vector<1x8x16xf32> to vector<8x16xf32>
    %20 = vector.shape_cast %17 : vector<8x16xf32> to vector<1x8x16xf32>
    tpu.vector_store %arg1[%c4, %c0_10, %c0_11], %20 {strides = array<i32>} : memref<8x8x16xf32, #tpu.memory_space<vmem>>, vector<1x8x16xf32>,
    %c12_i32 = arith.constant 12 : i32
    %21 = tpu.dynamic_rotate %0 by %c12_i32 dim 1 : vector<8x16xf32>, i32 -> vector<8x16xf32>
    %c5 = arith.constant 5 : index
    %c0_12 = arith.constant 0 : index
    %c0_13 = arith.constant 0 : index
    %22 = vector.load %arg1[%c5, %c0_12, %c0_13] : memref<8x8x16xf32, #tpu.memory_space<vmem>>, vector<1x8x16xf32>
    %23 = vector.shape_cast %22 : vector<1x8x16xf32> to vector<8x16xf32>
    %24 = vector.shape_cast %21 : vector<8x16xf32> to vector<1x8x16xf32>
    tpu.vector_store %arg1[%c5, %c0_12, %c0_13], %24 {strides = array<i32>} : memref<8x8x16xf32, #tpu.memory_space<vmem>>, vector<1x8x16xf32>,
    %c13_i32 = arith.constant 13 : i32
    %25 = tpu.dynamic_rotate %0 by %c13_i32 dim 1 : vector<8x16xf32>, i32 -> vector<8x16xf32>
    %c6 = arith.constant 6 : index
    %c0_14 = arith.constant 0 : index
    %c0_15 = arith.constant 0 : index
    %26 = vector.load %arg1[%c6, %c0_14, %c0_15] : memref<8x8x16xf32, #tpu.memory_space<vmem>>, vector<1x8x16xf32>
    %27 = vector.shape_cast %26 : vector<1x8x16xf32> to vector<8x16xf32>
    %28 = vector.shape_cast %25 : vector<8x16xf32> to vector<1x8x16xf32>
    tpu.vector_store %arg1[%c6, %c0_14, %c0_15], %28 {strides = array<i32>} : memref<8x8x16xf32, #tpu.memory_space<vmem>>, vector<1x8x16xf32>,
    %c15_i32 = arith.constant 15 : i32
    %29 = tpu.dynamic_rotate %0 by %c15_i32 dim 1 : vector<8x16xf32>, i32 -> vector<8x16xf32>
    %c7 = arith.constant 7 : index
    %c0_16 = arith.constant 0 : index
    %c0_17 = arith.constant 0 : index
    %30 = vector.load %arg1[%c7, %c0_16, %c0_17] : memref<8x8x16xf32, #tpu.memory_space<vmem>>, vector<1x8x16xf32>
    %31 = vector.shape_cast %30 : vector<1x8x16xf32> to vector<8x16xf32>
    %32 = vector.shape_cast %29 : vector<8x16xf32> to vector<1x8x16xf32>
    tpu.vector_store %arg1[%c7, %c0_16, %c0_17], %32 {strides = array<i32>} : memref<8x8x16xf32, #tpu.memory_space<vmem>>, vector<1x8x16xf32>,
    return
  }
}

module attributes {stable_mosaic.version = 11 : i64} {
  func.func @probe_kernel(%arg0: memref<8x4xf32, #tpu.memory_space<vmem>>, %arg1: memref<3x8x4xf32, #tpu.memory_space<vmem>>) attributes {dimension_semantics = [], scalar_prefetch = 0 : i64, scratch_operands = 0 : i64, tpu.core_type = #tpu.core_type<tc>} {
    %c0 = arith.constant 0 : index
    %c0_0 = arith.constant 0 : index
    %0 = vector.load %arg0[%c0, %c0_0] : memref<8x4xf32, #tpu.memory_space<vmem>>, vector<8x4xf32>
    %c1_i32 = arith.constant 1 : i32
    %1 = tpu.dynamic_rotate %0 by %c1_i32 dim 1 : vector<8x4xf32>, i32 -> vector<8x4xf32>
    %c0_1 = arith.constant 0 : index
    %c0_2 = arith.constant 0 : index
    %c0_3 = arith.constant 0 : index
    %2 = vector.load %arg1[%c0_1, %c0_2, %c0_3] : memref<3x8x4xf32, #tpu.memory_space<vmem>>, vector<1x8x4xf32>
    %3 = vector.shape_cast %2 : vector<1x8x4xf32> to vector<8x4xf32>
    %4 = vector.shape_cast %1 : vector<8x4xf32> to vector<1x8x4xf32>
    tpu.vector_store %arg1[%c0_1, %c0_2, %c0_3], %4 {strides = array<i32>} : memref<3x8x4xf32, #tpu.memory_space<vmem>>, vector<1x8x4xf32>,
    %c2_i32 = arith.constant 2 : i32
    %5 = tpu.dynamic_rotate %0 by %c2_i32 dim 1 : vector<8x4xf32>, i32 -> vector<8x4xf32>
    %c1 = arith.constant 1 : index
    %c0_4 = arith.constant 0 : index
    %c0_5 = arith.constant 0 : index
    %6 = vector.load %arg1[%c1, %c0_4, %c0_5] : memref<3x8x4xf32, #tpu.memory_space<vmem>>, vector<1x8x4xf32>
    %7 = vector.shape_cast %6 : vector<1x8x4xf32> to vector<8x4xf32>
    %8 = vector.shape_cast %5 : vector<8x4xf32> to vector<1x8x4xf32>
    tpu.vector_store %arg1[%c1, %c0_4, %c0_5], %8 {strides = array<i32>} : memref<3x8x4xf32, #tpu.memory_space<vmem>>, vector<1x8x4xf32>,
    %c3_i32 = arith.constant 3 : i32
    %9 = tpu.dynamic_rotate %0 by %c3_i32 dim 1 : vector<8x4xf32>, i32 -> vector<8x4xf32>
    %c2 = arith.constant 2 : index
    %c0_6 = arith.constant 0 : index
    %c0_7 = arith.constant 0 : index
    %10 = vector.load %arg1[%c2, %c0_6, %c0_7] : memref<3x8x4xf32, #tpu.memory_space<vmem>>, vector<1x8x4xf32>
    %11 = vector.shape_cast %10 : vector<1x8x4xf32> to vector<8x4xf32>
    %12 = vector.shape_cast %9 : vector<8x4xf32> to vector<1x8x4xf32>
    tpu.vector_store %arg1[%c2, %c0_6, %c0_7], %12 {strides = array<i32>} : memref<3x8x4xf32, #tpu.memory_space<vmem>>, vector<1x8x4xf32>,
    return
  }
}

module attributes {stable_mosaic.version = 11 : i64} {
  func.func @kernel(%arg0: i32, %arg1: memref<2xf32, #tpu.memory_space<smem>>, %arg2: memref<1x8x16xf32, #tpu.memory_space<vmem>>, %arg3: memref<1x8x16xf32, #tpu.memory_space<vmem>>, %arg4: memref<1x16xi32, #tpu.memory_space<vmem>>, %arg5: memref<8x9xf32, #tpu.memory_space<vmem>>, %arg6: memref<8x8xf32, #tpu.memory_space<vmem>>, %arg7: memref<8x1xf32, #tpu.memory_space<vmem>>, %arg8: memref<1x8x16xf32, #tpu.memory_space<vmem>>) attributes {dimension_semantics = [#tpu.dimension_semantics<parallel>], iteration_bounds = array<i64: 2>, scalar_prefetch = 0 : i64, scratch_operands = 0 : i64, tpu.core_type = #tpu.core_type<tc>, window_params = [{transform_indices = @transform_0, window_bounds = array<i64: 2>}, {transform_indices = @transform_1, window_bounds = array<i64: 1, 8, 16>}, {transform_indices = @transform_2, window_bounds = array<i64: 1, 8, 16>}, {pipeline_mode = #tpu.pipeline_mode<synchronous>, transform_indices = @transform_3, window_bounds = array<i64: 1, 16>}, {pipeline_mode = #tpu.pipeline_mode<synchronous>, transform_indices = @transform_4, window_bounds = array<i64: 8, 9>}, {pipeline_mode = #tpu.pipeline_mode<synchronous>, transform_indices = @transform_5, window_bounds = array<i64: 8, 8>}, {pipeline_mode = #tpu.pipeline_mode<synchronous>, transform_indices = @transform_6, window_bounds = array<i64: 8, 1>}, {transform_indices = @transform_7, window_bounds = array<i64: 1, 8, 16>}]} {
    %c0 = arith.constant 0 : index
    %0 = memref.load %arg1[%c0] : memref<2xf32, #tpu.memory_space<smem>>
    %c0_0 = arith.constant 0 : index
    %c0_1 = arith.constant 0 : index
    %c0_2 = arith.constant 0 : index
    %1 = vector.load %arg2[%c0_0, %c0_1, %c0_2] : memref<1x8x16xf32, #tpu.memory_space<vmem>>, vector<1x8x16xf32>
    %2 = vector.shape_cast %1 : vector<1x8x16xf32> to vector<8x16xf32>
    %3 = vector.broadcast %0 : f32 to vector<8x16xf32>
    %4 = arith.mulf %3, %2 : vector<8x16xf32>
    %c1 = arith.constant 1 : index
    %5 = memref.load %arg1[%c1] : memref<2xf32, #tpu.memory_space<smem>>
    %c0_3 = arith.constant 0 : index
    %c0_4 = arith.constant 0 : index
    %c0_5 = arith.constant 0 : index
    %6 = vector.load %arg3[%c0_3, %c0_4, %c0_5] : memref<1x8x16xf32, #tpu.memory_space<vmem>>, vector<1x8x16xf32>
    %7 = vector.shape_cast %6 : vector<1x8x16xf32> to vector<8x16xf32>
    %8 = vector.broadcast %5 : f32 to vector<8x16xf32>
    %9 = arith.mulf %8, %7 : vector<8x16xf32>
    %10 = arith.addf %4, %9 : vector<8x16xf32>
    %11 = arith.negf %10 : vector<8x16xf32>
    %12 = math.exp %11 : vector<8x16xf32>
    %cst = arith.constant 1.000000e+00 : f32
    %13 = vector.broadcast %cst : f32 to vector<8x16xf32>
    %14 = arith.addf %13, %12 : vector<8x16xf32>
    %15 = arith.divf %13, %14 : vector<8x16xf32>
    %16 = arith.mulf %10, %15 : vector<8x16xf32>
    %17 = tpu.iota {dimensions = array<i32: 1>} : vector<1x16xi32>
    %c0_6 = arith.constant 0 : index
    %c0_7 = arith.constant 0 : index
    %18 = vector.load %arg4[%c0_6, %c0_7] : memref<1x16xi32, #tpu.memory_space<vmem>>, vector<1x16xi32>
    %c4_i32 = arith.constant 4 : i32
    %19 = vector.broadcast %c4_i32 : i32 to vector<1x16xi32>
    %20 = arith.cmpi sge, %17, %19 : vector<1x16xi32>
    %c12_i32 = arith.constant 12 : i32
    %21 = vector.broadcast %c12_i32 : i32 to vector<1x16xi32>
    %22 = arith.cmpi slt, %17, %21 : vector<1x16xi32>
    %c1_i32 = arith.constant 1 : i32
    %23 = vector.broadcast %c1_i32 : i32 to vector<1x16xi32>
    %24 = arith.cmpi sge, %18, %23 : vector<1x16xi32>
    %c2_i32 = arith.constant 2 : i32
    %25 = vector.broadcast %c2_i32 : i32 to vector<1x16xi32>
    %26 = arith.cmpi sle, %18, %25 : vector<1x16xi32>
    %c0_8 = arith.constant 0 : index
    %c0_9 = arith.constant 0 : index
    %27 = vector.load %arg5[%c0_8, %c0_9] : memref<8x9xf32, #tpu.memory_space<vmem>>, vector<8x9xf32>
    %cst_10 = arith.constant 0.000000e+00 : f32
    %28 = vector.broadcast %cst_10 : f32 to vector<8x16xf32>
    %29 = vector.extract_strided_slice %16 {offsets = [0, 11], sizes = [8, 5], strides = [1, 1]} : vector<8x16xf32> to vector<8x5xf32>
    %30 = vector.extract_strided_slice %16 {offsets = [0, 0], sizes = [8, 11], strides = [1, 1]} : vector<8x16xf32> to vector<8x11xf32>
    %31 = tpu.concatenate %29, %30 in 1 : vector<8x5xf32>, vector<8x11xf32> -> vector<8x16xf32>
    %32 = arith.andi %20, %24 : vector<1x16xi1>
    %cst_11 = arith.constant 0.000000e+00 : f32
    %33 = vector.shape_cast %32 : vector<1x16xi1> to vector<1x16xi1>
    %34 = vector.broadcast %33 : vector<1x16xi1> to vector<8x16xi1>
    %35 = vector.broadcast %cst_11 : f32 to vector<8x16xf32>
    %36 = arith.select %34, %31, %35 : vector<8x16xi1>, vector<8x16xf32>
    %37 = vector.extract_strided_slice %27 {offsets = [0, 0], sizes = [8, 1], strides = [1, 1]} : vector<8x9xf32> to vector<8x1xf32>
    %38 = vector.broadcast %37 : vector<8x1xf32> to vector<8x16xf32>
    %39 = arith.mulf %36, %38 : vector<8x16xf32>
    %40 = arith.addf %28, %39 : vector<8x16xf32>
    %41 = vector.extract_strided_slice %16 {offsets = [0, 12], sizes = [8, 4], strides = [1, 1]} : vector<8x16xf32> to vector<8x4xf32>
    %42 = vector.extract_strided_slice %16 {offsets = [0, 0], sizes = [8, 12], strides = [1, 1]} : vector<8x16xf32> to vector<8x12xf32>
    %43 = tpu.concatenate %41, %42 in 1 : vector<8x4xf32>, vector<8x12xf32> -> vector<8x16xf32>
    %cst_12 = arith.constant 0.000000e+00 : f32
    %44 = vector.shape_cast %20 : vector<1x16xi1> to vector<1x16xi1>
    %45 = vector.broadcast %44 : vector<1x16xi1> to vector<8x16xi1>
    %46 = vector.broadcast %cst_12 : f32 to vector<8x16xf32>
    %47 = arith.select %45, %43, %46 : vector<8x16xi1>, vector<8x16xf32>
    %48 = vector.extract_strided_slice %27 {offsets = [0, 1], sizes = [8, 1], strides = [1, 1]} : vector<8x9xf32> to vector<8x1xf32>
    %49 = vector.broadcast %48 : vector<8x1xf32> to vector<8x16xf32>
    %50 = arith.mulf %47, %49 : vector<8x16xf32>
    %51 = arith.addf %40, %50 : vector<8x16xf32>
    %52 = vector.extract_strided_slice %16 {offsets = [0, 13], sizes = [8, 3], strides = [1, 1]} : vector<8x16xf32> to vector<8x3xf32>
    %53 = vector.extract_strided_slice %16 {offsets = [0, 0], sizes = [8, 13], strides = [1, 1]} : vector<8x16xf32> to vector<8x13xf32>
    %54 = tpu.concatenate %52, %53 in 1 : vector<8x3xf32>, vector<8x13xf32> -> vector<8x16xf32>
    %55 = arith.andi %20, %26 : vector<1x16xi1>
    %cst_13 = arith.constant 0.000000e+00 : f32
    %56 = vector.shape_cast %55 : vector<1x16xi1> to vector<1x16xi1>
    %57 = vector.broadcast %56 : vector<1x16xi1> to vector<8x16xi1>
    %58 = vector.broadcast %cst_13 : f32 to vector<8x16xf32>
    %59 = arith.select %57, %54, %58 : vector<8x16xi1>, vector<8x16xf32>
    %60 = vector.extract_strided_slice %27 {offsets = [0, 2], sizes = [8, 1], strides = [1, 1]} : vector<8x9xf32> to vector<8x1xf32>
    %61 = vector.broadcast %60 : vector<8x1xf32> to vector<8x16xf32>
    %62 = arith.mulf %59, %61 : vector<8x16xf32>
    %63 = arith.addf %51, %62 : vector<8x16xf32>
    %64 = vector.extract_strided_slice %16 {offsets = [0, 15], sizes = [8, 1], strides = [1, 1]} : vector<8x16xf32> to vector<8x1xf32>
    %65 = vector.extract_strided_slice %16 {offsets = [0, 0], sizes = [8, 15], strides = [1, 1]} : vector<8x16xf32> to vector<8x15xf32>
    %66 = tpu.concatenate %64, %65 in 1 : vector<8x1xf32>, vector<8x15xf32> -> vector<8x16xf32>
    %cst_14 = arith.constant 0.000000e+00 : f32
    %67 = vector.shape_cast %24 : vector<1x16xi1> to vector<1x16xi1>
    %68 = vector.broadcast %67 : vector<1x16xi1> to vector<8x16xi1>
    %69 = vector.broadcast %cst_14 : f32 to vector<8x16xf32>
    %70 = arith.select %68, %66, %69 : vector<8x16xi1>, vector<8x16xf32>
    %71 = vector.extract_strided_slice %27 {offsets = [0, 3], sizes = [8, 1], strides = [1, 1]} : vector<8x9xf32> to vector<8x1xf32>
    %72 = vector.broadcast %71 : vector<8x1xf32> to vector<8x16xf32>
    %73 = arith.mulf %70, %72 : vector<8x16xf32>
    %74 = arith.addf %63, %73 : vector<8x16xf32>
    %75 = vector.extract_strided_slice %27 {offsets = [0, 4], sizes = [8, 1], strides = [1, 1]} : vector<8x9xf32> to vector<8x1xf32>
    %76 = vector.broadcast %75 : vector<8x1xf32> to vector<8x16xf32>
    %77 = arith.mulf %16, %76 : vector<8x16xf32>
    %78 = arith.addf %74, %77 : vector<8x16xf32>
    %79 = vector.extract_strided_slice %16 {offsets = [0, 1], sizes = [8, 15], strides = [1, 1]} : vector<8x16xf32> to vector<8x15xf32>
    %80 = vector.extract_strided_slice %16 {offsets = [0, 0], sizes = [8, 1], strides = [1, 1]} : vector<8x16xf32> to vector<8x1xf32>
    %81 = tpu.concatenate %79, %80 in 1 : vector<8x15xf32>, vector<8x1xf32> -> vector<8x16xf32>
    %cst_15 = arith.constant 0.000000e+00 : f32
    %82 = vector.shape_cast %26 : vector<1x16xi1> to vector<1x16xi1>
    %83 = vector.broadcast %82 : vector<1x16xi1> to vector<8x16xi1>
    %84 = vector.broadcast %cst_15 : f32 to vector<8x16xf32>
    %85 = arith.select %83, %81, %84 : vector<8x16xi1>, vector<8x16xf32>
    %86 = vector.extract_strided_slice %27 {offsets = [0, 5], sizes = [8, 1], strides = [1, 1]} : vector<8x9xf32> to vector<8x1xf32>
    %87 = vector.broadcast %86 : vector<8x1xf32> to vector<8x16xf32>
    %88 = arith.mulf %85, %87 : vector<8x16xf32>
    %89 = arith.addf %78, %88 : vector<8x16xf32>
    %90 = vector.extract_strided_slice %16 {offsets = [0, 3], sizes = [8, 13], strides = [1, 1]} : vector<8x16xf32> to vector<8x13xf32>
    %91 = vector.extract_strided_slice %16 {offsets = [0, 0], sizes = [8, 3], strides = [1, 1]} : vector<8x16xf32> to vector<8x3xf32>
    %92 = tpu.concatenate %90, %91 in 1 : vector<8x13xf32>, vector<8x3xf32> -> vector<8x16xf32>
    %93 = arith.andi %22, %24 : vector<1x16xi1>
    %cst_16 = arith.constant 0.000000e+00 : f32
    %94 = vector.shape_cast %93 : vector<1x16xi1> to vector<1x16xi1>
    %95 = vector.broadcast %94 : vector<1x16xi1> to vector<8x16xi1>
    %96 = vector.broadcast %cst_16 : f32 to vector<8x16xf32>
    %97 = arith.select %95, %92, %96 : vector<8x16xi1>, vector<8x16xf32>
    %98 = vector.extract_strided_slice %27 {offsets = [0, 6], sizes = [8, 1], strides = [1, 1]} : vector<8x9xf32> to vector<8x1xf32>
    %99 = vector.broadcast %98 : vector<8x1xf32> to vector<8x16xf32>
    %100 = arith.mulf %97, %99 : vector<8x16xf32>
    %101 = arith.addf %89, %100 : vector<8x16xf32>
    %102 = vector.extract_strided_slice %16 {offsets = [0, 4], sizes = [8, 12], strides = [1, 1]} : vector<8x16xf32> to vector<8x12xf32>
    %103 = vector.extract_strided_slice %16 {offsets = [0, 0], sizes = [8, 4], strides = [1, 1]} : vector<8x16xf32> to vector<8x4xf32>
    %104 = tpu.concatenate %102, %103 in 1 : vector<8x12xf32>, vector<8x4xf32> -> vector<8x16xf32>
    %cst_17 = arith.constant 0.000000e+00 : f32
    %105 = vector.shape_cast %22 : vector<1x16xi1> to vector<1x16xi1>
    %106 = vector.broadcast %105 : vector<1x16xi1> to vector<8x16xi1>
    %107 = vector.broadcast %cst_17 : f32 to vector<8x16xf32>
    %108 = arith.select %106, %104, %107 : vector<8x16xi1>, vector<8x16xf32>
    %109 = vector.extract_strided_slice %27 {offsets = [0, 7], sizes = [8, 1], strides = [1, 1]} : vector<8x9xf32> to vector<8x1xf32>
    %110 = vector.broadcast %109 : vector<8x1xf32> to vector<8x16xf32>
    %111 = arith.mulf %108, %110 : vector<8x16xf32>
    %112 = arith.addf %101, %111 : vector<8x16xf32>
    %113 = vector.extract_strided_slice %16 {offsets = [0, 5], sizes = [8, 11], strides = [1, 1]} : vector<8x16xf32> to vector<8x11xf32>
    %114 = vector.extract_strided_slice %16 {offsets = [0, 0], sizes = [8, 5], strides = [1, 1]} : vector<8x16xf32> to vector<8x5xf32>
    %115 = tpu.concatenate %113, %114 in 1 : vector<8x11xf32>, vector<8x5xf32> -> vector<8x16xf32>
    %116 = arith.andi %22, %26 : vector<1x16xi1>
    %cst_18 = arith.constant 0.000000e+00 : f32
    %117 = vector.shape_cast %116 : vector<1x16xi1> to vector<1x16xi1>
    %118 = vector.broadcast %117 : vector<1x16xi1> to vector<8x16xi1>
    %119 = vector.broadcast %cst_18 : f32 to vector<8x16xf32>
    %120 = arith.select %118, %115, %119 : vector<8x16xi1>, vector<8x16xf32>
    %121 = vector.extract_strided_slice %27 {offsets = [0, 8], sizes = [8, 1], strides = [1, 1]} : vector<8x9xf32> to vector<8x1xf32>
    %122 = vector.broadcast %121 : vector<8x1xf32> to vector<8x16xf32>
    %123 = arith.mulf %120, %122 : vector<8x16xf32>
    %124 = arith.addf %112, %123 : vector<8x16xf32>
    %c0_19 = arith.constant 0 : index
    %c0_20 = arith.constant 0 : index
    %125 = vector.load %arg6[%c0_19, %c0_20] : memref<8x8xf32, #tpu.memory_space<vmem>>, vector<8x8xf32>
    %cst_21 = arith.constant dense<0.000000e+00> : vector<8x16xf32>
    %126 = tpu.matmul %125, %124, %cst_21 {dimension_numbers = #tpu.dot_dimension_numbers<[1], [0], [0], [1], [0, 0, 1, 1], [], []>} : vector<8x8xf32>, vector<8x16xf32>, vector<8x16xf32> -> vector<8x16xf32>
    %c0_22 = arith.constant 0 : index
    %c0_23 = arith.constant 0 : index
    %127 = vector.load %arg7[%c0_22, %c0_23] : memref<8x1xf32, #tpu.memory_space<vmem>>, vector<8x1xf32>
    %128 = vector.broadcast %127 : vector<8x1xf32> to vector<8x16xf32>
    %129 = arith.addf %126, %128 : vector<8x16xf32>
    %c0_24 = arith.constant 0 : index
    %c0_25 = arith.constant 0 : index
    %c0_26 = arith.constant 0 : index
    %130 = vector.load %arg8[%c0_24, %c0_25, %c0_26] : memref<1x8x16xf32, #tpu.memory_space<vmem>>, vector<1x8x16xf32>
    %131 = vector.shape_cast %130 : vector<1x8x16xf32> to vector<8x16xf32>
    %132 = vector.shape_cast %129 : vector<8x16xf32> to vector<1x8x16xf32>
    tpu.vector_store %arg8[%c0_24, %c0_25, %c0_26], %132 {strides = array<i32>} : memref<1x8x16xf32, #tpu.memory_space<vmem>>, vector<1x8x16xf32>,
    return
  }
  func.func @transform_0(%arg0: i32) -> i32 {
    %c0_i32 = arith.constant 0 : i32
    %c0_i32_0 = arith.constant 0 : i32
    return %c0_i32 : i32
  }
  func.func @transform_1(%arg0: i32) -> (i32, i32, i32) {
    %c0_i32 = arith.constant 0 : i32
    %c0_i32_0 = arith.constant 0 : i32
    %c0_i32_1 = arith.constant 0 : i32
    return %arg0, %c0_i32, %c0_i32_0 : i32, i32, i32
  }
  func.func @transform_2(%arg0: i32) -> (i32, i32, i32) {
    %c0_i32 = arith.constant 0 : i32
    %c0_i32_0 = arith.constant 0 : i32
    %c0_i32_1 = arith.constant 0 : i32
    return %arg0, %c0_i32, %c0_i32_0 : i32, i32, i32
  }
  func.func @transform_3(%arg0: i32) -> (i32, i32) {
    %c0_i32 = arith.constant 0 : i32
    %c0_i32_0 = arith.constant 0 : i32
    %c0_i32_1 = arith.constant 0 : i32
    return %c0_i32, %c0_i32_0 : i32, i32
  }
  func.func @transform_4(%arg0: i32) -> (i32, i32) {
    %c0_i32 = arith.constant 0 : i32
    %c0_i32_0 = arith.constant 0 : i32
    %c0_i32_1 = arith.constant 0 : i32
    return %c0_i32, %c0_i32_0 : i32, i32
  }
  func.func @transform_5(%arg0: i32) -> (i32, i32) {
    %c0_i32 = arith.constant 0 : i32
    %c0_i32_0 = arith.constant 0 : i32
    %c0_i32_1 = arith.constant 0 : i32
    return %c0_i32, %c0_i32_0 : i32, i32
  }
  func.func @transform_6(%arg0: i32) -> (i32, i32) {
    %c0_i32 = arith.constant 0 : i32
    %c0_i32_0 = arith.constant 0 : i32
    %c0_i32_1 = arith.constant 0 : i32
    return %c0_i32, %c0_i32_0 : i32, i32
  }
  func.func @transform_7(%arg0: i32) -> (i32, i32, i32) {
    %c0_i32 = arith.constant 0 : i32
    %c0_i32_0 = arith.constant 0 : i32
    %c0_i32_1 = arith.constant 0 : i32
    return %arg0, %c0_i32, %c0_i32_0 : i32, i32, i32
  }
}

module attributes {stable_mosaic.version = 11 : i64} {
  func.func @kernel(%arg0: i32, %arg1: memref<2xf32, #tpu.memory_space<smem>>, %arg2: memref<1x8x64xf32, #tpu.memory_space<vmem>>, %arg3: memref<1x8x64xf32, #tpu.memory_space<vmem>>, %arg4: memref<1x64xi32, #tpu.memory_space<vmem>>, %arg5: memref<8x9xf32, #tpu.memory_space<vmem>>, %arg6: memref<8x8xf32, #tpu.memory_space<vmem>>, %arg7: memref<8x1xf32, #tpu.memory_space<vmem>>, %arg8: memref<1x8x64xf32, #tpu.memory_space<vmem>>) attributes {dimension_semantics = [#tpu.dimension_semantics<parallel>], iteration_bounds = array<i64: 2>, scalar_prefetch = 0 : i64, scratch_operands = 0 : i64, tpu.core_type = #tpu.core_type<tc>, window_params = [{transform_indices = @transform_0, window_bounds = array<i64: 2>}, {transform_indices = @transform_1, window_bounds = array<i64: 1, 8, 64>}, {transform_indices = @transform_2, window_bounds = array<i64: 1, 8, 64>}, {pipeline_mode = #tpu.pipeline_mode<synchronous>, transform_indices = @transform_3, window_bounds = array<i64: 1, 64>}, {pipeline_mode = #tpu.pipeline_mode<synchronous>, transform_indices = @transform_4, window_bounds = array<i64: 8, 9>}, {pipeline_mode = #tpu.pipeline_mode<synchronous>, transform_indices = @transform_5, window_bounds = array<i64: 8, 8>}, {pipeline_mode = #tpu.pipeline_mode<synchronous>, transform_indices = @transform_6, window_bounds = array<i64: 8, 1>}, {transform_indices = @transform_7, window_bounds = array<i64: 1, 8, 64>}]} {
    %c0 = arith.constant 0 : index
    %0 = memref.load %arg1[%c0] : memref<2xf32, #tpu.memory_space<smem>>
    %c0_0 = arith.constant 0 : index
    %c0_1 = arith.constant 0 : index
    %c0_2 = arith.constant 0 : index
    %1 = vector.load %arg2[%c0_0, %c0_1, %c0_2] : memref<1x8x64xf32, #tpu.memory_space<vmem>>, vector<1x8x64xf32>
    %2 = vector.shape_cast %1 : vector<1x8x64xf32> to vector<8x64xf32>
    %3 = vector.broadcast %0 : f32 to vector<8x64xf32>
    %4 = arith.mulf %3, %2 : vector<8x64xf32>
    %c1 = arith.constant 1 : index
    %5 = memref.load %arg1[%c1] : memref<2xf32, #tpu.memory_space<smem>>
    %c0_3 = arith.constant 0 : index
    %c0_4 = arith.constant 0 : index
    %c0_5 = arith.constant 0 : index
    %6 = vector.load %arg3[%c0_3, %c0_4, %c0_5] : memref<1x8x64xf32, #tpu.memory_space<vmem>>, vector<1x8x64xf32>
    %7 = vector.shape_cast %6 : vector<1x8x64xf32> to vector<8x64xf32>
    %8 = vector.broadcast %5 : f32 to vector<8x64xf32>
    %9 = arith.mulf %8, %7 : vector<8x64xf32>
    %10 = arith.addf %4, %9 : vector<8x64xf32>
    %11 = arith.negf %10 : vector<8x64xf32>
    %12 = math.exp %11 : vector<8x64xf32>
    %cst = arith.constant 1.000000e+00 : f32
    %13 = vector.broadcast %cst : f32 to vector<8x64xf32>
    %14 = arith.addf %13, %12 : vector<8x64xf32>
    %15 = arith.divf %13, %14 : vector<8x64xf32>
    %16 = arith.mulf %10, %15 : vector<8x64xf32>
    %17 = tpu.iota {dimensions = array<i32: 1>} : vector<1x64xi32>
    %c0_6 = arith.constant 0 : index
    %c0_7 = arith.constant 0 : index
    %18 = vector.load %arg4[%c0_6, %c0_7] : memref<1x64xi32, #tpu.memory_space<vmem>>, vector<1x64xi32>
    %c8_i32 = arith.constant 8 : i32
    %19 = vector.broadcast %c8_i32 : i32 to vector<1x64xi32>
    %20 = arith.cmpi sge, %17, %19 : vector<1x64xi32>
    %c56_i32 = arith.constant 56 : i32
    %21 = vector.broadcast %c56_i32 : i32 to vector<1x64xi32>
    %22 = arith.cmpi slt, %17, %21 : vector<1x64xi32>
    %c1_i32 = arith.constant 1 : i32
    %23 = vector.broadcast %c1_i32 : i32 to vector<1x64xi32>
    %24 = arith.cmpi sge, %18, %23 : vector<1x64xi32>
    %c6_i32 = arith.constant 6 : i32
    %25 = vector.broadcast %c6_i32 : i32 to vector<1x64xi32>
    %26 = arith.cmpi sle, %18, %25 : vector<1x64xi32>
    %c0_8 = arith.constant 0 : index
    %c0_9 = arith.constant 0 : index
    %27 = vector.load %arg5[%c0_8, %c0_9] : memref<8x9xf32, #tpu.memory_space<vmem>>, vector<8x9xf32>
    %cst_10 = arith.constant 0.000000e+00 : f32
    %28 = vector.broadcast %cst_10 : f32 to vector<8x64xf32>
    %29 = vector.extract_strided_slice %16 {offsets = [0, 55], sizes = [8, 9], strides = [1, 1]} : vector<8x64xf32> to vector<8x9xf32>
    %30 = vector.extract_strided_slice %16 {offsets = [0, 0], sizes = [8, 55], strides = [1, 1]} : vector<8x64xf32> to vector<8x55xf32>
    %31 = tpu.concatenate %29, %30 in 1 : vector<8x9xf32>, vector<8x55xf32> -> vector<8x64xf32>
    %32 = arith.andi %20, %24 : vector<1x64xi1>
    %cst_11 = arith.constant 0.000000e+00 : f32
    %33 = vector.shape_cast %32 : vector<1x64xi1> to vector<1x64xi1>
    %34 = vector.broadcast %33 : vector<1x64xi1> to vector<8x64xi1>
    %35 = vector.broadcast %cst_11 : f32 to vector<8x64xf32>
    %36 = arith.select %34, %31, %35 : vector<8x64xi1>, vector<8x64xf32>
    %37 = vector.extract_strided_slice %27 {offsets = [0, 0], sizes = [8, 1], strides = [1, 1]} : vector<8x9xf32> to vector<8x1xf32>
    %38 = vector.broadcast %37 : vector<8x1xf32> to vector<8x64xf32>
    %39 = arith.mulf %36, %38 : vector<8x64xf32>
    %40 = arith.addf %28, %39 : vector<8x64xf32>
    %41 = vector.extract_strided_slice %16 {offsets = [0, 56], sizes = [8, 8], strides = [1, 1]} : vector<8x64xf32> to vector<8x8xf32>
    %42 = vector.extract_strided_slice %16 {offsets = [0, 0], sizes = [8, 56], strides = [1, 1]} : vector<8x64xf32> to vector<8x56xf32>
    %43 = tpu.concatenate %41, %42 in 1 : vector<8x8xf32>, vector<8x56xf32> -> vector<8x64xf32>
    %cst_12 = arith.constant 0.000000e+00 : f32
    %44 = vector.shape_cast %20 : vector<1x64xi1> to vector<1x64xi1>
    %45 = vector.broadcast %44 : vector<1x64xi1> to vector<8x64xi1>
    %46 = vector.broadcast %cst_12 : f32 to vector<8x64xf32>
    %47 = arith.select %45, %43, %46 : vector<8x64xi1>, vector<8x64xf32>
    %48 = vector.extract_strided_slice %27 {offsets = [0, 1], sizes = [8, 1], strides = [1, 1]} : vector<8x9xf32> to vector<8x1xf32>
    %49 = vector.broadcast %48 : vector<8x1xf32> to vector<8x64xf32>
    %50 = arith.mulf %47, %49 : vector<8x64xf32>
    %51 = arith.addf %40, %50 : vector<8x64xf32>
    %52 = vector.extract_strided_slice %16 {offsets = [0, 57], sizes = [8, 7], strides = [1, 1]} : vector<8x64xf32> to vector<8x7xf32>
    %53 = vector.extract_strided_slice %16 {offsets = [0, 0], sizes = [8, 57], strides = [1, 1]} : vector<8x64xf32> to vector<8x57xf32>
    %54 = tpu.concatenate %52, %53 in 1 : vector<8x7xf32>, vector<8x57xf32> -> vector<8x64xf32>
    %55 = arith.andi %20, %26 : vector<1x64xi1>
    %cst_13 = arith.constant 0.000000e+00 : f32
    %56 = vector.shape_cast %55 : vector<1x64xi1> to vector<1x64xi1>
    %57 = vector.broadcast %56 : vector<1x64xi1> to vector<8x64xi1>
    %58 = vector.broadcast %cst_13 : f32 to vector<8x64xf32>
    %59 = arith.select %57, %54, %58 : vector<8x64xi1>, vector<8x64xf32>
    %60 = vector.extract_strided_slice %27 {offsets = [0, 2], sizes = [8, 1], strides = [1, 1]} : vector<8x9xf32> to vector<8x1xf32>
    %61 = vector.broadcast %60 : vector<8x1xf32> to vector<8x64xf32>
    %62 = arith.mulf %59, %61 : vector<8x64xf32>
    %63 = arith.addf %51, %62 : vector<8x64xf32>
    %64 = vector.extract_strided_slice %16 {offsets = [0, 63], sizes = [8, 1], strides = [1, 1]} : vector<8x64xf32> to vector<8x1xf32>
    %65 = vector.extract_strided_slice %16 {offsets = [0, 0], sizes = [8, 63], strides = [1, 1]} : vector<8x64xf32> to vector<8x63xf32>
    %66 = tpu.concatenate %64, %65 in 1 : vector<8x1xf32>, vector<8x63xf32> -> vector<8x64xf32>
    %cst_14 = arith.constant 0.000000e+00 : f32
    %67 = vector.shape_cast %24 : vector<1x64xi1> to vector<1x64xi1>
    %68 = vector.broadcast %67 : vector<1x64xi1> to vector<8x64xi1>
    %69 = vector.broadcast %cst_14 : f32 to vector<8x64xf32>
    %70 = arith.select %68, %66, %69 : vector<8x64xi1>, vector<8x64xf32>
    %71 = vector.extract_strided_slice %27 {offsets = [0, 3], sizes = [8, 1], strides = [1, 1]} : vector<8x9xf32> to vector<8x1xf32>
    %72 = vector.broadcast %71 : vector<8x1xf32> to vector<8x64xf32>
    %73 = arith.mulf %70, %72 : vector<8x64xf32>
    %74 = arith.addf %63, %73 : vector<8x64xf32>
    %75 = vector.extract_strided_slice %27 {offsets = [0, 4], sizes = [8, 1], strides = [1, 1]} : vector<8x9xf32> to vector<8x1xf32>
    %76 = vector.broadcast %75 : vector<8x1xf32> to vector<8x64xf32>
    %77 = arith.mulf %16, %76 : vector<8x64xf32>
    %78 = arith.addf %74, %77 : vector<8x64xf32>
    %79 = vector.extract_strided_slice %16 {offsets = [0, 1], sizes = [8, 63], strides = [1, 1]} : vector<8x64xf32> to vector<8x63xf32>
    %80 = vector.extract_strided_slice %16 {offsets = [0, 0], sizes = [8, 1], strides = [1, 1]} : vector<8x64xf32> to vector<8x1xf32>
    %81 = tpu.concatenate %79, %80 in 1 : vector<8x63xf32>, vector<8x1xf32> -> vector<8x64xf32>
    %cst_15 = arith.constant 0.000000e+00 : f32
    %82 = vector.shape_cast %26 : vector<1x64xi1> to vector<1x64xi1>
    %83 = vector.broadcast %82 : vector<1x64xi1> to vector<8x64xi1>
    %84 = vector.broadcast %cst_15 : f32 to vector<8x64xf32>
    %85 = arith.select %83, %81, %84 : vector<8x64xi1>, vector<8x64xf32>
    %86 = vector.extract_strided_slice %27 {offsets = [0, 5], sizes = [8, 1], strides = [1, 1]} : vector<8x9xf32> to vector<8x1xf32>
    %87 = vector.broadcast %86 : vector<8x1xf32> to vector<8x64xf32>
    %88 = arith.mulf %85, %87 : vector<8x64xf32>
    %89 = arith.addf %78, %88 : vector<8x64xf32>
    %90 = vector.extract_strided_slice %16 {offsets = [0, 7], sizes = [8, 57], strides = [1, 1]} : vector<8x64xf32> to vector<8x57xf32>
    %91 = vector.extract_strided_slice %16 {offsets = [0, 0], sizes = [8, 7], strides = [1, 1]} : vector<8x64xf32> to vector<8x7xf32>
    %92 = tpu.concatenate %90, %91 in 1 : vector<8x57xf32>, vector<8x7xf32> -> vector<8x64xf32>
    %93 = arith.andi %22, %24 : vector<1x64xi1>
    %cst_16 = arith.constant 0.000000e+00 : f32
    %94 = vector.shape_cast %93 : vector<1x64xi1> to vector<1x64xi1>
    %95 = vector.broadcast %94 : vector<1x64xi1> to vector<8x64xi1>
    %96 = vector.broadcast %cst_16 : f32 to vector<8x64xf32>
    %97 = arith.select %95, %92, %96 : vector<8x64xi1>, vector<8x64xf32>
    %98 = vector.extract_strided_slice %27 {offsets = [0, 6], sizes = [8, 1], strides = [1, 1]} : vector<8x9xf32> to vector<8x1xf32>
    %99 = vector.broadcast %98 : vector<8x1xf32> to vector<8x64xf32>
    %100 = arith.mulf %97, %99 : vector<8x64xf32>
    %101 = arith.addf %89, %100 : vector<8x64xf32>
    %102 = vector.extract_strided_slice %16 {offsets = [0, 8], sizes = [8, 56], strides = [1, 1]} : vector<8x64xf32> to vector<8x56xf32>
    %103 = vector.extract_strided_slice %16 {offsets = [0, 0], sizes = [8, 8], strides = [1, 1]} : vector<8x64xf32> to vector<8x8xf32>
    %104 = tpu.concatenate %102, %103 in 1 : vector<8x56xf32>, vector<8x8xf32> -> vector<8x64xf32>
    %cst_17 = arith.constant 0.000000e+00 : f32
    %105 = vector.shape_cast %22 : vector<1x64xi1> to vector<1x64xi1>
    %106 = vector.broadcast %105 : vector<1x64xi1> to vector<8x64xi1>
    %107 = vector.broadcast %cst_17 : f32 to vector<8x64xf32>
    %108 = arith.select %106, %104, %107 : vector<8x64xi1>, vector<8x64xf32>
    %109 = vector.extract_strided_slice %27 {offsets = [0, 7], sizes = [8, 1], strides = [1, 1]} : vector<8x9xf32> to vector<8x1xf32>
    %110 = vector.broadcast %109 : vector<8x1xf32> to vector<8x64xf32>
    %111 = arith.mulf %108, %110 : vector<8x64xf32>
    %112 = arith.addf %101, %111 : vector<8x64xf32>
    %113 = vector.extract_strided_slice %16 {offsets = [0, 9], sizes = [8, 55], strides = [1, 1]} : vector<8x64xf32> to vector<8x55xf32>
    %114 = vector.extract_strided_slice %16 {offsets = [0, 0], sizes = [8, 9], strides = [1, 1]} : vector<8x64xf32> to vector<8x9xf32>
    %115 = tpu.concatenate %113, %114 in 1 : vector<8x55xf32>, vector<8x9xf32> -> vector<8x64xf32>
    %116 = arith.andi %22, %26 : vector<1x64xi1>
    %cst_18 = arith.constant 0.000000e+00 : f32
    %117 = vector.shape_cast %116 : vector<1x64xi1> to vector<1x64xi1>
    %118 = vector.broadcast %117 : vector<1x64xi1> to vector<8x64xi1>
    %119 = vector.broadcast %cst_18 : f32 to vector<8x64xf32>
    %120 = arith.select %118, %115, %119 : vector<8x64xi1>, vector<8x64xf32>
    %121 = vector.extract_strided_slice %27 {offsets = [0, 8], sizes = [8, 1], strides = [1, 1]} : vector<8x9xf32> to vector<8x1xf32>
    %122 = vector.broadcast %121 : vector<8x1xf32> to vector<8x64xf32>
    %123 = arith.mulf %120, %122 : vector<8x64xf32>
    %124 = arith.addf %112, %123 : vector<8x64xf32>
    %c0_19 = arith.constant 0 : index
    %c0_20 = arith.constant 0 : index
    %125 = vector.load %arg6[%c0_19, %c0_20] : memref<8x8xf32, #tpu.memory_space<vmem>>, vector<8x8xf32>
    %cst_21 = arith.constant dense<0.000000e+00> : vector<8x64xf32>
    %126 = tpu.matmul %125, %124, %cst_21 {dimension_numbers = #tpu.dot_dimension_numbers<[1], [0], [0], [1], [0, 0, 1, 1], [], []>} : vector<8x8xf32>, vector<8x64xf32>, vector<8x64xf32> -> vector<8x64xf32>
    %c0_22 = arith.constant 0 : index
    %c0_23 = arith.constant 0 : index
    %127 = vector.load %arg7[%c0_22, %c0_23] : memref<8x1xf32, #tpu.memory_space<vmem>>, vector<8x1xf32>
    %128 = vector.broadcast %127 : vector<8x1xf32> to vector<8x64xf32>
    %129 = arith.addf %126, %128 : vector<8x64xf32>
    %c0_24 = arith.constant 0 : index
    %c0_25 = arith.constant 0 : index
    %c0_26 = arith.constant 0 : index
    %130 = vector.load %arg8[%c0_24, %c0_25, %c0_26] : memref<1x8x64xf32, #tpu.memory_space<vmem>>, vector<1x8x64xf32>
    %131 = vector.shape_cast %130 : vector<1x8x64xf32> to vector<8x64xf32>
    %132 = vector.shape_cast %129 : vector<8x64xf32> to vector<1x8x64xf32>
    tpu.vector_store %arg8[%c0_24, %c0_25, %c0_26], %132 {strides = array<i32>} : memref<1x8x64xf32, #tpu.memory_space<vmem>>, vector<1x8x64xf32>,
    return
  }
  func.func @transform_0(%arg0: i32) -> i32 {
    %c0_i32 = arith.constant 0 : i32
    %c0_i32_0 = arith.constant 0 : i32
    return %c0_i32 : i32
  }
  func.func @transform_1(%arg0: i32) -> (i32, i32, i32) {
    %c0_i32 = arith.constant 0 : i32
    %c0_i32_0 = arith.constant 0 : i32
    %c0_i32_1 = arith.constant 0 : i32
    return %arg0, %c0_i32, %c0_i32_0 : i32, i32, i32
  }
  func.func @transform_2(%arg0: i32) -> (i32, i32, i32) {
    %c0_i32 = arith.constant 0 : i32
    %c0_i32_0 = arith.constant 0 : i32
    %c0_i32_1 = arith.constant 0 : i32
    return %arg0, %c0_i32, %c0_i32_0 : i32, i32, i32
  }
  func.func @transform_3(%arg0: i32) -> (i32, i32) {
    %c0_i32 = arith.constant 0 : i32
    %c0_i32_0 = arith.constant 0 : i32
    %c0_i32_1 = arith.constant 0 : i32
    return %c0_i32, %c0_i32_0 : i32, i32
  }
  func.func @transform_4(%arg0: i32) -> (i32, i32) {
    %c0_i32 = arith.constant 0 : i32
    %c0_i32_0 = arith.constant 0 : i32
    %c0_i32_1 = arith.constant 0 : i32
    return %c0_i32, %c0_i32_0 : i32, i32
  }
  func.func @transform_5(%arg0: i32) -> (i32, i32) {
    %c0_i32 = arith.constant 0 : i32
    %c0_i32_0 = arith.constant 0 : i32
    %c0_i32_1 = arith.constant 0 : i32
    return %c0_i32, %c0_i32_0 : i32, i32
  }
  func.func @transform_6(%arg0: i32) -> (i32, i32) {
    %c0_i32 = arith.constant 0 : i32
    %c0_i32_0 = arith.constant 0 : i32
    %c0_i32_1 = arith.constant 0 : i32
    return %c0_i32, %c0_i32_0 : i32, i32
  }
  func.func @transform_7(%arg0: i32) -> (i32, i32, i32) {
    %c0_i32 = arith.constant 0 : i32
    %c0_i32_0 = arith.constant 0 : i32
    %c0_i32_1 = arith.constant 0 : i32
    return %arg0, %c0_i32, %c0_i32_0 : i32, i32, i32
  }
}

module attributes {stable_mosaic.version = 11 : i64} {
  func.func @kernel(%arg0: i32, %arg1: memref<2xf32, #tpu.memory_space<smem>>, %arg2: memref<1x8x256xf32, #tpu.memory_space<vmem>>, %arg3: memref<1x8x256xf32, #tpu.memory_space<vmem>>, %arg4: memref<1x256xi32, #tpu.memory_space<vmem>>, %arg5: memref<8x9xf32, #tpu.memory_space<vmem>>, %arg6: memref<8x8xf32, #tpu.memory_space<vmem>>, %arg7: memref<8x1xf32, #tpu.memory_space<vmem>>, %arg8: memref<1x8x256xf32, #tpu.memory_space<vmem>>) attributes {dimension_semantics = [#tpu.dimension_semantics<parallel>], iteration_bounds = array<i64: 2>, scalar_prefetch = 0 : i64, scratch_operands = 0 : i64, tpu.core_type = #tpu.core_type<tc>, window_params = [{transform_indices = @transform_0, window_bounds = array<i64: 2>}, {transform_indices = @transform_1, window_bounds = array<i64: 1, 8, 256>}, {transform_indices = @transform_2, window_bounds = array<i64: 1, 8, 256>}, {pipeline_mode = #tpu.pipeline_mode<synchronous>, transform_indices = @transform_3, window_bounds = array<i64: 1, 256>}, {pipeline_mode = #tpu.pipeline_mode<synchronous>, transform_indices = @transform_4, window_bounds = array<i64: 8, 9>}, {pipeline_mode = #tpu.pipeline_mode<synchronous>, transform_indices = @transform_5, window_bounds = array<i64: 8, 8>}, {pipeline_mode = #tpu.pipeline_mode<synchronous>, transform_indices = @transform_6, window_bounds = array<i64: 8, 1>}, {transform_indices = @transform_7, window_bounds = array<i64: 1, 8, 256>}]} {
    %c0 = arith.constant 0 : index
    %0 = memref.load %arg1[%c0] : memref<2xf32, #tpu.memory_space<smem>>
    %c0_0 = arith.constant 0 : index
    %c0_1 = arith.constant 0 : index
    %c0_2 = arith.constant 0 : index
    %1 = vector.load %arg2[%c0_0, %c0_1, %c0_2] : memref<1x8x256xf32, #tpu.memory_space<vmem>>, vector<1x8x256xf32>
    %2 = vector.shape_cast %1 : vector<1x8x256xf32> to vector<8x256xf32>
    %3 = vector.broadcast %0 : f32 to vector<8x256xf32>
    %4 = arith.mulf %3, %2 : vector<8x256xf32>
    %c1 = arith.constant 1 : index
    %5 = memref.load %arg1[%c1] : memref<2xf32, #tpu.memory_space<smem>>
    %c0_3 = arith.constant 0 : index
    %c0_4 = arith.constant 0 : index
    %c0_5 = arith.constant 0 : index
    %6 = vector.load %arg3[%c0_3, %c0_4, %c0_5] : memref<1x8x256xf32, #tpu.memory_space<vmem>>, vector<1x8x256xf32>
    %7 = vector.shape_cast %6 : vector<1x8x256xf32> to vector<8x256xf32>
    %8 = vector.broadcast %5 : f32 to vector<8x256xf32>
    %9 = arith.mulf %8, %7 : vector<8x256xf32>
    %10 = arith.addf %4, %9 : vector<8x256xf32>
    %11 = arith.negf %10 : vector<8x256xf32>
    %12 = math.exp %11 : vector<8x256xf32>
    %cst = arith.constant 1.000000e+00 : f32
    %13 = vector.broadcast %cst : f32 to vector<8x256xf32>
    %14 = arith.addf %13, %12 : vector<8x256xf32>
    %15 = arith.divf %13, %14 : vector<8x256xf32>
    %16 = arith.mulf %10, %15 : vector<8x256xf32>
    %17 = tpu.iota {dimensions = array<i32: 1>} : vector<1x256xi32>
    %c0_6 = arith.constant 0 : index
    %c0_7 = arith.constant 0 : index
    %18 = vector.load %arg4[%c0_6, %c0_7] : memref<1x256xi32, #tpu.memory_space<vmem>>, vector<1x256xi32>
    %c16_i32 = arith.constant 16 : i32
    %19 = vector.broadcast %c16_i32 : i32 to vector<1x256xi32>
    %20 = arith.cmpi sge, %17, %19 : vector<1x256xi32>
    %c240_i32 = arith.constant 240 : i32
    %21 = vector.broadcast %c240_i32 : i32 to vector<1x256xi32>
    %22 = arith.cmpi slt, %17, %21 : vector<1x256xi32>
    %c1_i32 = arith.constant 1 : i32
    %23 = vector.broadcast %c1_i32 : i32 to vector<1x256xi32>
    %24 = arith.cmpi sge, %18, %23 : vector<1x256xi32>
    %c14_i32 = arith.constant 14 : i32
    %25 = vector.broadcast %c14_i32 : i32 to vector<1x256xi32>
    %26 = arith.cmpi sle, %18, %25 : vector<1x256xi32>
    %c0_8 = arith.constant 0 : index
    %c0_9 = arith.constant 0 : index
    %27 = vector.load %arg5[%c0_8, %c0_9] : memref<8x9xf32, #tpu.memory_space<vmem>>, vector<8x9xf32>
    %cst_10 = arith.constant 0.000000e+00 : f32
    %28 = vector.broadcast %cst_10 : f32 to vector<8x256xf32>
    %29 = vector.extract_strided_slice %16 {offsets = [0, 239], sizes = [8, 17], strides = [1, 1]} : vector<8x256xf32> to vector<8x17xf32>
    %30 = vector.extract_strided_slice %16 {offsets = [0, 0], sizes = [8, 239], strides = [1, 1]} : vector<8x256xf32> to vector<8x239xf32>
    %31 = tpu.concatenate %29, %30 in 1 : vector<8x17xf32>, vector<8x239xf32> -> vector<8x256xf32>
    %32 = arith.andi %20, %24 : vector<1x256xi1>
    %cst_11 = arith.constant 0.000000e+00 : f32
    %33 = vector.shape_cast %32 : vector<1x256xi1> to vector<1x256xi1>
    %34 = vector.broadcast %33 : vector<1x256xi1> to vector<8x256xi1>
    %35 = vector.broadcast %cst_11 : f32 to vector<8x256xf32>
    %36 = arith.select %34, %31, %35 : vector<8x256xi1>, vector<8x256xf32>
    %37 = vector.extract_strided_slice %27 {offsets = [0, 0], sizes = [8, 1], strides = [1, 1]} : vector<8x9xf32> to vector<8x1xf32>
    %38 = vector.broadcast %37 : vector<8x1xf32> to vector<8x256xf32>
    %39 = arith.mulf %36, %38 : vector<8x256xf32>
    %40 = arith.addf %28, %39 : vector<8x256xf32>
    %41 = vector.extract_strided_slice %16 {offsets = [0, 240], sizes = [8, 16], strides = [1, 1]} : vector<8x256xf32> to vector<8x16xf32>
    %42 = vector.extract_strided_slice %16 {offsets = [0, 0], sizes = [8, 240], strides = [1, 1]} : vector<8x256xf32> to vector<8x240xf32>
    %43 = tpu.concatenate %41, %42 in 1 : vector<8x16xf32>, vector<8x240xf32> -> vector<8x256xf32>
    %cst_12 = arith.constant 0.000000e+00 : f32
    %44 = vector.shape_cast %20 : vector<1x256xi1> to vector<1x256xi1>
    %45 = vector.broadcast %44 : vector<1x256xi1> to vector<8x256xi1>
    %46 = vector.broadcast %cst_12 : f32 to vector<8x256xf32>
    %47 = arith.select %45, %43, %46 : vector<8x256xi1>, vector<8x256xf32>
    %48 = vector.extract_strided_slice %27 {offsets = [0, 1], sizes = [8, 1], strides = [1, 1]} : vector<8x9xf32> to vector<8x1xf32>
    %49 = vector.broadcast %48 : vector<8x1xf32> to vector<8x256xf32>
    %50 = arith.mulf %47, %49 : vector<8x256xf32>
    %51 = arith.addf %40, %50 : vector<8x256xf32>
    %52 = vector.extract_strided_slice %16 {offsets = [0, 241], sizes = [8, 15], strides = [1, 1]} : vector<8x256xf32> to vector<8x15xf32>
    %53 = vector.extract_strided_slice %16 {offsets = [0, 0], sizes = [8, 241], strides = [1, 1]} : vector<8x256xf32> to vector<8x241xf32>
    %54 = tpu.concatenate %52, %53 in 1 : vector<8x15xf32>, vector<8x241xf32> -> vector<8x256xf32>
    %55 = arith.andi %20, %26 : vector<1x256xi1>
    %cst_13 = arith.constant 0.000000e+00 : f32
    %56 = vector.shape_cast %55 : vector<1x256xi1> to vector<1x256xi1>
    %57 = vector.broadcast %56 : vector<1x256xi1> to vector<8x256xi1>
    %58 = vector.broadcast %cst_13 : f32 to vector<8x256xf32>
    %59 = arith.select %57, %54, %58 : vector<8x256xi1>, vector<8x256xf32>
    %60 = vector.extract_strided_slice %27 {offsets = [0, 2], sizes = [8, 1], strides = [1, 1]} : vector<8x9xf32> to vector<8x1xf32>
    %61 = vector.broadcast %60 : vector<8x1xf32> to vector<8x256xf32>
    %62 = arith.mulf %59, %61 : vector<8x256xf32>
    %63 = arith.addf %51, %62 : vector<8x256xf32>
    %64 = vector.extract_strided_slice %16 {offsets = [0, 255], sizes = [8, 1], strides = [1, 1]} : vector<8x256xf32> to vector<8x1xf32>
    %65 = vector.extract_strided_slice %16 {offsets = [0, 0], sizes = [8, 255], strides = [1, 1]} : vector<8x256xf32> to vector<8x255xf32>
    %66 = tpu.concatenate %64, %65 in 1 : vector<8x1xf32>, vector<8x255xf32> -> vector<8x256xf32>
    %cst_14 = arith.constant 0.000000e+00 : f32
    %67 = vector.shape_cast %24 : vector<1x256xi1> to vector<1x256xi1>
    %68 = vector.broadcast %67 : vector<1x256xi1> to vector<8x256xi1>
    %69 = vector.broadcast %cst_14 : f32 to vector<8x256xf32>
    %70 = arith.select %68, %66, %69 : vector<8x256xi1>, vector<8x256xf32>
    %71 = vector.extract_strided_slice %27 {offsets = [0, 3], sizes = [8, 1], strides = [1, 1]} : vector<8x9xf32> to vector<8x1xf32>
    %72 = vector.broadcast %71 : vector<8x1xf32> to vector<8x256xf32>
    %73 = arith.mulf %70, %72 : vector<8x256xf32>
    %74 = arith.addf %63, %73 : vector<8x256xf32>
    %75 = vector.extract_strided_slice %27 {offsets = [0, 4], sizes = [8, 1], strides = [1, 1]} : vector<8x9xf32> to vector<8x1xf32>
    %76 = vector.broadcast %75 : vector<8x1xf32> to vector<8x256xf32>
    %77 = arith.mulf %16, %76 : vector<8x256xf32>
    %78 = arith.addf %74, %77 : vector<8x256xf32>
    %79 = vector.extract_strided_slice %16 {offsets = [0, 1], sizes = [8, 255], strides = [1, 1]} : vector<8x256xf32> to vector<8x255xf32>
    %80 = vector.extract_strided_slice %16 {offsets = [0, 0], sizes = [8, 1], strides = [1, 1]} : vector<8x256xf32> to vector<8x1xf32>
    %81 = tpu.concatenate %79, %80 in 1 : vector<8x255xf32>, vector<8x1xf32> -> vector<8x256xf32>
    %cst_15 = arith.constant 0.000000e+00 : f32
    %82 = vector.shape_cast %26 : vector<1x256xi1> to vector<1x256xi1>
    %83 = vector.broadcast %82 : vector<1x256xi1> to vector<8x256xi1>
    %84 = vector.broadcast %cst_15 : f32 to vector<8x256xf32>
    %85 = arith.select %83, %81, %84 : vector<8x256xi1>, vector<8x256xf32>
    %86 = vector.extract_strided_slice %27 {offsets = [0, 5], sizes = [8, 1], strides = [1, 1]} : vector<8x9xf32> to vector<8x1xf32>
    %87 = vector.broadcast %86 : vector<8x1xf32> to vector<8x256xf32>
    %88 = arith.mulf %85, %87 : vector<8x256xf32>
    %89 = arith.addf %78, %88 : vector<8x256xf32>
    %90 = vector.extract_strided_slice %16 {offsets = [0, 15], sizes = [8, 241], strides = [1, 1]} : vector<8x256xf32> to vector<8x241xf32>
    %91 = vector.extract_strided_slice %16 {offsets = [0, 0], sizes = [8, 15], strides = [1, 1]} : vector<8x256xf32> to vector<8x15xf32>
    %92 = tpu.concatenate %90, %91 in 1 : vector<8x241xf32>, vector<8x15xf32> -> vector<8x256xf32>
    %93 = arith.andi %22, %24 : vector<1x256xi1>
    %cst_16 = arith.constant 0.000000e+00 : f32
    %94 = vector.shape_cast %93 : vector<1x256xi1> to vector<1x256xi1>
    %95 = vector.broadcast %94 : vector<1x256xi1> to vector<8x256xi1>
    %96 = vector.broadcast %cst_16 : f32 to vector<8x256xf32>
    %97 = arith.select %95, %92, %96 : vector<8x256xi1>, vector<8x256xf32>
    %98 = vector.extract_strided_slice %27 {offsets = [0, 6], sizes = [8, 1], strides = [1, 1]} : vector<8x9xf32> to vector<8x1xf32>
    %99 = vector.broadcast %98 : vector<8x1xf32> to vector<8x256xf32>
    %100 = arith.mulf %97, %99 : vector<8x256xf32>
    %101 = arith.addf %89, %100 : vector<8x256xf32>
    %102 = vector.extract_strided_slice %16 {offsets = [0, 16], sizes = [8, 240], strides = [1, 1]} : vector<8x256xf32> to vector<8x240xf32>
    %103 = vector.extract_strided_slice %16 {offsets = [0, 0], sizes = [8, 16], strides = [1, 1]} : vector<8x256xf32> to vector<8x16xf32>
    %104 = tpu.concatenate %102, %103 in 1 : vector<8x240xf32>, vector<8x16xf32> -> vector<8x256xf32>
    %cst_17 = arith.constant 0.000000e+00 : f32
    %105 = vector.shape_cast %22 : vector<1x256xi1> to vector<1x256xi1>
    %106 = vector.broadcast %105 : vector<1x256xi1> to vector<8x256xi1>
    %107 = vector.broadcast %cst_17 : f32 to vector<8x256xf32>
    %108 = arith.select %106, %104, %107 : vector<8x256xi1>, vector<8x256xf32>
    %109 = vector.extract_strided_slice %27 {offsets = [0, 7], sizes = [8, 1], strides = [1, 1]} : vector<8x9xf32> to vector<8x1xf32>
    %110 = vector.broadcast %109 : vector<8x1xf32> to vector<8x256xf32>
    %111 = arith.mulf %108, %110 : vector<8x256xf32>
    %112 = arith.addf %101, %111 : vector<8x256xf32>
    %113 = vector.extract_strided_slice %16 {offsets = [0, 17], sizes = [8, 239], strides = [1, 1]} : vector<8x256xf32> to vector<8x239xf32>
    %114 = vector.extract_strided_slice %16 {offsets = [0, 0], sizes = [8, 17], strides = [1, 1]} : vector<8x256xf32> to vector<8x17xf32>
    %115 = tpu.concatenate %113, %114 in 1 : vector<8x239xf32>, vector<8x17xf32> -> vector<8x256xf32>
    %116 = arith.andi %22, %26 : vector<1x256xi1>
    %cst_18 = arith.constant 0.000000e+00 : f32
    %117 = vector.shape_cast %116 : vector<1x256xi1> to vector<1x256xi1>
    %118 = vector.broadcast %117 : vector<1x256xi1> to vector<8x256xi1>
    %119 = vector.broadcast %cst_18 : f32 to vector<8x256xf32>
    %120 = arith.select %118, %115, %119 : vector<8x256xi1>, vector<8x256xf32>
    %121 = vector.extract_strided_slice %27 {offsets = [0, 8], sizes = [8, 1], strides = [1, 1]} : vector<8x9xf32> to vector<8x1xf32>
    %122 = vector.broadcast %121 : vector<8x1xf32> to vector<8x256xf32>
    %123 = arith.mulf %120, %122 : vector<8x256xf32>
    %124 = arith.addf %112, %123 : vector<8x256xf32>
    %c0_19 = arith.constant 0 : index
    %c0_20 = arith.constant 0 : index
    %125 = vector.load %arg6[%c0_19, %c0_20] : memref<8x8xf32, #tpu.memory_space<vmem>>, vector<8x8xf32>
    %cst_21 = arith.constant dense<0.000000e+00> : vector<8x256xf32>
    %126 = tpu.matmul %125, %124, %cst_21 {dimension_numbers = #tpu.dot_dimension_numbers<[1], [0], [0], [1], [0, 0, 1, 1], [], []>} : vector<8x8xf32>, vector<8x256xf32>, vector<8x256xf32> -> vector<8x256xf32>
    %c0_22 = arith.constant 0 : index
    %c0_23 = arith.constant 0 : index
    %127 = vector.load %arg7[%c0_22, %c0_23] : memref<8x1xf32, #tpu.memory_space<vmem>>, vector<8x1xf32>
    %128 = vector.broadcast %127 : vector<8x1xf32> to vector<8x256xf32>
    %129 = arith.addf %126, %128 : vector<8x256xf32>
    %c0_24 = arith.constant 0 : index
    %c0_25 = arith.constant 0 : index
    %c0_26 = arith.constant 0 : index
    %130 = vector.load %arg8[%c0_24, %c0_25, %c0_26] : memref<1x8x256xf32, #tpu.memory_space<vmem>>, vector<1x8x256xf32>
    %131 = vector.shape_cast %130 : vector<1x8x256xf32> to vector<8x256xf32>
    %132 = vector.shape_cast %129 : vector<8x256xf32> to vector<1x8x256xf32>
    tpu.vector_store %arg8[%c0_24, %c0_25, %c0_26], %132 {strides = array<i32>} : memref<1x8x256xf32, #tpu.memory_space<vmem>>, vector<1x8x256xf32>,
    return
  }
  func.func @transform_0(%arg0: i32) -> i32 {
    %c0_i32 = arith.constant 0 : i32
    %c0_i32_0 = arith.constant 0 : i32
    return %c0_i32 : i32
  }
  func.func @transform_1(%arg0: i32) -> (i32, i32, i32) {
    %c0_i32 = arith.constant 0 : i32
    %c0_i32_0 = arith.constant 0 : i32
    %c0_i32_1 = arith.constant 0 : i32
    return %arg0, %c0_i32, %c0_i32_0 : i32, i32, i32
  }
  func.func @transform_2(%arg0: i32) -> (i32, i32, i32) {
    %c0_i32 = arith.constant 0 : i32
    %c0_i32_0 = arith.constant 0 : i32
    %c0_i32_1 = arith.constant 0 : i32
    return %arg0, %c0_i32, %c0_i32_0 : i32, i32, i32
  }
  func.func @transform_3(%arg0: i32) -> (i32, i32) {
    %c0_i32 = arith.constant 0 : i32
    %c0_i32_0 = arith.constant 0 : i32
    %c0_i32_1 = arith.constant 0 : i32
    return %c0_i32, %c0_i32_0 : i32, i32
  }
  func.func @transform_4(%arg0: i32) -> (i32, i32) {
    %c0_i32 = arith.constant 0 : i32
    %c0_i32_0 = arith.constant 0 : i32
    %c0_i32_1 = arith.constant 0 : i32
    return %c0_i32, %c0_i32_0 : i32, i32
  }
  func.func @transform_5(%arg0: i32) -> (i32, i32) {
    %c0_i32 = arith.constant 0 : i32
    %c0_i32_0 = arith.constant 0 : i32
    %c0_i32_1 = arith.constant 0 : i32
    return %c0_i32, %c0_i32_0 : i32, i32
  }
  func.func @transform_6(%arg0: i32) -> (i32, i32) {
    %c0_i32 = arith.constant 0 : i32
    %c0_i32_0 = arith.constant 0 : i32
    %c0_i32_1 = arith.constant 0 : i32
    return %c0_i32, %c0_i32_0 : i32, i32
  }
  func.func @transform_7(%arg0: i32) -> (i32, i32, i32) {
    %c0_i32 = arith.constant 0 : i32
    %c0_i32_0 = arith.constant 0 : i32
    %c0_i32_1 = arith.constant 0 : i32
    return %arg0, %c0_i32, %c0_i32_0 : i32, i32, i32
  }
}

module attributes {stable_mosaic.version = 11 : i64} {
  func.func @kernel(%arg0: i32, %arg1: memref<2xf32, #tpu.memory_space<smem>>, %arg2: memref<1x8x1024xf32, #tpu.memory_space<vmem>>, %arg3: memref<1x8x1024xf32, #tpu.memory_space<vmem>>, %arg4: memref<1x1024xi32, #tpu.memory_space<vmem>>, %arg5: memref<8x9xf32, #tpu.memory_space<vmem>>, %arg6: memref<8x8xf32, #tpu.memory_space<vmem>>, %arg7: memref<8x1xf32, #tpu.memory_space<vmem>>, %arg8: memref<1x8x1024xf32, #tpu.memory_space<vmem>>) attributes {dimension_semantics = [#tpu.dimension_semantics<parallel>], iteration_bounds = array<i64: 2>, scalar_prefetch = 0 : i64, scratch_operands = 0 : i64, tpu.core_type = #tpu.core_type<tc>, window_params = [{transform_indices = @transform_0, window_bounds = array<i64: 2>}, {transform_indices = @transform_1, window_bounds = array<i64: 1, 8, 1024>}, {transform_indices = @transform_2, window_bounds = array<i64: 1, 8, 1024>}, {pipeline_mode = #tpu.pipeline_mode<synchronous>, transform_indices = @transform_3, window_bounds = array<i64: 1, 1024>}, {pipeline_mode = #tpu.pipeline_mode<synchronous>, transform_indices = @transform_4, window_bounds = array<i64: 8, 9>}, {pipeline_mode = #tpu.pipeline_mode<synchronous>, transform_indices = @transform_5, window_bounds = array<i64: 8, 8>}, {pipeline_mode = #tpu.pipeline_mode<synchronous>, transform_indices = @transform_6, window_bounds = array<i64: 8, 1>}, {transform_indices = @transform_7, window_bounds = array<i64: 1, 8, 1024>}]} {
    %c0 = arith.constant 0 : index
    %0 = memref.load %arg1[%c0] : memref<2xf32, #tpu.memory_space<smem>>
    %c0_0 = arith.constant 0 : index
    %c0_1 = arith.constant 0 : index
    %c0_2 = arith.constant 0 : index
    %1 = vector.load %arg2[%c0_0, %c0_1, %c0_2] : memref<1x8x1024xf32, #tpu.memory_space<vmem>>, vector<1x8x1024xf32>
    %2 = vector.shape_cast %1 : vector<1x8x1024xf32> to vector<8x1024xf32>
    %3 = vector.broadcast %0 : f32 to vector<8x1024xf32>
    %4 = arith.mulf %3, %2 : vector<8x1024xf32>
    %c1 = arith.constant 1 : index
    %5 = memref.load %arg1[%c1] : memref<2xf32, #tpu.memory_space<smem>>
    %c0_3 = arith.constant 0 : index
    %c0_4 = arith.constant 0 : index
    %c0_5 = arith.constant 0 : index
    %6 = vector.load %arg3[%c0_3, %c0_4, %c0_5] : memref<1x8x1024xf32, #tpu.memory_space<vmem>>, vector<1x8x1024xf32>
    %7 = vector.shape_cast %6 : vector<1x8x1024xf32> to vector<8x1024xf32>
    %8 = vector.broadcast %5 : f32 to vector<8x1024xf32>
    %9 = arith.mulf %8, %7 : vector<8x1024xf32>
    %10 = arith.addf %4, %9 : vector<8x1024xf32>
    %11 = arith.negf %10 : vector<8x1024xf32>
    %12 = math.exp %11 : vector<8x1024xf32>
    %cst = arith.constant 1.000000e+00 : f32
    %13 = vector.broadcast %cst : f32 to vector<8x1024xf32>
    %14 = arith.addf %13, %12 : vector<8x1024xf32>
    %15 = arith.divf %13, %14 : vector<8x1024xf32>
    %16 = arith.mulf %10, %15 : vector<8x1024xf32>
    %17 = tpu.iota {dimensions = array<i32: 1>} : vector<1x1024xi32>
    %c0_6 = arith.constant 0 : index
    %c0_7 = arith.constant 0 : index
    %18 = vector.load %arg4[%c0_6, %c0_7] : memref<1x1024xi32, #tpu.memory_space<vmem>>, vector<1x1024xi32>
    %c32_i32 = arith.constant 32 : i32
    %19 = vector.broadcast %c32_i32 : i32 to vector<1x1024xi32>
    %20 = arith.cmpi sge, %17, %19 : vector<1x1024xi32>
    %c992_i32 = arith.constant 992 : i32
    %21 = vector.broadcast %c992_i32 : i32 to vector<1x1024xi32>
    %22 = arith.cmpi slt, %17, %21 : vector<1x1024xi32>
    %c1_i32 = arith.constant 1 : i32
    %23 = vector.broadcast %c1_i32 : i32 to vector<1x1024xi32>
    %24 = arith.cmpi sge, %18, %23 : vector<1x1024xi32>
    %c30_i32 = arith.constant 30 : i32
    %25 = vector.broadcast %c30_i32 : i32 to vector<1x1024xi32>
    %26 = arith.cmpi sle, %18, %25 : vector<1x1024xi32>
    %c0_8 = arith.constant 0 : index
    %c0_9 = arith.constant 0 : index
    %27 = vector.load %arg5[%c0_8, %c0_9] : memref<8x9xf32, #tpu.memory_space<vmem>>, vector<8x9xf32>
    %cst_10 = arith.constant 0.000000e+00 : f32
    %28 = vector.broadcast %cst_10 : f32 to vector<8x1024xf32>
    %29 = vector.extract_strided_slice %16 {offsets = [0, 991], sizes = [8, 33], strides = [1, 1]} : vector<8x1024xf32> to vector<8x33xf32>
    %30 = vector.extract_strided_slice %16 {offsets = [0, 0], sizes = [8, 991], strides = [1, 1]} : vector<8x1024xf32> to vector<8x991xf32>
    %31 = tpu.concatenate %29, %30 in 1 : vector<8x33xf32>, vector<8x991xf32> -> vector<8x1024xf32>
    %32 = arith.andi %20, %24 : vector<1x1024xi1>
    %cst_11 = arith.constant 0.000000e+00 : f32
    %33 = vector.shape_cast %32 : vector<1x1024xi1> to vector<1x1024xi1>
    %34 = vector.broadcast %33 : vector<1x1024xi1> to vector<8x1024xi1>
    %35 = vector.broadcast %cst_11 : f32 to vector<8x1024xf32>
    %36 = arith.select %34, %31, %35 : vector<8x1024xi1>, vector<8x1024xf32>
    %37 = vector.extract_strided_slice %27 {offsets = [0, 0], sizes = [8, 1], strides = [1, 1]} : vector<8x9xf32> to vector<8x1xf32>
    %38 = vector.broadcast %37 : vector<8x1xf32> to vector<8x1024xf32>
    %39 = arith.mulf %36, %38 : vector<8x1024xf32>
    %40 = arith.addf %28, %39 : vector<8x1024xf32>
    %41 = vector.extract_strided_slice %16 {offsets = [0, 992], sizes = [8, 32], strides = [1, 1]} : vector<8x1024xf32> to vector<8x32xf32>
    %42 = vector.extract_strided_slice %16 {offsets = [0, 0], sizes = [8, 992], strides = [1, 1]} : vector<8x1024xf32> to vector<8x992xf32>
    %43 = tpu.concatenate %41, %42 in 1 : vector<8x32xf32>, vector<8x992xf32> -> vector<8x1024xf32>
    %cst_12 = arith.constant 0.000000e+00 : f32
    %44 = vector.shape_cast %20 : vector<1x1024xi1> to vector<1x1024xi1>
    %45 = vector.broadcast %44 : vector<1x1024xi1> to vector<8x1024xi1>
    %46 = vector.broadcast %cst_12 : f32 to vector<8x1024xf32>
    %47 = arith.select %45, %43, %46 : vector<8x1024xi1>, vector<8x1024xf32>
    %48 = vector.extract_strided_slice %27 {offsets = [0, 1], sizes = [8, 1], strides = [1, 1]} : vector<8x9xf32> to vector<8x1xf32>
    %49 = vector.broadcast %48 : vector<8x1xf32> to vector<8x1024xf32>
    %50 = arith.mulf %47, %49 : vector<8x1024xf32>
    %51 = arith.addf %40, %50 : vector<8x1024xf32>
    %52 = vector.extract_strided_slice %16 {offsets = [0, 993], sizes = [8, 31], strides = [1, 1]} : vector<8x1024xf32> to vector<8x31xf32>
    %53 = vector.extract_strided_slice %16 {offsets = [0, 0], sizes = [8, 993], strides = [1, 1]} : vector<8x1024xf32> to vector<8x993xf32>
    %54 = tpu.concatenate %52, %53 in 1 : vector<8x31xf32>, vector<8x993xf32> -> vector<8x1024xf32>
    %55 = arith.andi %20, %26 : vector<1x1024xi1>
    %cst_13 = arith.constant 0.000000e+00 : f32
    %56 = vector.shape_cast %55 : vector<1x1024xi1> to vector<1x1024xi1>
    %57 = vector.broadcast %56 : vector<1x1024xi1> to vector<8x1024xi1>
    %58 = vector.broadcast %cst_13 : f32 to vector<8x1024xf32>
    %59 = arith.select %57, %54, %58 : vector<8x1024xi1>, vector<8x1024xf32>
    %60 = vector.extract_strided_slice %27 {offsets = [0, 2], sizes = [8, 1], strides = [1, 1]} : vector<8x9xf32> to vector<8x1xf32>
    %61 = vector.broadcast %60 : vector<8x1xf32> to vector<8x1024xf32>
    %62 = arith.mulf %59, %61 : vector<8x1024xf32>
    %63 = arith.addf %51, %62 : vector<8x1024xf32>
    %64 = vector.extract_strided_slice %16 {offsets = [0, 1023], sizes = [8, 1], strides = [1, 1]} : vector<8x1024xf32> to vector<8x1xf32>
    %65 = vector.extract_strided_slice %16 {offsets = [0, 0], sizes = [8, 1023], strides = [1, 1]} : vector<8x1024xf32> to vector<8x1023xf32>
    %66 = tpu.concatenate %64, %65 in 1 : vector<8x1xf32>, vector<8x1023xf32> -> vector<8x1024xf32>
    %cst_14 = arith.constant 0.000000e+00 : f32
    %67 = vector.shape_cast %24 : vector<1x1024xi1> to vector<1x1024xi1>
    %68 = vector.broadcast %67 : vector<1x1024xi1> to vector<8x1024xi1>
    %69 = vector.broadcast %cst_14 : f32 to vector<8x1024xf32>
    %70 = arith.select %68, %66, %69 : vector<8x1024xi1>, vector<8x1024xf32>
    %71 = vector.extract_strided_slice %27 {offsets = [0, 3], sizes = [8, 1], strides = [1, 1]} : vector<8x9xf32> to vector<8x1xf32>
    %72 = vector.broadcast %71 : vector<8x1xf32> to vector<8x1024xf32>
    %73 = arith.mulf %70, %72 : vector<8x1024xf32>
    %74 = arith.addf %63, %73 : vector<8x1024xf32>
    %75 = vector.extract_strided_slice %27 {offsets = [0, 4], sizes = [8, 1], strides = [1, 1]} : vector<8x9xf32> to vector<8x1xf32>
    %76 = vector.broadcast %75 : vector<8x1xf32> to vector<8x1024xf32>
    %77 = arith.mulf %16, %76 : vector<8x1024xf32>
    %78 = arith.addf %74, %77 : vector<8x1024xf32>
    %79 = vector.extract_strided_slice %16 {offsets = [0, 1], sizes = [8, 1023], strides = [1, 1]} : vector<8x1024xf32> to vector<8x1023xf32>
    %80 = vector.extract_strided_slice %16 {offsets = [0, 0], sizes = [8, 1], strides = [1, 1]} : vector<8x1024xf32> to vector<8x1xf32>
    %81 = tpu.concatenate %79, %80 in 1 : vector<8x1023xf32>, vector<8x1xf32> -> vector<8x1024xf32>
    %cst_15 = arith.constant 0.000000e+00 : f32
    %82 = vector.shape_cast %26 : vector<1x1024xi1> to vector<1x1024xi1>
    %83 = vector.broadcast %82 : vector<1x1024xi1> to vector<8x1024xi1>
    %84 = vector.broadcast %cst_15 : f32 to vector<8x1024xf32>
    %85 = arith.select %83, %81, %84 : vector<8x1024xi1>, vector<8x1024xf32>
    %86 = vector.extract_strided_slice %27 {offsets = [0, 5], sizes = [8, 1], strides = [1, 1]} : vector<8x9xf32> to vector<8x1xf32>
    %87 = vector.broadcast %86 : vector<8x1xf32> to vector<8x1024xf32>
    %88 = arith.mulf %85, %87 : vector<8x1024xf32>
    %89 = arith.addf %78, %88 : vector<8x1024xf32>
    %90 = vector.extract_strided_slice %16 {offsets = [0, 31], sizes = [8, 993], strides = [1, 1]} : vector<8x1024xf32> to vector<8x993xf32>
    %91 = vector.extract_strided_slice %16 {offsets = [0, 0], sizes = [8, 31], strides = [1, 1]} : vector<8x1024xf32> to vector<8x31xf32>
    %92 = tpu.concatenate %90, %91 in 1 : vector<8x993xf32>, vector<8x31xf32> -> vector<8x1024xf32>
    %93 = arith.andi %22, %24 : vector<1x1024xi1>
    %cst_16 = arith.constant 0.000000e+00 : f32
    %94 = vector.shape_cast %93 : vector<1x1024xi1> to vector<1x1024xi1>
    %95 = vector.broadcast %94 : vector<1x1024xi1> to vector<8x1024xi1>
    %96 = vector.broadcast %cst_16 : f32 to vector<8x1024xf32>
    %97 = arith.select %95, %92, %96 : vector<8x1024xi1>, vector<8x1024xf32>
    %98 = vector.extract_strided_slice %27 {offsets = [0, 6], sizes = [8, 1], strides = [1, 1]} : vector<8x9xf32> to vector<8x1xf32>
    %99 = vector.broadcast %98 : vector<8x1xf32> to vector<8x1024xf32>
    %100 = arith.mulf %97, %99 : vector<8x1024xf32>
    %101 = arith.addf %89, %100 : vector<8x1024xf32>
    %102 = vector.extract_strided_slice %16 {offsets = [0, 32], sizes = [8, 992], strides = [1, 1]} : vector<8x1024xf32> to vector<8x992xf32>
    %103 = vector.extract_strided_slice %16 {offsets = [0, 0], sizes = [8, 32], strides = [1, 1]} : vector<8x1024xf32> to vector<8x32xf32>
    %104 = tpu.concatenate %102, %103 in 1 : vector<8x992xf32>, vector<8x32xf32> -> vector<8x1024xf32>
    %cst_17 = arith.constant 0.000000e+00 : f32
    %105 = vector.shape_cast %22 : vector<1x1024xi1> to vector<1x1024xi1>
    %106 = vector.broadcast %105 : vector<1x1024xi1> to vector<8x1024xi1>
    %107 = vector.broadcast %cst_17 : f32 to vector<8x1024xf32>
    %108 = arith.select %106, %104, %107 : vector<8x1024xi1>, vector<8x1024xf32>
    %109 = vector.extract_strided_slice %27 {offsets = [0, 7], sizes = [8, 1], strides = [1, 1]} : vector<8x9xf32> to vector<8x1xf32>
    %110 = vector.broadcast %109 : vector<8x1xf32> to vector<8x1024xf32>
    %111 = arith.mulf %108, %110 : vector<8x1024xf32>
    %112 = arith.addf %101, %111 : vector<8x1024xf32>
    %113 = vector.extract_strided_slice %16 {offsets = [0, 33], sizes = [8, 991], strides = [1, 1]} : vector<8x1024xf32> to vector<8x991xf32>
    %114 = vector.extract_strided_slice %16 {offsets = [0, 0], sizes = [8, 33], strides = [1, 1]} : vector<8x1024xf32> to vector<8x33xf32>
    %115 = tpu.concatenate %113, %114 in 1 : vector<8x991xf32>, vector<8x33xf32> -> vector<8x1024xf32>
    %116 = arith.andi %22, %26 : vector<1x1024xi1>
    %cst_18 = arith.constant 0.000000e+00 : f32
    %117 = vector.shape_cast %116 : vector<1x1024xi1> to vector<1x1024xi1>
    %118 = vector.broadcast %117 : vector<1x1024xi1> to vector<8x1024xi1>
    %119 = vector.broadcast %cst_18 : f32 to vector<8x1024xf32>
    %120 = arith.select %118, %115, %119 : vector<8x1024xi1>, vector<8x1024xf32>
    %121 = vector.extract_strided_slice %27 {offsets = [0, 8], sizes = [8, 1], strides = [1, 1]} : vector<8x9xf32> to vector<8x1xf32>
    %122 = vector.broadcast %121 : vector<8x1xf32> to vector<8x1024xf32>
    %123 = arith.mulf %120, %122 : vector<8x1024xf32>
    %124 = arith.addf %112, %123 : vector<8x1024xf32>
    %c0_19 = arith.constant 0 : index
    %c0_20 = arith.constant 0 : index
    %125 = vector.load %arg6[%c0_19, %c0_20] : memref<8x8xf32, #tpu.memory_space<vmem>>, vector<8x8xf32>
    %cst_21 = arith.constant dense<0.000000e+00> : vector<8x1024xf32>
    %126 = tpu.matmul %125, %124, %cst_21 {dimension_numbers = #tpu.dot_dimension_numbers<[1], [0], [0], [1], [0, 0, 1, 1], [], []>} : vector<8x8xf32>, vector<8x1024xf32>, vector<8x1024xf32> -> vector<8x1024xf32>
    %c0_22 = arith.constant 0 : index
    %c0_23 = arith.constant 0 : index
    %127 = vector.load %arg7[%c0_22, %c0_23] : memref<8x1xf32, #tpu.memory_space<vmem>>, vector<8x1xf32>
    %128 = vector.broadcast %127 : vector<8x1xf32> to vector<8x1024xf32>
    %129 = arith.addf %126, %128 : vector<8x1024xf32>
    %c0_24 = arith.constant 0 : index
    %c0_25 = arith.constant 0 : index
    %c0_26 = arith.constant 0 : index
    %130 = vector.load %arg8[%c0_24, %c0_25, %c0_26] : memref<1x8x1024xf32, #tpu.memory_space<vmem>>, vector<1x8x1024xf32>
    %131 = vector.shape_cast %130 : vector<1x8x1024xf32> to vector<8x1024xf32>
    %132 = vector.shape_cast %129 : vector<8x1024xf32> to vector<1x8x1024xf32>
    tpu.vector_store %arg8[%c0_24, %c0_25, %c0_26], %132 {strides = array<i32>} : memref<1x8x1024xf32, #tpu.memory_space<vmem>>, vector<1x8x1024xf32>,
    return
  }
  func.func @transform_0(%arg0: i32) -> i32 {
    %c0_i32 = arith.constant 0 : i32
    %c0_i32_0 = arith.constant 0 : i32
    return %c0_i32 : i32
  }
  func.func @transform_1(%arg0: i32) -> (i32, i32, i32) {
    %c0_i32 = arith.constant 0 : i32
    %c0_i32_0 = arith.constant 0 : i32
    %c0_i32_1 = arith.constant 0 : i32
    return %arg0, %c0_i32, %c0_i32_0 : i32, i32, i32
  }
  func.func @transform_2(%arg0: i32) -> (i32, i32, i32) {
    %c0_i32 = arith.constant 0 : i32
    %c0_i32_0 = arith.constant 0 : i32
    %c0_i32_1 = arith.constant 0 : i32
    return %arg0, %c0_i32, %c0_i32_0 : i32, i32, i32
  }
  func.func @transform_3(%arg0: i32) -> (i32, i32) {
    %c0_i32 = arith.constant 0 : i32
    %c0_i32_0 = arith.constant 0 : i32
    %c0_i32_1 = arith.constant 0 : i32
    return %c0_i32, %c0_i32_0 : i32, i32
  }
  func.func @transform_4(%arg0: i32) -> (i32, i32) {
    %c0_i32 = arith.constant 0 : i32
    %c0_i32_0 = arith.constant 0 : i32
    %c0_i32_1 = arith.constant 0 : i32
    return %c0_i32, %c0_i32_0 : i32, i32
  }
  func.func @transform_5(%arg0: i32) -> (i32, i32) {
    %c0_i32 = arith.constant 0 : i32
    %c0_i32_0 = arith.constant 0 : i32
    %c0_i32_1 = arith.constant 0 : i32
    return %c0_i32, %c0_i32_0 : i32, i32
  }
  func.func @transform_6(%arg0: i32) -> (i32, i32) {
    %c0_i32 = arith.constant 0 : i32
    %c0_i32_0 = arith.constant 0 : i32
    %c0_i32_1 = arith.constant 0 : i32
    return %c0_i32, %c0_i32_0 : i32, i32
  }
  func.func @transform_7(%arg0: i32) -> (i32, i32, i32) {
    %c0_i32 = arith.constant 0 : i32
    %c0_i32_0 = arith.constant 0 : i32
    %c0_i32_1 = arith.constant 0 : i32
    return %arg0, %c0_i32, %c0_i32_0 : i32, i32, i32
  }
}

module attributes {stable_mosaic.version = 11 : i64} {
  func.func @kernel(%arg0: i32, %arg1: memref<3xf32, #tpu.memory_space<smem>>, %arg2: memref<1x8x256xf32, #tpu.memory_space<vmem>>, %arg3: memref<1x8x256xf32, #tpu.memory_space<vmem>>, %arg4: memref<1x8x256xf32, #tpu.memory_space<vmem>>, %arg5: memref<1x256xi32, #tpu.memory_space<vmem>>, %arg6: memref<8x9xf32, #tpu.memory_space<vmem>>, %arg7: memref<8x8xf32, #tpu.memory_space<vmem>>, %arg8: memref<8x1xf32, #tpu.memory_space<vmem>>, %arg9: memref<1x8x256xf32, #tpu.memory_space<vmem>>) attributes {dimension_semantics = [#tpu.dimension_semantics<parallel>], iteration_bounds = array<i64: 2>, scalar_prefetch = 0 : i64, scratch_operands = 0 : i64, tpu.core_type = #tpu.core_type<tc>, window_params = [{transform_indices = @transform_0, window_bounds = array<i64: 3>}, {transform_indices = @transform_1, window_bounds = array<i64: 1, 8, 256>}, {transform_indices = @transform_2, window_bounds = array<i64: 1, 8, 256>}, {transform_indices = @transform_3, window_bounds = array<i64: 1, 8, 256>}, {pipeline_mode = #tpu.pipeline_mode<synchronous>, transform_indices = @transform_4, window_bounds = array<i64: 1, 256>}, {pipeline_mode = #tpu.pipeline_mode<synchronous>, transform_indices = @transform_5, window_bounds = array<i64: 8, 9>}, {pipeline_mode = #tpu.pipeline_mode<synchronous>, transform_indices = @transform_6, window_bounds = array<i64: 8, 8>}, {pipeline_mode = #tpu.pipeline_mode<synchronous>, transform_indices = @transform_7, window_bounds = array<i64: 8, 1>}, {transform_indices = @transform_8, window_bounds = array<i64: 1, 8, 256>}]} {
    %c0 = arith.constant 0 : index
    %0 = memref.load %arg1[%c0] : memref<3xf32, #tpu.memory_space<smem>>
    %c0_0 = arith.constant 0 : index
    %c0_1 = arith.constant 0 : index
    %c0_2 = arith.constant 0 : index
    %1 = vector.load %arg2[%c0_0, %c0_1, %c0_2] : memref<1x8x256xf32, #tpu.memory_space<vmem>>, vector<1x8x256xf32>
    %2 = vector.shape_cast %1 : vector<1x8x256xf32> to vector<8x256xf32>
    %3 = vector.broadcast %0 : f32 to vector<8x256xf32>
    %4 = arith.mulf %3, %2 : vector<8x256xf32>
    %c1 = arith.constant 1 : index
    %5 = memref.load %arg1[%c1] : memref<3xf32, #tpu.memory_space<smem>>
    %c0_3 = arith.constant 0 : index
    %c0_4 = arith.constant 0 : index
    %c0_5 = arith.constant 0 : index
    %6 = vector.load %arg3[%c0_3, %c0_4, %c0_5] : memref<1x8x256xf32, #tpu.memory_space<vmem>>, vector<1x8x256xf32>
    %7 = vector.shape_cast %6 : vector<1x8x256xf32> to vector<8x256xf32>
    %8 = vector.broadcast %5 : f32 to vector<8x256xf32>
    %9 = arith.mulf %8, %7 : vector<8x256xf32>
    %10 = arith.addf %4, %9 : vector<8x256xf32>
    %c2 = arith.constant 2 : index
    %11 = memref.load %arg1[%c2] : memref<3xf32, #tpu.memory_space<smem>>
    %c0_6 = arith.constant 0 : index
    %c0_7 = arith.constant 0 : index
    %c0_8 = arith.constant 0 : index
    %12 = vector.load %arg4[%c0_6, %c0_7, %c0_8] : memref<1x8x256xf32, #tpu.memory_space<vmem>>, vector<1x8x256xf32>
    %13 = vector.shape_cast %12 : vector<1x8x256xf32> to vector<8x256xf32>
    %14 = vector.broadcast %11 : f32 to vector<8x256xf32>
    %15 = arith.mulf %14, %13 : vector<8x256xf32>
    %16 = arith.addf %10, %15 : vector<8x256xf32>
    %17 = arith.negf %16 : vector<8x256xf32>
    %18 = math.exp %17 : vector<8x256xf32>
    %cst = arith.constant 1.000000e+00 : f32
    %19 = vector.broadcast %cst : f32 to vector<8x256xf32>
    %20 = arith.addf %19, %18 : vector<8x256xf32>
    %21 = arith.divf %19, %20 : vector<8x256xf32>
    %22 = arith.mulf %16, %21 : vector<8x256xf32>
    %23 = tpu.iota {dimensions = array<i32: 1>} : vector<1x256xi32>
    %c0_9 = arith.constant 0 : index
    %c0_10 = arith.constant 0 : index
    %24 = vector.load %arg5[%c0_9, %c0_10] : memref<1x256xi32, #tpu.memory_space<vmem>>, vector<1x256xi32>
    %c16_i32 = arith.constant 16 : i32
    %25 = vector.broadcast %c16_i32 : i32 to vector<1x256xi32>
    %26 = arith.cmpi sge, %23, %25 : vector<1x256xi32>
    %c240_i32 = arith.constant 240 : i32
    %27 = vector.broadcast %c240_i32 : i32 to vector<1x256xi32>
    %28 = arith.cmpi slt, %23, %27 : vector<1x256xi32>
    %c1_i32 = arith.constant 1 : i32
    %29 = vector.broadcast %c1_i32 : i32 to vector<1x256xi32>
    %30 = arith.cmpi sge, %24, %29 : vector<1x256xi32>
    %c14_i32 = arith.constant 14 : i32
    %31 = vector.broadcast %c14_i32 : i32 to vector<1x256xi32>
    %32 = arith.cmpi sle, %24, %31 : vector<1x256xi32>
    %c0_11 = arith.constant 0 : index
    %c0_12 = arith.constant 0 : index
    %33 = vector.load %arg6[%c0_11, %c0_12] : memref<8x9xf32, #tpu.memory_space<vmem>>, vector<8x9xf32>
    %cst_13 = arith.constant 0.000000e+00 : f32
    %34 = vector.broadcast %cst_13 : f32 to vector<8x256xf32>
    %35 = vector.extract_strided_slice %22 {offsets = [0, 239], sizes = [8, 17], strides = [1, 1]} : vector<8x256xf32> to vector<8x17xf32>
    %36 = vector.extract_strided_slice %22 {offsets = [0, 0], sizes = [8, 239], strides = [1, 1]} : vector<8x256xf32> to vector<8x239xf32>
    %37 = tpu.concatenate %35, %36 in 1 : vector<8x17xf32>, vector<8x239xf32> -> vector<8x256xf32>
    %38 = arith.andi %26, %30 : vector<1x256xi1>
    %cst_14 = arith.constant 0.000000e+00 : f32
    %39 = vector.shape_cast %38 : vector<1x256xi1> to vector<1x256xi1>
    %40 = vector.broadcast %39 : vector<1x256xi1> to vector<8x256xi1>
    %41 = vector.broadcast %cst_14 : f32 to vector<8x256xf32>
    %42 = arith.select %40, %37, %41 : vector<8x256xi1>, vector<8x256xf32>
    %43 = vector.extract_strided_slice %33 {offsets = [0, 0], sizes = [8, 1], strides = [1, 1]} : vector<8x9xf32> to vector<8x1xf32>
    %44 = vector.broadcast %43 : vector<8x1xf32> to vector<8x256xf32>
    %45 = arith.mulf %42, %44 : vector<8x256xf32>
    %46 = arith.addf %34, %45 : vector<8x256xf32>
    %47 = vector.extract_strided_slice %22 {offsets = [0, 240], sizes = [8, 16], strides = [1, 1]} : vector<8x256xf32> to vector<8x16xf32>
    %48 = vector.extract_strided_slice %22 {offsets = [0, 0], sizes = [8, 240], strides = [1, 1]} : vector<8x256xf32> to vector<8x240xf32>
    %49 = tpu.concatenate %47, %48 in 1 : vector<8x16xf32>, vector<8x240xf32> -> vector<8x256xf32>
    %cst_15 = arith.constant 0.000000e+00 : f32
    %50 = vector.shape_cast %26 : vector<1x256xi1> to vector<1x256xi1>
    %51 = vector.broadcast %50 : vector<1x256xi1> to vector<8x256xi1>
    %52 = vector.broadcast %cst_15 : f32 to vector<8x256xf32>
    %53 = arith.select %51, %49, %52 : vector<8x256xi1>, vector<8x256xf32>
    %54 = vector.extract_strided_slice %33 {offsets = [0, 1], sizes = [8, 1], strides = [1, 1]} : vector<8x9xf32> to vector<8x1xf32>
    %55 = vector.broadcast %54 : vector<8x1xf32> to vector<8x256xf32>
    %56 = arith.mulf %53, %55 : vector<8x256xf32>
    %57 = arith.addf %46, %56 : vector<8x256xf32>
    %58 = vector.extract_strided_slice %22 {offsets = [0, 241], sizes = [8, 15], strides = [1, 1]} : vector<8x256xf32> to vector<8x15xf32>
    %59 = vector.extract_strided_slice %22 {offsets = [0, 0], sizes = [8, 241], strides = [1, 1]} : vector<8x256xf32> to vector<8x241xf32>
    %60 = tpu.concatenate %58, %59 in 1 : vector<8x15xf32>, vector<8x241xf32> -> vector<8x256xf32>
    %61 = arith.andi %26, %32 : vector<1x256xi1>
    %cst_16 = arith.constant 0.000000e+00 : f32
    %62 = vector.shape_cast %61 : vector<1x256xi1> to vector<1x256xi1>
    %63 = vector.broadcast %62 : vector<1x256xi1> to vector<8x256xi1>
    %64 = vector.broadcast %cst_16 : f32 to vector<8x256xf32>
    %65 = arith.select %63, %60, %64 : vector<8x256xi1>, vector<8x256xf32>
    %66 = vector.extract_strided_slice %33 {offsets = [0, 2], sizes = [8, 1], strides = [1, 1]} : vector<8x9xf32> to vector<8x1xf32>
    %67 = vector.broadcast %66 : vector<8x1xf32> to vector<8x256xf32>
    %68 = arith.mulf %65, %67 : vector<8x256xf32>
    %69 = arith.addf %57, %68 : vector<8x256xf32>
    %70 = vector.extract_strided_slice %22 {offsets = [0, 255], sizes = [8, 1], strides = [1, 1]} : vector<8x256xf32> to vector<8x1xf32>
    %71 = vector.extract_strided_slice %22 {offsets = [0, 0], sizes = [8, 255], strides = [1, 1]} : vector<8x256xf32> to vector<8x255xf32>
    %72 = tpu.concatenate %70, %71 in 1 : vector<8x1xf32>, vector<8x255xf32> -> vector<8x256xf32>
    %cst_17 = arith.constant 0.000000e+00 : f32
    %73 = vector.shape_cast %30 : vector<1x256xi1> to vector<1x256xi1>
    %74 = vector.broadcast %73 : vector<1x256xi1> to vector<8x256xi1>
    %75 = vector.broadcast %cst_17 : f32 to vector<8x256xf32>
    %76 = arith.select %74, %72, %75 : vector<8x256xi1>, vector<8x256xf32>
    %77 = vector.extract_strided_slice %33 {offsets = [0, 3], sizes = [8, 1], strides = [1, 1]} : vector<8x9xf32> to vector<8x1xf32>
    %78 = vector.broadcast %77 : vector<8x1xf32> to vector<8x256xf32>
    %79 = arith.mulf %76, %78 : vector<8x256xf32>
    %80 = arith.addf %69, %79 : vector<8x256xf32>
    %81 = vector.extract_strided_slice %33 {offsets = [0, 4], sizes = [8, 1], strides = [1, 1]} : vector<8x9xf32> to vector<8x1xf32>
    %82 = vector.broadcast %81 : vector<8x1xf32> to vector<8x256xf32>
    %83 = arith.mulf %22, %82 : vector<8x256xf32>
    %84 = arith.addf %80, %83 : vector<8x256xf32>
    %85 = vector.extract_strided_slice %22 {offsets = [0, 1], sizes = [8, 255], strides = [1, 1]} : vector<8x256xf32> to vector<8x255xf32>
    %86 = vector.extract_strided_slice %22 {offsets = [0, 0], sizes = [8, 1], strides = [1, 1]} : vector<8x256xf32> to vector<8x1xf32>
    %87 = tpu.concatenate %85, %86 in 1 : vector<8x255xf32>, vector<8x1xf32> -> vector<8x256xf32>
    %cst_18 = arith.constant 0.000000e+00 : f32
    %88 = vector.shape_cast %32 : vector<1x256xi1> to vector<1x256xi1>
    %89 = vector.broadcast %88 : vector<1x256xi1> to vector<8x256xi1>
    %90 = vector.broadcast %cst_18 : f32 to vector<8x256xf32>
    %91 = arith.select %89, %87, %90 : vector<8x256xi1>, vector<8x256xf32>
    %92 = vector.extract_strided_slice %33 {offsets = [0, 5], sizes = [8, 1], strides = [1, 1]} : vector<8x9xf32> to vector<8x1xf32>
    %93 = vector.broadcast %92 : vector<8x1xf32> to vector<8x256xf32>
    %94 = arith.mulf %91, %93 : vector<8x256xf32>
    %95 = arith.addf %84, %94 : vector<8x256xf32>
    %96 = vector.extract_strided_slice %22 {offsets = [0, 15], sizes = [8, 241], strides = [1, 1]} : vector<8x256xf32> to vector<8x241xf32>
    %97 = vector.extract_strided_slice %22 {offsets = [0, 0], sizes = [8, 15], strides = [1, 1]} : vector<8x256xf32> to vector<8x15xf32>
    %98 = tpu.concatenate %96, %97 in 1 : vector<8x241xf32>, vector<8x15xf32> -> vector<8x256xf32>
    %99 = arith.andi %28, %30 : vector<1x256xi1>
    %cst_19 = arith.constant 0.000000e+00 : f32
    %100 = vector.shape_cast %99 : vector<1x256xi1> to vector<1x256xi1>
    %101 = vector.broadcast %100 : vector<1x256xi1> to vector<8x256xi1>
    %102 = vector.broadcast %cst_19 : f32 to vector<8x256xf32>
    %103 = arith.select %101, %98, %102 : vector<8x256xi1>, vector<8x256xf32>
    %104 = vector.extract_strided_slice %33 {offsets = [0, 6], sizes = [8, 1], strides = [1, 1]} : vector<8x9xf32> to vector<8x1xf32>
    %105 = vector.broadcast %104 : vector<8x1xf32> to vector<8x256xf32>
    %106 = arith.mulf %103, %105 : vector<8x256xf32>
    %107 = arith.addf %95, %106 : vector<8x256xf32>
    %108 = vector.extract_strided_slice %22 {offsets = [0, 16], sizes = [8, 240], strides = [1, 1]} : vector<8x256xf32> to vector<8x240xf32>
    %109 = vector.extract_strided_slice %22 {offsets = [0, 0], sizes = [8, 16], strides = [1, 1]} : vector<8x256xf32> to vector<8x16xf32>
    %110 = tpu.concatenate %108, %109 in 1 : vector<8x240xf32>, vector<8x16xf32> -> vector<8x256xf32>
    %cst_20 = arith.constant 0.000000e+00 : f32
    %111 = vector.shape_cast %28 : vector<1x256xi1> to vector<1x256xi1>
    %112 = vector.broadcast %111 : vector<1x256xi1> to vector<8x256xi1>
    %113 = vector.broadcast %cst_20 : f32 to vector<8x256xf32>
    %114 = arith.select %112, %110, %113 : vector<8x256xi1>, vector<8x256xf32>
    %115 = vector.extract_strided_slice %33 {offsets = [0, 7], sizes = [8, 1], strides = [1, 1]} : vector<8x9xf32> to vector<8x1xf32>
    %116 = vector.broadcast %115 : vector<8x1xf32> to vector<8x256xf32>
    %117 = arith.mulf %114, %116 : vector<8x256xf32>
    %118 = arith.addf %107, %117 : vector<8x256xf32>
    %119 = vector.extract_strided_slice %22 {offsets = [0, 17], sizes = [8, 239], strides = [1, 1]} : vector<8x256xf32> to vector<8x239xf32>
    %120 = vector.extract_strided_slice %22 {offsets = [0, 0], sizes = [8, 17], strides = [1, 1]} : vector<8x256xf32> to vector<8x17xf32>
    %121 = tpu.concatenate %119, %120 in 1 : vector<8x239xf32>, vector<8x17xf32> -> vector<8x256xf32>
    %122 = arith.andi %28, %32 : vector<1x256xi1>
    %cst_21 = arith.constant 0.000000e+00 : f32
    %123 = vector.shape_cast %122 : vector<1x256xi1> to vector<1x256xi1>
    %124 = vector.broadcast %123 : vector<1x256xi1> to vector<8x256xi1>
    %125 = vector.broadcast %cst_21 : f32 to vector<8x256xf32>
    %126 = arith.select %124, %121, %125 : vector<8x256xi1>, vector<8x256xf32>
    %127 = vector.extract_strided_slice %33 {offsets = [0, 8], sizes = [8, 1], strides = [1, 1]} : vector<8x9xf32> to vector<8x1xf32>
    %128 = vector.broadcast %127 : vector<8x1xf32> to vector<8x256xf32>
    %129 = arith.mulf %126, %128 : vector<8x256xf32>
    %130 = arith.addf %118, %129 : vector<8x256xf32>
    %c0_22 = arith.constant 0 : index
    %c0_23 = arith.constant 0 : index
    %131 = vector.load %arg7[%c0_22, %c0_23] : memref<8x8xf32, #tpu.memory_space<vmem>>, vector<8x8xf32>
    %cst_24 = arith.constant dense<0.000000e+00> : vector<8x256xf32>
    %132 = tpu.matmul %131, %130, %cst_24 {dimension_numbers = #tpu.dot_dimension_numbers<[1], [0], [0], [1], [0, 0, 1, 1], [], []>} : vector<8x8xf32>, vector<8x256xf32>, vector<8x256xf32> -> vector<8x256xf32>
    %c0_25 = arith.constant 0 : index
    %c0_26 = arith.constant 0 : index
    %133 = vector.load %arg8[%c0_25, %c0_26] : memref<8x1xf32, #tpu.memory_space<vmem>>, vector<8x1xf32>
    %134 = vector.broadcast %133 : vector<8x1xf32> to vector<8x256xf32>
    %135 = arith.addf %132, %134 : vector<8x256xf32>
    %c0_27 = arith.constant 0 : index
    %c0_28 = arith.constant 0 : index
    %c0_29 = arith.constant 0 : index
    %136 = vector.load %arg9[%c0_27, %c0_28, %c0_29] : memref<1x8x256xf32, #tpu.memory_space<vmem>>, vector<1x8x256xf32>
    %137 = vector.shape_cast %136 : vector<1x8x256xf32> to vector<8x256xf32>
    %138 = vector.shape_cast %135 : vector<8x256xf32> to vector<1x8x256xf32>
    tpu.vector_store %arg9[%c0_27, %c0_28, %c0_29], %138 {strides = array<i32>} : memref<1x8x256xf32, #tpu.memory_space<vmem>>, vector<1x8x256xf32>,
    return
  }
  func.func @transform_0(%arg0: i32) -> i32 {
    %c0_i32 = arith.constant 0 : i32
    %c0_i32_0 = arith.constant 0 : i32
    return %c0_i32 : i32
  }
  func.func @transform_1(%arg0: i32) -> (i32, i32, i32) {
    %c0_i32 = arith.constant 0 : i32
    %c0_i32_0 = arith.constant 0 : i32
    %c0_i32_1 = arith.constant 0 : i32
    return %arg0, %c0_i32, %c0_i32_0 : i32, i32, i32
  }
  func.func @transform_2(%arg0: i32) -> (i32, i32, i32) {
    %c0_i32 = arith.constant 0 : i32
    %c0_i32_0 = arith.constant 0 : i32
    %c0_i32_1 = arith.constant 0 : i32
    return %arg0, %c0_i32, %c0_i32_0 : i32, i32, i32
  }
  func.func @transform_3(%arg0: i32) -> (i32, i32, i32) {
    %c0_i32 = arith.constant 0 : i32
    %c0_i32_0 = arith.constant 0 : i32
    %c0_i32_1 = arith.constant 0 : i32
    return %arg0, %c0_i32, %c0_i32_0 : i32, i32, i32
  }
  func.func @transform_4(%arg0: i32) -> (i32, i32) {
    %c0_i32 = arith.constant 0 : i32
    %c0_i32_0 = arith.constant 0 : i32
    %c0_i32_1 = arith.constant 0 : i32
    return %c0_i32, %c0_i32_0 : i32, i32
  }
  func.func @transform_5(%arg0: i32) -> (i32, i32) {
    %c0_i32 = arith.constant 0 : i32
    %c0_i32_0 = arith.constant 0 : i32
    %c0_i32_1 = arith.constant 0 : i32
    return %c0_i32, %c0_i32_0 : i32, i32
  }
  func.func @transform_6(%arg0: i32) -> (i32, i32) {
    %c0_i32 = arith.constant 0 : i32
    %c0_i32_0 = arith.constant 0 : i32
    %c0_i32_1 = arith.constant 0 : i32
    return %c0_i32, %c0_i32_0 : i32, i32
  }
  func.func @transform_7(%arg0: i32) -> (i32, i32) {
    %c0_i32 = arith.constant 0 : i32
    %c0_i32_0 = arith.constant 0 : i32
    %c0_i32_1 = arith.constant 0 : i32
    return %c0_i32, %c0_i32_0 : i32, i32
  }
  func.func @transform_8(%arg0: i32) -> (i32, i32, i32) {
    %c0_i32 = arith.constant 0 : i32
    %c0_i32_0 = arith.constant 0 : i32
    %c0_i32_1 = arith.constant 0 : i32
    return %arg0, %c0_i32, %c0_i32_0 : i32, i32, i32
  }
}

module attributes {stable_mosaic.version = 11 : i64} {
  func.func @kernel(%arg0: i32, %arg1: memref<3xf32, #tpu.memory_space<smem>>, %arg2: memref<1x8x64xf32, #tpu.memory_space<vmem>>, %arg3: memref<1x8x64xf32, #tpu.memory_space<vmem>>, %arg4: memref<1x8x64xf32, #tpu.memory_space<vmem>>, %arg5: memref<1x64xi32, #tpu.memory_space<vmem>>, %arg6: memref<8x9xf32, #tpu.memory_space<vmem>>, %arg7: memref<8x8xf32, #tpu.memory_space<vmem>>, %arg8: memref<8x1xf32, #tpu.memory_space<vmem>>, %arg9: memref<1x8x64xf32, #tpu.memory_space<vmem>>) attributes {dimension_semantics = [#tpu.dimension_semantics<parallel>], iteration_bounds = array<i64: 2>, scalar_prefetch = 0 : i64, scratch_operands = 0 : i64, tpu.core_type = #tpu.core_type<tc>, window_params = [{transform_indices = @transform_0, window_bounds = array<i64: 3>}, {transform_indices = @transform_1, window_bounds = array<i64: 1, 8, 64>}, {transform_indices = @transform_2, window_bounds = array<i64: 1, 8, 64>}, {transform_indices = @transform_3, window_bounds = array<i64: 1, 8, 64>}, {pipeline_mode = #tpu.pipeline_mode<synchronous>, transform_indices = @transform_4, window_bounds = array<i64: 1, 64>}, {pipeline_mode = #tpu.pipeline_mode<synchronous>, transform_indices = @transform_5, window_bounds = array<i64: 8, 9>}, {pipeline_mode = #tpu.pipeline_mode<synchronous>, transform_indices = @transform_6, window_bounds = array<i64: 8, 8>}, {pipeline_mode = #tpu.pipeline_mode<synchronous>, transform_indices = @transform_7, window_bounds = array<i64: 8, 1>}, {transform_indices = @transform_8, window_bounds = array<i64: 1, 8, 64>}]} {
    %c0 = arith.constant 0 : index
    %0 = memref.load %arg1[%c0] : memref<3xf32, #tpu.memory_space<smem>>
    %c0_0 = arith.constant 0 : index
    %c0_1 = arith.constant 0 : index
    %c0_2 = arith.constant 0 : index
    %1 = vector.load %arg2[%c0_0, %c0_1, %c0_2] : memref<1x8x64xf32, #tpu.memory_space<vmem>>, vector<1x8x64xf32>
    %2 = vector.shape_cast %1 : vector<1x8x64xf32> to vector<8x64xf32>
    %3 = vector.broadcast %0 : f32 to vector<8x64xf32>
    %4 = arith.mulf %3, %2 : vector<8x64xf32>
    %c1 = arith.constant 1 : index
    %5 = memref.load %arg1[%c1] : memref<3xf32, #tpu.memory_space<smem>>
    %c0_3 = arith.constant 0 : index
    %c0_4 = arith.constant 0 : index
    %c0_5 = arith.constant 0 : index
    %6 = vector.load %arg3[%c0_3, %c0_4, %c0_5] : memref<1x8x64xf32, #tpu.memory_space<vmem>>, vector<1x8x64xf32>
    %7 = vector.shape_cast %6 : vector<1x8x64xf32> to vector<8x64xf32>
    %8 = vector.broadcast %5 : f32 to vector<8x64xf32>
    %9 = arith.mulf %8, %7 : vector<8x64xf32>
    %10 = arith.addf %4, %9 : vector<8x64xf32>
    %c2 = arith.constant 2 : index
    %11 = memref.load %arg1[%c2] : memref<3xf32, #tpu.memory_space<smem>>
    %c0_6 = arith.constant 0 : index
    %c0_7 = arith.constant 0 : index
    %c0_8 = arith.constant 0 : index
    %12 = vector.load %arg4[%c0_6, %c0_7, %c0_8] : memref<1x8x64xf32, #tpu.memory_space<vmem>>, vector<1x8x64xf32>
    %13 = vector.shape_cast %12 : vector<1x8x64xf32> to vector<8x64xf32>
    %14 = vector.broadcast %11 : f32 to vector<8x64xf32>
    %15 = arith.mulf %14, %13 : vector<8x64xf32>
    %16 = arith.addf %10, %15 : vector<8x64xf32>
    %17 = arith.negf %16 : vector<8x64xf32>
    %18 = math.exp %17 : vector<8x64xf32>
    %cst = arith.constant 1.000000e+00 : f32
    %19 = vector.broadcast %cst : f32 to vector<8x64xf32>
    %20 = arith.addf %19, %18 : vector<8x64xf32>
    %21 = arith.divf %19, %20 : vector<8x64xf32>
    %22 = arith.mulf %16, %21 : vector<8x64xf32>
    %23 = tpu.iota {dimensions = array<i32: 1>} : vector<1x64xi32>
    %c0_9 = arith.constant 0 : index
    %c0_10 = arith.constant 0 : index
    %24 = vector.load %arg5[%c0_9, %c0_10] : memref<1x64xi32, #tpu.memory_space<vmem>>, vector<1x64xi32>
    %c8_i32 = arith.constant 8 : i32
    %25 = vector.broadcast %c8_i32 : i32 to vector<1x64xi32>
    %26 = arith.cmpi sge, %23, %25 : vector<1x64xi32>
    %c56_i32 = arith.constant 56 : i32
    %27 = vector.broadcast %c56_i32 : i32 to vector<1x64xi32>
    %28 = arith.cmpi slt, %23, %27 : vector<1x64xi32>
    %c1_i32 = arith.constant 1 : i32
    %29 = vector.broadcast %c1_i32 : i32 to vector<1x64xi32>
    %30 = arith.cmpi sge, %24, %29 : vector<1x64xi32>
    %c6_i32 = arith.constant 6 : i32
    %31 = vector.broadcast %c6_i32 : i32 to vector<1x64xi32>
    %32 = arith.cmpi sle, %24, %31 : vector<1x64xi32>
    %c0_11 = arith.constant 0 : index
    %c0_12 = arith.constant 0 : index
    %33 = vector.load %arg6[%c0_11, %c0_12] : memref<8x9xf32, #tpu.memory_space<vmem>>, vector<8x9xf32>
    %cst_13 = arith.constant 0.000000e+00 : f32
    %34 = vector.broadcast %cst_13 : f32 to vector<8x64xf32>
    %35 = vector.extract_strided_slice %22 {offsets = [0, 55], sizes = [8, 9], strides = [1, 1]} : vector<8x64xf32> to vector<8x9xf32>
    %36 = vector.extract_strided_slice %22 {offsets = [0, 0], sizes = [8, 55], strides = [1, 1]} : vector<8x64xf32> to vector<8x55xf32>
    %37 = tpu.concatenate %35, %36 in 1 : vector<8x9xf32>, vector<8x55xf32> -> vector<8x64xf32>
    %38 = arith.andi %26, %30 : vector<1x64xi1>
    %cst_14 = arith.constant 0.000000e+00 : f32
    %39 = vector.shape_cast %38 : vector<1x64xi1> to vector<1x64xi1>
    %40 = vector.broadcast %39 : vector<1x64xi1> to vector<8x64xi1>
    %41 = vector.broadcast %cst_14 : f32 to vector<8x64xf32>
    %42 = arith.select %40, %37, %41 : vector<8x64xi1>, vector<8x64xf32>
    %43 = vector.extract_strided_slice %33 {offsets = [0, 0], sizes = [8, 1], strides = [1, 1]} : vector<8x9xf32> to vector<8x1xf32>
    %44 = vector.broadcast %43 : vector<8x1xf32> to vector<8x64xf32>
    %45 = arith.mulf %42, %44 : vector<8x64xf32>
    %46 = arith.addf %34, %45 : vector<8x64xf32>
    %47 = vector.extract_strided_slice %22 {offsets = [0, 56], sizes = [8, 8], strides = [1, 1]} : vector<8x64xf32> to vector<8x8xf32>
    %48 = vector.extract_strided_slice %22 {offsets = [0, 0], sizes = [8, 56], strides = [1, 1]} : vector<8x64xf32> to vector<8x56xf32>
    %49 = tpu.concatenate %47, %48 in 1 : vector<8x8xf32>, vector<8x56xf32> -> vector<8x64xf32>
    %cst_15 = arith.constant 0.000000e+00 : f32
    %50 = vector.shape_cast %26 : vector<1x64xi1> to vector<1x64xi1>
    %51 = vector.broadcast %50 : vector<1x64xi1> to vector<8x64xi1>
    %52 = vector.broadcast %cst_15 : f32 to vector<8x64xf32>
    %53 = arith.select %51, %49, %52 : vector<8x64xi1>, vector<8x64xf32>
    %54 = vector.extract_strided_slice %33 {offsets = [0, 1], sizes = [8, 1], strides = [1, 1]} : vector<8x9xf32> to vector<8x1xf32>
    %55 = vector.broadcast %54 : vector<8x1xf32> to vector<8x64xf32>
    %56 = arith.mulf %53, %55 : vector<8x64xf32>
    %57 = arith.addf %46, %56 : vector<8x64xf32>
    %58 = vector.extract_strided_slice %22 {offsets = [0, 57], sizes = [8, 7], strides = [1, 1]} : vector<8x64xf32> to vector<8x7xf32>
    %59 = vector.extract_strided_slice %22 {offsets = [0, 0], sizes = [8, 57], strides = [1, 1]} : vector<8x64xf32> to vector<8x57xf32>
    %60 = tpu.concatenate %58, %59 in 1 : vector<8x7xf32>, vector<8x57xf32> -> vector<8x64xf32>
    %61 = arith.andi %26, %32 : vector<1x64xi1>
    %cst_16 = arith.constant 0.000000e+00 : f32
    %62 = vector.shape_cast %61 : vector<1x64xi1> to vector<1x64xi1>
    %63 = vector.broadcast %62 : vector<1x64xi1> to vector<8x64xi1>
    %64 = vector.broadcast %cst_16 : f32 to vector<8x64xf32>
    %65 = arith.select %63, %60, %64 : vector<8x64xi1>, vector<8x64xf32>
    %66 = vector.extract_strided_slice %33 {offsets = [0, 2], sizes = [8, 1], strides = [1, 1]} : vector<8x9xf32> to vector<8x1xf32>
    %67 = vector.broadcast %66 : vector<8x1xf32> to vector<8x64xf32>
    %68 = arith.mulf %65, %67 : vector<8x64xf32>
    %69 = arith.addf %57, %68 : vector<8x64xf32>
    %70 = vector.extract_strided_slice %22 {offsets = [0, 63], sizes = [8, 1], strides = [1, 1]} : vector<8x64xf32> to vector<8x1xf32>
    %71 = vector.extract_strided_slice %22 {offsets = [0, 0], sizes = [8, 63], strides = [1, 1]} : vector<8x64xf32> to vector<8x63xf32>
    %72 = tpu.concatenate %70, %71 in 1 : vector<8x1xf32>, vector<8x63xf32> -> vector<8x64xf32>
    %cst_17 = arith.constant 0.000000e+00 : f32
    %73 = vector.shape_cast %30 : vector<1x64xi1> to vector<1x64xi1>
    %74 = vector.broadcast %73 : vector<1x64xi1> to vector<8x64xi1>
    %75 = vector.broadcast %cst_17 : f32 to vector<8x64xf32>
    %76 = arith.select %74, %72, %75 : vector<8x64xi1>, vector<8x64xf32>
    %77 = vector.extract_strided_slice %33 {offsets = [0, 3], sizes = [8, 1], strides = [1, 1]} : vector<8x9xf32> to vector<8x1xf32>
    %78 = vector.broadcast %77 : vector<8x1xf32> to vector<8x64xf32>
    %79 = arith.mulf %76, %78 : vector<8x64xf32>
    %80 = arith.addf %69, %79 : vector<8x64xf32>
    %81 = vector.extract_strided_slice %33 {offsets = [0, 4], sizes = [8, 1], strides = [1, 1]} : vector<8x9xf32> to vector<8x1xf32>
    %82 = vector.broadcast %81 : vector<8x1xf32> to vector<8x64xf32>
    %83 = arith.mulf %22, %82 : vector<8x64xf32>
    %84 = arith.addf %80, %83 : vector<8x64xf32>
    %85 = vector.extract_strided_slice %22 {offsets = [0, 1], sizes = [8, 63], strides = [1, 1]} : vector<8x64xf32> to vector<8x63xf32>
    %86 = vector.extract_strided_slice %22 {offsets = [0, 0], sizes = [8, 1], strides = [1, 1]} : vector<8x64xf32> to vector<8x1xf32>
    %87 = tpu.concatenate %85, %86 in 1 : vector<8x63xf32>, vector<8x1xf32> -> vector<8x64xf32>
    %cst_18 = arith.constant 0.000000e+00 : f32
    %88 = vector.shape_cast %32 : vector<1x64xi1> to vector<1x64xi1>
    %89 = vector.broadcast %88 : vector<1x64xi1> to vector<8x64xi1>
    %90 = vector.broadcast %cst_18 : f32 to vector<8x64xf32>
    %91 = arith.select %89, %87, %90 : vector<8x64xi1>, vector<8x64xf32>
    %92 = vector.extract_strided_slice %33 {offsets = [0, 5], sizes = [8, 1], strides = [1, 1]} : vector<8x9xf32> to vector<8x1xf32>
    %93 = vector.broadcast %92 : vector<8x1xf32> to vector<8x64xf32>
    %94 = arith.mulf %91, %93 : vector<8x64xf32>
    %95 = arith.addf %84, %94 : vector<8x64xf32>
    %96 = vector.extract_strided_slice %22 {offsets = [0, 7], sizes = [8, 57], strides = [1, 1]} : vector<8x64xf32> to vector<8x57xf32>
    %97 = vector.extract_strided_slice %22 {offsets = [0, 0], sizes = [8, 7], strides = [1, 1]} : vector<8x64xf32> to vector<8x7xf32>
    %98 = tpu.concatenate %96, %97 in 1 : vector<8x57xf32>, vector<8x7xf32> -> vector<8x64xf32>
    %99 = arith.andi %28, %30 : vector<1x64xi1>
    %cst_19 = arith.constant 0.000000e+00 : f32
    %100 = vector.shape_cast %99 : vector<1x64xi1> to vector<1x64xi1>
    %101 = vector.broadcast %100 : vector<1x64xi1> to vector<8x64xi1>
    %102 = vector.broadcast %cst_19 : f32 to vector<8x64xf32>
    %103 = arith.select %101, %98, %102 : vector<8x64xi1>, vector<8x64xf32>
    %104 = vector.extract_strided_slice %33 {offsets = [0, 6], sizes = [8, 1], strides = [1, 1]} : vector<8x9xf32> to vector<8x1xf32>
    %105 = vector.broadcast %104 : vector<8x1xf32> to vector<8x64xf32>
    %106 = arith.mulf %103, %105 : vector<8x64xf32>
    %107 = arith.addf %95, %106 : vector<8x64xf32>
    %108 = vector.extract_strided_slice %22 {offsets = [0, 8], sizes = [8, 56], strides = [1, 1]} : vector<8x64xf32> to vector<8x56xf32>
    %109 = vector.extract_strided_slice %22 {offsets = [0, 0], sizes = [8, 8], strides = [1, 1]} : vector<8x64xf32> to vector<8x8xf32>
    %110 = tpu.concatenate %108, %109 in 1 : vector<8x56xf32>, vector<8x8xf32> -> vector<8x64xf32>
    %cst_20 = arith.constant 0.000000e+00 : f32
    %111 = vector.shape_cast %28 : vector<1x64xi1> to vector<1x64xi1>
    %112 = vector.broadcast %111 : vector<1x64xi1> to vector<8x64xi1>
    %113 = vector.broadcast %cst_20 : f32 to vector<8x64xf32>
    %114 = arith.select %112, %110, %113 : vector<8x64xi1>, vector<8x64xf32>
    %115 = vector.extract_strided_slice %33 {offsets = [0, 7], sizes = [8, 1], strides = [1, 1]} : vector<8x9xf32> to vector<8x1xf32>
    %116 = vector.broadcast %115 : vector<8x1xf32> to vector<8x64xf32>
    %117 = arith.mulf %114, %116 : vector<8x64xf32>
    %118 = arith.addf %107, %117 : vector<8x64xf32>
    %119 = vector.extract_strided_slice %22 {offsets = [0, 9], sizes = [8, 55], strides = [1, 1]} : vector<8x64xf32> to vector<8x55xf32>
    %120 = vector.extract_strided_slice %22 {offsets = [0, 0], sizes = [8, 9], strides = [1, 1]} : vector<8x64xf32> to vector<8x9xf32>
    %121 = tpu.concatenate %119, %120 in 1 : vector<8x55xf32>, vector<8x9xf32> -> vector<8x64xf32>
    %122 = arith.andi %28, %32 : vector<1x64xi1>
    %cst_21 = arith.constant 0.000000e+00 : f32
    %123 = vector.shape_cast %122 : vector<1x64xi1> to vector<1x64xi1>
    %124 = vector.broadcast %123 : vector<1x64xi1> to vector<8x64xi1>
    %125 = vector.broadcast %cst_21 : f32 to vector<8x64xf32>
    %126 = arith.select %124, %121, %125 : vector<8x64xi1>, vector<8x64xf32>
    %127 = vector.extract_strided_slice %33 {offsets = [0, 8], sizes = [8, 1], strides = [1, 1]} : vector<8x9xf32> to vector<8x1xf32>
    %128 = vector.broadcast %127 : vector<8x1xf32> to vector<8x64xf32>
    %129 = arith.mulf %126, %128 : vector<8x64xf32>
    %130 = arith.addf %118, %129 : vector<8x64xf32>
    %c0_22 = arith.constant 0 : index
    %c0_23 = arith.constant 0 : index
    %131 = vector.load %arg7[%c0_22, %c0_23] : memref<8x8xf32, #tpu.memory_space<vmem>>, vector<8x8xf32>
    %cst_24 = arith.constant dense<0.000000e+00> : vector<8x64xf32>
    %132 = tpu.matmul %131, %130, %cst_24 {dimension_numbers = #tpu.dot_dimension_numbers<[1], [0], [0], [1], [0, 0, 1, 1], [], []>} : vector<8x8xf32>, vector<8x64xf32>, vector<8x64xf32> -> vector<8x64xf32>
    %c0_25 = arith.constant 0 : index
    %c0_26 = arith.constant 0 : index
    %133 = vector.load %arg8[%c0_25, %c0_26] : memref<8x1xf32, #tpu.memory_space<vmem>>, vector<8x1xf32>
    %134 = vector.broadcast %133 : vector<8x1xf32> to vector<8x64xf32>
    %135 = arith.addf %132, %134 : vector<8x64xf32>
    %c0_27 = arith.constant 0 : index
    %c0_28 = arith.constant 0 : index
    %c0_29 = arith.constant 0 : index
    %136 = vector.load %arg9[%c0_27, %c0_28, %c0_29] : memref<1x8x64xf32, #tpu.memory_space<vmem>>, vector<1x8x64xf32>
    %137 = vector.shape_cast %136 : vector<1x8x64xf32> to vector<8x64xf32>
    %138 = vector.shape_cast %135 : vector<8x64xf32> to vector<1x8x64xf32>
    tpu.vector_store %arg9[%c0_27, %c0_28, %c0_29], %138 {strides = array<i32>} : memref<1x8x64xf32, #tpu.memory_space<vmem>>, vector<1x8x64xf32>,
    return
  }
  func.func @transform_0(%arg0: i32) -> i32 {
    %c0_i32 = arith.constant 0 : i32
    %c0_i32_0 = arith.constant 0 : i32
    return %c0_i32 : i32
  }
  func.func @transform_1(%arg0: i32) -> (i32, i32, i32) {
    %c0_i32 = arith.constant 0 : i32
    %c0_i32_0 = arith.constant 0 : i32
    %c0_i32_1 = arith.constant 0 : i32
    return %arg0, %c0_i32, %c0_i32_0 : i32, i32, i32
  }
  func.func @transform_2(%arg0: i32) -> (i32, i32, i32) {
    %c0_i32 = arith.constant 0 : i32
    %c0_i32_0 = arith.constant 0 : i32
    %c0_i32_1 = arith.constant 0 : i32
    return %arg0, %c0_i32, %c0_i32_0 : i32, i32, i32
  }
  func.func @transform_3(%arg0: i32) -> (i32, i32, i32) {
    %c0_i32 = arith.constant 0 : i32
    %c0_i32_0 = arith.constant 0 : i32
    %c0_i32_1 = arith.constant 0 : i32
    return %arg0, %c0_i32, %c0_i32_0 : i32, i32, i32
  }
  func.func @transform_4(%arg0: i32) -> (i32, i32) {
    %c0_i32 = arith.constant 0 : i32
    %c0_i32_0 = arith.constant 0 : i32
    %c0_i32_1 = arith.constant 0 : i32
    return %c0_i32, %c0_i32_0 : i32, i32
  }
  func.func @transform_5(%arg0: i32) -> (i32, i32) {
    %c0_i32 = arith.constant 0 : i32
    %c0_i32_0 = arith.constant 0 : i32
    %c0_i32_1 = arith.constant 0 : i32
    return %c0_i32, %c0_i32_0 : i32, i32
  }
  func.func @transform_6(%arg0: i32) -> (i32, i32) {
    %c0_i32 = arith.constant 0 : i32
    %c0_i32_0 = arith.constant 0 : i32
    %c0_i32_1 = arith.constant 0 : i32
    return %c0_i32, %c0_i32_0 : i32, i32
  }
  func.func @transform_7(%arg0: i32) -> (i32, i32) {
    %c0_i32 = arith.constant 0 : i32
    %c0_i32_0 = arith.constant 0 : i32
    %c0_i32_1 = arith.constant 0 : i32
    return %c0_i32, %c0_i32_0 : i32, i32
  }
  func.func @transform_8(%arg0: i32) -> (i32, i32, i32) {
    %c0_i32 = arith.constant 0 : i32
    %c0_i32_0 = arith.constant 0 : i32
    %c0_i32_1 = arith.constant 0 : i32
    return %arg0, %c0_i32, %c0_i32_0 : i32, i32, i32
  }
}

module attributes {stable_mosaic.version = 11 : i64} {
  func.func @kernel(%arg0: i32, %arg1: memref<3xf32, #tpu.memory_space<smem>>, %arg2: memref<1x8x16xf32, #tpu.memory_space<vmem>>, %arg3: memref<1x8x16xf32, #tpu.memory_space<vmem>>, %arg4: memref<1x8x16xf32, #tpu.memory_space<vmem>>, %arg5: memref<1x16xi32, #tpu.memory_space<vmem>>, %arg6: memref<8x9xf32, #tpu.memory_space<vmem>>, %arg7: memref<8x8xf32, #tpu.memory_space<vmem>>, %arg8: memref<8x1xf32, #tpu.memory_space<vmem>>, %arg9: memref<1x8x16xf32, #tpu.memory_space<vmem>>) attributes {dimension_semantics = [#tpu.dimension_semantics<parallel>], iteration_bounds = array<i64: 2>, scalar_prefetch = 0 : i64, scratch_operands = 0 : i64, tpu.core_type = #tpu.core_type<tc>, window_params = [{transform_indices = @transform_0, window_bounds = array<i64: 3>}, {transform_indices = @transform_1, window_bounds = array<i64: 1, 8, 16>}, {transform_indices = @transform_2, window_bounds = array<i64: 1, 8, 16>}, {transform_indices = @transform_3, window_bounds = array<i64: 1, 8, 16>}, {pipeline_mode = #tpu.pipeline_mode<synchronous>, transform_indices = @transform_4, window_bounds = array<i64: 1, 16>}, {pipeline_mode = #tpu.pipeline_mode<synchronous>, transform_indices = @transform_5, window_bounds = array<i64: 8, 9>}, {pipeline_mode = #tpu.pipeline_mode<synchronous>, transform_indices = @transform_6, window_bounds = array<i64: 8, 8>}, {pipeline_mode = #tpu.pipeline_mode<synchronous>, transform_indices = @transform_7, window_bounds = array<i64: 8, 1>}, {transform_indices = @transform_8, window_bounds = array<i64: 1, 8, 16>}]} {
    %c0 = arith.constant 0 : index
    %0 = memref.load %arg1[%c0] : memref<3xf32, #tpu.memory_space<smem>>
    %c0_0 = arith.constant 0 : index
    %c0_1 = arith.constant 0 : index
    %c0_2 = arith.constant 0 : index
    %1 = vector.load %arg2[%c0_0, %c0_1, %c0_2] : memref<1x8x16xf32, #tpu.memory_space<vmem>>, vector<1x8x16xf32>
    %2 = vector.shape_cast %1 : vector<1x8x16xf32> to vector<8x16xf32>
    %3 = vector.broadcast %0 : f32 to vector<8x16xf32>
    %4 = arith.mulf %3, %2 : vector<8x16xf32>
    %c1 = arith.constant 1 : index
    %5 = memref.load %arg1[%c1] : memref<3xf32, #tpu.memory_space<smem>>
    %c0_3 = arith.constant 0 : index
    %c0_4 = arith.constant 0 : index
    %c0_5 = arith.constant 0 : index
    %6 = vector.load %arg3[%c0_3, %c0_4, %c0_5] : memref<1x8x16xf32, #tpu.memory_space<vmem>>, vector<1x8x16xf32>
    %7 = vector.shape_cast %6 : vector<1x8x16xf32> to vector<8x16xf32>
    %8 = vector.broadcast %5 : f32 to vector<8x16xf32>
    %9 = arith.mulf %8, %7 : vector<8x16xf32>
    %10 = arith.addf %4, %9 : vector<8x16xf32>
    %c2 = arith.constant 2 : index
    %11 = memref.load %arg1[%c2] : memref<3xf32, #tpu.memory_space<smem>>
    %c0_6 = arith.constant 0 : index
    %c0_7 = arith.constant 0 : index
    %c0_8 = arith.constant 0 : index
    %12 = vector.load %arg4[%c0_6, %c0_7, %c0_8] : memref<1x8x16xf32, #tpu.memory_space<vmem>>, vector<1x8x16xf32>
    %13 = vector.shape_cast %12 : vector<1x8x16xf32> to vector<8x16xf32>
    %14 = vector.broadcast %11 : f32 to vector<8x16xf32>
    %15 = arith.mulf %14, %13 : vector<8x16xf32>
    %16 = arith.addf %10, %15 : vector<8x16xf32>
    %17 = arith.negf %16 : vector<8x16xf32>
    %18 = math.exp %17 : vector<8x16xf32>
    %cst = arith.constant 1.000000e+00 : f32
    %19 = vector.broadcast %cst : f32 to vector<8x16xf32>
    %20 = arith.addf %19, %18 : vector<8x16xf32>
    %21 = arith.divf %19, %20 : vector<8x16xf32>
    %22 = arith.mulf %16, %21 : vector<8x16xf32>
    %23 = tpu.iota {dimensions = array<i32: 1>} : vector<1x16xi32>
    %c0_9 = arith.constant 0 : index
    %c0_10 = arith.constant 0 : index
    %24 = vector.load %arg5[%c0_9, %c0_10] : memref<1x16xi32, #tpu.memory_space<vmem>>, vector<1x16xi32>
    %c4_i32 = arith.constant 4 : i32
    %25 = vector.broadcast %c4_i32 : i32 to vector<1x16xi32>
    %26 = arith.cmpi sge, %23, %25 : vector<1x16xi32>
    %c12_i32 = arith.constant 12 : i32
    %27 = vector.broadcast %c12_i32 : i32 to vector<1x16xi32>
    %28 = arith.cmpi slt, %23, %27 : vector<1x16xi32>
    %c1_i32 = arith.constant 1 : i32
    %29 = vector.broadcast %c1_i32 : i32 to vector<1x16xi32>
    %30 = arith.cmpi sge, %24, %29 : vector<1x16xi32>
    %c2_i32 = arith.constant 2 : i32
    %31 = vector.broadcast %c2_i32 : i32 to vector<1x16xi32>
    %32 = arith.cmpi sle, %24, %31 : vector<1x16xi32>
    %c0_11 = arith.constant 0 : index
    %c0_12 = arith.constant 0 : index
    %33 = vector.load %arg6[%c0_11, %c0_12] : memref<8x9xf32, #tpu.memory_space<vmem>>, vector<8x9xf32>
    %cst_13 = arith.constant 0.000000e+00 : f32
    %34 = vector.broadcast %cst_13 : f32 to vector<8x16xf32>
    %35 = vector.extract_strided_slice %22 {offsets = [0, 11], sizes = [8, 5], strides = [1, 1]} : vector<8x16xf32> to vector<8x5xf32>
    %36 = vector.extract_strided_slice %22 {offsets = [0, 0], sizes = [8, 11], strides = [1, 1]} : vector<8x16xf32> to vector<8x11xf32>
    %37 = tpu.concatenate %35, %36 in 1 : vector<8x5xf32>, vector<8x11xf32> -> vector<8x16xf32>
    %38 = arith.andi %26, %30 : vector<1x16xi1>
    %cst_14 = arith.constant 0.000000e+00 : f32
    %39 = vector.shape_cast %38 : vector<1x16xi1> to vector<1x16xi1>
    %40 = vector.broadcast %39 : vector<1x16xi1> to vector<8x16xi1>
    %41 = vector.broadcast %cst_14 : f32 to vector<8x16xf32>
    %42 = arith.select %40, %37, %41 : vector<8x16xi1>, vector<8x16xf32>
    %43 = vector.extract_strided_slice %33 {offsets = [0, 0], sizes = [8, 1], strides = [1, 1]} : vector<8x9xf32> to vector<8x1xf32>
    %44 = vector.broadcast %43 : vector<8x1xf32> to vector<8x16xf32>
    %45 = arith.mulf %42, %44 : vector<8x16xf32>
    %46 = arith.addf %34, %45 : vector<8x16xf32>
    %47 = vector.extract_strided_slice %22 {offsets = [0, 12], sizes = [8, 4], strides = [1, 1]} : vector<8x16xf32> to vector<8x4xf32>
    %48 = vector.extract_strided_slice %22 {offsets = [0, 0], sizes = [8, 12], strides = [1, 1]} : vector<8x16xf32> to vector<8x12xf32>
    %49 = tpu.concatenate %47, %48 in 1 : vector<8x4xf32>, vector<8x12xf32> -> vector<8x16xf32>
    %cst_15 = arith.constant 0.000000e+00 : f32
    %50 = vector.shape_cast %26 : vector<1x16xi1> to vector<1x16xi1>
    %51 = vector.broadcast %50 : vector<1x16xi1> to vector<8x16xi1>
    %52 = vector.broadcast %cst_15 : f32 to vector<8x16xf32>
    %53 = arith.select %51, %49, %52 : vector<8x16xi1>, vector<8x16xf32>
    %54 = vector.extract_strided_slice %33 {offsets = [0, 1], sizes = [8, 1], strides = [1, 1]} : vector<8x9xf32> to vector<8x1xf32>
    %55 = vector.broadcast %54 : vector<8x1xf32> to vector<8x16xf32>
    %56 = arith.mulf %53, %55 : vector<8x16xf32>
    %57 = arith.addf %46, %56 : vector<8x16xf32>
    %58 = vector.extract_strided_slice %22 {offsets = [0, 13], sizes = [8, 3], strides = [1, 1]} : vector<8x16xf32> to vector<8x3xf32>
    %59 = vector.extract_strided_slice %22 {offsets = [0, 0], sizes = [8, 13], strides = [1, 1]} : vector<8x16xf32> to vector<8x13xf32>
    %60 = tpu.concatenate %58, %59 in 1 : vector<8x3xf32>, vector<8x13xf32> -> vector<8x16xf32>
    %61 = arith.andi %26, %32 : vector<1x16xi1>
    %cst_16 = arith.constant 0.000000e+00 : f32
    %62 = vector.shape_cast %61 : vector<1x16xi1> to vector<1x16xi1>
    %63 = vector.broadcast %62 : vector<1x16xi1> to vector<8x16xi1>
    %64 = vector.broadcast %cst_16 : f32 to vector<8x16xf32>
    %65 = arith.select %63, %60, %64 : vector<8x16xi1>, vector<8x16xf32>
    %66 = vector.extract_strided_slice %33 {offsets = [0, 2], sizes = [8, 1], strides = [1, 1]} : vector<8x9xf32> to vector<8x1xf32>
    %67 = vector.broadcast %66 : vector<8x1xf32> to vector<8x16xf32>
    %68 = arith.mulf %65, %67 : vector<8x16xf32>
    %69 = arith.addf %57, %68 : vector<8x16xf32>
    %70 = vector.extract_strided_slice %22 {offsets = [0, 15], sizes = [8, 1], strides = [1, 1]} : vector<8x16xf32> to vector<8x1xf32>
    %71 = vector.extract_strided_slice %22 {offsets = [0, 0], sizes = [8, 15], strides = [1, 1]} : vector<8x16xf32> to vector<8x15xf32>
    %72 = tpu.concatenate %70, %71 in 1 : vector<8x1xf32>, vector<8x15xf32> -> vector<8x16xf32>
    %cst_17 = arith.constant 0.000000e+00 : f32
    %73 = vector.shape_cast %30 : vector<1x16xi1> to vector<1x16xi1>
    %74 = vector.broadcast %73 : vector<1x16xi1> to vector<8x16xi1>
    %75 = vector.broadcast %cst_17 : f32 to vector<8x16xf32>
    %76 = arith.select %74, %72, %75 : vector<8x16xi1>, vector<8x16xf32>
    %77 = vector.extract_strided_slice %33 {offsets = [0, 3], sizes = [8, 1], strides = [1, 1]} : vector<8x9xf32> to vector<8x1xf32>
    %78 = vector.broadcast %77 : vector<8x1xf32> to vector<8x16xf32>
    %79 = arith.mulf %76, %78 : vector<8x16xf32>
    %80 = arith.addf %69, %79 : vector<8x16xf32>
    %81 = vector.extract_strided_slice %33 {offsets = [0, 4], sizes = [8, 1], strides = [1, 1]} : vector<8x9xf32> to vector<8x1xf32>
    %82 = vector.broadcast %81 : vector<8x1xf32> to vector<8x16xf32>
    %83 = arith.mulf %22, %82 : vector<8x16xf32>
    %84 = arith.addf %80, %83 : vector<8x16xf32>
    %85 = vector.extract_strided_slice %22 {offsets = [0, 1], sizes = [8, 15], strides = [1, 1]} : vector<8x16xf32> to vector<8x15xf32>
    %86 = vector.extract_strided_slice %22 {offsets = [0, 0], sizes = [8, 1], strides = [1, 1]} : vector<8x16xf32> to vector<8x1xf32>
    %87 = tpu.concatenate %85, %86 in 1 : vector<8x15xf32>, vector<8x1xf32> -> vector<8x16xf32>
    %cst_18 = arith.constant 0.000000e+00 : f32
    %88 = vector.shape_cast %32 : vector<1x16xi1> to vector<1x16xi1>
    %89 = vector.broadcast %88 : vector<1x16xi1> to vector<8x16xi1>
    %90 = vector.broadcast %cst_18 : f32 to vector<8x16xf32>
    %91 = arith.select %89, %87, %90 : vector<8x16xi1>, vector<8x16xf32>
    %92 = vector.extract_strided_slice %33 {offsets = [0, 5], sizes = [8, 1], strides = [1, 1]} : vector<8x9xf32> to vector<8x1xf32>
    %93 = vector.broadcast %92 : vector<8x1xf32> to vector<8x16xf32>
    %94 = arith.mulf %91, %93 : vector<8x16xf32>
    %95 = arith.addf %84, %94 : vector<8x16xf32>
    %96 = vector.extract_strided_slice %22 {offsets = [0, 3], sizes = [8, 13], strides = [1, 1]} : vector<8x16xf32> to vector<8x13xf32>
    %97 = vector.extract_strided_slice %22 {offsets = [0, 0], sizes = [8, 3], strides = [1, 1]} : vector<8x16xf32> to vector<8x3xf32>
    %98 = tpu.concatenate %96, %97 in 1 : vector<8x13xf32>, vector<8x3xf32> -> vector<8x16xf32>
    %99 = arith.andi %28, %30 : vector<1x16xi1>
    %cst_19 = arith.constant 0.000000e+00 : f32
    %100 = vector.shape_cast %99 : vector<1x16xi1> to vector<1x16xi1>
    %101 = vector.broadcast %100 : vector<1x16xi1> to vector<8x16xi1>
    %102 = vector.broadcast %cst_19 : f32 to vector<8x16xf32>
    %103 = arith.select %101, %98, %102 : vector<8x16xi1>, vector<8x16xf32>
    %104 = vector.extract_strided_slice %33 {offsets = [0, 6], sizes = [8, 1], strides = [1, 1]} : vector<8x9xf32> to vector<8x1xf32>
    %105 = vector.broadcast %104 : vector<8x1xf32> to vector<8x16xf32>
    %106 = arith.mulf %103, %105 : vector<8x16xf32>
    %107 = arith.addf %95, %106 : vector<8x16xf32>
    %108 = vector.extract_strided_slice %22 {offsets = [0, 4], sizes = [8, 12], strides = [1, 1]} : vector<8x16xf32> to vector<8x12xf32>
    %109 = vector.extract_strided_slice %22 {offsets = [0, 0], sizes = [8, 4], strides = [1, 1]} : vector<8x16xf32> to vector<8x4xf32>
    %110 = tpu.concatenate %108, %109 in 1 : vector<8x12xf32>, vector<8x4xf32> -> vector<8x16xf32>
    %cst_20 = arith.constant 0.000000e+00 : f32
    %111 = vector.shape_cast %28 : vector<1x16xi1> to vector<1x16xi1>
    %112 = vector.broadcast %111 : vector<1x16xi1> to vector<8x16xi1>
    %113 = vector.broadcast %cst_20 : f32 to vector<8x16xf32>
    %114 = arith.select %112, %110, %113 : vector<8x16xi1>, vector<8x16xf32>
    %115 = vector.extract_strided_slice %33 {offsets = [0, 7], sizes = [8, 1], strides = [1, 1]} : vector<8x9xf32> to vector<8x1xf32>
    %116 = vector.broadcast %115 : vector<8x1xf32> to vector<8x16xf32>
    %117 = arith.mulf %114, %116 : vector<8x16xf32>
    %118 = arith.addf %107, %117 : vector<8x16xf32>
    %119 = vector.extract_strided_slice %22 {offsets = [0, 5], sizes = [8, 11], strides = [1, 1]} : vector<8x16xf32> to vector<8x11xf32>
    %120 = vector.extract_strided_slice %22 {offsets = [0, 0], sizes = [8, 5], strides = [1, 1]} : vector<8x16xf32> to vector<8x5xf32>
    %121 = tpu.concatenate %119, %120 in 1 : vector<8x11xf32>, vector<8x5xf32> -> vector<8x16xf32>
    %122 = arith.andi %28, %32 : vector<1x16xi1>
    %cst_21 = arith.constant 0.000000e+00 : f32
    %123 = vector.shape_cast %122 : vector<1x16xi1> to vector<1x16xi1>
    %124 = vector.broadcast %123 : vector<1x16xi1> to vector<8x16xi1>
    %125 = vector.broadcast %cst_21 : f32 to vector<8x16xf32>
    %126 = arith.select %124, %121, %125 : vector<8x16xi1>, vector<8x16xf32>
    %127 = vector.extract_strided_slice %33 {offsets = [0, 8], sizes = [8, 1], strides = [1, 1]} : vector<8x9xf32> to vector<8x1xf32>
    %128 = vector.broadcast %127 : vector<8x1xf32> to vector<8x16xf32>
    %129 = arith.mulf %126, %128 : vector<8x16xf32>
    %130 = arith.addf %118, %129 : vector<8x16xf32>
    %c0_22 = arith.constant 0 : index
    %c0_23 = arith.constant 0 : index
    %131 = vector.load %arg7[%c0_22, %c0_23] : memref<8x8xf32, #tpu.memory_space<vmem>>, vector<8x8xf32>
    %cst_24 = arith.constant dense<0.000000e+00> : vector<8x16xf32>
    %132 = tpu.matmul %131, %130, %cst_24 {dimension_numbers = #tpu.dot_dimension_numbers<[1], [0], [0], [1], [0, 0, 1, 1], [], []>} : vector<8x8xf32>, vector<8x16xf32>, vector<8x16xf32> -> vector<8x16xf32>
    %c0_25 = arith.constant 0 : index
    %c0_26 = arith.constant 0 : index
    %133 = vector.load %arg8[%c0_25, %c0_26] : memref<8x1xf32, #tpu.memory_space<vmem>>, vector<8x1xf32>
    %134 = vector.broadcast %133 : vector<8x1xf32> to vector<8x16xf32>
    %135 = arith.addf %132, %134 : vector<8x16xf32>
    %c0_27 = arith.constant 0 : index
    %c0_28 = arith.constant 0 : index
    %c0_29 = arith.constant 0 : index
    %136 = vector.load %arg9[%c0_27, %c0_28, %c0_29] : memref<1x8x16xf32, #tpu.memory_space<vmem>>, vector<1x8x16xf32>
    %137 = vector.shape_cast %136 : vector<1x8x16xf32> to vector<8x16xf32>
    %138 = vector.shape_cast %135 : vector<8x16xf32> to vector<1x8x16xf32>
    tpu.vector_store %arg9[%c0_27, %c0_28, %c0_29], %138 {strides = array<i32>} : memref<1x8x16xf32, #tpu.memory_space<vmem>>, vector<1x8x16xf32>,
    return
  }
  func.func @transform_0(%arg0: i32) -> i32 {
    %c0_i32 = arith.constant 0 : i32
    %c0_i32_0 = arith.constant 0 : i32
    return %c0_i32 : i32
  }
  func.func @transform_1(%arg0: i32) -> (i32, i32, i32) {
    %c0_i32 = arith.constant 0 : i32
    %c0_i32_0 = arith.constant 0 : i32
    %c0_i32_1 = arith.constant 0 : i32
    return %arg0, %c0_i32, %c0_i32_0 : i32, i32, i32
  }
  func.func @transform_2(%arg0: i32) -> (i32, i32, i32) {
    %c0_i32 = arith.constant 0 : i32
    %c0_i32_0 = arith.constant 0 : i32
    %c0_i32_1 = arith.constant 0 : i32
    return %arg0, %c0_i32, %c0_i32_0 : i32, i32, i32
  }
  func.func @transform_3(%arg0: i32) -> (i32, i32, i32) {
    %c0_i32 = arith.constant 0 : i32
    %c0_i32_0 = arith.constant 0 : i32
    %c0_i32_1 = arith.constant 0 : i32
    return %arg0, %c0_i32, %c0_i32_0 : i32, i32, i32
  }
  func.func @transform_4(%arg0: i32) -> (i32, i32) {
    %c0_i32 = arith.constant 0 : i32
    %c0_i32_0 = arith.constant 0 : i32
    %c0_i32_1 = arith.constant 0 : i32
    return %c0_i32, %c0_i32_0 : i32, i32
  }
  func.func @transform_5(%arg0: i32) -> (i32, i32) {
    %c0_i32 = arith.constant 0 : i32
    %c0_i32_0 = arith.constant 0 : i32
    %c0_i32_1 = arith.constant 0 : i32
    return %c0_i32, %c0_i32_0 : i32, i32
  }
  func.func @transform_6(%arg0: i32) -> (i32, i32) {
    %c0_i32 = arith.constant 0 : i32
    %c0_i32_0 = arith.constant 0 : i32
    %c0_i32_1 = arith.constant 0 : i32
    return %c0_i32, %c0_i32_0 : i32, i32
  }
  func.func @transform_7(%arg0: i32) -> (i32, i32) {
    %c0_i32 = arith.constant 0 : i32
    %c0_i32_0 = arith.constant 0 : i32
    %c0_i32_1 = arith.constant 0 : i32
    return %c0_i32, %c0_i32_0 : i32, i32
  }
  func.func @transform_8(%arg0: i32) -> (i32, i32, i32) {
    %c0_i32 = arith.constant 0 : i32
    %c0_i32_0 = arith.constant 0 : i32
    %c0_i32_1 = arith.constant 0 : i32
    return %arg0, %c0_i32, %c0_i32_0 : i32, i32, i32
  }
}

module attributes {stable_mosaic.version = 11 : i64} {
  func.func @kernel(%arg0: i32, %arg1: memref<2xf32, #tpu.memory_space<smem>>, %arg2: memref<1x8x4xf32, #tpu.memory_space<vmem>>, %arg3: memref<1x8x4xf32, #tpu.memory_space<vmem>>, %arg4: memref<1x4xi32, #tpu.memory_space<vmem>>, %arg5: memref<8x9xf32, #tpu.memory_space<vmem>>, %arg6: memref<8x8xf32, #tpu.memory_space<vmem>>, %arg7: memref<8x1xf32, #tpu.memory_space<vmem>>, %arg8: memref<1x8x4xf32, #tpu.memory_space<vmem>>) attributes {dimension_semantics = [#tpu.dimension_semantics<parallel>], iteration_bounds = array<i64: 2>, scalar_prefetch = 0 : i64, scratch_operands = 0 : i64, tpu.core_type = #tpu.core_type<tc>, window_params = [{transform_indices = @transform_0, window_bounds = array<i64: 2>}, {transform_indices = @transform_1, window_bounds = array<i64: 1, 8, 4>}, {transform_indices = @transform_2, window_bounds = array<i64: 1, 8, 4>}, {pipeline_mode = #tpu.pipeline_mode<synchronous>, transform_indices = @transform_3, window_bounds = array<i64: 1, 4>}, {pipeline_mode = #tpu.pipeline_mode<synchronous>, transform_indices = @transform_4, window_bounds = array<i64: 8, 9>}, {pipeline_mode = #tpu.pipeline_mode<synchronous>, transform_indices = @transform_5, window_bounds = array<i64: 8, 8>}, {pipeline_mode = #tpu.pipeline_mode<synchronous>, transform_indices = @transform_6, window_bounds = array<i64: 8, 1>}, {transform_indices = @transform_7, window_bounds = array<i64: 1, 8, 4>}]} {
    %c0 = arith.constant 0 : index
    %0 = memref.load %arg1[%c0] : memref<2xf32, #tpu.memory_space<smem>>
    %c0_0 = arith.constant 0 : index
    %c0_1 = arith.constant 0 : index
    %c0_2 = arith.constant 0 : index
    %1 = vector.load %arg2[%c0_0, %c0_1, %c0_2] : memref<1x8x4xf32, #tpu.memory_space<vmem>>, vector<1x8x4xf32>
    %2 = vector.shape_cast %1 : vector<1x8x4xf32> to vector<8x4xf32>
    %3 = vector.broadcast %0 : f32 to vector<8x4xf32>
    %4 = arith.mulf %3, %2 : vector<8x4xf32>
    %c1 = arith.constant 1 : index
    %5 = memref.load %arg1[%c1] : memref<2xf32, #tpu.memory_space<smem>>
    %c0_3 = arith.constant 0 : index
    %c0_4 = arith.constant 0 : index
    %c0_5 = arith.constant 0 : index
    %6 = vector.load %arg3[%c0_3, %c0_4, %c0_5] : memref<1x8x4xf32, #tpu.memory_space<vmem>>, vector<1x8x4xf32>
    %7 = vector.shape_cast %6 : vector<1x8x4xf32> to vector<8x4xf32>
    %8 = vector.broadcast %5 : f32 to vector<8x4xf32>
    %9 = arith.mulf %8, %7 : vector<8x4xf32>
    %10 = arith.addf %4, %9 : vector<8x4xf32>
    %11 = arith.negf %10 : vector<8x4xf32>
    %12 = math.exp %11 : vector<8x4xf32>
    %cst = arith.constant 1.000000e+00 : f32
    %13 = vector.broadcast %cst : f32 to vector<8x4xf32>
    %14 = arith.addf %13, %12 : vector<8x4xf32>
    %15 = arith.divf %13, %14 : vector<8x4xf32>
    %16 = arith.mulf %10, %15 : vector<8x4xf32>
    %17 = tpu.iota {dimensions = array<i32: 1>} : vector<1x4xi32>
    %c0_6 = arith.constant 0 : index
    %c0_7 = arith.constant 0 : index
    %18 = vector.load %arg4[%c0_6, %c0_7] : memref<1x4xi32, #tpu.memory_space<vmem>>, vector<1x4xi32>
    %c2_i32 = arith.constant 2 : i32
    %19 = vector.broadcast %c2_i32 : i32 to vector<1x4xi32>
    %20 = arith.cmpi sge, %17, %19 : vector<1x4xi32>
    %c2_i32_8 = arith.constant 2 : i32
    %21 = vector.broadcast %c2_i32_8 : i32 to vector<1x4xi32>
    %22 = arith.cmpi slt, %17, %21 : vector<1x4xi32>
    %c1_i32 = arith.constant 1 : i32
    %23 = vector.broadcast %c1_i32 : i32 to vector<1x4xi32>
    %24 = arith.cmpi sge, %18, %23 : vector<1x4xi32>
    %c0_i32 = arith.constant 0 : i32
    %25 = vector.broadcast %c0_i32 : i32 to vector<1x4xi32>
    %26 = arith.cmpi sle, %18, %25 : vector<1x4xi32>
    %c0_9 = arith.constant 0 : index
    %c0_10 = arith.constant 0 : index
    %27 = vector.load %arg5[%c0_9, %c0_10] : memref<8x9xf32, #tpu.memory_space<vmem>>, vector<8x9xf32>
    %cst_11 = arith.constant 0.000000e+00 : f32
    %28 = vector.broadcast %cst_11 : f32 to vector<8x4xf32>
    %29 = vector.extract_strided_slice %16 {offsets = [0, 1], sizes = [8, 3], strides = [1, 1]} : vector<8x4xf32> to vector<8x3xf32>
    %30 = vector.extract_strided_slice %16 {offsets = [0, 0], sizes = [8, 1], strides = [1, 1]} : vector<8x4xf32> to vector<8x1xf32>
    %31 = tpu.concatenate %29, %30 in 1 : vector<8x3xf32>, vector<8x1xf32> -> vector<8x4xf32>
    %32 = arith.andi %20, %24 : vector<1x4xi1>
    %cst_12 = arith.constant 0.000000e+00 : f32
    %33 = vector.shape_cast %32 : vector<1x4xi1> to vector<1x4xi1>
    %34 = vector.broadcast %33 : vector<1x4xi1> to vector<8x4xi1>
    %35 = vector.broadcast %cst_12 : f32 to vector<8x4xf32>
    %36 = arith.select %34, %31, %35 : vector<8x4xi1>, vector<8x4xf32>
    %37 = vector.extract_strided_slice %27 {offsets = [0, 0], sizes = [8, 1], strides = [1, 1]} : vector<8x9xf32> to vector<8x1xf32>
    %38 = vector.broadcast %37 : vector<8x1xf32> to vector<8x4xf32>
    %39 = arith.mulf %36, %38 : vector<8x4xf32>
    %40 = arith.addf %28, %39 : vector<8x4xf32>
    %41 = vector.extract_strided_slice %16 {offsets = [0, 2], sizes = [8, 2], strides = [1, 1]} : vector<8x4xf32> to vector<8x2xf32>
    %42 = vector.extract_strided_slice %16 {offsets = [0, 0], sizes = [8, 2], strides = [1, 1]} : vector<8x4xf32> to vector<8x2xf32>
    %43 = tpu.concatenate %41, %42 in 1 : vector<8x2xf32>, vector<8x2xf32> -> vector<8x4xf32>
    %cst_13 = arith.constant 0.000000e+00 : f32
    %44 = vector.shape_cast %20 : vector<1x4xi1> to vector<1x4xi1>
    %45 = vector.broadcast %44 : vector<1x4xi1> to vector<8x4xi1>
    %46 = vector.broadcast %cst_13 : f32 to vector<8x4xf32>
    %47 = arith.select %45, %43, %46 : vector<8x4xi1>, vector<8x4xf32>
    %48 = vector.extract_strided_slice %27 {offsets = [0, 1], sizes = [8, 1], strides = [1, 1]} : vector<8x9xf32> to vector<8x1xf32>
    %49 = vector.broadcast %48 : vector<8x1xf32> to vector<8x4xf32>
    %50 = arith.mulf %47, %49 : vector<8x4xf32>
    %51 = arith.addf %40, %50 : vector<8x4xf32>
    %52 = vector.extract_strided_slice %16 {offsets = [0, 3], sizes = [8, 1], strides = [1, 1]} : vector<8x4xf32> to vector<8x1xf32>
    %53 = vector.extract_strided_slice %16 {offsets = [0, 0], sizes = [8, 3], strides = [1, 1]} : vector<8x4xf32> to vector<8x3xf32>
    %54 = tpu.concatenate %52, %53 in 1 : vector<8x1xf32>, vector<8x3xf32> -> vector<8x4xf32>
    %55 = arith.andi %20, %26 : vector<1x4xi1>
    %cst_14 = arith.constant 0.000000e+00 : f32
    %56 = vector.shape_cast %55 : vector<1x4xi1> to vector<1x4xi1>
    %57 = vector.broadcast %56 : vector<1x4xi1> to vector<8x4xi1>
    %58 = vector.broadcast %cst_14 : f32 to vector<8x4xf32>
    %59 = arith.select %57, %54, %58 : vector<8x4xi1>, vector<8x4xf32>
    %60 = vector.extract_strided_slice %27 {offsets = [0, 2], sizes = [8, 1], strides = [1, 1]} : vector<8x9xf32> to vector<8x1xf32>
    %61 = vector.broadcast %60 : vector<8x1xf32> to vector<8x4xf32>
    %62 = arith.mulf %59, %61 : vector<8x4xf32>
    %63 = arith.addf %51, %62 : vector<8x4xf32>
    %64 = vector.extract_strided_slice %16 {offsets = [0, 3], sizes = [8, 1], strides = [1, 1]} : vector<8x4xf32> to vector<8x1xf32>
    %65 = vector.extract_strided_slice %16 {offsets = [0, 0], sizes = [8, 3], strides = [1, 1]} : vector<8x4xf32> to vector<8x3xf32>
    %66 = tpu.concatenate %64, %65 in 1 : vector<8x1xf32>, vector<8x3xf32> -> vector<8x4xf32>
    %cst_15 = arith.constant 0.000000e+00 : f32
    %67 = vector.shape_cast %24 : vector<1x4xi1> to vector<1x4xi1>
    %68 = vector.broadcast %67 : vector<1x4xi1> to vector<8x4xi1>
    %69 = vector.broadcast %cst_15 : f32 to vector<8x4xf32>
    %70 = arith.select %68, %66, %69 : vector<8x4xi1>, vector<8x4xf32>
    %71 = vector.extract_strided_slice %27 {offsets = [0, 3], sizes = [8, 1], strides = [1, 1]} : vector<8x9xf32> to vector<8x1xf32>
    %72 = vector.broadcast %71 : vector<8x1xf32> to vector<8x4xf32>
    %73 = arith.mulf %70, %72 : vector<8x4xf32>
    %74 = arith.addf %63, %73 : vector<8x4xf32>
    %75 = vector.extract_strided_slice %27 {offsets = [0, 4], sizes = [8, 1], strides = [1, 1]} : vector<8x9xf32> to vector<8x1xf32>
    %76 = vector.broadcast %75 : vector<8x1xf32> to vector<8x4xf32>
    %77 = arith.mulf %16, %76 : vector<8x4xf32>
    %78 = arith.addf %74, %77 : vector<8x4xf32>
    %79 = vector.extract_strided_slice %16 {offsets = [0, 1], sizes = [8, 3], strides = [1, 1]} : vector<8x4xf32> to vector<8x3xf32>
    %80 = vector.extract_strided_slice %16 {offsets = [0, 0], sizes = [8, 1], strides = [1, 1]} : vector<8x4xf32> to vector<8x1xf32>
    %81 = tpu.concatenate %79, %80 in 1 : vector<8x3xf32>, vector<8x1xf32> -> vector<8x4xf32>
    %cst_16 = arith.constant 0.000000e+00 : f32
    %82 = vector.shape_cast %26 : vector<1x4xi1> to vector<1x4xi1>
    %83 = vector.broadcast %82 : vector<1x4xi1> to vector<8x4xi1>
    %84 = vector.broadcast %cst_16 : f32 to vector<8x4xf32>
    %85 = arith.select %83, %81, %84 : vector<8x4xi1>, vector<8x4xf32>
    %86 = vector.extract_strided_slice %27 {offsets = [0, 5], sizes = [8, 1], strides = [1, 1]} : vector<8x9xf32> to vector<8x1xf32>
    %87 = vector.broadcast %86 : vector<8x1xf32> to vector<8x4xf32>
    %88 = arith.mulf %85, %87 : vector<8x4xf32>
    %89 = arith.addf %78, %88 : vector<8x4xf32>
    %90 = vector.extract_strided_slice %16 {offsets = [0, 1], sizes = [8, 3], strides = [1, 1]} : vector<8x4xf32> to vector<8x3xf32>
    %91 = vector.extract_strided_slice %16 {offsets = [0, 0], sizes = [8, 1], strides = [1, 1]} : vector<8x4xf32> to vector<8x1xf32>
    %92 = tpu.concatenate %90, %91 in 1 : vector<8x3xf32>, vector<8x1xf32> -> vector<8x4xf32>
    %93 = arith.andi %22, %24 : vector<1x4xi1>
    %cst_17 = arith.constant 0.000000e+00 : f32
    %94 = vector.shape_cast %93 : vector<1x4xi1> to vector<1x4xi1>
    %95 = vector.broadcast %94 : vector<1x4xi1> to vector<8x4xi1>
    %96 = vector.broadcast %cst_17 : f32 to vector<8x4xf32>
    %97 = arith.select %95, %92, %96 : vector<8x4xi1>, vector<8x4xf32>
    %98 = vector.extract_strided_slice %27 {offsets = [0, 6], sizes = [8, 1], strides = [1, 1]} : vector<8x9xf32> to vector<8x1xf32>
    %99 = vector.broadcast %98 : vector<8x1xf32> to vector<8x4xf32>
    %100 = arith.mulf %97, %99 : vector<8x4xf32>
    %101 = arith.addf %89, %100 : vector<8x4xf32>
    %102 = vector.extract_strided_slice %16 {offsets = [0, 2], sizes = [8, 2], strides = [1, 1]} : vector<8x4xf32> to vector<8x2xf32>
    %103 = vector.extract_strided_slice %16 {offsets = [0, 0], sizes = [8, 2], strides = [1, 1]} : vector<8x4xf32> to vector<8x2xf32>
    %104 = tpu.concatenate %102, %103 in 1 : vector<8x2xf32>, vector<8x2xf32> -> vector<8x4xf32>
    %cst_18 = arith.constant 0.000000e+00 : f32
    %105 = vector.shape_cast %22 : vector<1x4xi1> to vector<1x4xi1>
    %106 = vector.broadcast %105 : vector<1x4xi1> to vector<8x4xi1>
    %107 = vector.broadcast %cst_18 : f32 to vector<8x4xf32>
    %108 = arith.select %106, %104, %107 : vector<8x4xi1>, vector<8x4xf32>
    %109 = vector.extract_strided_slice %27 {offsets = [0, 7], sizes = [8, 1], strides = [1, 1]} : vector<8x9xf32> to vector<8x1xf32>
    %110 = vector.broadcast %109 : vector<8x1xf32> to vector<8x4xf32>
    %111 = arith.mulf %108, %110 : vector<8x4xf32>
    %112 = arith.addf %101, %111 : vector<8x4xf32>
    %113 = vector.extract_strided_slice %16 {offsets = [0, 3], sizes = [8, 1], strides = [1, 1]} : vector<8x4xf32> to vector<8x1xf32>
    %114 = vector.extract_strided_slice %16 {offsets = [0, 0], sizes = [8, 3], strides = [1, 1]} : vector<8x4xf32> to vector<8x3xf32>
    %115 = tpu.concatenate %113, %114 in 1 : vector<8x1xf32>, vector<8x3xf32> -> vector<8x4xf32>
    %116 = arith.andi %22, %26 : vector<1x4xi1>
    %cst_19 = arith.constant 0.000000e+00 : f32
    %117 = vector.shape_cast %116 : vector<1x4xi1> to vector<1x4xi1>
    %118 = vector.broadcast %117 : vector<1x4xi1> to vector<8x4xi1>
    %119 = vector.broadcast %cst_19 : f32 to vector<8x4xf32>
    %120 = arith.select %118, %115, %119 : vector<8x4xi1>, vector<8x4xf32>
    %121 = vector.extract_strided_slice %27 {offsets = [0, 8], sizes = [8, 1], strides = [1, 1]} : vector<8x9xf32> to vector<8x1xf32>
    %122 = vector.broadcast %121 : vector<8x1xf32> to vector<8x4xf32>
    %123 = arith.mulf %120, %122 : vector<8x4xf32>
    %124 = arith.addf %112, %123 : vector<8x4xf32>
    %c0_20 = arith.constant 0 : index
    %c0_21 = arith.constant 0 : index
    %125 = vector.load %arg6[%c0_20, %c0_21] : memref<8x8xf32, #tpu.memory_space<vmem>>, vector<8x8xf32>
    %cst_22 = arith.constant dense<0.000000e+00> : vector<8x4xf32>
    %126 = tpu.matmul %125, %124, %cst_22 {dimension_numbers = #tpu.dot_dimension_numbers<[1], [0], [0], [1], [0, 0, 1, 1], [], []>} : vector<8x8xf32>, vector<8x4xf32>, vector<8x4xf32> -> vector<8x4xf32>
    %c0_23 = arith.constant 0 : index
    %c0_24 = arith.constant 0 : index
    %127 = vector.load %arg7[%c0_23, %c0_24] : memref<8x1xf32, #tpu.memory_space<vmem>>, vector<8x1xf32>
    %128 = vector.broadcast %127 : vector<8x1xf32> to vector<8x4xf32>
    %129 = arith.addf %126, %128 : vector<8x4xf32>
    %c0_25 = arith.constant 0 : index
    %c0_26 = arith.constant 0 : index
    %c0_27 = arith.constant 0 : index
    %130 = vector.load %arg8[%c0_25, %c0_26, %c0_27] : memref<1x8x4xf32, #tpu.memory_space<vmem>>, vector<1x8x4xf32>
    %131 = vector.shape_cast %130 : vector<1x8x4xf32> to vector<8x4xf32>
    %132 = vector.shape_cast %129 : vector<8x4xf32> to vector<1x8x4xf32>
    tpu.vector_store %arg8[%c0_25, %c0_26, %c0_27], %132 {strides = array<i32>} : memref<1x8x4xf32, #tpu.memory_space<vmem>>, vector<1x8x4xf32>,
    return
  }
  func.func @transform_0(%arg0: i32) -> i32 {
    %c0_i32 = arith.constant 0 : i32
    %c0_i32_0 = arith.constant 0 : i32
    return %c0_i32 : i32
  }
  func.func @transform_1(%arg0: i32) -> (i32, i32, i32) {
    %c0_i32 = arith.constant 0 : i32
    %c0_i32_0 = arith.constant 0 : i32
    %c0_i32_1 = arith.constant 0 : i32
    return %arg0, %c0_i32, %c0_i32_0 : i32, i32, i32
  }
  func.func @transform_2(%arg0: i32) -> (i32, i32, i32) {
    %c0_i32 = arith.constant 0 : i32
    %c0_i32_0 = arith.constant 0 : i32
    %c0_i32_1 = arith.constant 0 : i32
    return %arg0, %c0_i32, %c0_i32_0 : i32, i32, i32
  }
  func.func @transform_3(%arg0: i32) -> (i32, i32) {
    %c0_i32 = arith.constant 0 : i32
    %c0_i32_0 = arith.constant 0 : i32
    %c0_i32_1 = arith.constant 0 : i32
    return %c0_i32, %c0_i32_0 : i32, i32
  }
  func.func @transform_4(%arg0: i32) -> (i32, i32) {
    %c0_i32 = arith.constant 0 : i32
    %c0_i32_0 = arith.constant 0 : i32
    %c0_i32_1 = arith.constant 0 : i32
    return %c0_i32, %c0_i32_0 : i32, i32
  }
  func.func @transform_5(%arg0: i32) -> (i32, i32) {
    %c0_i32 = arith.constant 0 : i32
    %c0_i32_0 = arith.constant 0 : i32
    %c0_i32_1 = arith.constant 0 : i32
    return %c0_i32, %c0_i32_0 : i32, i32
  }
  func.func @transform_6(%arg0: i32) -> (i32, i32) {
    %c0_i32 = arith.constant 0 : i32
    %c0_i32_0 = arith.constant 0 : i32
    %c0_i32_1 = arith.constant 0 : i32
    return %c0_i32, %c0_i32_0 : i32, i32
  }
  func.func @transform_7(%arg0: i32) -> (i32, i32, i32) {
    %c0_i32 = arith.constant 0 : i32
    %c0_i32_0 = arith.constant 0 : i32
    %c0_i32_1 = arith.constant 0 : i32
    return %arg0, %c0_i32, %c0_i32_0 : i32, i32, i32
  }
}

</mosaic_0001>

<llo_original>
// kernel: tpu_custom_call.1
$region0: #{tpu_custom_call.1}
  #allocation0 [shape = 'u32[]', space=smem, size = 0x4, offset = 0x4, fixed_abs, tag = 'smem constant byte address 0x4 - core index']
  #allocation1 [shape = 'u32[72,128]{1,0:T(1,128)}', space=vmem, size = 0x9000, scoped, tag = 'internal scratch']
  %s0 = inlined_call_operand.hbm [shape: f32[8,1024], index: 0, kind: input, shape index: {}]
  %s1 = inlined_call_operand.hbm [shape: f32[8,8,1024], index: 1, kind: output, shape index: {}]
  %s2 = sld [smem:[#allocation0]]
  $region18: #{tpu_custom_call.1} parent=0
    _
  %s4 = ssub.s32 1, %s2
  %s5 = scalar_select 0, %s4, %s2
  $region1: #{tpu_custom_call.1} parent=0
    #allocation2 [shape = 'u8[32768]{0}', space=vmem, size = 0x8000, scoped, tag = 'input window, operand 0, single buffered']
    #allocation3 [shape = 's32[1]{0}', space=sflag, size = 0x4, scoped, tag = 'scoped memory for tpu_custom_call.1']
    #allocation4 [shape = 's32[1]{0}', space=sflag, size = 0x4, scoped, tag = 'scoped memory for tpu_custom_call.1']
    #allocation5 [shape = 'u8[262144]{0}', space=vmem, size = 0x40000, scoped, tag = 'output window, operand 0, single buffered']
    %6 = vsyncpa [#allocation3], 0
    %7 = vsyncpa [#allocation4], 0
    // Predicated region
    $region2: #{tpu_custom_call.1} parent=1 // pred_check
      _
    $region3: #{tpu_custom_call.1} parent=1 // pred_check_branch
      %9 = sbr.rel (0) target = $region5
    $region4: #{tpu_custom_call.1} parent=1 // pred_region
      %11 = vsyncadd [#allocation3], 0
      %s13 = sshll.u32 %s0, 4
      %s14 = int_to_ptr.hbm [resolvable:$true] %s13
      %s15 = sshll.u32 [#allocation2], 4
      %s16 = int_to_ptr.vmem [resolvable:$true] %s15
      %18 = dma.hbm_to_vmem [thread:$0]  %s14, 1024, %s16, [#allocation3]
    $region5: #{tpu_custom_call.1} parent=1 // pred_fallthru
      _
    // Predicated region
    $region6: #{tpu_custom_call.1} parent=1 // pred_check
      _
    $region7: #{tpu_custom_call.1} parent=1 // pred_check_branch
      %20 = sbr.rel (0) target = $region9
    $region8: #{tpu_custom_call.1} parent=1 // pred_region
      %22 = dma.done [#allocation3], 1024
    $region9: #{tpu_custom_call.1} parent=1 // pred_fallthru
      _
    %v23 = vld [vmem:[#allocation2] sm:$0xff]
    %v24 = vld [vmem:[#allocation2 + $0x8] sm:$0xff]
    %v25 = vld [vmem:[#allocation2 + $0x10] sm:$0xff]
    %v26 = vld [vmem:[#allocation2 + $0x18] sm:$0xff]
    %v27 = vld [vmem:[#allocation2 + $0x20] sm:$0xff]
    %v28 = vld [vmem:[#allocation2 + $0x28] sm:$0xff]
    %v29 = vld [vmem:[#allocation2 + $0x30] sm:$0xff]
    %v30 = vld [vmem:[#allocation2 + $0x38] sm:$0xff]
    %31 = vrot.lane.b32.xlu0 %v23, 1
    %v32 = vpop.permute.xlu0 %31
    %33 = vrot.lane.b32.xlu0 %v24, 1
    %v34 = vpop.permute.xlu0 %33
    %35 = vrot.lane.b32.xlu0 %v25, 1
    %v36 = vpop.permute.xlu0 %35
    %37 = vrot.lane.b32.xlu0 %v26, 1
    %v38 = vpop.permute.xlu0 %37
    %39 = vrot.lane.b32.xlu0 %v27, 1
    %v40 = vpop.permute.xlu0 %39
    %41 = vrot.lane.b32.xlu0 %v28, 1
    %v42 = vpop.permute.xlu0 %41
    %43 = vrot.lane.b32.xlu0 %v29, 1
    %v44 = vpop.permute.xlu0 %43
    %45 = vrot.lane.b32.xlu0 %v30, 1
    %v46 = vpop.permute.xlu0 %45
    %v47 = vlaneseq
    %v48 = vand.u32 %v47, 127
    %vm49 = vcmp.lt.s32.totalorder %v48, 1
    %v50 = vsel %vm49, %v44, %v46
    %v51 = vsel %vm49, %v42, %v44
    %v52 = vsel %vm49, %v40, %v42
    %v53 = vsel %vm49, %v38, %v40
    %v54 = vsel %vm49, %v36, %v38
    %v55 = vsel %vm49, %v34, %v36
    %v56 = vsel %vm49, %v32, %v34
    %v57 = vsel %vm49, %v46, %v32
    %58 = vst [vmem:[#allocation5] sm:$0xff] %v57
    %59 = vst [vmem:[#allocation5 + $0x8] sm:$0xff] %v56
    %60 = vst [vmem:[#allocation5 + $0x10] sm:$0xff] %v55
    %61 = vst [vmem:[#allocation5 + $0x18] sm:$0xff] %v54
    %62 = vst [vmem:[#allocation5 + $0x20] sm:$0xff] %v53
    %63 = vst [vmem:[#allocation5 + $0x28] sm:$0xff] %v52
    %64 = vst [vmem:[#allocation5 + $0x30] sm:$0xff] %v51
    %65 = vst [vmem:[#allocation5 + $0x38] sm:$0xff] %v50
    %66 = vrot.lane.b32.xlu0 %v23, 31
    %v67 = vpop.permute.xlu0 %66
    %68 = vrot.lane.b32.xlu0 %v24, 31
    %v69 = vpop.permute.xlu0 %68
    %70 = vrot.lane.b32.xlu0 %v25, 31
    %v71 = vpop.permute.xlu0 %70
    %72 = vrot.lane.b32.xlu0 %v26, 31
    %v73 = vpop.permute.xlu0 %72
    %74 = vrot.lane.b32.xlu0 %v27, 31
    %v75 = vpop.permute.xlu0 %74
    %76 = vrot.lane.b32.xlu0 %v28, 31
    %v77 = vpop.permute.xlu0 %76
    %78 = vrot.lane.b32.xlu0 %v29, 31
    %v79 = vpop.permute.xlu0 %78
    %80 = vrot.lane.b32.xlu0 %v30, 31
    %v81 = vpop.permute.xlu0 %80
    %vm82 = vcmp.lt.s32.totalorder %v48, 31
    %v83 = vsel %vm82, %v79, %v81
    %v84 = vsel %vm82, %v77, %v79
    %v85 = vsel %vm82, %v75, %v77
    %v86 = vsel %vm82, %v73, %v75
    %v87 = vsel %vm82, %v71, %v73
    %v88 = vsel %vm82, %v69, %v71
    %v89 = vsel %vm82, %v67, %v69
    %v90 = vsel %vm82, %v81, %v67
    %s91 = scalar_lea.vmem [#allocation5], 64
    %92 = vst [vmem:[%s91] sm:$0xff] %v90
    %93 = vst [vmem:[%s91 + $0x8] sm:$0xff] %v89
    %94 = vst [vmem:[%s91 + $0x10] sm:$0xff] %v88
    %95 = vst [vmem:[%s91 + $0x18] sm:$0xff] %v87
    %96 = vst [vmem:[%s91 + $0x20] sm:$0xff] %v86
    %97 = vst [vmem:[%s91 + $0x28] sm:$0xff] %v85
    %98 = vst [vmem:[%s91 + $0x30] sm:$0xff] %v84
    %99 = vst [vmem:[%s91 + $0x38] sm:$0xff] %v83
    %100 = vrot.lane.b32.xlu0 %v23, 32
    %v101 = vpop.permute.xlu0 %100
    %102 = vrot.lane.b32.xlu0 %v24, 32
    %v103 = vpop.permute.xlu0 %102
    %104 = vrot.lane.b32.xlu0 %v25, 32
    %v105 = vpop.permute.xlu0 %104
    %106 = vrot.lane.b32.xlu0 %v26, 32
    %v107 = vpop.permute.xlu0 %106
    %108 = vrot.lane.b32.xlu0 %v27, 32
    %v109 = vpop.permute.xlu0 %108
    %110 = vrot.lane.b32.xlu0 %v28, 32
    %v111 = vpop.permute.xlu0 %110
    %112 = vrot.lane.b32.xlu0 %v29, 32
    %v113 = vpop.permute.xlu0 %112
    %114 = vrot.lane.b32.xlu0 %v30, 32
    %v115 = vpop.permute.xlu0 %114
    %vm116 = vcmp.lt.s32.totalorder %v48, 32
    %v117 = vsel %vm116, %v113, %v115
    %v118 = vsel %vm116, %v111, %v113
    %v119 = vsel %vm116, %v109, %v111
    %v120 = vsel %vm116, %v107, %v109
    %v121 = vsel %vm116, %v105, %v107
    %v122 = vsel %vm116, %v103, %v105
    %v123 = vsel %vm116, %v101, %v103
    %v124 = vsel %vm116, %v115, %v101
    %s125 = scalar_lea.vmem [#allocation5], 128
    %126 = vst [vmem:[%s125] sm:$0xff] %v124
    %127 = vst [vmem:[%s125 + $0x8] sm:$0xff] %v123
    %128 = vst [vmem:[%s125 + $0x10] sm:$0xff] %v122
    %129 = vst [vmem:[%s125 + $0x18] sm:$0xff] %v121
    %130 = vst [vmem:[%s125 + $0x20] sm:$0xff] %v120
    %131 = vst [vmem:[%s125 + $0x28] sm:$0xff] %v119
    %132 = vst [vmem:[%s125 + $0x30] sm:$0xff] %v118
    %133 = vst [vmem:[%s125 + $0x38] sm:$0xff] %v117
    %134 = vrot.lane.b32.xlu0 %v23, 33
    %v135 = vpop.permute.xlu0 %134
    %136 = vrot.lane.b32.xlu0 %v24, 33
    %v137 = vpop.permute.xlu0 %136
    %138 = vrot.lane.b32.xlu0 %v25, 33
    %v139 = vpop.permute.xlu0 %138
    %140 = vrot.lane.b32.xlu0 %v26, 33
    %v141 = vpop.permute.xlu0 %140
    %142 = vrot.lane.b32.xlu0 %v27, 33
    %v143 = vpop.permute.xlu0 %142
    %144 = vrot.lane.b32.xlu0 %v28, 33
    %v145 = vpop.permute.xlu0 %144
    %146 = vrot.lane.b32.xlu0 %v29, 33
    %v147 = vpop.permute.xlu0 %146
    %148 = vrot.lane.b32.xlu0 %v30, 33
    %v149 = vpop.permute.xlu0 %148
    %vm150 = vcmp.lt.s32.totalorder %v48, 33
    %v151 = vsel %vm150, %v147, %v149
    %v152 = vsel %vm150, %v145, %v147
    %v153 = vsel %vm150, %v143, %v145
    %v154 = vsel %vm150, %v141, %v143
    %v155 = vsel %vm150, %v139, %v141
    %v156 = vsel %vm150, %v137, %v139
    %v157 = vsel %vm150, %v135, %v137
    %v158 = vsel %vm150, %v149, %v135
    %s159 = scalar_lea.vmem [#allocation5], 192
    %160 = vst [vmem:[%s159] sm:$0xff] %v158
    %161 = vst [vmem:[%s159 + $0x8] sm:$0xff] %v157
    %162 = vst [vmem:[%s159 + $0x10] sm:$0xff] %v156
    %163 = vst [vmem:[%s159 + $0x18] sm:$0xff] %v155
    %164 = vst [vmem:[%s159 + $0x20] sm:$0xff] %v154
    %165 = vst [vmem:[%s159 + $0x28] sm:$0xff] %v153
    %166 = vst [vmem:[%s159 + $0x30] sm:$0xff] %v152
    %167 = vst [vmem:[%s159 + $0x38] sm:$0xff] %v151
    %168 = vrot.lane.b32.xlu0 %v23, 95
    %v169 = vpop.permute.xlu0 %168
    %170 = vrot.lane.b32.xlu0 %v24, 95
    %v171 = vpop.permute.xlu0 %170
    %172 = vrot.lane.b32.xlu0 %v25, 95
    %v173 = vpop.permute.xlu0 %172
    %174 = vrot.lane.b32.xlu0 %v26, 95
    %v175 = vpop.permute.xlu0 %174
    %176 = vrot.lane.b32.xlu0 %v27, 95
    %v177 = vpop.permute.xlu0 %176
    %178 = vrot.lane.b32.xlu0 %v28, 95
    %v179 = vpop.permute.xlu0 %178
    %180 = vrot.lane.b32.xlu0 %v29, 95
    %v181 = vpop.permute.xlu0 %180
    %182 = vrot.lane.b32.xlu0 %v30, 95
    %v183 = vpop.permute.xlu0 %182
    %vm184 = vcmp.lt.s32.totalorder %v48, 95
    %v185 = vsel %vm184, %v181, %v183
    %v186 = vsel %vm184, %v179, %v181
    %v187 = vsel %vm184, %v177, %v179
    %v188 = vsel %vm184, %v175, %v177
    %v189 = vsel %vm184, %v173, %v175
    %v190 = vsel %vm184, %v171, %v173
    %v191 = vsel %vm184, %v169, %v171
    %v192 = vsel %vm184, %v183, %v169
    %s193 = scalar_lea.vmem [#allocation5], 256
    %194 = vst [vmem:[%s193] sm:$0xff] %v191
    %195 = vst [vmem:[%s193 + $0x8] sm:$0xff] %v190
    %196 = vst [vmem:[%s193 + $0x10] sm:$0xff] %v189
    %197 = vst [vmem:[%s193 + $0x18] sm:$0xff] %v188
    %198 = vst [vmem:[%s193 + $0x20] sm:$0xff] %v187
    %199 = vst [vmem:[%s193 + $0x28] sm:$0xff] %v186
    %200 = vst [vmem:[%s193 + $0x30] sm:$0xff] %v185
    %201 = vst [vmem:[%s193 + $0x38] sm:$0xff] %v192
    %202 = vrot.lane.b32.xlu0 %v23, 96
    %v203 = vpop.permute.xlu0 %202
    %204 = vrot.lane.b32.xlu0 %v24, 96
    %v205 = vpop.permute.xlu0 %204
    %206 = vrot.lane.b32.xlu0 %v25, 96
    %v207 = vpop.permute.xlu0 %206
    %208 = vrot.lane.b32.xlu0 %v26, 96
    %v209 = vpop.permute.xlu0 %208
    %210 = vrot.lane.b32.xlu0 %v27, 96
    %v211 = vpop.permute.xlu0 %210
    %212 = vrot.lane.b32.xlu0 %v28, 96
    %v213 = vpop.permute.xlu0 %212
    %214 = vrot.lane.b32.xlu0 %v29, 96
    %v215 = vpop.permute.xlu0 %214
    %216 = vrot.lane.b32.xlu0 %v30, 96
    %v217 = vpop.permute.xlu0 %216
    %vm218 = vcmp.lt.s32.totalorder %v48, 96
    %v219 = vsel %vm218, %v215, %v217
    %v220 = vsel %vm218, %v213, %v215
    %v221 = vsel %vm218, %v211, %v213
    %v222 = vsel %vm218, %v209, %v211
    %v223 = vsel %vm218, %v207, %v209
    %v224 = vsel %vm218, %v205, %v207
    %v225 = vsel %vm218, %v203, %v205
    %v226 = vsel %vm218, %v217, %v203
    %s227 = scalar_lea.vmem [#allocation5], 320
    %228 = vst [vmem:[%s227] sm:$0xff] %v225
    %229 = vst [vmem:[%s227 + $0x8] sm:$0xff] %v224
    %230 = vst [vmem:[%s227 + $0x10] sm:$0xff] %v223
    %231 = vst [vmem:[%s227 + $0x18] sm:$0xff] %v222
    %232 = vst [vmem:[%s227 + $0x20] sm:$0xff] %v221
    %233 = vst [vmem:[%s227 + $0x28] sm:$0xff] %v220
    %234 = vst [vmem:[%s227 + $0x30] sm:$0xff] %v219
    %235 = vst [vmem:[%s227 + $0x38] sm:$0xff] %v226
    %236 = vrot.lane.b32.xlu0 %v23, 97
    %v237 = vpop.permute.xlu0 %236
    %238 = vrot.lane.b32.xlu0 %v24, 97
    %v239 = vpop.permute.xlu0 %238
    %240 = vrot.lane.b32.xlu0 %v25, 97
    %v241 = vpop.permute.xlu0 %240
    %242 = vrot.lane.b32.xlu0 %v26, 97
    %v243 = vpop.permute.xlu0 %242
    %244 = vrot.lane.b32.xlu0 %v27, 97
    %v245 = vpop.permute.xlu0 %244
    %246 = vrot.lane.b32.xlu0 %v28, 97
    %v247 = vpop.permute.xlu0 %246
    %248 = vrot.lane.b32.xlu0 %v29, 97
    %v249 = vpop.permute.xlu0 %248
    %250 = vrot.lane.b32.xlu0 %v30, 97
    %v251 = vpop.permute.xlu0 %250
    %vm252 = vcmp.lt.s32.totalorder %v48, 97
    %v253 = vsel %vm252, %v249, %v251
    %v254 = vsel %vm252, %v247, %v249
    %v255 = vsel %vm252, %v245, %v247
    %v256 = vsel %vm252, %v243, %v245
    %v257 = vsel %vm252, %v241, %v243
    %v258 = vsel %vm252, %v239, %v241
    %v259 = vsel %vm252, %v237, %v239
    %v260 = vsel %vm252, %v251, %v237
    %s261 = scalar_lea.vmem [#allocation5], 384
    %262 = vst [vmem:[%s261] sm:$0xff] %v259
    %263 = vst [vmem:[%s261 + $0x8] sm:$0xff] %v258
    %264 = vst [vmem:[%s261 + $0x10] sm:$0xff] %v257
    %265 = vst [vmem:[%s261 + $0x18] sm:$0xff] %v256
    %266 = vst [vmem:[%s261 + $0x20] sm:$0xff] %v255
    %267 = vst [vmem:[%s261 + $0x28] sm:$0xff] %v254
    %268 = vst [vmem:[%s261 + $0x30] sm:$0xff] %v253
    %269 = vst [vmem:[%s261 + $0x38] sm:$0xff] %v260
    %270 = vrot.lane.b32.xlu0 %v23, 127
    %v271 = vpop.permute.xlu0 %270
    %272 = vrot.lane.b32.xlu0 %v24, 127
    %v273 = vpop.permute.xlu0 %272
    %274 = vrot.lane.b32.xlu0 %v25, 127
    %v275 = vpop.permute.xlu0 %274
    %276 = vrot.lane.b32.xlu0 %v26, 127
    %v277 = vpop.permute.xlu0 %276
    %278 = vrot.lane.b32.xlu0 %v27, 127
    %v279 = vpop.permute.xlu0 %278
    %280 = vrot.lane.b32.xlu0 %v28, 127
    %v281 = vpop.permute.xlu0 %280
    %282 = vrot.lane.b32.xlu0 %v29, 127
    %v283 = vpop.permute.xlu0 %282
    %284 = vrot.lane.b32.xlu0 %v30, 127
    %v285 = vpop.permute.xlu0 %284
    %vm286 = vcmp.lt.s32.totalorder %v48, 127
    %v287 = vsel %vm286, %v283, %v285
    %v288 = vsel %vm286, %v281, %v283
    %v289 = vsel %vm286, %v279, %v281
    %v290 = vsel %vm286, %v277, %v279
    %v291 = vsel %vm286, %v275, %v277
    %v292 = vsel %vm286, %v273, %v275
    %v293 = vsel %vm286, %v271, %v273
    %v294 = vsel %vm286, %v285, %v271
    %s295 = scalar_lea.vmem [#allocation5], 448
    %296 = vst [vmem:[%s295] sm:$0xff] %v293
    %297 = vst [vmem:[%s295 + $0x8] sm:$0xff] %v292
    %298 = vst [vmem:[%s295 + $0x10] sm:$0xff] %v291
    %299 = vst [vmem:[%s295 + $0x18] sm:$0xff] %v290
    %300 = vst [vmem:[%s295 + $0x20] sm:$0xff] %v289
    %301 = vst [vmem:[%s295 + $0x28] sm:$0xff] %v288
    %302 = vst [vmem:[%s295 + $0x30] sm:$0xff] %v287
    %303 = vst [vmem:[%s295 + $0x38] sm:$0xff] %v294
    // Predicated region
    $region10: #{tpu_custom_call.1} parent=1 // pred_check
      _
    $region11: #{tpu_custom_call.1} parent=1 // pred_check_branch
      %305 = sbr.rel (0) target = $region13
    $region12: #{tpu_custom_call.1} parent=1 // pred_region
      %307 = vsyncadd [#allocation4], 0
      %s308 = sshll.u32 [#allocation5], 4
      %s309 = int_to_ptr.vmem [resolvable:$true] %s308
      %s310 = sshll.u32 %s1, 4
      %s311 = int_to_ptr.hbm [resolvable:$true] %s310
      %316 = dma.vmem_to_hbm [thread:$0]  %s309, 8192, %s311, [#allocation4], 1024, 1024, 64
    $region13: #{tpu_custom_call.1} parent=1 // pred_fallthru
      _
    // Predicated region
    $region14: #{tpu_custom_call.1} parent=1 // pred_check
      _
    $region15: #{tpu_custom_call.1} parent=1 // pred_check_branch
      %318 = sbr.rel (0) target = $region17
    $region16: #{tpu_custom_call.1} parent=1 // pred_region
      %320 = dma.done [#allocation4], 8192
    $region17: #{tpu_custom_call.1} parent=1 // pred_fallthru
      _
    %321 = vsyncpa [#allocation3], 1
    %322 = vsyncpa [#allocation4], 1

// kernel: tpu_custom_call.1
$region0: #{tpu_custom_call.1}
  #allocation0 [shape = 'u32[]', space=smem, size = 0x4, offset = 0x4, fixed_abs, tag = 'smem constant byte address 0x4 - core index']
  #allocation1 [shape = 'u32[72,128]{1,0:T(1,128)}', space=vmem, size = 0x9000, scoped, tag = 'internal scratch']
  %s0 = inlined_call_operand.hbm [shape: f32[8,256], index: 0, kind: input, shape index: {}]
  %s1 = inlined_call_operand.hbm [shape: f32[8,8,256], index: 1, kind: output, shape index: {}]
  %s2 = sld [smem:[#allocation0]]
  $region18: #{tpu_custom_call.1} parent=0
    _
  %s4 = ssub.s32 1, %s2
  %s5 = scalar_select 0, %s4, %s2
  $region1: #{tpu_custom_call.1} parent=0
    #allocation2 [shape = 'u8[8192]{0}', space=vmem, size = 0x2000, scoped, tag = 'input window, operand 0, single buffered']
    #allocation3 [shape = 's32[1]{0}', space=sflag, size = 0x4, scoped, tag = 'scoped memory for tpu_custom_call.1']
    #allocation4 [shape = 's32[1]{0}', space=sflag, size = 0x4, scoped, tag = 'scoped memory for tpu_custom_call.1']
    #allocation5 [shape = 'u8[65536]{0}', space=vmem, size = 0x10000, scoped, tag = 'output window, operand 0, single buffered']
    %6 = vsyncpa [#allocation3], 0
    %7 = vsyncpa [#allocation4], 0
    // Predicated region
    $region2: #{tpu_custom_call.1} parent=1 // pred_check
      _
    $region3: #{tpu_custom_call.1} parent=1 // pred_check_branch
      %9 = sbr.rel (0) target = $region5
    $region4: #{tpu_custom_call.1} parent=1 // pred_region
      %11 = vsyncadd [#allocation3], 0
      %s13 = sshll.u32 %s0, 4
      %s14 = int_to_ptr.hbm [resolvable:$true] %s13
      %s15 = sshll.u32 [#allocation2], 4
      %s16 = int_to_ptr.vmem [resolvable:$true] %s15
      %18 = dma.hbm_to_vmem [thread:$0]  %s14, 256, %s16, [#allocation3]
    $region5: #{tpu_custom_call.1} parent=1 // pred_fallthru
      _
    // Predicated region
    $region6: #{tpu_custom_call.1} parent=1 // pred_check
      _
    $region7: #{tpu_custom_call.1} parent=1 // pred_check_branch
      %20 = sbr.rel (0) target = $region9
    $region8: #{tpu_custom_call.1} parent=1 // pred_region
      %22 = dma.done [#allocation3], 256
    $region9: #{tpu_custom_call.1} parent=1 // pred_fallthru
      _
    %v23 = vld [vmem:[#allocation2] sm:$0xff]
    %v24 = vld [vmem:[#allocation2 + $0x8] sm:$0xff]
    %25 = vrot.lane.b32.xlu0 %v23, 1
    %v26 = vpop.permute.xlu0 %25
    %27 = vrot.lane.b32.xlu0 %v24, 1
    %v28 = vpop.permute.xlu0 %27
    %v29 = vlaneseq
    %v30 = vand.u32 %v29, 127
    %vm31 = vcmp.lt.s32.totalorder %v30, 1
    %v32 = vsel %vm31, %v26, %v28
    %v33 = vsel %vm31, %v28, %v26
    %34 = vst [vmem:[#allocation5] sm:$0xff] %v33
    %35 = vst [vmem:[#allocation5 + $0x8] sm:$0xff] %v32
    %36 = vrot.lane.b32.xlu0 %v23, 15
    %v37 = vpop.permute.xlu0 %36
    %38 = vrot.lane.b32.xlu0 %v24, 15
    %v39 = vpop.permute.xlu0 %38
    %vm40 = vcmp.lt.s32.totalorder %v30, 15
    %v41 = vsel %vm40, %v37, %v39
    %v42 = vsel %vm40, %v39, %v37
    %s43 = scalar_lea.vmem [#allocation5], 16
    %44 = vst [vmem:[%s43] sm:$0xff] %v42
    %45 = vst [vmem:[%s43 + $0x8] sm:$0xff] %v41
    %46 = vrot.lane.b32.xlu0 %v23, 16
    %v47 = vpop.permute.xlu0 %46
    %48 = vrot.lane.b32.xlu0 %v24, 16
    %v49 = vpop.permute.xlu0 %48
    %vm50 = vcmp.lt.s32.totalorder %v30, 16
    %v51 = vsel %vm50, %v47, %v49
    %v52 = vsel %vm50, %v49, %v47
    %s53 = scalar_lea.vmem [#allocation5], 32
    %54 = vst [vmem:[%s53] sm:$0xff] %v52
    %55 = vst [vmem:[%s53 + $0x8] sm:$0xff] %v51
    %56 = vrot.lane.b32.xlu0 %v23, 17
    %v57 = vpop.permute.xlu0 %56
    %58 = vrot.lane.b32.xlu0 %v24, 17
    %v59 = vpop.permute.xlu0 %58
    %vm60 = vcmp.lt.s32.totalorder %v30, 17
    %v61 = vsel %vm60, %v57, %v59
    %v62 = vsel %vm60, %v59, %v57
    %s63 = scalar_lea.vmem [#allocation5], 48
    %64 = vst [vmem:[%s63] sm:$0xff] %v62
    %65 = vst [vmem:[%s63 + $0x8] sm:$0xff] %v61
    %66 = vrot.lane.b32.xlu0 %v23, 111
    %v67 = vpop.permute.xlu0 %66
    %68 = vrot.lane.b32.xlu0 %v24, 111
    %v69 = vpop.permute.xlu0 %68
    %vm70 = vcmp.lt.s32.totalorder %v30, 111
    %v71 = vsel %vm70, %v67, %v69
    %v72 = vsel %vm70, %v69, %v67
    %s73 = scalar_lea.vmem [#allocation5], 64
    %74 = vst [vmem:[%s73] sm:$0xff] %v71
    %75 = vst [vmem:[%s73 + $0x8] sm:$0xff] %v72
    %76 = vrot.lane.b32.xlu0 %v23, 112
    %v77 = vpop.permute.xlu0 %76
    %78 = vrot.lane.b32.xlu0 %v24, 112
    %v79 = vpop.permute.xlu0 %78
    %vm80 = vcmp.lt.s32.totalorder %v30, 112
    %v81 = vsel %vm80, %v77, %v79
    %v82 = vsel %vm80, %v79, %v77
    %s83 = scalar_lea.vmem [#allocation5], 80
    %84 = vst [vmem:[%s83] sm:$0xff] %v81
    %85 = vst [vmem:[%s83 + $0x8] sm:$0xff] %v82
    %86 = vrot.lane.b32.xlu0 %v23, 113
    %v87 = vpop.permute.xlu0 %86
    %88 = vrot.lane.b32.xlu0 %v24, 113
    %v89 = vpop.permute.xlu0 %88
    %vm90 = vcmp.lt.s32.totalorder %v30, 113
    %v91 = vsel %vm90, %v87, %v89
    %v92 = vsel %vm90, %v89, %v87
    %s93 = scalar_lea.vmem [#allocation5], 96
    %94 = vst [vmem:[%s93] sm:$0xff] %v91
    %95 = vst [vmem:[%s93 + $0x8] sm:$0xff] %v92
    %96 = vrot.lane.b32.xlu0 %v23, 127
    %v97 = vpop.permute.xlu0 %96
    %98 = vrot.lane.b32.xlu0 %v24, 127
    %v99 = vpop.permute.xlu0 %98
    %vm100 = vcmp.lt.s32.totalorder %v30, 127
    %v101 = vsel %vm100, %v97, %v99
    %v102 = vsel %vm100, %v99, %v97
    %s103 = scalar_lea.vmem [#allocation5], 112
    %104 = vst [vmem:[%s103] sm:$0xff] %v101
    %105 = vst [vmem:[%s103 + $0x8] sm:$0xff] %v102
    // Predicated region
    $region10: #{tpu_custom_call.1} parent=1 // pred_check
      _
    $region11: #{tpu_custom_call.1} parent=1 // pred_check_branch
      %107 = sbr.rel (0) target = $region13
    $region12: #{tpu_custom_call.1} parent=1 // pred_region
      %109 = vsyncadd [#allocation4], 0
      %s110 = sshll.u32 [#allocation5], 4
      %s111 = int_to_ptr.vmem [resolvable:$true] %s110
      %s112 = sshll.u32 %s1, 4
      %s113 = int_to_ptr.hbm [resolvable:$true] %s112
      %118 = dma.vmem_to_hbm [thread:$0]  %s111, 2048, %s113, [#allocation4], 256, 256, 16
    $region13: #{tpu_custom_call.1} parent=1 // pred_fallthru
      _
    // Predicated region
    $region14: #{tpu_custom_call.1} parent=1 // pred_check
      _
    $region15: #{tpu_custom_call.1} parent=1 // pred_check_branch
      %120 = sbr.rel (0) target = $region17
    $region16: #{tpu_custom_call.1} parent=1 // pred_region
      %122 = dma.done [#allocation4], 2048
    $region17: #{tpu_custom_call.1} parent=1 // pred_fallthru
      _
    %123 = vsyncpa [#allocation3], 1
    %124 = vsyncpa [#allocation4], 1

// kernel: tpu_custom_call.1
$region0: #{tpu_custom_call.1}
  #allocation0 [shape = 'u32[]', space=smem, size = 0x4, offset = 0x4, fixed_abs, tag = 'smem constant byte address 0x4 - core index']
  #allocation1 [shape = 'u32[72,128]{1,0:T(1,128)}', space=vmem, size = 0x9000, scoped, tag = 'internal scratch']
  %s0 = inlined_call_operand.hbm [shape: f32[8,64], index: 0, kind: input, shape index: {}]
  %s1 = inlined_call_operand.hbm [shape: f32[8,8,64], index: 1, kind: output, shape index: {}]
  %s2 = sld [smem:[#allocation0]]
  $region18: #{tpu_custom_call.1} parent=0
    _
  %s4 = ssub.s32 1, %s2
  %s5 = scalar_select 0, %s4, %s2
  $region1: #{tpu_custom_call.1} parent=0
    #allocation2 [shape = 'u8[4096]{0}', space=vmem, size = 0x1000, scoped, tag = 'input window, operand 0, single buffered']
    #allocation3 [shape = 's32[1]{0}', space=sflag, size = 0x4, scoped, tag = 'scoped memory for tpu_custom_call.1']
    #allocation4 [shape = 's32[1]{0}', space=sflag, size = 0x4, scoped, tag = 'scoped memory for tpu_custom_call.1']
    #allocation5 [shape = 'u8[32768]{0}', space=vmem, size = 0x8000, scoped, tag = 'output window, operand 0, single buffered']
    %6 = vsyncpa [#allocation3], 0
    %7 = vsyncpa [#allocation4], 0
    // Predicated region
    $region2: #{tpu_custom_call.1} parent=1 // pred_check
      _
    $region3: #{tpu_custom_call.1} parent=1 // pred_check_branch
      %9 = sbr.rel (0) target = $region5
    $region4: #{tpu_custom_call.1} parent=1 // pred_region
      %11 = vsyncadd [#allocation3], 0
      %s13 = sshll.u32 %s0, 4
      %s14 = int_to_ptr.hbm [resolvable:$true] %s13
      %s15 = sshll.u32 [#allocation2], 4
      %s16 = int_to_ptr.vmem [resolvable:$true] %s15
      %18 = dma.hbm_to_vmem [thread:$0]  %s14, 128, %s16, [#allocation3]
    $region5: #{tpu_custom_call.1} parent=1 // pred_fallthru
      _
    // Predicated region
    $region6: #{tpu_custom_call.1} parent=1 // pred_check
      _
    $region7: #{tpu_custom_call.1} parent=1 // pred_check_branch
      %20 = sbr.rel (0) target = $region9
    $region8: #{tpu_custom_call.1} parent=1 // pred_region
      %22 = dma.done [#allocation3], 128
    $region9: #{tpu_custom_call.1} parent=1 // pred_fallthru
      _
    %v23 = vld [vmem:[#allocation2] sm:$0xff]
    %vm24 = vcmask 1048064
    %25 = vrot.lane.b32.xlu0 %v23, 64
    %v26 = vpop.permute.xlu0 %25
    %v27 = vsel %vm24, %v26, %v23
    %28 = vrot.lane.b32.xlu0 %v27, 64
    %v29 = vpop.permute.xlu0 %28
    %v30 = vsel %vm24, %v29, %v23
    %32 = vrot.lane.b32.xlu0 %v30, 65
    %v33 = vpop.permute.xlu0 %32
    %vm35 = vcmask 523264
    %36 = vst.msk [vmem:[#allocation5] sm:$0xff] %vm35, %v33
    %37 = vrot.lane.b32.xlu0 %v30, 71
    %v38 = vpop.permute.xlu0 %37
    %s40 = scalar_lea.vmem [#allocation5], 8
    %41 = vst.msk [vmem:[%s40] sm:$0xff] %vm35, %v38
    %42 = vrot.lane.b32.xlu0 %v30, 72
    %v43 = vpop.permute.xlu0 %42
    %s45 = scalar_lea.vmem [#allocation5], 16
    %46 = vst.msk [vmem:[%s45] sm:$0xff] %vm35, %v43
    %47 = vrot.lane.b32.xlu0 %v30, 73
    %v48 = vpop.permute.xlu0 %47
    %s50 = scalar_lea.vmem [#allocation5], 24
    %51 = vst.msk [vmem:[%s50] sm:$0xff] %vm35, %v48
    %52 = vrot.lane.b32.xlu0 %v30, 119
    %v53 = vpop.permute.xlu0 %52
    %s55 = scalar_lea.vmem [#allocation5], 32
    %56 = vst.msk [vmem:[%s55] sm:$0xff] %vm35, %v53
    %57 = vrot.lane.b32.xlu0 %v30, 120
    %v58 = vpop.permute.xlu0 %57
    %s60 = scalar_lea.vmem [#allocation5], 40
    %61 = vst.msk [vmem:[%s60] sm:$0xff] %vm35, %v58
    %62 = vrot.lane.b32.xlu0 %v30, 121
    %v63 = vpop.permute.xlu0 %62
    %s65 = scalar_lea.vmem [#allocation5], 48
    %66 = vst.msk [vmem:[%s65] sm:$0xff] %vm35, %v63
    %67 = vrot.lane.b32.xlu0 %v30, 127
    %v68 = vpop.permute.xlu0 %67
    %s70 = scalar_lea.vmem [#allocation5], 56
    %71 = vst.msk [vmem:[%s70] sm:$0xff] %vm35, %v68
    // Predicated region
    $region10: #{tpu_custom_call.1} parent=1 // pred_check
      _
    $region11: #{tpu_custom_call.1} parent=1 // pred_check_branch
      %73 = sbr.rel (0) target = $region13
    $region12: #{tpu_custom_call.1} parent=1 // pred_region
      %75 = vsyncadd [#allocation4], 0
      %s76 = sshll.u32 [#allocation5], 4
      %s77 = int_to_ptr.vmem [resolvable:$true] %s76
      %s78 = sshll.u32 %s1, 4
      %s79 = int_to_ptr.hbm [resolvable:$true] %s78
      %84 = dma.vmem_to_hbm [thread:$0]  %s77, 1024, %s79, [#allocation4], 128, 128, 8
    $region13: #{tpu_custom_call.1} parent=1 // pred_fallthru
      _
    // Predicated region
    $region14: #{tpu_custom_call.1} parent=1 // pred_check
      _
    $region15: #{tpu_custom_call.1} parent=1 // pred_check_branch
      %86 = sbr.rel (0) target = $region17
    $region16: #{tpu_custom_call.1} parent=1 // pred_region
      %88 = dma.done [#allocation4], 1024
    $region17: #{tpu_custom_call.1} parent=1 // pred_fallthru
      _
    %89 = vsyncpa [#allocation3], 1
    %90 = vsyncpa [#allocation4], 1

// kernel: tpu_custom_call.1
$region0: #{tpu_custom_call.1}
  #allocation0 [shape = 'u32[]', space=smem, size = 0x4, offset = 0x4, fixed_abs, tag = 'smem constant byte address 0x4 - core index']
  #allocation1 [shape = 'u32[72,128]{1,0:T(1,128)}', space=vmem, size = 0x9000, scoped, tag = 'internal scratch']
  %s0 = inlined_call_operand.hbm [shape: f32[8,16], index: 0, kind: input, shape index: {}]
  %s1 = inlined_call_operand.hbm [shape: f32[8,8,16], index: 1, kind: output, shape index: {}]
  %s2 = sld [smem:[#allocation0]]
  $region18: #{tpu_custom_call.1} parent=0
    _
  %s4 = ssub.s32 1, %s2
  %s5 = scalar_select 0, %s4, %s2
  $region1: #{tpu_custom_call.1} parent=0
    #allocation2 [shape = 'u8[4096]{0}', space=vmem, size = 0x1000, scoped, tag = 'input window, operand 0, single buffered']
    #allocation3 [shape = 's32[1]{0}', space=sflag, size = 0x4, scoped, tag = 'scoped memory for tpu_custom_call.1']
    #allocation4 [shape = 's32[1]{0}', space=sflag, size = 0x4, scoped, tag = 'scoped memory for tpu_custom_call.1']
    #allocation5 [shape = 'u8[32768]{0}', space=vmem, size = 0x8000, scoped, tag = 'output window, operand 0, single buffered']
    %6 = vsyncpa [#allocation3], 0
    %7 = vsyncpa [#allocation4], 0
    // Predicated region
    $region2: #{tpu_custom_call.1} parent=1 // pred_check
      _
    $region3: #{tpu_custom_call.1} parent=1 // pred_check_branch
      %9 = sbr.rel (0) target = $region5
    $region4: #{tpu_custom_call.1} parent=1 // pred_region
      %11 = vsyncadd [#allocation3], 0
      %s13 = sshll.u32 %s0, 4
      %s14 = int_to_ptr.hbm [resolvable:$true] %s13
      %s15 = sshll.u32 [#allocation2], 4
      %s16 = int_to_ptr.vmem [resolvable:$true] %s15
      %18 = dma.hbm_to_vmem [thread:$0]  %s14, 128, %s16, [#allocation3]
    $region5: #{tpu_custom_call.1} parent=1 // pred_fallthru
      _
    // Predicated region
    $region6: #{tpu_custom_call.1} parent=1 // pred_check
      _
    $region7: #{tpu_custom_call.1} parent=1 // pred_check_branch
      %20 = sbr.rel (0) target = $region9
    $region8: #{tpu_custom_call.1} parent=1 // pred_region
      %22 = dma.done [#allocation3], 128
    $region9: #{tpu_custom_call.1} parent=1 // pred_fallthru
      _
    %v23 = vld [vmem:[#allocation2] sm:$0xff]
    %vm24 = vcmask 1047680
    %25 = vrot.lane.b32.xlu0 %v23, 16
    %v26 = vpop.permute.xlu0 %25
    %v27 = vsel %vm24, %v26, %v23
    %28 = vrot.lane.b32.xlu0 %v27, 16
    %v29 = vpop.permute.xlu0 %28
    %v30 = vsel %vm24, %v29, %v23
    %32 = vrot.lane.b32.xlu0 %v30, 113
    %v33 = vpop.permute.xlu0 %32
    %vm35 = vcmask 130048
    %36 = vst.msk [vmem:[#allocation5] sm:$0xff] %vm35, %v33
    %37 = vrot.lane.b32.xlu0 %v30, 115
    %v38 = vpop.permute.xlu0 %37
    %s40 = scalar_lea.vmem [#allocation5], 8
    %41 = vst.msk [vmem:[%s40] sm:$0xff] %vm35, %v38
    %42 = vrot.lane.b32.xlu0 %v30, 116
    %v43 = vpop.permute.xlu0 %42
    %s45 = scalar_lea.vmem [#allocation5], 16
    %46 = vst.msk [vmem:[%s45] sm:$0xff] %vm35, %v43
    %47 = vrot.lane.b32.xlu0 %v30, 117
    %v48 = vpop.permute.xlu0 %47
    %s50 = scalar_lea.vmem [#allocation5], 24
    %51 = vst.msk [vmem:[%s50] sm:$0xff] %vm35, %v48
    %52 = vrot.lane.b32.xlu0 %v30, 123
    %v53 = vpop.permute.xlu0 %52
    %s55 = scalar_lea.vmem [#allocation5], 32
    %56 = vst.msk [vmem:[%s55] sm:$0xff] %vm35, %v53
    %57 = vrot.lane.b32.xlu0 %v30, 124
    %v58 = vpop.permute.xlu0 %57
    %s60 = scalar_lea.vmem [#allocation5], 40
    %61 = vst.msk [vmem:[%s60] sm:$0xff] %vm35, %v58
    %62 = vrot.lane.b32.xlu0 %v30, 125
    %v63 = vpop.permute.xlu0 %62
    %s65 = scalar_lea.vmem [#allocation5], 48
    %66 = vst.msk [vmem:[%s65] sm:$0xff] %vm35, %v63
    %67 = vrot.lane.b32.xlu0 %v30, 127
    %v68 = vpop.permute.xlu0 %67
    %s70 = scalar_lea.vmem [#allocation5], 56
    %71 = vst.msk [vmem:[%s70] sm:$0xff] %vm35, %v68
    // Predicated region
    $region10: #{tpu_custom_call.1} parent=1 // pred_check
      _
    $region11: #{tpu_custom_call.1} parent=1 // pred_check_branch
      %73 = sbr.rel (0) target = $region13
    $region12: #{tpu_custom_call.1} parent=1 // pred_region
      %75 = vsyncadd [#allocation4], 0
      %s76 = sshll.u32 [#allocation5], 4
      %s77 = int_to_ptr.vmem [resolvable:$true] %s76
      %s78 = sshll.u32 %s1, 4
      %s79 = int_to_ptr.hbm [resolvable:$true] %s78
      %84 = dma.vmem_to_hbm [thread:$0]  %s77, 1024, %s79, [#allocation4], 128, 128, 8
    $region13: #{tpu_custom_call.1} parent=1 // pred_fallthru
      _
    // Predicated region
    $region14: #{tpu_custom_call.1} parent=1 // pred_check
      _
    $region15: #{tpu_custom_call.1} parent=1 // pred_check_branch
      %86 = sbr.rel (0) target = $region17
    $region16: #{tpu_custom_call.1} parent=1 // pred_region
      %88 = dma.done [#allocation4], 1024
    $region17: #{tpu_custom_call.1} parent=1 // pred_fallthru
      _
    %89 = vsyncpa [#allocation3], 1
    %90 = vsyncpa [#allocation4], 1

// kernel: tpu_custom_call.1
$region0: #{tpu_custom_call.1}
  #allocation0 [shape = 'u32[]', space=smem, size = 0x4, offset = 0x4, fixed_abs, tag = 'smem constant byte address 0x4 - core index']
  #allocation1 [shape = 'u32[72,128]{1,0:T(1,128)}', space=vmem, size = 0x9000, scoped, tag = 'internal scratch']
  %s0 = inlined_call_operand.vmem [shape: f32[8,4], index: 0, kind: input, shape index: {}]
  %s1 = inlined_call_operand.vmem [shape: f32[3,8,4], index: 1, kind: output, shape index: {}]
  %s2 = sld [smem:[#allocation0]]
  $region14: #{tpu_custom_call.1} parent=0
    _
  %s4 = ssub.s32 1, %s2
  %s5 = scalar_select 0, %s4, %s2
  // Predicated region
  $region2: #{tpu_custom_call.1} parent=0 // pred_check
    _
  $region3: #{tpu_custom_call.1} parent=0 // pred_check_branch
    %7 = sbr.rel (0) target = $region5
  $region4: #{tpu_custom_call.1} parent=0 // pred_region
    _
  $region5: #{tpu_custom_call.1} parent=0 // pred_fallthru
    _
  %v8 = vld [vmem:[%s0] sm:$0xff]
  %vm9 = vcmask 1047584
  %10 = vrot.lane.b32.xlu0 %v8, 4
  %v11 = vpop.permute.xlu0 %10
  %v12 = vsel %vm9, %v11, %v8
  %13 = vrot.lane.b32.xlu0 %v12, 4
  %v14 = vpop.permute.xlu0 %13
  %v15 = vsel %vm9, %v14, %v8
  %17 = vrot.lane.b32.xlu0 %v15, 125
  %v18 = vpop.permute.xlu0 %17
  %vm20 = vcmask 31744
  %21 = vst.msk [vmem:[%s1] sm:$0xff] %vm20, %v18
  %22 = vrot.lane.b32.xlu0 %v15, 126
  %v23 = vpop.permute.xlu0 %22
  %s25 = scalar_lea.vmem %s1, 8
  %26 = vst.msk [vmem:[%s25] sm:$0xff] %vm20, %v23
  %27 = vrot.lane.b32.xlu0 %v15, 127
  %v28 = vpop.permute.xlu0 %27
  %s30 = scalar_lea.vmem %s1, 16
  %31 = vst.msk [vmem:[%s30] sm:$0xff] %vm20, %v28
  // Predicated region
  $region6: #{tpu_custom_call.1} parent=0 // pred_check
    _
  $region7: #{tpu_custom_call.1} parent=0 // pred_check_branch
    %33 = sbr.rel (0) target = $region9
  $region8: #{tpu_custom_call.1} parent=0 // pred_region
    _
  $region9: #{tpu_custom_call.1} parent=0 // pred_fallthru
    _
  // Predicated region
  $region10: #{tpu_custom_call.1} parent=0 // pred_check
    _
  $region11: #{tpu_custom_call.1} parent=0 // pred_check_branch
    %35 = sbr.rel (0) target = $region13
  $region12: #{tpu_custom_call.1} parent=0 // pred_region
    _
  $region13: #{tpu_custom_call.1} parent=0 // pred_fallthru
    _

// kernel: tile.44
$region0: #{tile.44}
  %s0 = inlined_call_operand.vmem [shape: s32[4,4], index: 0, kind: input, shape index: {}]
  %s1 = inlined_call_operand.vmem [shape: s32[1,16], index: 1, kind: output, shape index: {}]
  $region1: #{tile.44} parent=0
    #allocation0 [shape = 'u8[4096]{0}', space=vmem, size = 0x1000, scoped, tag = 'scoped mem for output reshape']
    #allocation1 [shape = 'u8[4096]{0}', space=vmem, size = 0x1000, scoped, tag = 'scoped mem for input reshape']
    %s3 = ssub.s32 16, 1
    %v4 = vld [vmem:[%s0] sm:%s3]
    %5 = vst [vmem:[#allocation1] sm:%s3] %v4
    %v6 = vld [vmem:[#allocation1] sm:$0x1]
    %vm7 = vcmask 31744
    %8 = vst.msk [vmem:[#allocation0] sm:$0x1] %vm7, %v6
    %s9 = scalar_lea.vmem [#allocation1], 3
    %v10 = vld [vmem:[%s9] sm:$0x1]
    %11 = vrot.lane.b32.xlu0 %v10, 12
    %v12 = vpop.permute.xlu0 %11
    %vm13 = vcmask 130144
    %14 = vst.msk [vmem:[#allocation0] sm:$0x1] %vm13, %v12
    %s15 = scalar_lea.vmem [#allocation1], 2
    %v16 = vld [vmem:[%s15] sm:$0x1]
    %17 = vrot.lane.b32.xlu0 %v16, 8
    %v18 = vpop.permute.xlu0 %17
    %vm19 = vcmask 97344
    %20 = vst.msk [vmem:[#allocation0] sm:$0x1] %vm19, %v18
    %s21 = scalar_lea.vmem [#allocation1], 1
    %v22 = vld [vmem:[%s21] sm:$0x1]
    %23 = vrot.lane.b32.xlu0 %v22, 4
    %v24 = vpop.permute.xlu0 %23
    %vm25 = vcmask 64544
    %26 = vst.msk [vmem:[#allocation0] sm:$0x1] %vm25, %v24
    %s28 = ssub.s32 2, 1
    %v29 = vld [vmem:[#allocation0] sm:%s28]
    %s31 = ssub.s32 2, 1
    %32 = vst [vmem:[%s1] sm:%s31] %v29

// kernel: tile.49
$region0: #{tile.49}
  %s0 = inlined_call_operand.vmem [shape: s32[8,8], index: 0, kind: input, shape index: {}]
  %s1 = inlined_call_operand.vmem [shape: s32[1,64], index: 1, kind: output, shape index: {}]
  $region1: #{tile.49} parent=0
    #allocation0 [shape = 'u8[4096]{0}', space=vmem, size = 0x1000, scoped, tag = 'scoped mem for output reshape']
    %v2 = vld [vmem:[%s0] sm:$0x1]
    %vm3 = vcmask 64512
    %4 = vst.msk [vmem:[#allocation0] sm:$0x1] %vm3, %v2
    %s5 = scalar_lea.vmem %s0, 7
    %v6 = vld [vmem:[%s5] sm:$0x1]
    %7 = vrot.lane.b32.xlu0 %v6, 56
    %v8 = vpop.permute.xlu0 %7
    %vm9 = vcmask 523712
    %10 = vst.msk [vmem:[#allocation0] sm:$0x1] %vm9, %v8
    %s11 = scalar_lea.vmem %s0, 6
    %v12 = vld [vmem:[%s11] sm:$0x1]
    %13 = vrot.lane.b32.xlu0 %v12, 48
    %v14 = vpop.permute.xlu0 %13
    %vm15 = vcmask 458112
    %16 = vst.msk [vmem:[#allocation0] sm:$0x1] %vm15, %v14
    %s17 = scalar_lea.vmem %s0, 5
    %v18 = vld [vmem:[%s17] sm:$0x1]
    %19 = vrot.lane.b32.xlu0 %v18, 40
    %v20 = vpop.permute.xlu0 %19
    %vm21 = vcmask 392512
    %22 = vst.msk [vmem:[#allocation0] sm:$0x1] %vm21, %v20
    %s23 = scalar_lea.vmem %s0, 4
    %v24 = vld [vmem:[%s23] sm:$0x1]
    %25 = vrot.lane.b32.xlu0 %v24, 32
    %v26 = vpop.permute.xlu0 %25
    %vm27 = vcmask 326912
    %28 = vst.msk [vmem:[#allocation0] sm:$0x1] %vm27, %v26
    %s29 = scalar_lea.vmem %s0, 3
    %v30 = vld [vmem:[%s29] sm:$0x1]
    %31 = vrot.lane.b32.xlu0 %v30, 24
    %v32 = vpop.permute.xlu0 %31
    %vm33 = vcmask 261312
    %34 = vst.msk [vmem:[#allocation0] sm:$0x1] %vm33, %v32
    %s35 = scalar_lea.vmem %s0, 2
    %v36 = vld [vmem:[%s35] sm:$0x1]
    %37 = vrot.lane.b32.xlu0 %v36, 16
    %v38 = vpop.permute.xlu0 %37
    %vm39 = vcmask 195712
    %40 = vst.msk [vmem:[#allocation0] sm:$0x1] %vm39, %v38
    %s41 = scalar_lea.vmem %s0, 1
    %v42 = vld [vmem:[%s41] sm:$0x1]
    %43 = vrot.lane.b32.xlu0 %v42, 8
    %v44 = vpop.permute.xlu0 %43
    %vm45 = vcmask 130112
    %46 = vst.msk [vmem:[#allocation0] sm:$0x1] %vm45, %v44
    %s48 = ssub.s32 2, 1
    %v49 = vld [vmem:[#allocation0] sm:%s48]
    %s51 = ssub.s32 2, 1
    %52 = vst [vmem:[%s1] sm:%s51] %v49

// kernel: tile.54
$region0: #{tile.54}
  %s0 = inlined_call_operand.vmem [shape: s32[16,16], index: 0, kind: input, shape index: {}]
  %s1 = inlined_call_operand.vmem [shape: s32[1,256], index: 1, kind: output, shape index: {}]
  $region1: #{tile.54} parent=0
    #allocation0 [shape = 'u8[8192]{0}', space=vmem, size = 0x2000, scoped, tag = 'scoped mem for output reshape']
    %s2 = smov 3
    %v3 = vld [vmem:[%s0] ss:$8 sm:%s2]
    %vm4 = vcmask 130048
    %5 = vst.msk [vmem:[#allocation0] ss:$8 sm:$0x3] %vm4, %v3
    %s6 = scalar_lea.vmem %s0, 7
    %s7 = smov 3
    %v8 = vld [vmem:[%s6] ss:$8 sm:%s7]
    %9 = vrot.lane.b32.xlu0 %v8, 112
    %v10 = vpop.permute.xlu0 %9
    %vm11 = vcmask 1048448
    %12 = vst.msk [vmem:[#allocation0] ss:$8 sm:$0x3] %vm11, %v10
    %s13 = scalar_lea.vmem %s0, 6
    %s14 = smov 3
    %v15 = vld [vmem:[%s13] ss:$8 sm:%s14]
    %16 = vrot.lane.b32.xlu0 %v15, 96
    %v17 = vpop.permute.xlu0 %16
    %vm18 = vcmask 917248
    %19 = vst.msk [vmem:[#allocation0] ss:$8 sm:$0x3] %vm18, %v17
    %s20 = scalar_lea.vmem %s0, 5
    %s21 = smov 3
    %v22 = vld [vmem:[%s20] ss:$8 sm:%s21]
    %23 = vrot.lane.b32.xlu0 %v22, 80
    %v24 = vpop.permute.xlu0 %23
    %vm25 = vcmask 786048
    %26 = vst.msk [vmem:[#allocation0] ss:$8 sm:$0x3] %vm25, %v24
    %s27 = scalar_lea.vmem %s0, 4
    %s28 = smov 3
    %v29 = vld [vmem:[%s27] ss:$8 sm:%s28]
    %30 = vrot.lane.b32.xlu0 %v29, 64
    %v31 = vpop.permute.xlu0 %30
    %vm32 = vcmask 654848
    %33 = vst.msk [vmem:[#allocation0] ss:$8 sm:$0x3] %vm32, %v31
    %s34 = scalar_lea.vmem %s0, 3
    %s35 = smov 3
    %v36 = vld [vmem:[%s34] ss:$8 sm:%s35]
    %37 = vrot.lane.b32.xlu0 %v36, 48
    %v38 = vpop.permute.xlu0 %37
    %vm39 = vcmask 523648
    %40 = vst.msk [vmem:[#allocation0] ss:$8 sm:$0x3] %vm39, %v38
    %s41 = scalar_lea.vmem %s0, 2
    %s42 = smov 3
    %v43 = vld [vmem:[%s41] ss:$8 sm:%s42]
    %44 = vrot.lane.b32.xlu0 %v43, 32
    %v45 = vpop.permute.xlu0 %44
    %vm46 = vcmask 392448
    %47 = vst.msk [vmem:[#allocation0] ss:$8 sm:$0x3] %vm46, %v45
    %s48 = scalar_lea.vmem %s0, 1
    %s49 = smov 3
    %v50 = vld [vmem:[%s48] ss:$8 sm:%s49]
    %51 = vrot.lane.b32.xlu0 %v50, 16
    %v52 = vpop.permute.xlu0 %51
    %vm53 = vcmask 261248
    %54 = vst.msk [vmem:[#allocation0] ss:$8 sm:$0x3] %vm53, %v52
    %s56 = ssub.s32 2, 1
    %v57 = vld [vmem:[#allocation0] sm:%s56]
    %s59 = ssub.s32 2, 1
    %60 = vst [vmem:[%s1] sm:%s59] %v57
    %s61 = scalar_lea.vmem [#allocation0], 8
    %v62 = vld [vmem:[%s61] sm:%s56]
    %s64 = ssub.s32 2, 1
    %s65 = scalar_lea.vmem %s1, 1
    %66 = vst [vmem:[%s65] sm:%s64] %v62

// kernel: bifpn_layer_forward.8
$region0: #{bifpn_layer_forward.8}
  #allocation0 [shape = 'u32[]', space=smem, size = 0x4, offset = 0x4, fixed_abs, tag = 'smem constant byte address 0x4 - core index']
  #allocation1 [shape = 'u32[72,128]{1,0:T(1,128)}', space=vmem, size = 0x9000, scoped, tag = 'internal scratch']
  %s0 = inlined_call_operand.vmem [shape: f32[2], index: 0, kind: input, shape index: {}]
  %s1 = inlined_call_operand.vmem [shape: f32[2,8,16], index: 1, kind: input, shape index: {}]
  %s2 = inlined_call_operand.vmem [shape: f32[2,8,16], index: 2, kind: input, shape index: {}]
  %s3 = inlined_call_operand.vmem [shape: s32[1,16], index: 3, kind: input, shape index: {}]
  %s4 = inlined_call_operand.vmem [shape: f32[8,9], index: 4, kind: input, shape index: {}]
  %s5 = inlined_call_operand.vmem [shape: f32[8,8], index: 5, kind: input, shape index: {}]
  %s6 = inlined_call_operand.vmem [shape: f32[8,1], index: 6, kind: input, shape index: {}]
  %s7 = inlined_call_operand.vmem [shape: f32[2,8,16], index: 7, kind: output, shape index: {}]
  %s8 = sld [smem:[#allocation0]]
  $region65: #{bifpn_layer_forward.8} parent=0
    _
  %s10 = ssub.s32 1, %s8
  %s11 = scalar_select 0, %s10, %s8
  $region1: #{bifpn_layer_forward.8} parent=0
    #allocation2 [shape = 'u8[512]{0}', space=smem, size = 0x200, scoped, tag = 'input window, operand 0, single buffered']
    #allocation3 [shape = 's32[2]{0}', space=sflag, size = 0x8, scoped, tag = 'scoped memory for bifpn_layer_forward.8']
    %12 = vsyncpa [#allocation3], 0
    loop: start=0, step=1, limit=4
    $region2: #{bifpn_layer_forward.8} parent=1 // loop_pre_header
      _
    $region3: #{bifpn_layer_forward.8} parent=1 // loop_header
      %s14 = sphi 0, %s18
      %p15 = scmp.ge.s32.totalorder %s14, 4
      %s22 = sphi 0, %s22
      %s24 = sphi 0, %s22
      %s25 = sphi 0, %s24
      %s39 = sphi 0, %s25
      %s45 = sphi 0, %s47
      %s48 = sphi 0, %s45
      %s49 = sphi 0, %s48
      %s65 = sphi 0, %s49
      %s71 = sphi 0, %s73
      %s74 = sphi 0, %s71
      %s75 = sphi 0, %s74
      %s91 = sphi 0, %s75
      %s95 = sphi 0, %s95
      %s97 = sphi 0, %s95
      %s98 = sphi 0, %s97
      %s112 = sphi 0, %s98
      %s116 = sphi 0, %s116
      %s118 = sphi 0, %s116
      %s119 = sphi 0, %s118
      %s133 = sphi 0, %s119
      %s137 = sphi 0, %s137
      %s139 = sphi 0, %s137
      %s140 = sphi 0, %s139
      %s154 = sphi 0, %s140
      %s158 = sphi 0, %s158
      %s160 = sphi 0, %s158
      %s161 = sphi 0, %s160
      %s175 = sphi 0, %s161
      %s181 = sphi 0, %s183
      %s184 = sphi 0, %s181
      %s185 = sphi 0, %s184
      %s201 = sphi 0, %s185
    $region4: #{bifpn_layer_forward.8} parent=1 // loop_header_branch
      %17 = sbr.rel (%p15) target = $region8
    $region5: #{bifpn_layer_forward.8} parent=1 // loop_body
      %s19 = ssub.s32 %s14, 1
      %s20 = ssub.s32 %s14, 2
      %s21 = sadd.s32 %s14, 1
      %s23 = sadd.s32 %s22, 1
      %p26 = scmp.eq.s32.totalorder %s14, 1
      %p27 = scmp.ne.s32.totalorder %s22, %s24
      %p28 = scmp.eq.s32.totalorder %s14, 0
      %p29 = por %p27, %p28
      %p30 = scmp.ne.s32.totalorder %s22, %s24
      %p31 = scmp.eq.s32.totalorder %s19, 1
      %p32 = por %p30, %p31
      %p33 = scmp.ne.s32.totalorder %s24, %s25
      %p34 = scmp.eq.s32.totalorder %s19, 0
      %p35 = por %p33, %p34
      %p36 = scmp.ne.s32.totalorder %s24, %s25
      %p37 = scmp.eq.s32.totalorder %s20, 1
      %p38 = por %p36, %p37
      %p40 = scmp.ne.s32.totalorder %s25, %s39
      %p41 = scmp.eq.s32.totalorder %s20, 0
      %p42 = por %p40, %p41
      %s43 = ssub.s32 %s14, %s21
      %p44 = scmp.eq.s32.totalorder %s43, 0
      %s46 = sadd.s32 %s45, 1
      %s47 = scalar_select %p44, %s45, %s46
      %p50 = pneg %p44
      %p51 = scmp.eq.s32.totalorder %s14, 1
      %p52 = por %p50, %p51
      %p53 = scmp.ne.s32.totalorder %s45, %s48
      %p54 = scmp.eq.s32.totalorder %s14, 0
      %p55 = por %p53, %p54
      %p56 = scmp.ne.s32.totalorder %s45, %s48
      %p57 = scmp.eq.s32.totalorder %s19, 1
      %p58 = por %p56, %p57
      %p59 = scmp.ne.s32.totalorder %s48, %s49
      %p60 = scmp.eq.s32.totalorder %s19, 0
      %p61 = por %p59, %p60
      %p62 = scmp.ne.s32.totalorder %s48, %s49
      %p63 = scmp.eq.s32.totalorder %s20, 1
      %p64 = por %p62, %p63
      %p66 = scmp.ne.s32.totalorder %s49, %s65
      %p67 = scmp.eq.s32.totalorder %s20, 0
      %p68 = por %p66, %p67
      %s69 = ssub.s32 %s14, %s21
      %p70 = scmp.eq.s32.totalorder %s69, 0
      %s72 = sadd.s32 %s71, 1
      %s73 = scalar_select %p70, %s71, %s72
      %p76 = pneg %p70
      %p77 = scmp.eq.s32.totalorder %s14, 1
      %p78 = por %p76, %p77
      %p79 = scmp.ne.s32.totalorder %s71, %s74
      %p80 = scmp.eq.s32.totalorder %s14, 0
      %p81 = por %p79, %p80
      %p82 = scmp.ne.s32.totalorder %s71, %s74
      %p83 = scmp.eq.s32.totalorder %s19, 1
      %p84 = por %p82, %p83
      %p85 = scmp.ne.s32.totalorder %s74, %s75
      %p86 = scmp.eq.s32.totalorder %s19, 0
      %p87 = por %p85, %p86
      %p88 = scmp.ne.s32.totalorder %s74, %s75
      %p89 = scmp.eq.s32.totalorder %s20, 1
      %p90 = por %p88, %p89
      %p92 = scmp.ne.s32.totalorder %s75, %s91
      %p93 = scmp.eq.s32.totalorder %s20, 0
      %p94 = por %p92, %p93
      %s96 = sadd.s32 %s95, 1
      %p99 = scmp.eq.s32.totalorder %s14, 1
      %p100 = scmp.ne.s32.totalorder %s95, %s97
      %p101 = scmp.eq.s32.totalorder %s14, 0
      %p102 = por %p100, %p101
      %p103 = scmp.ne.s32.totalorder %s95, %s97
      %p104 = scmp.eq.s32.totalorder %s19, 1
      %p105 = por %p103, %p104
      %p106 = scmp.ne.s32.totalorder %s97, %s98
      %p107 = scmp.eq.s32.totalorder %s19, 0
      %p108 = por %p106, %p107
      %p109 = scmp.ne.s32.totalorder %s97, %s98
      %p110 = scmp.eq.s32.totalorder %s20, 1
      %p111 = por %p109, %p110
      %p113 = scmp.ne.s32.totalorder %s98, %s112
      %p114 = scmp.eq.s32.totalorder %s20, 0
      %p115 = por %p113, %p114
      %s117 = sadd.s32 %s116, 1
      %p120 = scmp.eq.s32.totalorder %s14, 1
      %p121 = scmp.ne.s32.totalorder %s116, %s118
      %p122 = scmp.eq.s32.totalorder %s14, 0
      %p123 = por %p121, %p122
      %p124 = scmp.ne.s32.totalorder %s116, %s118
      %p125 = scmp.eq.s32.totalorder %s19, 1
      %p126 = por %p124, %p125
      %p127 = scmp.ne.s32.totalorder %s118, %s119
      %p128 = scmp.eq.s32.totalorder %s19, 0
      %p129 = por %p127, %p128
      %p130 = scmp.ne.s32.totalorder %s118, %s119
      %p131 = scmp.eq.s32.totalorder %s20, 1
      %p132 = por %p130, %p131
      %p134 = scmp.ne.s32.totalorder %s119, %s133
      %p135 = scmp.eq.s32.totalorder %s20, 0
      %p136 = por %p134, %p135
      %s138 = sadd.s32 %s137, 1
      %p141 = scmp.eq.s32.totalorder %s14, 1
      %p142 = scmp.ne.s32.totalorder %s137, %s139
      %p143 = scmp.eq.s32.totalorder %s14, 0
      %p144 = por %p142, %p143
      %p145 = scmp.ne.s32.totalorder %s137, %s139
      %p146 = scmp.eq.s32.totalorder %s19, 1
      %p147 = por %p145, %p146
      %p148 = scmp.ne.s32.totalorder %s139, %s140
      %p149 = scmp.eq.s32.totalorder %s19, 0
      %p150 = por %p148, %p149
      %p151 = scmp.ne.s32.totalorder %s139, %s140
      %p152 = scmp.eq.s32.totalorder %s20, 1
      %p153 = por %p151, %p152
      %p155 = scmp.ne.s32.totalorder %s140, %s154
      %p156 = scmp.eq.s32.totalorder %s20, 0
      %p157 = por %p155, %p156
      %s159 = sadd.s32 %s158, 1
      %p162 = scmp.eq.s32.totalorder %s14, 1
      %p163 = scmp.ne.s32.totalorder %s158, %s160
      %p164 = scmp.eq.s32.totalorder %s14, 0
      %p165 = por %p163, %p164
      %p166 = scmp.ne.s32.totalorder %s158, %s160
      %p167 = scmp.eq.s32.totalorder %s19, 1
      %p168 = por %p166, %p167
      %p169 = scmp.ne.s32.totalorder %s160, %s161
      %p170 = scmp.eq.s32.totalorder %s19, 0
      %p171 = por %p169, %p170
      %p172 = scmp.ne.s32.totalorder %s160, %s161
      %p173 = scmp.eq.s32.totalorder %s20, 1
      %p174 = por %p172, %p173
      %p176 = scmp.ne.s32.totalorder %s161, %s175
      %p177 = scmp.eq.s32.totalorder %s20, 0
      %p178 = por %p176, %p177
      %s179 = ssub.s32 %s14, %s21
      %p180 = scmp.eq.s32.totalorder %s179, 0
      %s182 = sadd.s32 %s181, 1
      %s183 = scalar_select %p180, %s181, %s182
      %p186 = pneg %p180
      %p187 = scmp.eq.s32.totalorder %s14, 1
      %p188 = por %p186, %p187
      %p189 = scmp.ne.s32.totalorder %s181, %s184
      %p190 = scmp.eq.s32.totalorder %s14, 0
      %p191 = por %p189, %p190
      %p192 = scmp.ne.s32.totalorder %s181, %s184
      %p193 = scmp.eq.s32.totalorder %s19, 1
      %p194 = por %p192, %p193
      %p195 = scmp.ne.s32.totalorder %s184, %s185
      %p196 = scmp.eq.s32.totalorder %s19, 0
      %p197 = por %p195, %p196
      %p198 = scmp.ne.s32.totalorder %s184, %s185
      %p199 = scmp.eq.s32.totalorder %s20, 1
      %p200 = por %p198, %p199
      %p202 = scmp.ne.s32.totalorder %s185, %s201
      %p203 = scmp.eq.s32.totalorder %s20, 0
      %p204 = por %p202, %p203
      %p205 = scmp.le.s32.totalorder 1, %s14
      %p206 = scmp.lt.s32.totalorder %s14, 3
      %p207 = pnand %p205, %p206
      %p208 = pneg %p207
      // Predicated region
      $region9: #{bifpn_layer_forward.8} parent=5 // pred_check
        _
      $region10: #{bifpn_layer_forward.8} parent=5 // pred_check_branch
        %210 = sbr.rel (%p207) target = $region12
      $region11: #{bifpn_layer_forward.8} parent=5 // pred_region
        %s211 = ssub.s32 %s14, 1
        // Predicated region
        $region13: #{bifpn_layer_forward.8} parent=11 // pred_check
          %p212 = pneg %p35
        $region14: #{bifpn_layer_forward.8} parent=11 // pred_check_branch
          %214 = sbr.rel (%p212) target = $region16
        $region15: #{bifpn_layer_forward.8} parent=11 // pred_region
          %216 = vsyncadd [#allocation3], 0
          %s218 = sshll.u32 %s0, 4
          %s219 = int_to_ptr.vmem [resolvable:$true] %s218
          %221 = dma.vmem_to_smem %s219, 16, [#allocation2], [#allocation3]
        $region16: #{bifpn_layer_forward.8} parent=11 // pred_fallthru
          _
        // Predicated region
        $region17: #{bifpn_layer_forward.8} parent=11 // pred_check
          %p222 = pneg %p108
        $region18: #{bifpn_layer_forward.8} parent=11 // pred_check_branch
          %224 = sbr.rel (%p222) target = $region20
        $region19: #{bifpn_layer_forward.8} parent=11 // pred_region
          _
        $region20: #{bifpn_layer_forward.8} parent=11 // pred_fallthru
          _
        // Predicated region
        $region21: #{bifpn_layer_forward.8} parent=11 // pred_check
          %p225 = pneg %p129
        $region22: #{bifpn_layer_forward.8} parent=11 // pred_check_branch
          %227 = sbr.rel (%p225) target = $region24
        $region23: #{bifpn_layer_forward.8} parent=11 // pred_region
          _
        $region24: #{bifpn_layer_forward.8} parent=11 // pred_fallthru
          _
        // Predicated region
        $region25: #{bifpn_layer_forward.8} parent=11 // pred_check
          %p228 = pneg %p150
        $region26: #{bifpn_layer_forward.8} parent=11 // pred_check_branch
          %230 = sbr.rel (%p228) target = $region28
        $region27: #{bifpn_layer_forward.8} parent=11 // pred_region
          _
        $region28: #{bifpn_layer_forward.8} parent=11 // pred_fallthru
          _
        // Predicated region
        $region29: #{bifpn_layer_forward.8} parent=11 // pred_check
          %p231 = pneg %p171
        $region30: #{bifpn_layer_forward.8} parent=11 // pred_check_branch
          %233 = sbr.rel (%p231) target = $region32
        $region31: #{bifpn_layer_forward.8} parent=11 // pred_region
          _
        $region32: #{bifpn_layer_forward.8} parent=11 // pred_fallthru
          _
      $region12: #{bifpn_layer_forward.8} parent=5 // pred_fallthru
        _
      %p234 = scmp.lt.s32.totalorder %s14, 2
      // Predicated region
      $region33: #{bifpn_layer_forward.8} parent=5 // pred_check
        %p235 = pneg %p234
      $region34: #{bifpn_layer_forward.8} parent=5 // pred_check_branch
        %237 = sbr.rel (%p235) target = $region36
      $region35: #{bifpn_layer_forward.8} parent=5 // pred_region
        // Predicated region
        $region37: #{bifpn_layer_forward.8} parent=35 // pred_check
          %p238 = pneg %p55
        $region38: #{bifpn_layer_forward.8} parent=35 // pred_check_branch
          %240 = sbr.rel (%p238) target = $region40
        $region39: #{bifpn_layer_forward.8} parent=35 // pred_region
          %p241 = scmp.lt.s32.totalorder %s14, 1
          %s242 = scalar_select %p241, %s14, 1
          %s243 = smul.addr %s242, 8
          %s244 = scalar_lea.vmem %s1, %s243
        $region40: #{bifpn_layer_forward.8} parent=35 // pred_fallthru
          _
        // Predicated region
        $region41: #{bifpn_layer_forward.8} parent=35 // pred_check
          %p245 = pneg %p81
        $region42: #{bifpn_layer_forward.8} parent=35 // pred_check_branch
          %247 = sbr.rel (%p245) target = $region44
        $region43: #{bifpn_layer_forward.8} parent=35 // pred_region
          %p248 = scmp.lt.s32.totalorder %s14, 1
          %s249 = scalar_select %p248, %s14, 1
          %s250 = smul.addr %s249, 8
          %s251 = scalar_lea.vmem %s2, %s250
        $region44: #{bifpn_layer_forward.8} parent=35 // pred_fallthru
          _
      $region36: #{bifpn_layer_forward.8} parent=5 // pred_fallthru
        _
      %p252 = scmp.le.s32.totalorder 1, %s14
      %p253 = scmp.lt.s32.totalorder %s14, 3
      %p254 = pnand %p252, %p253
      %p255 = pneg %p254
      // Predicated region
      $region45: #{bifpn_layer_forward.8} parent=5 // pred_check
        _
      $region46: #{bifpn_layer_forward.8} parent=5 // pred_check_branch
        %257 = sbr.rel (%p254) target = $region48
      $region47: #{bifpn_layer_forward.8} parent=5 // pred_region
        %s258 = ssub.s32 %s14, 1
        // Predicated region
        $region49: #{bifpn_layer_forward.8} parent=47 // pred_check
          %p259 = pneg %p35
        $region50: #{bifpn_layer_forward.8} parent=47 // pred_check_branch
          %261 = sbr.rel (%p259) target = $region52
        $region51: #{bifpn_layer_forward.8} parent=47 // pred_region
          %263 = dma.done [#allocation3], 16
        $region52: #{bifpn_layer_forward.8} parent=47 // pred_fallthru
          _
        %264 = sfence
        %p265 = pneg %p35
        %p266 = pneg %p32
        %p267 = scmp.lt.s32.totalorder %s19, 1
        %s268 = scalar_select %p267, %s19, 1
        %s269 = smul.addr %s268, 8
        %s270 = scalar_lea.vmem %s1, %s269
        %p271 = pneg %p61
        %p272 = pneg %p58
        %p273 = scmp.lt.s32.totalorder %s19, 1
        %s274 = scalar_select %p273, %s19, 1
        %s275 = smul.addr %s274, 8
        %s276 = scalar_lea.vmem %s2, %s275
        %p277 = pneg %p87
        %p278 = pneg %p84
        %p279 = pneg %p108
        %p280 = pneg %p105
        %p281 = pneg %p129
        %p282 = pneg %p126
        %p283 = pneg %p150
        %p284 = pneg %p147
        %p285 = pneg %p171
        %p286 = pneg %p168
        %p287 = pneg %p197
        %p288 = pneg %p194
        %p289 = scmp.lt.s32.totalorder %s19, 1
        %s290 = scalar_select %p289, %s19, 1
        %s291 = smul.addr %s290, 8
        %s292 = scalar_lea.vmem %s7, %s291
        %p293 = scmp.lt.s32.totalorder %s19, 1
        %s294 = scalar_select %p293, %s19, 1
        %s295 = smul.addr %s294, 8
        %s296 = scalar_lea.vmem %s1, %s295
        %p297 = scmp.lt.s32.totalorder %s19, 1
        %s298 = scalar_select %p297, %s19, 1
        %s299 = smul.addr %s298, 8
        %s300 = scalar_lea.vmem %s2, %s299
        %p301 = scmp.lt.s32.totalorder %s19, 1
        %s302 = scalar_select %p301, %s19, 1
        %s303 = smul.addr %s302, 8
        %s304 = scalar_lea.vmem %s7, %s303
        %s305 = sld [smem:[#allocation2]]
        %v306 = vld [vmem:[%s296] sm:$0xff]
        %v307 = vstv %s305
        %v308 = vmul.f32 %v307, %v306
        %s309 = sld [smem:[#allocation2 + $0x1]]
        %v310 = vld [vmem:[%s300] sm:$0xff]
        %v311 = vstv %s309
        %v312 = vmul.f32 %v311, %v310
        %v313 = vadd.f32 %v308, %v312
        %v314 = vxor.u32 %v313, 2147483648
        %v315 = vmul.f32 %v314, 1.442695
        %v316 = vpow.pop %v315
        %v317 = vadd.f32 %v316, 1.0
        %v318 = vrcp.pop %v317
        %v319 = vmul.f32 %v317, %v318
        %v320 = vsub.f32 1.0, %v319
        %v321 = vmul.f32 %v318, %v320
        %v322 = vadd.f32 %v318, %v321
        %vm323 = vweird.f32 %v317
        %vm324 = vweird.f32 %v318
        %vm325 = vmor %vm323, %vm324
        %v326 = vsel %vm325, %v318, %v322
        %v327 = vand.u32 2147483647, %v317
        %vm328 = vcmp.eq.f32.partialorder %v327, 8.507059e+37
        %v329 = vand.u32 %v317, 2147483648
        %v330 = vor.u32 1.1754944e-38, %v329
        %v331 = vsel %vm328, %v330, %v326
        %v332 = vmul.f32 1.0, %v331
        %v333 = vmul.f32 %v313, %v332
        %v334 = vlaneseq
        %v335 = vand.u32 %v334, 127
        %v336 = vld [vmem:[%s3] sm:$0x1]
        %vm337 = vcmp.ge.s32.totalorder %v335, 4
        %vm338 = vcmp.lt.s32.totalorder %v335, 12
        %vm339 = vcmp.ge.s32.totalorder %v336, 1
        %vm340 = vcmp.le.s32.totalorder %v336, 2
        %v341 = vld [vmem:[%s4] sm:$0xff]
        %343 = vrot.lane.b32.xlu0 %v333, 117
        %v344 = vpop.permute.xlu0 %343
        %346 = vrot.lane.b32.xlu0 %v333, 5
        %v347 = vpop.permute.xlu0 %346
        %vm349 = vcmask 39936
        %v350 = vsel %vm349, %v344, %v347
        %vm351 = vmand %vm337, %vm339
        %v352 = vsel %vm351, 1, 0
        %v353 = vperm.slane %v352, 0
        %vm354 = vcmp.eq.s32.totalorder %v353, 1
        %v355 = vsel %vm354, %v350, 0.0
        %357 = vset.pattern.permute.xlu0 0
        %358 = vperm.xlu0 %357, %v341
        %v359 = vpop.permute.xlu0 %358
        %v361 = vmul.f32 %v355, %v359
        %v362 = vadd.f32 %v361, 0.0
        %363 = vrot.lane.b32.xlu0 %v333, 116
        %v364 = vpop.permute.xlu0 %363
        %366 = vrot.lane.b32.xlu0 %v333, 4
        %v367 = vpop.permute.xlu0 %366
        %vm369 = vcmask 31744
        %v370 = vsel %vm369, %v364, %v367
        %v371 = vsel %vm337, 1, 0
        %vm372 = vcmp.eq.s32.totalorder %v371, 1
        %v373 = vsel %vm372, %v370, 0.0
        %374 = vset.pattern.permute.xlu0 1
        %375 = vperm.xlu0 %374, %v341
        %v376 = vpop.permute.xlu0 %375
        %v378 = vmul.f32 %v373, %v376
        %v379 = vadd.f32 %v362, %v378
        %380 = vrot.lane.b32.xlu0 %v333, 115
        %v381 = vpop.permute.xlu0 %380
        %383 = vrot.lane.b32.xlu0 %v333, 3
        %v384 = vpop.permute.xlu0 %383
        %vm386 = vcmask 23552
        %v387 = vsel %vm386, %v381, %v384
        %vm388 = vmand %vm337, %vm340
        %v389 = vsel %vm388, 1, 0
        %v390 = vperm.slane %v389, 0
        %vm391 = vcmp.eq.s32.totalorder %v390, 1
        %v392 = vsel %vm391, %v387, 0.0
        %393 = vset.pattern.permute.xlu0 2
        %394 = vperm.xlu0 %393, %v341
        %v395 = vpop.permute.xlu0 %394
        %v397 = vmul.f32 %v392, %v395
        %v398 = vadd.f32 %v379, %v397
        %399 = vrot.lane.b32.xlu0 %v333, 113
        %v400 = vpop.permute.xlu0 %399
        %402 = vrot.lane.b32.xlu0 %v333, 1
        %v403 = vpop.permute.xlu0 %402
        %vm405 = vcmask 7168
        %v406 = vsel %vm405, %v400, %v403
        %v407 = vsel %vm339, 1, 0
        %v408 = vperm.slane %v407, 0
        %vm409 = vcmp.eq.s32.totalorder %v408, 1
        %v410 = vsel %vm409, %v406, 0.0
        %411 = vset.pattern.permute.xlu0 3
        %412 = vperm.xlu0 %411, %v341
        %v413 = vpop.permute.xlu0 %412
        %v415 = vmul.f32 %v410, %v413
        %v416 = vadd.f32 %v398, %v415
        %417 = vset.pattern.permute.xlu0 4
        %418 = vperm.xlu0 %417, %v341
        %v419 = vpop.permute.xlu0 %418
        %v421 = vmul.f32 %v333, %v419
        %v422 = vadd.f32 %v416, %v421
        %423 = vrot.lane.b32.xlu0 %v333, 127
        %v424 = vpop.permute.xlu0 %423
        %426 = vrot.lane.b32.xlu0 %v333, 15
        %v427 = vpop.permute.xlu0 %426
        %vm429 = vcmask 121856
        %v430 = vsel %vm429, %v424, %v427
        %v431 = vsel %vm340, 1, 0
        %v432 = vperm.slane %v431, 0
        %vm433 = vcmp.eq.s32.totalorder %v432, 1
        %v434 = vsel %vm433, %v430, 0.0
        %435 = vset.pattern.permute.xlu0 5
        %436 = vperm.xlu0 %435, %v341
        %v437 = vpop.permute.xlu0 %436
        %v439 = vmul.f32 %v434, %v437
        %v440 = vadd.f32 %v422, %v439
        %441 = vrot.lane.b32.xlu0 %v333, 125
        %v442 = vpop.permute.xlu0 %441
        %444 = vrot.lane.b32.xlu0 %v333, 13
        %v445 = vpop.permute.xlu0 %444
        %vm447 = vcmask 105472
        %v448 = vsel %vm447, %v442, %v445
        %vm449 = vmand %vm338, %vm339
        %v450 = vsel %vm449, 1, 0
        %v451 = vperm.slane %v450, 0
        %vm452 = vcmp.eq.s32.totalorder %v451, 1
        %v453 = vsel %vm452, %v448, 0.0
        %454 = vset.pattern.permute.xlu0 6
        %455 = vperm.xlu0 %454, %v341
        %v456 = vpop.permute.xlu0 %455
        %v458 = vmul.f32 %v453, %v456
        %v459 = vadd.f32 %v440, %v458
        %460 = vrot.lane.b32.xlu0 %v333, 124
        %v461 = vpop.permute.xlu0 %460
        %463 = vrot.lane.b32.xlu0 %v333, 12
        %v464 = vpop.permute.xlu0 %463
        %vm466 = vcmask 97280
        %v467 = vsel %vm466, %v461, %v464
        %v468 = vsel %vm338, 1, 0
        %vm469 = vcmp.eq.s32.totalorder %v468, 1
        %v470 = vsel %vm469, %v467, 0.0
        %471 = vset.pattern.permute.xlu0 7
        %472 = vperm.xlu0 %471, %v341
        %v473 = vpop.permute.xlu0 %472
        %v475 = vmul.f32 %v470, %v473
        %v476 = vadd.f32 %v459, %v475
        %477 = vrot.lane.b32.xlu0 %v333, 123
        %v478 = vpop.permute.xlu0 %477
        %480 = vrot.lane.b32.xlu0 %v333, 11
        %v481 = vpop.permute.xlu0 %480
        %vm483 = vcmask 89088
        %v484 = vsel %vm483, %v478, %v481
        %vm485 = vmand %vm338, %vm340
        %v486 = vsel %vm485, 1, 0
        %v487 = vperm.slane %v486, 0
        %vm488 = vcmp.eq.s32.totalorder %v487, 1
        %v489 = vsel %vm488, %v484, 0.0
        %490 = vset.pattern.permute.xlu0 8
        %491 = vperm.xlu0 %490, %v341
        %v492 = vpop.permute.xlu0 %491
        %v494 = vmul.f32 %v489, %v492
        %v495 = vadd.f32 %v476, %v494
        %v496 = vld [vmem:[%s5] sm:$0xff]
        %v497 = vld [vmem:[%s6] sm:$0xff]
        %499 = vset.pattern.permute.xlu0 0
        %500 = vperm.xlu0 %499, %v497
        %v501 = vpop.permute.xlu0 %500
        %vm503 = vcmask 64512
        %v505 = vsel %vm503, %v496, 0
        %507 = vmatpush.msra.mxu0 0.0
        %508 = vmatpush.msra.mxu0 0.0
        %509 = vmatpush.msra.mxu0 0.0
        %510 = vmatpush.msra.mxu0 0.0
        %511 = vmatpush.msra.mxu0 0.0
        %512 = vmatpush.msra.mxu0 0.0
        %513 = vmatpush.msra.mxu0 0.0
        %514 = vmatpush.msra.mxu0 0.0
        %515 = vmatpush.msra.mxu0 0.0
        %516 = vmatpush.msra.mxu0 0.0
        %517 = vmatpush.msra.mxu0 0.0
        %518 = vmatpush.msra.mxu0 0.0
        %519 = vmatpush.msra.mxu0 0.0
        %520 = vmatpush.msra.mxu0 0.0
        %521 = vmatpush.msra.mxu0 0.0
        %522 = vmatpush.msra.mxu0 %v495
        %523 = vmatmul.f32.gmra.mxu0 %v505
        %v524 = vpop.f32.mrf.mxu0
        %v525 = vadd.f32 %v501, %v524
        %526 = vdwg.mxu0
        %vm527 = vcmask 130048
        %528 = vst.msk [vmem:[%s304] sm:$0xff] %vm527, %v525
        %p529 = scmp.lt.s32.totalorder %s19, 1
        %s530 = scalar_select %p529, %s19, 1
        %s531 = smul.addr %s530, 8
        %s532 = scalar_lea.vmem %s7, %s531
        // Predicated region
        $region53: #{bifpn_layer_forward.8} parent=47 // pred_check
          %p533 = pneg %p194
        $region54: #{bifpn_layer_forward.8} parent=47 // pred_check_branch
          %535 = sbr.rel (%p533) target = $region56
        $region55: #{bifpn_layer_forward.8} parent=47 // pred_region
          _
        $region56: #{bifpn_layer_forward.8} parent=47 // pred_fallthru
          _
      $region48: #{bifpn_layer_forward.8} parent=5 // pred_fallthru
        _
      %p536 = scmp.le.s32.totalorder 2, %s14
      // Predicated region
      $region57: #{bifpn_layer_forward.8} parent=5 // pred_check
        %p537 = pneg %p536
      $region58: #{bifpn_layer_forward.8} parent=5 // pred_check_branch
        %539 = sbr.rel (%p537) target = $region60
      $region59: #{bifpn_layer_forward.8} parent=5 // pred_region
        %s540 = ssub.s32 %s14, 2
        // Predicated region
        $region61: #{bifpn_layer_forward.8} parent=59 // pred_check
          %p541 = pneg %p200
        $region62: #{bifpn_layer_forward.8} parent=59 // pred_check_branch
          %543 = sbr.rel (%p541) target = $region64
        $region63: #{bifpn_layer_forward.8} parent=59 // pred_region
          %p544 = scmp.lt.s32.totalorder %s20, 1
          %s545 = scalar_select %p544, %s20, 1
          %s546 = smul.addr %s545, 8
          %s547 = scalar_lea.vmem %s7, %s546
        $region64: #{bifpn_layer_forward.8} parent=59 // pred_fallthru
          _
      $region60: #{bifpn_layer_forward.8} parent=5 // pred_fallthru
        _
    $region6: #{bifpn_layer_forward.8} parent=1 // loop_footer
      %s18 = sadd.s32 1, %s14
    $region7: #{bifpn_layer_forward.8} parent=1 // loop_footer_branch
      %13 = sbr.rel target = $region3
    $region8: #{bifpn_layer_forward.8} parent=1 // loop_exit
      _
    %548 = vsyncpa [#allocation3], 1
    %s549 = scalar_lea.sflag [#allocation3], 1
    %550 = vsyncpa %s549, 1

// kernel: bifpn_layer_forward.10
$region0: #{bifpn_layer_forward.10}
  #allocation0 [shape = 'u32[]', space=smem, size = 0x4, offset = 0x4, fixed_abs, tag = 'smem constant byte address 0x4 - core index']
  #allocation1 [shape = 'u32[72,128]{1,0:T(1,128)}', space=vmem, size = 0x9000, scoped, tag = 'internal scratch']
  %s0 = inlined_call_operand.vmem [shape: f32[2], index: 0, kind: input, shape index: {}]
  %s1 = inlined_call_operand.vmem [shape: f32[2,8,256], index: 1, kind: input, shape index: {}]
  %s2 = inlined_call_operand.vmem [shape: f32[2,8,256], index: 2, kind: input, shape index: {}]
  %s3 = inlined_call_operand.vmem [shape: s32[1,256], index: 3, kind: input, shape index: {}]
  %s4 = inlined_call_operand.vmem [shape: f32[8,9], index: 4, kind: input, shape index: {}]
  %s5 = inlined_call_operand.vmem [shape: f32[8,8], index: 5, kind: input, shape index: {}]
  %s6 = inlined_call_operand.vmem [shape: f32[8,1], index: 6, kind: input, shape index: {}]
  %s7 = inlined_call_operand.vmem [shape: f32[2,8,256], index: 7, kind: output, shape index: {}]
  %s8 = sld [smem:[#allocation0]]
  $region65: #{bifpn_layer_forward.10} parent=0
    _
  %s10 = ssub.s32 1, %s8
  %s11 = scalar_select 0, %s10, %s8
  $region1: #{bifpn_layer_forward.10} parent=0
    #allocation2 [shape = 'u8[512]{0}', space=smem, size = 0x200, scoped, tag = 'input window, operand 0, single buffered']
    #allocation3 [shape = 's32[2]{0}', space=sflag, size = 0x8, scoped, tag = 'scoped memory for bifpn_layer_forward.10']
    %12 = vsyncpa [#allocation3], 0
    loop: start=0, step=1, limit=4
    $region2: #{bifpn_layer_forward.10} parent=1 // loop_pre_header
      _
    $region3: #{bifpn_layer_forward.10} parent=1 // loop_header
      %s14 = sphi 0, %s18
      %p15 = scmp.ge.s32.totalorder %s14, 4
      %s22 = sphi 0, %s22
      %s24 = sphi 0, %s22
      %s25 = sphi 0, %s24
      %s39 = sphi 0, %s25
      %s45 = sphi 0, %s47
      %s48 = sphi 0, %s45
      %s49 = sphi 0, %s48
      %s65 = sphi 0, %s49
      %s71 = sphi 0, %s73
      %s74 = sphi 0, %s71
      %s75 = sphi 0, %s74
      %s91 = sphi 0, %s75
      %s95 = sphi 0, %s95
      %s97 = sphi 0, %s95
      %s98 = sphi 0, %s97
      %s112 = sphi 0, %s98
      %s116 = sphi 0, %s116
      %s118 = sphi 0, %s116
      %s119 = sphi 0, %s118
      %s133 = sphi 0, %s119
      %s137 = sphi 0, %s137
      %s139 = sphi 0, %s137
      %s140 = sphi 0, %s139
      %s154 = sphi 0, %s140
      %s158 = sphi 0, %s158
      %s160 = sphi 0, %s158
      %s161 = sphi 0, %s160
      %s175 = sphi 0, %s161
      %s181 = sphi 0, %s183
      %s184 = sphi 0, %s181
      %s185 = sphi 0, %s184
      %s201 = sphi 0, %s185
    $region4: #{bifpn_layer_forward.10} parent=1 // loop_header_branch
      %17 = sbr.rel (%p15) target = $region8
    $region5: #{bifpn_layer_forward.10} parent=1 // loop_body
      %s19 = ssub.s32 %s14, 1
      %s20 = ssub.s32 %s14, 2
      %s21 = sadd.s32 %s14, 1
      %s23 = sadd.s32 %s22, 1
      %p26 = scmp.eq.s32.totalorder %s14, 1
      %p27 = scmp.ne.s32.totalorder %s22, %s24
      %p28 = scmp.eq.s32.totalorder %s14, 0
      %p29 = por %p27, %p28
      %p30 = scmp.ne.s32.totalorder %s22, %s24
      %p31 = scmp.eq.s32.totalorder %s19, 1
      %p32 = por %p30, %p31
      %p33 = scmp.ne.s32.totalorder %s24, %s25
      %p34 = scmp.eq.s32.totalorder %s19, 0
      %p35 = por %p33, %p34
      %p36 = scmp.ne.s32.totalorder %s24, %s25
      %p37 = scmp.eq.s32.totalorder %s20, 1
      %p38 = por %p36, %p37
      %p40 = scmp.ne.s32.totalorder %s25, %s39
      %p41 = scmp.eq.s32.totalorder %s20, 0
      %p42 = por %p40, %p41
      %s43 = ssub.s32 %s14, %s21
      %p44 = scmp.eq.s32.totalorder %s43, 0
      %s46 = sadd.s32 %s45, 1
      %s47 = scalar_select %p44, %s45, %s46
      %p50 = pneg %p44
      %p51 = scmp.eq.s32.totalorder %s14, 1
      %p52 = por %p50, %p51
      %p53 = scmp.ne.s32.totalorder %s45, %s48
      %p54 = scmp.eq.s32.totalorder %s14, 0
      %p55 = por %p53, %p54
      %p56 = scmp.ne.s32.totalorder %s45, %s48
      %p57 = scmp.eq.s32.totalorder %s19, 1
      %p58 = por %p56, %p57
      %p59 = scmp.ne.s32.totalorder %s48, %s49
      %p60 = scmp.eq.s32.totalorder %s19, 0
      %p61 = por %p59, %p60
      %p62 = scmp.ne.s32.totalorder %s48, %s49
      %p63 = scmp.eq.s32.totalorder %s20, 1
      %p64 = por %p62, %p63
      %p66 = scmp.ne.s32.totalorder %s49, %s65
      %p67 = scmp.eq.s32.totalorder %s20, 0
      %p68 = por %p66, %p67
      %s69 = ssub.s32 %s14, %s21
      %p70 = scmp.eq.s32.totalorder %s69, 0
      %s72 = sadd.s32 %s71, 1
      %s73 = scalar_select %p70, %s71, %s72
      %p76 = pneg %p70
      %p77 = scmp.eq.s32.totalorder %s14, 1
      %p78 = por %p76, %p77
      %p79 = scmp.ne.s32.totalorder %s71, %s74
      %p80 = scmp.eq.s32.totalorder %s14, 0
      %p81 = por %p79, %p80
      %p82 = scmp.ne.s32.totalorder %s71, %s74
      %p83 = scmp.eq.s32.totalorder %s19, 1
      %p84 = por %p82, %p83
      %p85 = scmp.ne.s32.totalorder %s74, %s75
      %p86 = scmp.eq.s32.totalorder %s19, 0
      %p87 = por %p85, %p86
      %p88 = scmp.ne.s32.totalorder %s74, %s75
      %p89 = scmp.eq.s32.totalorder %s20, 1
      %p90 = por %p88, %p89
      %p92 = scmp.ne.s32.totalorder %s75, %s91
      %p93 = scmp.eq.s32.totalorder %s20, 0
      %p94 = por %p92, %p93
      %s96 = sadd.s32 %s95, 1
      %p99 = scmp.eq.s32.totalorder %s14, 1
      %p100 = scmp.ne.s32.totalorder %s95, %s97
      %p101 = scmp.eq.s32.totalorder %s14, 0
      %p102 = por %p100, %p101
      %p103 = scmp.ne.s32.totalorder %s95, %s97
      %p104 = scmp.eq.s32.totalorder %s19, 1
      %p105 = por %p103, %p104
      %p106 = scmp.ne.s32.totalorder %s97, %s98
      %p107 = scmp.eq.s32.totalorder %s19, 0
      %p108 = por %p106, %p107
      %p109 = scmp.ne.s32.totalorder %s97, %s98
      %p110 = scmp.eq.s32.totalorder %s20, 1
      %p111 = por %p109, %p110
      %p113 = scmp.ne.s32.totalorder %s98, %s112
      %p114 = scmp.eq.s32.totalorder %s20, 0
      %p115 = por %p113, %p114
      %s117 = sadd.s32 %s116, 1
      %p120 = scmp.eq.s32.totalorder %s14, 1
      %p121 = scmp.ne.s32.totalorder %s116, %s118
      %p122 = scmp.eq.s32.totalorder %s14, 0
      %p123 = por %p121, %p122
      %p124 = scmp.ne.s32.totalorder %s116, %s118
      %p125 = scmp.eq.s32.totalorder %s19, 1
      %p126 = por %p124, %p125
      %p127 = scmp.ne.s32.totalorder %s118, %s119
      %p128 = scmp.eq.s32.totalorder %s19, 0
      %p129 = por %p127, %p128
      %p130 = scmp.ne.s32.totalorder %s118, %s119
      %p131 = scmp.eq.s32.totalorder %s20, 1
      %p132 = por %p130, %p131
      %p134 = scmp.ne.s32.totalorder %s119, %s133
      %p135 = scmp.eq.s32.totalorder %s20, 0
      %p136 = por %p134, %p135
      %s138 = sadd.s32 %s137, 1
      %p141 = scmp.eq.s32.totalorder %s14, 1
      %p142 = scmp.ne.s32.totalorder %s137, %s139
      %p143 = scmp.eq.s32.totalorder %s14, 0
      %p144 = por %p142, %p143
      %p145 = scmp.ne.s32.totalorder %s137, %s139
      %p146 = scmp.eq.s32.totalorder %s19, 1
      %p147 = por %p145, %p146
      %p148 = scmp.ne.s32.totalorder %s139, %s140
      %p149 = scmp.eq.s32.totalorder %s19, 0
      %p150 = por %p148, %p149
      %p151 = scmp.ne.s32.totalorder %s139, %s140
      %p152 = scmp.eq.s32.totalorder %s20, 1
      %p153 = por %p151, %p152
      %p155 = scmp.ne.s32.totalorder %s140, %s154
      %p156 = scmp.eq.s32.totalorder %s20, 0
      %p157 = por %p155, %p156
      %s159 = sadd.s32 %s158, 1
      %p162 = scmp.eq.s32.totalorder %s14, 1
      %p163 = scmp.ne.s32.totalorder %s158, %s160
      %p164 = scmp.eq.s32.totalorder %s14, 0
      %p165 = por %p163, %p164
      %p166 = scmp.ne.s32.totalorder %s158, %s160
      %p167 = scmp.eq.s32.totalorder %s19, 1
      %p168 = por %p166, %p167
      %p169 = scmp.ne.s32.totalorder %s160, %s161
      %p170 = scmp.eq.s32.totalorder %s19, 0
      %p171 = por %p169, %p170
      %p172 = scmp.ne.s32.totalorder %s160, %s161
      %p173 = scmp.eq.s32.totalorder %s20, 1
      %p174 = por %p172, %p173
      %p176 = scmp.ne.s32.totalorder %s161, %s175
      %p177 = scmp.eq.s32.totalorder %s20, 0
      %p178 = por %p176, %p177
      %s179 = ssub.s32 %s14, %s21
      %p180 = scmp.eq.s32.totalorder %s179, 0
      %s182 = sadd.s32 %s181, 1
      %s183 = scalar_select %p180, %s181, %s182
      %p186 = pneg %p180
      %p187 = scmp.eq.s32.totalorder %s14, 1
      %p188 = por %p186, %p187
      %p189 = scmp.ne.s32.totalorder %s181, %s184
      %p190 = scmp.eq.s32.totalorder %s14, 0
      %p191 = por %p189, %p190
      %p192 = scmp.ne.s32.totalorder %s181, %s184
      %p193 = scmp.eq.s32.totalorder %s19, 1
      %p194 = por %p192, %p193
      %p195 = scmp.ne.s32.totalorder %s184, %s185
      %p196 = scmp.eq.s32.totalorder %s19, 0
      %p197 = por %p195, %p196
      %p198 = scmp.ne.s32.totalorder %s184, %s185
      %p199 = scmp.eq.s32.totalorder %s20, 1
      %p200 = por %p198, %p199
      %p202 = scmp.ne.s32.totalorder %s185, %s201
      %p203 = scmp.eq.s32.totalorder %s20, 0
      %p204 = por %p202, %p203
      %p205 = scmp.le.s32.totalorder 1, %s14
      %p206 = scmp.lt.s32.totalorder %s14, 3
      %p207 = pnand %p205, %p206
      %p208 = pneg %p207
      // Predicated region
      $region9: #{bifpn_layer_forward.10} parent=5 // pred_check
        _
      $region10: #{bifpn_layer_forward.10} parent=5 // pred_check_branch
        %210 = sbr.rel (%p207) target = $region12
      $region11: #{bifpn_layer_forward.10} parent=5 // pred_region
        %s211 = ssub.s32 %s14, 1
        // Predicated region
        $region13: #{bifpn_layer_forward.10} parent=11 // pred_check
          %p212 = pneg %p35
        $region14: #{bifpn_layer_forward.10} parent=11 // pred_check_branch
          %214 = sbr.rel (%p212) target = $region16
        $region15: #{bifpn_layer_forward.10} parent=11 // pred_region
          %216 = vsyncadd [#allocation3], 0
          %s218 = sshll.u32 %s0, 4
          %s219 = int_to_ptr.vmem [resolvable:$true] %s218
          %221 = dma.vmem_to_smem %s219, 16, [#allocation2], [#allocation3]
        $region16: #{bifpn_layer_forward.10} parent=11 // pred_fallthru
          _
        // Predicated region
        $region17: #{bifpn_layer_forward.10} parent=11 // pred_check
          %p222 = pneg %p108
        $region18: #{bifpn_layer_forward.10} parent=11 // pred_check_branch
          %224 = sbr.rel (%p222) target = $region20
        $region19: #{bifpn_layer_forward.10} parent=11 // pred_region
          _
        $region20: #{bifpn_layer_forward.10} parent=11 // pred_fallthru
          _
        // Predicated region
        $region21: #{bifpn_layer_forward.10} parent=11 // pred_check
          %p225 = pneg %p129
        $region22: #{bifpn_layer_forward.10} parent=11 // pred_check_branch
          %227 = sbr.rel (%p225) target = $region24
        $region23: #{bifpn_layer_forward.10} parent=11 // pred_region
          _
        $region24: #{bifpn_layer_forward.10} parent=11 // pred_fallthru
          _
        // Predicated region
        $region25: #{bifpn_layer_forward.10} parent=11 // pred_check
          %p228 = pneg %p150
        $region26: #{bifpn_layer_forward.10} parent=11 // pred_check_branch
          %230 = sbr.rel (%p228) target = $region28
        $region27: #{bifpn_layer_forward.10} parent=11 // pred_region
          _
        $region28: #{bifpn_layer_forward.10} parent=11 // pred_fallthru
          _
        // Predicated region
        $region29: #{bifpn_layer_forward.10} parent=11 // pred_check
          %p231 = pneg %p171
        $region30: #{bifpn_layer_forward.10} parent=11 // pred_check_branch
          %233 = sbr.rel (%p231) target = $region32
        $region31: #{bifpn_layer_forward.10} parent=11 // pred_region
          _
        $region32: #{bifpn_layer_forward.10} parent=11 // pred_fallthru
          _
      $region12: #{bifpn_layer_forward.10} parent=5 // pred_fallthru
        _
      %p234 = scmp.lt.s32.totalorder %s14, 2
      // Predicated region
      $region33: #{bifpn_layer_forward.10} parent=5 // pred_check
        %p235 = pneg %p234
      $region34: #{bifpn_layer_forward.10} parent=5 // pred_check_branch
        %237 = sbr.rel (%p235) target = $region36
      $region35: #{bifpn_layer_forward.10} parent=5 // pred_region
        // Predicated region
        $region37: #{bifpn_layer_forward.10} parent=35 // pred_check
          %p238 = pneg %p55
        $region38: #{bifpn_layer_forward.10} parent=35 // pred_check_branch
          %240 = sbr.rel (%p238) target = $region40
        $region39: #{bifpn_layer_forward.10} parent=35 // pred_region
          %p241 = scmp.lt.s32.totalorder %s14, 1
          %s242 = scalar_select %p241, %s14, 1
          %s243 = smul.addr %s242, 2
          %s244 = smul.addr %s243, 8
          %s245 = scalar_lea.vmem %s1, %s244
        $region40: #{bifpn_layer_forward.10} parent=35 // pred_fallthru
          _
        // Predicated region
        $region41: #{bifpn_layer_forward.10} parent=35 // pred_check
          %p246 = pneg %p81
        $region42: #{bifpn_layer_forward.10} parent=35 // pred_check_branch
          %248 = sbr.rel (%p246) target = $region44
        $region43: #{bifpn_layer_forward.10} parent=35 // pred_region
          %p249 = scmp.lt.s32.totalorder %s14, 1
          %s250 = scalar_select %p249, %s14, 1
          %s251 = smul.addr %s250, 2
          %s252 = smul.addr %s251, 8
          %s253 = scalar_lea.vmem %s2, %s252
        $region44: #{bifpn_layer_forward.10} parent=35 // pred_fallthru
          _
      $region36: #{bifpn_layer_forward.10} parent=5 // pred_fallthru
        _
      %p254 = scmp.le.s32.totalorder 1, %s14
      %p255 = scmp.lt.s32.totalorder %s14, 3
      %p256 = pnand %p254, %p255
      %p257 = pneg %p256
      // Predicated region
      $region45: #{bifpn_layer_forward.10} parent=5 // pred_check
        _
      $region46: #{bifpn_layer_forward.10} parent=5 // pred_check_branch
        %259 = sbr.rel (%p256) target = $region48
      $region47: #{bifpn_layer_forward.10} parent=5 // pred_region
        %s260 = ssub.s32 %s14, 1
        // Predicated region
        $region49: #{bifpn_layer_forward.10} parent=47 // pred_check
          %p261 = pneg %p35
        $region50: #{bifpn_layer_forward.10} parent=47 // pred_check_branch
          %263 = sbr.rel (%p261) target = $region52
        $region51: #{bifpn_layer_forward.10} parent=47 // pred_region
          %265 = dma.done [#allocation3], 16
        $region52: #{bifpn_layer_forward.10} parent=47 // pred_fallthru
          _
        %266 = sfence
        %p267 = pneg %p35
        %p268 = pneg %p32
        %p269 = scmp.lt.s32.totalorder %s19, 1
        %s270 = scalar_select %p269, %s19, 1
        %s271 = smul.addr %s270, 2
        %s272 = smul.addr %s271, 8
        %s273 = scalar_lea.vmem %s1, %s272
        %p274 = pneg %p61
        %p275 = pneg %p58
        %p276 = scmp.lt.s32.totalorder %s19, 1
        %s277 = scalar_select %p276, %s19, 1
        %s278 = smul.addr %s277, 2
        %s279 = smul.addr %s278, 8
        %s280 = scalar_lea.vmem %s2, %s279
        %p281 = pneg %p87
        %p282 = pneg %p84
        %p283 = pneg %p108
        %p284 = pneg %p105
        %p285 = pneg %p129
        %p286 = pneg %p126
        %p287 = pneg %p150
        %p288 = pneg %p147
        %p289 = pneg %p171
        %p290 = pneg %p168
        %p291 = pneg %p197
        %p292 = pneg %p194
        %p293 = scmp.lt.s32.totalorder %s19, 1
        %s294 = scalar_select %p293, %s19, 1
        %s295 = smul.addr %s294, 2
        %s296 = smul.addr %s295, 8
        %s297 = scalar_lea.vmem %s7, %s296
        %p298 = scmp.lt.s32.totalorder %s19, 1
        %s299 = scalar_select %p298, %s19, 1
        %s300 = smul.addr %s299, 2
        %s301 = smul.addr %s300, 8
        %s302 = scalar_lea.vmem %s1, %s301
        %p303 = scmp.lt.s32.totalorder %s19, 1
        %s304 = scalar_select %p303, %s19, 1
        %s305 = smul.addr %s304, 2
        %s306 = smul.addr %s305, 8
        %s307 = scalar_lea.vmem %s2, %s306
        %p308 = scmp.lt.s32.totalorder %s19, 1
        %s309 = scalar_select %p308, %s19, 1
        %s310 = smul.addr %s309, 2
        %s311 = smul.addr %s310, 8
        %s312 = scalar_lea.vmem %s7, %s311
        %s313 = sld [smem:[#allocation2]]
        %v314 = vld [vmem:[%s302] sm:$0xff]
        %v315 = vld [vmem:[%s302 + $0x8] sm:$0xff]
        %v316 = vstv %s313
        %v317 = vmul.f32 %v316, %v314
        %v318 = vmul.f32 %v316, %v315
        %s319 = sld [smem:[#allocation2 + $0x1]]
        %v320 = vld [vmem:[%s307] sm:$0xff]
        %v321 = vld [vmem:[%s307 + $0x8] sm:$0xff]
        %v322 = vstv %s319
        %v323 = vmul.f32 %v322, %v320
        %v324 = vmul.f32 %v322, %v321
        %v325 = vadd.f32 %v317, %v323
        %v326 = vadd.f32 %v318, %v324
        %v327 = vxor.u32 %v325, 2147483648
        %v328 = vxor.u32 %v326, 2147483648
        %v329 = vmul.f32 %v327, 1.442695
        %v330 = vpow.pop %v329
        %v331 = vmul.f32 %v328, 1.442695
        %v332 = vpow.pop %v331
        %v333 = vadd.f32 %v330, 1.0
        %v334 = vadd.f32 %v332, 1.0
        %v335 = vrcp.pop %v333
        %v336 = vmul.f32 %v333, %v335
        %v337 = vsub.f32 1.0, %v336
        %v338 = vmul.f32 %v335, %v337
        %v339 = vadd.f32 %v335, %v338
        %vm340 = vweird.f32 %v333
        %vm341 = vweird.f32 %v335
        %vm342 = vmor %vm340, %vm341
        %v343 = vsel %vm342, %v335, %v339
        %v344 = vand.u32 2147483647, %v333
        %vm345 = vcmp.eq.f32.partialorder %v344, 8.507059e+37
        %v346 = vand.u32 %v333, 2147483648
        %v347 = vor.u32 1.1754944e-38, %v346
        %v348 = vsel %vm345, %v347, %v343
        %v349 = vmul.f32 1.0, %v348
        %v350 = vrcp.pop %v334
        %v351 = vmul.f32 %v334, %v350
        %v352 = vsub.f32 1.0, %v351
        %v353 = vmul.f32 %v350, %v352
        %v354 = vadd.f32 %v350, %v353
        %vm355 = vweird.f32 %v334
        %vm356 = vweird.f32 %v350
        %vm357 = vmor %vm355, %vm356
        %v358 = vsel %vm357, %v350, %v354
        %v359 = vand.u32 2147483647, %v334
        %vm360 = vcmp.eq.f32.partialorder %v359, 8.507059e+37
        %v361 = vand.u32 %v334, 2147483648
        %v362 = vor.u32 1.1754944e-38, %v361
        %v363 = vsel %vm360, %v362, %v358
        %v364 = vmul.f32 1.0, %v363
        %v365 = vmul.f32 %v325, %v349
        %v366 = vmul.f32 %v326, %v364
        %v367 = vlaneseq
        %v368 = vand.u32 %v367, 127
        %v369 = vadd.s32 %v368, 128
        %v370 = vld [vmem:[%s3] sm:$0x3]
        %vm371 = vcmp.ge.s32.totalorder %v368, 16
        %vm372 = vcmp.ge.s32.totalorder %v369, 16
        %vm373 = vcmp.lt.s32.totalorder %v368, 240
        %vm374 = vcmp.lt.s32.totalorder %v369, 240
        %vm375 = vcmp.ge.s32.totalorder %v370, 1
        %vm376 = vcmp.le.s32.totalorder %v370, 14
        %v377 = vld [vmem:[%s4] sm:$0xff]
        %379 = vrot.lane.b32.xlu0 %v366, 17
        %v380 = vpop.permute.xlu0 %379
        %383 = vrot.lane.b32.xlu0 %v365, 17
        %v384 = vpop.permute.xlu0 %383
        %vm385 = vcmask 138240
        %v386 = vsel %vm385, %v384, %v380
        %v389 = vsel %vm385, %v380, %v384
        %v390 = vsel %vm375, 1, 0
        %v391 = vperm.slane %v390, 0
        %v392 = vperm.slane %v390, 1
        %vm393 = vcmp.ne.s32.totalorder %v391, 0
        %vm394 = vcmp.ne.s32.totalorder %v392, 0
        %vm395 = vmand %vm371, %vm393
        %vm396 = vmand %vm372, %vm394
        %v397 = vsel %vm395, 1, 0
        %v398 = vsel %vm396, 1, 0
        %v399 = vperm.slane %v397, 0
        %v400 = vperm.slane %v398, 0
        %vm401 = vcmp.eq.s32.totalorder %v399, 1
        %vm402 = vcmp.eq.s32.totalorder %v400, 1
        %v403 = vsel %vm401, %v389, 0.0
        %v404 = vsel %vm402, %v386, 0.0
        %406 = vset.pattern.permute.xlu0 0
        %407 = vperm.xlu0 %406, %v377
        %v408 = vpop.permute.xlu0 %407
        %v410 = vmul.f32 %v403, %v408
        %v411 = vmul.f32 %v404, %v408
        %v412 = vadd.f32 %v410, 0.0
        %v413 = vadd.f32 %v411, 0.0
        %414 = vrot.lane.b32.xlu0 %v366, 16
        %v415 = vpop.permute.xlu0 %414
        %417 = vrot.lane.b32.xlu0 %v365, 16
        %v418 = vpop.permute.xlu0 %417
        %vm419 = vcmask 130048
        %v420 = vsel %vm419, %v418, %v415
        %v423 = vsel %vm419, %v415, %v418
        %v424 = vsel %vm371, 1, 0
        %v425 = vsel %vm372, 1, 0
        %vm426 = vcmp.eq.s32.totalorder %v424, 1
        %vm427 = vcmp.eq.s32.totalorder %v425, 1
        %v428 = vsel %vm426, %v423, 0.0
        %v429 = vsel %vm427, %v420, 0.0
        %430 = vset.pattern.permute.xlu0 1
        %431 = vperm.xlu0 %430, %v377
        %v432 = vpop.permute.xlu0 %431
        %v434 = vmul.f32 %v428, %v432
        %v435 = vmul.f32 %v429, %v432
        %v436 = vadd.f32 %v412, %v434
        %v437 = vadd.f32 %v413, %v435
        %438 = vrot.lane.b32.xlu0 %v366, 15
        %v439 = vpop.permute.xlu0 %438
        %441 = vrot.lane.b32.xlu0 %v365, 15
        %v442 = vpop.permute.xlu0 %441
        %vm443 = vcmask 121856
        %v444 = vsel %vm443, %v442, %v439
        %v447 = vsel %vm443, %v439, %v442
        %v448 = vsel %vm376, 1, 0
        %v449 = vperm.slane %v448, 0
        %v450 = vperm.slane %v448, 1
        %vm451 = vcmp.ne.s32.totalorder %v449, 0
        %vm452 = vcmp.ne.s32.totalorder %v450, 0
        %vm453 = vmand %vm371, %vm451
        %vm454 = vmand %vm372, %vm452
        %v455 = vsel %vm453, 1, 0
        %v456 = vsel %vm454, 1, 0
        %v457 = vperm.slane %v455, 0
        %v458 = vperm.slane %v456, 0
        %vm459 = vcmp.eq.s32.totalorder %v457, 1
        %vm460 = vcmp.eq.s32.totalorder %v458, 1
        %v461 = vsel %vm459, %v447, 0.0
        %v462 = vsel %vm460, %v444, 0.0
        %463 = vset.pattern.permute.xlu0 2
        %464 = vperm.xlu0 %463, %v377
        %v465 = vpop.permute.xlu0 %464
        %v467 = vmul.f32 %v461, %v465
        %v468 = vmul.f32 %v462, %v465
        %v469 = vadd.f32 %v436, %v467
        %v470 = vadd.f32 %v437, %v468
        %471 = vrot.lane.b32.xlu0 %v366, 1
        %v472 = vpop.permute.xlu0 %471
        %474 = vrot.lane.b32.xlu0 %v365, 1
        %v475 = vpop.permute.xlu0 %474
        %vm476 = vcmask 7168
        %v477 = vsel %vm476, %v475, %v472
        %v480 = vsel %vm476, %v472, %v475
        %vm481 = vcmp.eq.s32.totalorder %v391, 1
        %vm482 = vcmp.eq.s32.totalorder %v392, 1
        %v483 = vsel %vm481, %v480, 0.0
        %v484 = vsel %vm482, %v477, 0.0
        %485 = vset.pattern.permute.xlu0 3
        %486 = vperm.xlu0 %485, %v377
        %v487 = vpop.permute.xlu0 %486
        %v489 = vmul.f32 %v483, %v487
        %v490 = vmul.f32 %v484, %v487
        %v491 = vadd.f32 %v469, %v489
        %v492 = vadd.f32 %v470, %v490
        %493 = vset.pattern.permute.xlu0 4
        %494 = vperm.xlu0 %493, %v377
        %v495 = vpop.permute.xlu0 %494
        %v497 = vmul.f32 %v365, %v495
        %v498 = vmul.f32 %v366, %v495
        %v499 = vadd.f32 %v491, %v497
        %v500 = vadd.f32 %v492, %v498
        %501 = vrot.lane.b32.xlu0 %v365, 127
        %v502 = vpop.permute.xlu0 %501
        %503 = vrot.lane.b32.xlu0 %v366, 127
        %v504 = vpop.permute.xlu0 %503
        %vm505 = vcmask 1039360
        %v506 = vsel %vm505, %v502, %v504
        %v510 = vsel %vm505, %v504, %v502
        %vm511 = vcmp.eq.s32.totalorder %v449, 1
        %vm512 = vcmp.eq.s32.totalorder %v450, 1
        %v513 = vsel %vm511, %v506, 0.0
        %v514 = vsel %vm512, %v510, 0.0
        %515 = vset.pattern.permute.xlu0 5
        %516 = vperm.xlu0 %515, %v377
        %v517 = vpop.permute.xlu0 %516
        %v519 = vmul.f32 %v513, %v517
        %v520 = vmul.f32 %v514, %v517
        %v521 = vadd.f32 %v499, %v519
        %v522 = vadd.f32 %v500, %v520
        %523 = vrot.lane.b32.xlu0 %v365, 113
        %v524 = vpop.permute.xlu0 %523
        %525 = vrot.lane.b32.xlu0 %v366, 113
        %v526 = vpop.permute.xlu0 %525
        %vm527 = vcmask 924672
        %v528 = vsel %vm527, %v524, %v526
        %v532 = vsel %vm527, %v526, %v524
        %vm533 = vmand %vm373, %vm393
        %vm534 = vmand %vm374, %vm394
        %v535 = vsel %vm533, 1, 0
        %v536 = vsel %vm534, 1, 0
        %v537 = vperm.slane %v535, 0
        %v538 = vperm.slane %v536, 0
        %vm539 = vcmp.eq.s32.totalorder %v537, 1
        %vm540 = vcmp.eq.s32.totalorder %v538, 1
        %v541 = vsel %vm539, %v528, 0.0
        %v542 = vsel %vm540, %v532, 0.0
        %543 = vset.pattern.permute.xlu0 6
        %544 = vperm.xlu0 %543, %v377
        %v545 = vpop.permute.xlu0 %544
        %v547 = vmul.f32 %v541, %v545
        %v548 = vmul.f32 %v542, %v545
        %v549 = vadd.f32 %v521, %v547
        %v550 = vadd.f32 %v522, %v548
        %551 = vrot.lane.b32.xlu0 %v365, 112
        %v552 = vpop.permute.xlu0 %551
        %553 = vrot.lane.b32.xlu0 %v366, 112
        %v554 = vpop.permute.xlu0 %553
        %vm555 = vcmask 916480
        %v556 = vsel %vm555, %v552, %v554
        %v560 = vsel %vm555, %v554, %v552
        %v561 = vsel %vm373, 1, 0
        %v562 = vsel %vm374, 1, 0
        %vm563 = vcmp.eq.s32.totalorder %v561, 1
        %vm564 = vcmp.eq.s32.totalorder %v562, 1
        %v565 = vsel %vm563, %v556, 0.0
        %v566 = vsel %vm564, %v560, 0.0
        %567 = vset.pattern.permute.xlu0 7
        %568 = vperm.xlu0 %567, %v377
        %v569 = vpop.permute.xlu0 %568
        %v571 = vmul.f32 %v565, %v569
        %v572 = vmul.f32 %v566, %v569
        %v573 = vadd.f32 %v549, %v571
        %v574 = vadd.f32 %v550, %v572
        %575 = vrot.lane.b32.xlu0 %v365, 111
        %v576 = vpop.permute.xlu0 %575
        %577 = vrot.lane.b32.xlu0 %v366, 111
        %v578 = vpop.permute.xlu0 %577
        %vm579 = vcmask 908288
        %v580 = vsel %vm579, %v576, %v578
        %v584 = vsel %vm579, %v578, %v576
        %vm585 = vmand %vm373, %vm451
        %vm586 = vmand %vm374, %vm452
        %v587 = vsel %vm585, 1, 0
        %v588 = vsel %vm586, 1, 0
        %v589 = vperm.slane %v587, 0
        %v590 = vperm.slane %v588, 0
        %vm591 = vcmp.eq.s32.totalorder %v589, 1
        %vm592 = vcmp.eq.s32.totalorder %v590, 1
        %v593 = vsel %vm591, %v580, 0.0
        %v594 = vsel %vm592, %v584, 0.0
        %595 = vset.pattern.permute.xlu0 8
        %596 = vperm.xlu0 %595, %v377
        %v597 = vpop.permute.xlu0 %596
        %v599 = vmul.f32 %v593, %v597
        %v600 = vmul.f32 %v594, %v597
        %v601 = vadd.f32 %v573, %v599
        %v602 = vadd.f32 %v574, %v600
        %v603 = vld [vmem:[%s5] sm:$0xff]
        %v604 = vld [vmem:[%s6] sm:$0xff]
        %606 = vset.pattern.permute.xlu0 0
        %607 = vperm.xlu0 %606, %v604
        %v608 = vpop.permute.xlu0 %607
        %vm610 = vcmask 64512
        %v612 = vsel %vm610, %v603, 0
        %614 = vmatpush.msra.mxu0 0.0
        %615 = vmatpush.msra.mxu0 0.0
        %616 = vmatpush.msra.mxu0 0.0
        %617 = vmatpush.msra.mxu0 0.0
        %618 = vmatpush.msra.mxu0 0.0
        %619 = vmatpush.msra.mxu0 0.0
        %620 = vmatpush.msra.mxu0 0.0
        %621 = vmatpush.msra.mxu0 0.0
        %622 = vmatpush.msra.mxu0 0.0
        %623 = vmatpush.msra.mxu0 0.0
        %624 = vmatpush.msra.mxu0 0.0
        %625 = vmatpush.msra.mxu0 0.0
        %626 = vmatpush.msra.mxu0 0.0
        %627 = vmatpush.msra.mxu0 0.0
        %628 = vmatpush.msra.mxu0 0.0
        %629 = vmatpush.msra.mxu0 %v601
        %630 = vmatmul.f32.gmra.mxu0 %v612
        %v631 = vpop.f32.mrf.mxu0
        %v632 = vadd.f32 %v608, %v631
        %633 = vdwg.mxu0
        %634 = vmatpush.msra.mxu0 0.0
        %635 = vmatpush.msra.mxu0 0.0
        %636 = vmatpush.msra.mxu0 0.0
        %637 = vmatpush.msra.mxu0 0.0
        %638 = vmatpush.msra.mxu0 0.0
        %639 = vmatpush.msra.mxu0 0.0
        %640 = vmatpush.msra.mxu0 0.0
        %641 = vmatpush.msra.mxu0 0.0
        %642 = vmatpush.msra.mxu0 0.0
        %643 = vmatpush.msra.mxu0 0.0
        %644 = vmatpush.msra.mxu0 0.0
        %645 = vmatpush.msra.mxu0 0.0
        %646 = vmatpush.msra.mxu0 0.0
        %647 = vmatpush.msra.mxu0 0.0
        %648 = vmatpush.msra.mxu0 0.0
        %649 = vmatpush.msra.mxu0 %v602
        %650 = vmatmul.f32.gmra.mxu0 %v612
        %v651 = vpop.f32.mrf.mxu0
        %v652 = vadd.f32 %v608, %v651
        %653 = vdwg.mxu0
        %654 = vst [vmem:[%s312] sm:$0xff] %v632
        %655 = vst [vmem:[%s312 + $0x8] sm:$0xff] %v652
        %p656 = scmp.lt.s32.totalorder %s19, 1
        %s657 = scalar_select %p656, %s19, 1
        %s658 = smul.addr %s657, 2
        %s659 = smul.addr %s658, 8
        %s660 = scalar_lea.vmem %s7, %s659
        // Predicated region
        $region53: #{bifpn_layer_forward.10} parent=47 // pred_check
          %p661 = pneg %p194
        $region54: #{bifpn_layer_forward.10} parent=47 // pred_check_branch
          %663 = sbr.rel (%p661) target = $region56
        $region55: #{bifpn_layer_forward.10} parent=47 // pred_region
          _
        $region56: #{bifpn_layer_forward.10} parent=47 // pred_fallthru
          _
      $region48: #{bifpn_layer_forward.10} parent=5 // pred_fallthru
        _
      %p664 = scmp.le.s32.totalorder 2, %s14
      // Predicated region
      $region57: #{bifpn_layer_forward.10} parent=5 // pred_check
        %p665 = pneg %p664
      $region58: #{bifpn_layer_forward.10} parent=5 // pred_check_branch
        %667 = sbr.rel (%p665) target = $region60
      $region59: #{bifpn_layer_forward.10} parent=5 // pred_region
        %s668 = ssub.s32 %s14, 2
        // Predicated region
        $region61: #{bifpn_layer_forward.10} parent=59 // pred_check
          %p669 = pneg %p200
        $region62: #{bifpn_layer_forward.10} parent=59 // pred_check_branch
          %671 = sbr.rel (%p669) target = $region64
        $region63: #{bifpn_layer_forward.10} parent=59 // pred_region
          %p672 = scmp.lt.s32.totalorder %s20, 1
          %s673 = scalar_select %p672, %s20, 1
          %s674 = smul.addr %s673, 2
          %s675 = smul.addr %s674, 8
          %s676 = scalar_lea.vmem %s7, %s675
        $region64: #{bifpn_layer_forward.10} parent=59 // pred_fallthru
          _
      $region60: #{bifpn_layer_forward.10} parent=5 // pred_fallthru
        _
    $region6: #{bifpn_layer_forward.10} parent=1 // loop_footer
      %s18 = sadd.s32 1, %s14
    $region7: #{bifpn_layer_forward.10} parent=1 // loop_footer_branch
      %13 = sbr.rel target = $region3
    $region8: #{bifpn_layer_forward.10} parent=1 // loop_exit
      _
    %677 = vsyncpa [#allocation3], 1
    %s678 = scalar_lea.sflag [#allocation3], 1
    %679 = vsyncpa %s678, 1

// kernel: bifpn_layer_forward.9
$region0: #{bifpn_layer_forward.9}
  #allocation0 [shape = 'u32[]', space=smem, size = 0x4, offset = 0x4, fixed_abs, tag = 'smem constant byte address 0x4 - core index']
  #allocation1 [shape = 'u32[72,128]{1,0:T(1,128)}', space=vmem, size = 0x9000, scoped, tag = 'internal scratch']
  %s0 = inlined_call_operand.vmem [shape: f32[2], index: 0, kind: input, shape index: {}]
  %s1 = inlined_call_operand.vmem [shape: f32[2,8,64], index: 1, kind: input, shape index: {}]
  %s2 = inlined_call_operand.vmem [shape: f32[2,8,64], index: 2, kind: input, shape index: {}]
  %s3 = inlined_call_operand.vmem [shape: s32[1,64], index: 3, kind: input, shape index: {}]
  %s4 = inlined_call_operand.vmem [shape: f32[8,9], index: 4, kind: input, shape index: {}]
  %s5 = inlined_call_operand.vmem [shape: f32[8,8], index: 5, kind: input, shape index: {}]
  %s6 = inlined_call_operand.vmem [shape: f32[8,1], index: 6, kind: input, shape index: {}]
  %s7 = inlined_call_operand.vmem [shape: f32[2,8,64], index: 7, kind: output, shape index: {}]
  %s8 = sld [smem:[#allocation0]]
  $region65: #{bifpn_layer_forward.9} parent=0
    _
  %s10 = ssub.s32 1, %s8
  %s11 = scalar_select 0, %s10, %s8
  $region1: #{bifpn_layer_forward.9} parent=0
    #allocation2 [shape = 'u8[512]{0}', space=smem, size = 0x200, scoped, tag = 'input window, operand 0, single buffered']
    #allocation3 [shape = 's32[2]{0}', space=sflag, size = 0x8, scoped, tag = 'scoped memory for bifpn_layer_forward.9']
    %12 = vsyncpa [#allocation3], 0
    loop: start=0, step=1, limit=4
    $region2: #{bifpn_layer_forward.9} parent=1 // loop_pre_header
      _
    $region3: #{bifpn_layer_forward.9} parent=1 // loop_header
      %s14 = sphi 0, %s18
      %p15 = scmp.ge.s32.totalorder %s14, 4
      %s22 = sphi 0, %s22
      %s24 = sphi 0, %s22
      %s25 = sphi 0, %s24
      %s39 = sphi 0, %s25
      %s45 = sphi 0, %s47
      %s48 = sphi 0, %s45
      %s49 = sphi 0, %s48
      %s65 = sphi 0, %s49
      %s71 = sphi 0, %s73
      %s74 = sphi 0, %s71
      %s75 = sphi 0, %s74
      %s91 = sphi 0, %s75
      %s95 = sphi 0, %s95
      %s97 = sphi 0, %s95
      %s98 = sphi 0, %s97
      %s112 = sphi 0, %s98
      %s116 = sphi 0, %s116
      %s118 = sphi 0, %s116
      %s119 = sphi 0, %s118
      %s133 = sphi 0, %s119
      %s137 = sphi 0, %s137
      %s139 = sphi 0, %s137
      %s140 = sphi 0, %s139
      %s154 = sphi 0, %s140
      %s158 = sphi 0, %s158
      %s160 = sphi 0, %s158
      %s161 = sphi 0, %s160
      %s175 = sphi 0, %s161
      %s181 = sphi 0, %s183
      %s184 = sphi 0, %s181
      %s185 = sphi 0, %s184
      %s201 = sphi 0, %s185
    $region4: #{bifpn_layer_forward.9} parent=1 // loop_header_branch
      %17 = sbr.rel (%p15) target = $region8
    $region5: #{bifpn_layer_forward.9} parent=1 // loop_body
      %s19 = ssub.s32 %s14, 1
      %s20 = ssub.s32 %s14, 2
      %s21 = sadd.s32 %s14, 1
      %s23 = sadd.s32 %s22, 1
      %p26 = scmp.eq.s32.totalorder %s14, 1
      %p27 = scmp.ne.s32.totalorder %s22, %s24
      %p28 = scmp.eq.s32.totalorder %s14, 0
      %p29 = por %p27, %p28
      %p30 = scmp.ne.s32.totalorder %s22, %s24
      %p31 = scmp.eq.s32.totalorder %s19, 1
      %p32 = por %p30, %p31
      %p33 = scmp.ne.s32.totalorder %s24, %s25
      %p34 = scmp.eq.s32.totalorder %s19, 0
      %p35 = por %p33, %p34
      %p36 = scmp.ne.s32.totalorder %s24, %s25
      %p37 = scmp.eq.s32.totalorder %s20, 1
      %p38 = por %p36, %p37
      %p40 = scmp.ne.s32.totalorder %s25, %s39
      %p41 = scmp.eq.s32.totalorder %s20, 0
      %p42 = por %p40, %p41
      %s43 = ssub.s32 %s14, %s21
      %p44 = scmp.eq.s32.totalorder %s43, 0
      %s46 = sadd.s32 %s45, 1
      %s47 = scalar_select %p44, %s45, %s46
      %p50 = pneg %p44
      %p51 = scmp.eq.s32.totalorder %s14, 1
      %p52 = por %p50, %p51
      %p53 = scmp.ne.s32.totalorder %s45, %s48
      %p54 = scmp.eq.s32.totalorder %s14, 0
      %p55 = por %p53, %p54
      %p56 = scmp.ne.s32.totalorder %s45, %s48
      %p57 = scmp.eq.s32.totalorder %s19, 1
      %p58 = por %p56, %p57
      %p59 = scmp.ne.s32.totalorder %s48, %s49
      %p60 = scmp.eq.s32.totalorder %s19, 0
      %p61 = por %p59, %p60
      %p62 = scmp.ne.s32.totalorder %s48, %s49
      %p63 = scmp.eq.s32.totalorder %s20, 1
      %p64 = por %p62, %p63
      %p66 = scmp.ne.s32.totalorder %s49, %s65
      %p67 = scmp.eq.s32.totalorder %s20, 0
      %p68 = por %p66, %p67
      %s69 = ssub.s32 %s14, %s21
      %p70 = scmp.eq.s32.totalorder %s69, 0
      %s72 = sadd.s32 %s71, 1
      %s73 = scalar_select %p70, %s71, %s72
      %p76 = pneg %p70
      %p77 = scmp.eq.s32.totalorder %s14, 1
      %p78 = por %p76, %p77
      %p79 = scmp.ne.s32.totalorder %s71, %s74
      %p80 = scmp.eq.s32.totalorder %s14, 0
      %p81 = por %p79, %p80
      %p82 = scmp.ne.s32.totalorder %s71, %s74
      %p83 = scmp.eq.s32.totalorder %s19, 1
      %p84 = por %p82, %p83
      %p85 = scmp.ne.s32.totalorder %s74, %s75
      %p86 = scmp.eq.s32.totalorder %s19, 0
      %p87 = por %p85, %p86
      %p88 = scmp.ne.s32.totalorder %s74, %s75
      %p89 = scmp.eq.s32.totalorder %s20, 1
      %p90 = por %p88, %p89
      %p92 = scmp.ne.s32.totalorder %s75, %s91
      %p93 = scmp.eq.s32.totalorder %s20, 0
      %p94 = por %p92, %p93
      %s96 = sadd.s32 %s95, 1
      %p99 = scmp.eq.s32.totalorder %s14, 1
      %p100 = scmp.ne.s32.totalorder %s95, %s97
      %p101 = scmp.eq.s32.totalorder %s14, 0
      %p102 = por %p100, %p101
      %p103 = scmp.ne.s32.totalorder %s95, %s97
      %p104 = scmp.eq.s32.totalorder %s19, 1
      %p105 = por %p103, %p104
      %p106 = scmp.ne.s32.totalorder %s97, %s98
      %p107 = scmp.eq.s32.totalorder %s19, 0
      %p108 = por %p106, %p107
      %p109 = scmp.ne.s32.totalorder %s97, %s98
      %p110 = scmp.eq.s32.totalorder %s20, 1
      %p111 = por %p109, %p110
      %p113 = scmp.ne.s32.totalorder %s98, %s112
      %p114 = scmp.eq.s32.totalorder %s20, 0
      %p115 = por %p113, %p114
      %s117 = sadd.s32 %s116, 1
      %p120 = scmp.eq.s32.totalorder %s14, 1
      %p121 = scmp.ne.s32.totalorder %s116, %s118
      %p122 = scmp.eq.s32.totalorder %s14, 0
      %p123 = por %p121, %p122
      %p124 = scmp.ne.s32.totalorder %s116, %s118
      %p125 = scmp.eq.s32.totalorder %s19, 1
      %p126 = por %p124, %p125
      %p127 = scmp.ne.s32.totalorder %s118, %s119
      %p128 = scmp.eq.s32.totalorder %s19, 0
      %p129 = por %p127, %p128
      %p130 = scmp.ne.s32.totalorder %s118, %s119
      %p131 = scmp.eq.s32.totalorder %s20, 1
      %p132 = por %p130, %p131
      %p134 = scmp.ne.s32.totalorder %s119, %s133
      %p135 = scmp.eq.s32.totalorder %s20, 0
      %p136 = por %p134, %p135
      %s138 = sadd.s32 %s137, 1
      %p141 = scmp.eq.s32.totalorder %s14, 1
      %p142 = scmp.ne.s32.totalorder %s137, %s139
      %p143 = scmp.eq.s32.totalorder %s14, 0
      %p144 = por %p142, %p143
      %p145 = scmp.ne.s32.totalorder %s137, %s139
      %p146 = scmp.eq.s32.totalorder %s19, 1
      %p147 = por %p145, %p146
      %p148 = scmp.ne.s32.totalorder %s139, %s140
      %p149 = scmp.eq.s32.totalorder %s19, 0
      %p150 = por %p148, %p149
      %p151 = scmp.ne.s32.totalorder %s139, %s140
      %p152 = scmp.eq.s32.totalorder %s20, 1
      %p153 = por %p151, %p152
      %p155 = scmp.ne.s32.totalorder %s140, %s154
      %p156 = scmp.eq.s32.totalorder %s20, 0
      %p157 = por %p155, %p156
      %s159 = sadd.s32 %s158, 1
      %p162 = scmp.eq.s32.totalorder %s14, 1
      %p163 = scmp.ne.s32.totalorder %s158, %s160
      %p164 = scmp.eq.s32.totalorder %s14, 0
      %p165 = por %p163, %p164
      %p166 = scmp.ne.s32.totalorder %s158, %s160
      %p167 = scmp.eq.s32.totalorder %s19, 1
      %p168 = por %p166, %p167
      %p169 = scmp.ne.s32.totalorder %s160, %s161
      %p170 = scmp.eq.s32.totalorder %s19, 0
      %p171 = por %p169, %p170
      %p172 = scmp.ne.s32.totalorder %s160, %s161
      %p173 = scmp.eq.s32.totalorder %s20, 1
      %p174 = por %p172, %p173
      %p176 = scmp.ne.s32.totalorder %s161, %s175
      %p177 = scmp.eq.s32.totalorder %s20, 0
      %p178 = por %p176, %p177
      %s179 = ssub.s32 %s14, %s21
      %p180 = scmp.eq.s32.totalorder %s179, 0
      %s182 = sadd.s32 %s181, 1
      %s183 = scalar_select %p180, %s181, %s182
      %p186 = pneg %p180
      %p187 = scmp.eq.s32.totalorder %s14, 1
      %p188 = por %p186, %p187
      %p189 = scmp.ne.s32.totalorder %s181, %s184
      %p190 = scmp.eq.s32.totalorder %s14, 0
      %p191 = por %p189, %p190
      %p192 = scmp.ne.s32.totalorder %s181, %s184
      %p193 = scmp.eq.s32.totalorder %s19, 1
      %p194 = por %p192, %p193
      %p195 = scmp.ne.s32.totalorder %s184, %s185
      %p196 = scmp.eq.s32.totalorder %s19, 0
      %p197 = por %p195, %p196
      %p198 = scmp.ne.s32.totalorder %s184, %s185
      %p199 = scmp.eq.s32.totalorder %s20, 1
      %p200 = por %p198, %p199
      %p202 = scmp.ne.s32.totalorder %s185, %s201
      %p203 = scmp.eq.s32.totalorder %s20, 0
      %p204 = por %p202, %p203
      %p205 = scmp.le.s32.totalorder 1, %s14
      %p206 = scmp.lt.s32.totalorder %s14, 3
      %p207 = pnand %p205, %p206
      %p208 = pneg %p207
      // Predicated region
      $region9: #{bifpn_layer_forward.9} parent=5 // pred_check
        _
      $region10: #{bifpn_layer_forward.9} parent=5 // pred_check_branch
        %210 = sbr.rel (%p207) target = $region12
      $region11: #{bifpn_layer_forward.9} parent=5 // pred_region
        %s211 = ssub.s32 %s14, 1
        // Predicated region
        $region13: #{bifpn_layer_forward.9} parent=11 // pred_check
          %p212 = pneg %p35
        $region14: #{bifpn_layer_forward.9} parent=11 // pred_check_branch
          %214 = sbr.rel (%p212) target = $region16
        $region15: #{bifpn_layer_forward.9} parent=11 // pred_region
          %216 = vsyncadd [#allocation3], 0
          %s218 = sshll.u32 %s0, 4
          %s219 = int_to_ptr.vmem [resolvable:$true] %s218
          %221 = dma.vmem_to_smem %s219, 16, [#allocation2], [#allocation3]
        $region16: #{bifpn_layer_forward.9} parent=11 // pred_fallthru
          _
        // Predicated region
        $region17: #{bifpn_layer_forward.9} parent=11 // pred_check
          %p222 = pneg %p108
        $region18: #{bifpn_layer_forward.9} parent=11 // pred_check_branch
          %224 = sbr.rel (%p222) target = $region20
        $region19: #{bifpn_layer_forward.9} parent=11 // pred_region
          _
        $region20: #{bifpn_layer_forward.9} parent=11 // pred_fallthru
          _
        // Predicated region
        $region21: #{bifpn_layer_forward.9} parent=11 // pred_check
          %p225 = pneg %p129
        $region22: #{bifpn_layer_forward.9} parent=11 // pred_check_branch
          %227 = sbr.rel (%p225) target = $region24
        $region23: #{bifpn_layer_forward.9} parent=11 // pred_region
          _
        $region24: #{bifpn_layer_forward.9} parent=11 // pred_fallthru
          _
        // Predicated region
        $region25: #{bifpn_layer_forward.9} parent=11 // pred_check
          %p228 = pneg %p150
        $region26: #{bifpn_layer_forward.9} parent=11 // pred_check_branch
          %230 = sbr.rel (%p228) target = $region28
        $region27: #{bifpn_layer_forward.9} parent=11 // pred_region
          _
        $region28: #{bifpn_layer_forward.9} parent=11 // pred_fallthru
          _
        // Predicated region
        $region29: #{bifpn_layer_forward.9} parent=11 // pred_check
          %p231 = pneg %p171
        $region30: #{bifpn_layer_forward.9} parent=11 // pred_check_branch
          %233 = sbr.rel (%p231) target = $region32
        $region31: #{bifpn_layer_forward.9} parent=11 // pred_region
          _
        $region32: #{bifpn_layer_forward.9} parent=11 // pred_fallthru
          _
      $region12: #{bifpn_layer_forward.9} parent=5 // pred_fallthru
        _
      %p234 = scmp.lt.s32.totalorder %s14, 2
      // Predicated region
      $region33: #{bifpn_layer_forward.9} parent=5 // pred_check
        %p235 = pneg %p234
      $region34: #{bifpn_layer_forward.9} parent=5 // pred_check_branch
        %237 = sbr.rel (%p235) target = $region36
      $region35: #{bifpn_layer_forward.9} parent=5 // pred_region
        // Predicated region
        $region37: #{bifpn_layer_forward.9} parent=35 // pred_check
          %p238 = pneg %p55
        $region38: #{bifpn_layer_forward.9} parent=35 // pred_check_branch
          %240 = sbr.rel (%p238) target = $region40
        $region39: #{bifpn_layer_forward.9} parent=35 // pred_region
          %p241 = scmp.lt.s32.totalorder %s14, 1
          %s242 = scalar_select %p241, %s14, 1
          %s243 = smul.addr %s242, 8
          %s244 = scalar_lea.vmem %s1, %s243
        $region40: #{bifpn_layer_forward.9} parent=35 // pred_fallthru
          _
        // Predicated region
        $region41: #{bifpn_layer_forward.9} parent=35 // pred_check
          %p245 = pneg %p81
        $region42: #{bifpn_layer_forward.9} parent=35 // pred_check_branch
          %247 = sbr.rel (%p245) target = $region44
        $region43: #{bifpn_layer_forward.9} parent=35 // pred_region
          %p248 = scmp.lt.s32.totalorder %s14, 1
          %s249 = scalar_select %p248, %s14, 1
          %s250 = smul.addr %s249, 8
          %s251 = scalar_lea.vmem %s2, %s250
        $region44: #{bifpn_layer_forward.9} parent=35 // pred_fallthru
          _
      $region36: #{bifpn_layer_forward.9} parent=5 // pred_fallthru
        _
      %p252 = scmp.le.s32.totalorder 1, %s14
      %p253 = scmp.lt.s32.totalorder %s14, 3
      %p254 = pnand %p252, %p253
      %p255 = pneg %p254
      // Predicated region
      $region45: #{bifpn_layer_forward.9} parent=5 // pred_check
        _
      $region46: #{bifpn_layer_forward.9} parent=5 // pred_check_branch
        %257 = sbr.rel (%p254) target = $region48
      $region47: #{bifpn_layer_forward.9} parent=5 // pred_region
        %s258 = ssub.s32 %s14, 1
        // Predicated region
        $region49: #{bifpn_layer_forward.9} parent=47 // pred_check
          %p259 = pneg %p35
        $region50: #{bifpn_layer_forward.9} parent=47 // pred_check_branch
          %261 = sbr.rel (%p259) target = $region52
        $region51: #{bifpn_layer_forward.9} parent=47 // pred_region
          %263 = dma.done [#allocation3], 16
        $region52: #{bifpn_layer_forward.9} parent=47 // pred_fallthru
          _
        %264 = sfence
        %p265 = pneg %p35
        %p266 = pneg %p32
        %p267 = scmp.lt.s32.totalorder %s19, 1
        %s268 = scalar_select %p267, %s19, 1
        %s269 = smul.addr %s268, 8
        %s270 = scalar_lea.vmem %s1, %s269
        %p271 = pneg %p61
        %p272 = pneg %p58
        %p273 = scmp.lt.s32.totalorder %s19, 1
        %s274 = scalar_select %p273, %s19, 1
        %s275 = smul.addr %s274, 8
        %s276 = scalar_lea.vmem %s2, %s275
        %p277 = pneg %p87
        %p278 = pneg %p84
        %p279 = pneg %p108
        %p280 = pneg %p105
        %p281 = pneg %p129
        %p282 = pneg %p126
        %p283 = pneg %p150
        %p284 = pneg %p147
        %p285 = pneg %p171
        %p286 = pneg %p168
        %p287 = pneg %p197
        %p288 = pneg %p194
        %p289 = scmp.lt.s32.totalorder %s19, 1
        %s290 = scalar_select %p289, %s19, 1
        %s291 = smul.addr %s290, 8
        %s292 = scalar_lea.vmem %s7, %s291
        %p293 = scmp.lt.s32.totalorder %s19, 1
        %s294 = scalar_select %p293, %s19, 1
        %s295 = smul.addr %s294, 8
        %s296 = scalar_lea.vmem %s1, %s295
        %p297 = scmp.lt.s32.totalorder %s19, 1
        %s298 = scalar_select %p297, %s19, 1
        %s299 = smul.addr %s298, 8
        %s300 = scalar_lea.vmem %s2, %s299
        %p301 = scmp.lt.s32.totalorder %s19, 1
        %s302 = scalar_select %p301, %s19, 1
        %s303 = smul.addr %s302, 8
        %s304 = scalar_lea.vmem %s7, %s303
        %s305 = sld [smem:[#allocation2]]
        %v306 = vld [vmem:[%s296] sm:$0xff]
        %v307 = vstv %s305
        %v308 = vmul.f32 %v307, %v306
        %s309 = sld [smem:[#allocation2 + $0x1]]
        %v310 = vld [vmem:[%s300] sm:$0xff]
        %v311 = vstv %s309
        %v312 = vmul.f32 %v311, %v310
        %v313 = vadd.f32 %v308, %v312
        %v314 = vxor.u32 %v313, 2147483648
        %v315 = vmul.f32 %v314, 1.442695
        %v316 = vpow.pop %v315
        %v317 = vadd.f32 %v316, 1.0
        %v318 = vrcp.pop %v317
        %v319 = vmul.f32 %v317, %v318
        %v320 = vsub.f32 1.0, %v319
        %v321 = vmul.f32 %v318, %v320
        %v322 = vadd.f32 %v318, %v321
        %vm323 = vweird.f32 %v317
        %vm324 = vweird.f32 %v318
        %vm325 = vmor %vm323, %vm324
        %v326 = vsel %vm325, %v318, %v322
        %v327 = vand.u32 2147483647, %v317
        %vm328 = vcmp.eq.f32.partialorder %v327, 8.507059e+37
        %v329 = vand.u32 %v317, 2147483648
        %v330 = vor.u32 1.1754944e-38, %v329
        %v331 = vsel %vm328, %v330, %v326
        %v332 = vmul.f32 1.0, %v331
        %v333 = vmul.f32 %v313, %v332
        %v334 = vlaneseq
        %v335 = vand.u32 %v334, 127
        %v336 = vld [vmem:[%s3] sm:$0x1]
        %vm337 = vcmp.ge.s32.totalorder %v335, 8
        %vm338 = vcmp.lt.s32.totalorder %v335, 56
        %vm339 = vcmp.ge.s32.totalorder %v336, 1
        %vm340 = vcmp.le.s32.totalorder %v336, 6
        %v341 = vld [vmem:[%s4] sm:$0xff]
        %343 = vrot.lane.b32.xlu0 %v333, 73
        %v344 = vpop.permute.xlu0 %343
        %346 = vrot.lane.b32.xlu0 %v333, 9
        %v347 = vpop.permute.xlu0 %346
        %vm349 = vcmask 72704
        %v350 = vsel %vm349, %v344, %v347
        %vm351 = vmand %vm337, %vm339
        %v352 = vsel %vm351, 1, 0
        %v353 = vperm.slane %v352, 0
        %vm354 = vcmp.eq.s32.totalorder %v353, 1
        %v355 = vsel %vm354, %v350, 0.0
        %357 = vset.pattern.permute.xlu0 0
        %358 = vperm.xlu0 %357, %v341
        %v359 = vpop.permute.xlu0 %358
        %v361 = vmul.f32 %v355, %v359
        %v362 = vadd.f32 %v361, 0.0
        %363 = vrot.lane.b32.xlu0 %v333, 72
        %v364 = vpop.permute.xlu0 %363
        %366 = vrot.lane.b32.xlu0 %v333, 8
        %v367 = vpop.permute.xlu0 %366
        %vm369 = vcmask 64512
        %v370 = vsel %vm369, %v364, %v367
        %v371 = vsel %vm337, 1, 0
        %vm372 = vcmp.eq.s32.totalorder %v371, 1
        %v373 = vsel %vm372, %v370, 0.0
        %374 = vset.pattern.permute.xlu0 1
        %375 = vperm.xlu0 %374, %v341
        %v376 = vpop.permute.xlu0 %375
        %v378 = vmul.f32 %v373, %v376
        %v379 = vadd.f32 %v362, %v378
        %380 = vrot.lane.b32.xlu0 %v333, 71
        %v381 = vpop.permute.xlu0 %380
        %383 = vrot.lane.b32.xlu0 %v333, 7
        %v384 = vpop.permute.xlu0 %383
        %vm386 = vcmask 56320
        %v387 = vsel %vm386, %v381, %v384
        %vm388 = vmand %vm337, %vm340
        %v389 = vsel %vm388, 1, 0
        %v390 = vperm.slane %v389, 0
        %vm391 = vcmp.eq.s32.totalorder %v390, 1
        %v392 = vsel %vm391, %v387, 0.0
        %393 = vset.pattern.permute.xlu0 2
        %394 = vperm.xlu0 %393, %v341
        %v395 = vpop.permute.xlu0 %394
        %v397 = vmul.f32 %v392, %v395
        %v398 = vadd.f32 %v379, %v397
        %399 = vrot.lane.b32.xlu0 %v333, 65
        %v400 = vpop.permute.xlu0 %399
        %402 = vrot.lane.b32.xlu0 %v333, 1
        %v403 = vpop.permute.xlu0 %402
        %vm405 = vcmask 7168
        %v406 = vsel %vm405, %v400, %v403
        %v407 = vsel %vm339, 1, 0
        %v408 = vperm.slane %v407, 0
        %vm409 = vcmp.eq.s32.totalorder %v408, 1
        %v410 = vsel %vm409, %v406, 0.0
        %411 = vset.pattern.permute.xlu0 3
        %412 = vperm.xlu0 %411, %v341
        %v413 = vpop.permute.xlu0 %412
        %v415 = vmul.f32 %v410, %v413
        %v416 = vadd.f32 %v398, %v415
        %417 = vset.pattern.permute.xlu0 4
        %418 = vperm.xlu0 %417, %v341
        %v419 = vpop.permute.xlu0 %418
        %v421 = vmul.f32 %v333, %v419
        %v422 = vadd.f32 %v416, %v421
        %423 = vrot.lane.b32.xlu0 %v333, 127
        %v424 = vpop.permute.xlu0 %423
        %426 = vrot.lane.b32.xlu0 %v333, 63
        %v427 = vpop.permute.xlu0 %426
        %vm429 = vcmask 515072
        %v430 = vsel %vm429, %v424, %v427
        %v431 = vsel %vm340, 1, 0
        %v432 = vperm.slane %v431, 0
        %vm433 = vcmp.eq.s32.totalorder %v432, 1
        %v434 = vsel %vm433, %v430, 0.0
        %435 = vset.pattern.permute.xlu0 5
        %436 = vperm.xlu0 %435, %v341
        %v437 = vpop.permute.xlu0 %436
        %v439 = vmul.f32 %v434, %v437
        %v440 = vadd.f32 %v422, %v439
        %441 = vrot.lane.b32.xlu0 %v333, 121
        %v442 = vpop.permute.xlu0 %441
        %444 = vrot.lane.b32.xlu0 %v333, 57
        %v445 = vpop.permute.xlu0 %444
        %vm447 = vcmask 465920
        %v448 = vsel %vm447, %v442, %v445
        %vm449 = vmand %vm338, %vm339
        %v450 = vsel %vm449, 1, 0
        %v451 = vperm.slane %v450, 0
        %vm452 = vcmp.eq.s32.totalorder %v451, 1
        %v453 = vsel %vm452, %v448, 0.0
        %454 = vset.pattern.permute.xlu0 6
        %455 = vperm.xlu0 %454, %v341
        %v456 = vpop.permute.xlu0 %455
        %v458 = vmul.f32 %v453, %v456
        %v459 = vadd.f32 %v440, %v458
        %460 = vrot.lane.b32.xlu0 %v333, 120
        %v461 = vpop.permute.xlu0 %460
        %463 = vrot.lane.b32.xlu0 %v333, 56
        %v464 = vpop.permute.xlu0 %463
        %vm466 = vcmask 457728
        %v467 = vsel %vm466, %v461, %v464
        %v468 = vsel %vm338, 1, 0
        %vm469 = vcmp.eq.s32.totalorder %v468, 1
        %v470 = vsel %vm469, %v467, 0.0
        %471 = vset.pattern.permute.xlu0 7
        %472 = vperm.xlu0 %471, %v341
        %v473 = vpop.permute.xlu0 %472
        %v475 = vmul.f32 %v470, %v473
        %v476 = vadd.f32 %v459, %v475
        %477 = vrot.lane.b32.xlu0 %v333, 119
        %v478 = vpop.permute.xlu0 %477
        %480 = vrot.lane.b32.xlu0 %v333, 55
        %v481 = vpop.permute.xlu0 %480
        %vm483 = vcmask 449536
        %v484 = vsel %vm483, %v478, %v481
        %vm485 = vmand %vm338, %vm340
        %v486 = vsel %vm485, 1, 0
        %v487 = vperm.slane %v486, 0
        %vm488 = vcmp.eq.s32.totalorder %v487, 1
        %v489 = vsel %vm488, %v484, 0.0
        %490 = vset.pattern.permute.xlu0 8
        %491 = vperm.xlu0 %490, %v341
        %v492 = vpop.permute.xlu0 %491
        %v494 = vmul.f32 %v489, %v492
        %v495 = vadd.f32 %v476, %v494
        %v496 = vld [vmem:[%s5] sm:$0xff]
        %v497 = vld [vmem:[%s6] sm:$0xff]
        %499 = vset.pattern.permute.xlu0 0
        %500 = vperm.xlu0 %499, %v497
        %v501 = vpop.permute.xlu0 %500
        %v504 = vsel %vm369, %v496, 0
        %506 = vmatpush.msra.mxu0 0.0
        %507 = vmatpush.msra.mxu0 0.0
        %508 = vmatpush.msra.mxu0 0.0
        %509 = vmatpush.msra.mxu0 0.0
        %510 = vmatpush.msra.mxu0 0.0
        %511 = vmatpush.msra.mxu0 0.0
        %512 = vmatpush.msra.mxu0 0.0
        %513 = vmatpush.msra.mxu0 0.0
        %514 = vmatpush.msra.mxu0 0.0
        %515 = vmatpush.msra.mxu0 0.0
        %516 = vmatpush.msra.mxu0 0.0
        %517 = vmatpush.msra.mxu0 0.0
        %518 = vmatpush.msra.mxu0 0.0
        %519 = vmatpush.msra.mxu0 0.0
        %520 = vmatpush.msra.mxu0 0.0
        %521 = vmatpush.msra.mxu0 %v495
        %522 = vmatmul.f32.gmra.mxu0 %v504
        %v523 = vpop.f32.mrf.mxu0
        %v524 = vadd.f32 %v501, %v523
        %525 = vdwg.mxu0
        %vm526 = vcmask 523264
        %527 = vst.msk [vmem:[%s304] sm:$0xff] %vm526, %v524
        %p528 = scmp.lt.s32.totalorder %s19, 1
        %s529 = scalar_select %p528, %s19, 1
        %s530 = smul.addr %s529, 8
        %s531 = scalar_lea.vmem %s7, %s530
        // Predicated region
        $region53: #{bifpn_layer_forward.9} parent=47 // pred_check
          %p532 = pneg %p194
        $region54: #{bifpn_layer_forward.9} parent=47 // pred_check_branch
          %534 = sbr.rel (%p532) target = $region56
        $region55: #{bifpn_layer_forward.9} parent=47 // pred_region
          _
        $region56: #{bifpn_layer_forward.9} parent=47 // pred_fallthru
          _
      $region48: #{bifpn_layer_forward.9} parent=5 // pred_fallthru
        _
      %p535 = scmp.le.s32.totalorder 2, %s14
      // Predicated region
      $region57: #{bifpn_layer_forward.9} parent=5 // pred_check
        %p536 = pneg %p535
      $region58: #{bifpn_layer_forward.9} parent=5 // pred_check_branch
        %538 = sbr.rel (%p536) target = $region60
      $region59: #{bifpn_layer_forward.9} parent=5 // pred_region
        %s539 = ssub.s32 %s14, 2
        // Predicated region
        $region61: #{bifpn_layer_forward.9} parent=59 // pred_check
          %p540 = pneg %p200
        $region62: #{bifpn_layer_forward.9} parent=59 // pred_check_branch
          %542 = sbr.rel (%p540) target = $region64
        $region63: #{bifpn_layer_forward.9} parent=59 // pred_region
          %p543 = scmp.lt.s32.totalorder %s20, 1
          %s544 = scalar_select %p543, %s20, 1
          %s545 = smul.addr %s544, 8
          %s546 = scalar_lea.vmem %s7, %s545
        $region64: #{bifpn_layer_forward.9} parent=59 // pred_fallthru
          _
      $region60: #{bifpn_layer_forward.9} parent=5 // pred_fallthru
        _
    $region6: #{bifpn_layer_forward.9} parent=1 // loop_footer
      %s18 = sadd.s32 1, %s14
    $region7: #{bifpn_layer_forward.9} parent=1 // loop_footer_branch
      %13 = sbr.rel target = $region3
    $region8: #{bifpn_layer_forward.9} parent=1 // loop_exit
      _
    %547 = vsyncpa [#allocation3], 1
    %s548 = scalar_lea.sflag [#allocation3], 1
    %549 = vsyncpa %s548, 1

// kernel: tile.59
$region0: #{tile.59}
  %s0 = inlined_call_operand.vmem [shape: s32[32,32], index: 0, kind: input, shape index: {}]
  %s1 = inlined_call_operand.vmem [shape: s32[1,1024], index: 1, kind: output, shape index: {}]
  $region1: #{tile.59} parent=0
    #allocation0 [shape = 'u8[32768]{0}', space=vmem, size = 0x8000, scoped, tag = 'scoped mem for output reshape']
    %v2 = vld [vmem:[%s0] ss:$4 sm:$0xff]
    %vm3 = vcmask 261120
    %4 = vst.msk [vmem:[#allocation0] ss:$8 sm:$0xf] %vm3, %v2
    %5 = vst.msk [vmem:[#allocation0] ss:$8 sm:$0xf0] %vm3, %v2
    %s6 = scalar_lea.vmem %s0, 3
    %v7 = vld [vmem:[%s6] ss:$4 sm:$0xff]
    %8 = vrot.lane.b32.xlu0 %v7, 96
    %v9 = vpop.permute.xlu0 %8
    %vm10 = vcmask 1048320
    %11 = vst.msk [vmem:[#allocation0] ss:$8 sm:$0xf] %vm10, %v9
    %12 = vst.msk [vmem:[#allocation0] ss:$8 sm:$0xf0] %vm10, %v9
    %s13 = scalar_lea.vmem %s0, 2
    %v14 = vld [vmem:[%s13] ss:$4 sm:$0xff]
    %15 = vrot.lane.b32.xlu0 %v14, 64
    %v16 = vpop.permute.xlu0 %15
    %vm17 = vcmask 785920
    %18 = vst.msk [vmem:[#allocation0] ss:$8 sm:$0xf] %vm17, %v16
    %19 = vst.msk [vmem:[#allocation0] ss:$8 sm:$0xf0] %vm17, %v16
    %s20 = scalar_lea.vmem %s0, 1
    %v21 = vld [vmem:[%s20] ss:$4 sm:$0xff]
    %22 = vrot.lane.b32.xlu0 %v21, 32
    %v23 = vpop.permute.xlu0 %22
    %vm24 = vcmask 523520
    %25 = vst.msk [vmem:[#allocation0] ss:$8 sm:$0xf] %vm24, %v23
    %26 = vst.msk [vmem:[#allocation0] ss:$8 sm:$0xf0] %vm24, %v23
    %s28 = ssub.s32 2, 1
    %v29 = vld [vmem:[#allocation0] sm:%s28]
    %s31 = ssub.s32 2, 1
    %32 = vst [vmem:[%s1] sm:%s31] %v29
    %s33 = scalar_lea.vmem [#allocation0], 8
    %v34 = vld [vmem:[%s33] sm:%s28]
    %s36 = ssub.s32 2, 1
    %s37 = scalar_lea.vmem %s1, 1
    %38 = vst [vmem:[%s37] sm:%s36] %v34
    %s39 = scalar_lea.vmem [#allocation0], 16
    %v40 = vld [vmem:[%s39] sm:%s28]
    %s42 = ssub.s32 2, 1
    %s43 = scalar_lea.vmem %s1, 2
    %44 = vst [vmem:[%s43] sm:%s42] %v40
    %s45 = scalar_lea.vmem [#allocation0], 24
    %v46 = vld [vmem:[%s45] sm:%s28]
    %s48 = ssub.s32 2, 1
    %s49 = scalar_lea.vmem %s1, 3
    %50 = vst [vmem:[%s49] sm:%s48] %v46
    %s51 = scalar_lea.vmem [#allocation0], 32
    %v52 = vld [vmem:[%s51] sm:%s28]
    %s54 = ssub.s32 2, 1
    %s55 = scalar_lea.vmem %s1, 4
    %56 = vst [vmem:[%s55] sm:%s54] %v52
    %s57 = scalar_lea.vmem [#allocation0], 40
    %v58 = vld [vmem:[%s57] sm:%s28]
    %s60 = ssub.s32 2, 1
    %s61 = scalar_lea.vmem %s1, 5
    %62 = vst [vmem:[%s61] sm:%s60] %v58
    %s63 = scalar_lea.vmem [#allocation0], 48
    %v64 = vld [vmem:[%s63] sm:%s28]
    %s66 = ssub.s32 2, 1
    %s67 = scalar_lea.vmem %s1, 6
    %68 = vst [vmem:[%s67] sm:%s66] %v64
    %s69 = scalar_lea.vmem [#allocation0], 56
    %v70 = vld [vmem:[%s69] sm:%s28]
    %s72 = ssub.s32 2, 1
    %s73 = scalar_lea.vmem %s1, 7
    %74 = vst [vmem:[%s73] sm:%s72] %v70

// kernel: bifpn_layer_forward.11
$region0: #{bifpn_layer_forward.11}
  #allocation0 [shape = 'u32[]', space=smem, size = 0x4, offset = 0x4, fixed_abs, tag = 'smem constant byte address 0x4 - core index']
  #allocation1 [shape = 'u32[72,128]{1,0:T(1,128)}', space=vmem, size = 0x9000, scoped, tag = 'internal scratch']
  %s0 = inlined_call_operand.vmem [shape: f32[2], index: 0, kind: input, shape index: {}]
  %s1 = inlined_call_operand.vmem [shape: f32[2,8,1024], index: 1, kind: input, shape index: {}]
  %s2 = inlined_call_operand.vmem [shape: f32[2,8,1024], index: 2, kind: input, shape index: {}]
  %s3 = inlined_call_operand.vmem [shape: s32[1,1024], index: 3, kind: input, shape index: {}]
  %s4 = inlined_call_operand.vmem [shape: f32[8,9], index: 4, kind: input, shape index: {}]
  %s5 = inlined_call_operand.vmem [shape: f32[8,8], index: 5, kind: input, shape index: {}]
  %s6 = inlined_call_operand.vmem [shape: f32[8,1], index: 6, kind: input, shape index: {}]
  %s7 = inlined_call_operand.vmem [shape: f32[2,8,1024], index: 7, kind: output, shape index: {}]
  %s8 = sld [smem:[#allocation0]]
  $region65: #{bifpn_layer_forward.11} parent=0
    _
  %s10 = ssub.s32 1, %s8
  %s11 = scalar_select 0, %s10, %s8
  $region1: #{bifpn_layer_forward.11} parent=0
    #allocation2 [shape = 'u8[512]{0}', space=smem, size = 0x200, scoped, tag = 'input window, operand 0, single buffered']
    #allocation3 [shape = 's32[2]{0}', space=sflag, size = 0x8, scoped, tag = 'scoped memory for bifpn_layer_forward.11']
    %12 = vsyncpa [#allocation3], 0
    loop: start=0, step=1, limit=4
    $region2: #{bifpn_layer_forward.11} parent=1 // loop_pre_header
      _
    $region3: #{bifpn_layer_forward.11} parent=1 // loop_header
      %s14 = sphi 0, %s18
      %p15 = scmp.ge.s32.totalorder %s14, 4
      %s22 = sphi 0, %s22
      %s24 = sphi 0, %s22
      %s25 = sphi 0, %s24
      %s39 = sphi 0, %s25
      %s45 = sphi 0, %s47
      %s48 = sphi 0, %s45
      %s49 = sphi 0, %s48
      %s65 = sphi 0, %s49
      %s71 = sphi 0, %s73
      %s74 = sphi 0, %s71
      %s75 = sphi 0, %s74
      %s91 = sphi 0, %s75
      %s95 = sphi 0, %s95
      %s97 = sphi 0, %s95
      %s98 = sphi 0, %s97
      %s112 = sphi 0, %s98
      %s116 = sphi 0, %s116
      %s118 = sphi 0, %s116
      %s119 = sphi 0, %s118
      %s133 = sphi 0, %s119
      %s137 = sphi 0, %s137
      %s139 = sphi 0, %s137
      %s140 = sphi 0, %s139
      %s154 = sphi 0, %s140
      %s158 = sphi 0, %s158
      %s160 = sphi 0, %s158
      %s161 = sphi 0, %s160
      %s175 = sphi 0, %s161
      %s181 = sphi 0, %s183
      %s184 = sphi 0, %s181
      %s185 = sphi 0, %s184
      %s201 = sphi 0, %s185
    $region4: #{bifpn_layer_forward.11} parent=1 // loop_header_branch
      %17 = sbr.rel (%p15) target = $region8
    $region5: #{bifpn_layer_forward.11} parent=1 // loop_body
      %s19 = ssub.s32 %s14, 1
      %s20 = ssub.s32 %s14, 2
      %s21 = sadd.s32 %s14, 1
      %s23 = sadd.s32 %s22, 1
      %p26 = scmp.eq.s32.totalorder %s14, 1
      %p27 = scmp.ne.s32.totalorder %s22, %s24
      %p28 = scmp.eq.s32.totalorder %s14, 0
      %p29 = por %p27, %p28
      %p30 = scmp.ne.s32.totalorder %s22, %s24
      %p31 = scmp.eq.s32.totalorder %s19, 1
      %p32 = por %p30, %p31
      %p33 = scmp.ne.s32.totalorder %s24, %s25
      %p34 = scmp.eq.s32.totalorder %s19, 0
      %p35 = por %p33, %p34
      %p36 = scmp.ne.s32.totalorder %s24, %s25
      %p37 = scmp.eq.s32.totalorder %s20, 1
      %p38 = por %p36, %p37
      %p40 = scmp.ne.s32.totalorder %s25, %s39
      %p41 = scmp.eq.s32.totalorder %s20, 0
      %p42 = por %p40, %p41
      %s43 = ssub.s32 %s14, %s21
      %p44 = scmp.eq.s32.totalorder %s43, 0
      %s46 = sadd.s32 %s45, 1
      %s47 = scalar_select %p44, %s45, %s46
      %p50 = pneg %p44
      %p51 = scmp.eq.s32.totalorder %s14, 1
      %p52 = por %p50, %p51
      %p53 = scmp.ne.s32.totalorder %s45, %s48
      %p54 = scmp.eq.s32.totalorder %s14, 0
      %p55 = por %p53, %p54
      %p56 = scmp.ne.s32.totalorder %s45, %s48
      %p57 = scmp.eq.s32.totalorder %s19, 1
      %p58 = por %p56, %p57
      %p59 = scmp.ne.s32.totalorder %s48, %s49
      %p60 = scmp.eq.s32.totalorder %s19, 0
      %p61 = por %p59, %p60
      %p62 = scmp.ne.s32.totalorder %s48, %s49
      %p63 = scmp.eq.s32.totalorder %s20, 1
      %p64 = por %p62, %p63
      %p66 = scmp.ne.s32.totalorder %s49, %s65
      %p67 = scmp.eq.s32.totalorder %s20, 0
      %p68 = por %p66, %p67
      %s69 = ssub.s32 %s14, %s21
      %p70 = scmp.eq.s32.totalorder %s69, 0
      %s72 = sadd.s32 %s71, 1
      %s73 = scalar_select %p70, %s71, %s72
      %p76 = pneg %p70
      %p77 = scmp.eq.s32.totalorder %s14, 1
      %p78 = por %p76, %p77
      %p79 = scmp.ne.s32.totalorder %s71, %s74
      %p80 = scmp.eq.s32.totalorder %s14, 0
      %p81 = por %p79, %p80
      %p82 = scmp.ne.s32.totalorder %s71, %s74
      %p83 = scmp.eq.s32.totalorder %s19, 1
      %p84 = por %p82, %p83
      %p85 = scmp.ne.s32.totalorder %s74, %s75
      %p86 = scmp.eq.s32.totalorder %s19, 0
      %p87 = por %p85, %p86
      %p88 = scmp.ne.s32.totalorder %s74, %s75
      %p89 = scmp.eq.s32.totalorder %s20, 1
      %p90 = por %p88, %p89
      %p92 = scmp.ne.s32.totalorder %s75, %s91
      %p93 = scmp.eq.s32.totalorder %s20, 0
      %p94 = por %p92, %p93
      %s96 = sadd.s32 %s95, 1
      %p99 = scmp.eq.s32.totalorder %s14, 1
      %p100 = scmp.ne.s32.totalorder %s95, %s97
      %p101 = scmp.eq.s32.totalorder %s14, 0
      %p102 = por %p100, %p101
      %p103 = scmp.ne.s32.totalorder %s95, %s97
      %p104 = scmp.eq.s32.totalorder %s19, 1
      %p105 = por %p103, %p104
      %p106 = scmp.ne.s32.totalorder %s97, %s98
      %p107 = scmp.eq.s32.totalorder %s19, 0
      %p108 = por %p106, %p107
      %p109 = scmp.ne.s32.totalorder %s97, %s98
      %p110 = scmp.eq.s32.totalorder %s20, 1
      %p111 = por %p109, %p110
      %p113 = scmp.ne.s32.totalorder %s98, %s112
      %p114 = scmp.eq.s32.totalorder %s20, 0
      %p115 = por %p113, %p114
      %s117 = sadd.s32 %s116, 1
      %p120 = scmp.eq.s32.totalorder %s14, 1
      %p121 = scmp.ne.s32.totalorder %s116, %s118
      %p122 = scmp.eq.s32.totalorder %s14, 0
      %p123 = por %p121, %p122
      %p124 = scmp.ne.s32.totalorder %s116, %s118
      %p125 = scmp.eq.s32.totalorder %s19, 1
      %p126 = por %p124, %p125
      %p127 = scmp.ne.s32.totalorder %s118, %s119
      %p128 = scmp.eq.s32.totalorder %s19, 0
      %p129 = por %p127, %p128
      %p130 = scmp.ne.s32.totalorder %s118, %s119
      %p131 = scmp.eq.s32.totalorder %s20, 1
      %p132 = por %p130, %p131
      %p134 = scmp.ne.s32.totalorder %s119, %s133
      %p135 = scmp.eq.s32.totalorder %s20, 0
      %p136 = por %p134, %p135
      %s138 = sadd.s32 %s137, 1
      %p141 = scmp.eq.s32.totalorder %s14, 1
      %p142 = scmp.ne.s32.totalorder %s137, %s139
      %p143 = scmp.eq.s32.totalorder %s14, 0
      %p144 = por %p142, %p143
      %p145 = scmp.ne.s32.totalorder %s137, %s139
      %p146 = scmp.eq.s32.totalorder %s19, 1
      %p147 = por %p145, %p146
      %p148 = scmp.ne.s32.totalorder %s139, %s140
      %p149 = scmp.eq.s32.totalorder %s19, 0
      %p150 = por %p148, %p149
      %p151 = scmp.ne.s32.totalorder %s139, %s140
      %p152 = scmp.eq.s32.totalorder %s20, 1
      %p153 = por %p151, %p152
      %p155 = scmp.ne.s32.totalorder %s140, %s154
      %p156 = scmp.eq.s32.totalorder %s20, 0
      %p157 = por %p155, %p156
      %s159 = sadd.s32 %s158, 1
      %p162 = scmp.eq.s32.totalorder %s14, 1
      %p163 = scmp.ne.s32.totalorder %s158, %s160
      %p164 = scmp.eq.s32.totalorder %s14, 0
      %p165 = por %p163, %p164
      %p166 = scmp.ne.s32.totalorder %s158, %s160
      %p167 = scmp.eq.s32.totalorder %s19, 1
      %p168 = por %p166, %p167
      %p169 = scmp.ne.s32.totalorder %s160, %s161
      %p170 = scmp.eq.s32.totalorder %s19, 0
      %p171 = por %p169, %p170
      %p172 = scmp.ne.s32.totalorder %s160, %s161
      %p173 = scmp.eq.s32.totalorder %s20, 1
      %p174 = por %p172, %p173
      %p176 = scmp.ne.s32.totalorder %s161, %s175
      %p177 = scmp.eq.s32.totalorder %s20, 0
      %p178 = por %p176, %p177
      %s179 = ssub.s32 %s14, %s21
      %p180 = scmp.eq.s32.totalorder %s179, 0
      %s182 = sadd.s32 %s181, 1
      %s183 = scalar_select %p180, %s181, %s182
      %p186 = pneg %p180
      %p187 = scmp.eq.s32.totalorder %s14, 1
      %p188 = por %p186, %p187
      %p189 = scmp.ne.s32.totalorder %s181, %s184
      %p190 = scmp.eq.s32.totalorder %s14, 0
      %p191 = por %p189, %p190
      %p192 = scmp.ne.s32.totalorder %s181, %s184
      %p193 = scmp.eq.s32.totalorder %s19, 1
      %p194 = por %p192, %p193
      %p195 = scmp.ne.s32.totalorder %s184, %s185
      %p196 = scmp.eq.s32.totalorder %s19, 0
      %p197 = por %p195, %p196
      %p198 = scmp.ne.s32.totalorder %s184, %s185
      %p199 = scmp.eq.s32.totalorder %s20, 1
      %p200 = por %p198, %p199
      %p202 = scmp.ne.s32.totalorder %s185, %s201
      %p203 = scmp.eq.s32.totalorder %s20, 0
      %p204 = por %p202, %p203
      %p205 = scmp.le.s32.totalorder 1, %s14
      %p206 = scmp.lt.s32.totalorder %s14, 3
      %p207 = pnand %p205, %p206
      %p208 = pneg %p207
      // Predicated region
      $region9: #{bifpn_layer_forward.11} parent=5 // pred_check
        _
      $region10: #{bifpn_layer_forward.11} parent=5 // pred_check_branch
        %210 = sbr.rel (%p207) target = $region12
      $region11: #{bifpn_layer_forward.11} parent=5 // pred_region
        %s211 = ssub.s32 %s14, 1
        // Predicated region
        $region13: #{bifpn_layer_forward.11} parent=11 // pred_check
          %p212 = pneg %p35
        $region14: #{bifpn_layer_forward.11} parent=11 // pred_check_branch
          %214 = sbr.rel (%p212) target = $region16
        $region15: #{bifpn_layer_forward.11} parent=11 // pred_region
          %216 = vsyncadd [#allocation3], 0
          %s218 = sshll.u32 %s0, 4
          %s219 = int_to_ptr.vmem [resolvable:$true] %s218
          %221 = dma.vmem_to_smem %s219, 16, [#allocation2], [#allocation3]
        $region16: #{bifpn_layer_forward.11} parent=11 // pred_fallthru
          _
        // Predicated region
        $region17: #{bifpn_layer_forward.11} parent=11 // pred_check
          %p222 = pneg %p108
        $region18: #{bifpn_layer_forward.11} parent=11 // pred_check_branch
          %224 = sbr.rel (%p222) target = $region20
        $region19: #{bifpn_layer_forward.11} parent=11 // pred_region
          _
        $region20: #{bifpn_layer_forward.11} parent=11 // pred_fallthru
          _
        // Predicated region
        $region21: #{bifpn_layer_forward.11} parent=11 // pred_check
          %p225 = pneg %p129
        $region22: #{bifpn_layer_forward.11} parent=11 // pred_check_branch
          %227 = sbr.rel (%p225) target = $region24
        $region23: #{bifpn_layer_forward.11} parent=11 // pred_region
          _
        $region24: #{bifpn_layer_forward.11} parent=11 // pred_fallthru
          _
        // Predicated region
        $region25: #{bifpn_layer_forward.11} parent=11 // pred_check
          %p228 = pneg %p150
        $region26: #{bifpn_layer_forward.11} parent=11 // pred_check_branch
          %230 = sbr.rel (%p228) target = $region28
        $region27: #{bifpn_layer_forward.11} parent=11 // pred_region
          _
        $region28: #{bifpn_layer_forward.11} parent=11 // pred_fallthru
          _
        // Predicated region
        $region29: #{bifpn_layer_forward.11} parent=11 // pred_check
          %p231 = pneg %p171
        $region30: #{bifpn_layer_forward.11} parent=11 // pred_check_branch
          %233 = sbr.rel (%p231) target = $region32
        $region31: #{bifpn_layer_forward.11} parent=11 // pred_region
          _
        $region32: #{bifpn_layer_forward.11} parent=11 // pred_fallthru
          _
      $region12: #{bifpn_layer_forward.11} parent=5 // pred_fallthru
        _
      %p234 = scmp.lt.s32.totalorder %s14, 2
      // Predicated region
      $region33: #{bifpn_layer_forward.11} parent=5 // pred_check
        %p235 = pneg %p234
      $region34: #{bifpn_layer_forward.11} parent=5 // pred_check_branch
        %237 = sbr.rel (%p235) target = $region36
      $region35: #{bifpn_layer_forward.11} parent=5 // pred_region
        // Predicated region
        $region37: #{bifpn_layer_forward.11} parent=35 // pred_check
          %p238 = pneg %p55
        $region38: #{bifpn_layer_forward.11} parent=35 // pred_check_branch
          %240 = sbr.rel (%p238) target = $region40
        $region39: #{bifpn_layer_forward.11} parent=35 // pred_region
          %p241 = scmp.lt.s32.totalorder %s14, 1
          %s242 = scalar_select %p241, %s14, 1
          %s243 = smul.addr %s242, 8
          %s244 = smul.addr %s243, 8
          %s245 = scalar_lea.vmem %s1, %s244
        $region40: #{bifpn_layer_forward.11} parent=35 // pred_fallthru
          _
        // Predicated region
        $region41: #{bifpn_layer_forward.11} parent=35 // pred_check
          %p246 = pneg %p81
        $region42: #{bifpn_layer_forward.11} parent=35 // pred_check_branch
          %248 = sbr.rel (%p246) target = $region44
        $region43: #{bifpn_layer_forward.11} parent=35 // pred_region
          %p249 = scmp.lt.s32.totalorder %s14, 1
          %s250 = scalar_select %p249, %s14, 1
          %s251 = smul.addr %s250, 8
          %s252 = smul.addr %s251, 8
          %s253 = scalar_lea.vmem %s2, %s252
        $region44: #{bifpn_layer_forward.11} parent=35 // pred_fallthru
          _
      $region36: #{bifpn_layer_forward.11} parent=5 // pred_fallthru
        _
      %p254 = scmp.le.s32.totalorder 1, %s14
      %p255 = scmp.lt.s32.totalorder %s14, 3
      %p256 = pnand %p254, %p255
      %p257 = pneg %p256
      // Predicated region
      $region45: #{bifpn_layer_forward.11} parent=5 // pred_check
        _
      $region46: #{bifpn_layer_forward.11} parent=5 // pred_check_branch
        %259 = sbr.rel (%p256) target = $region48
      $region47: #{bifpn_layer_forward.11} parent=5 // pred_region
        %s260 = ssub.s32 %s14, 1
        // Predicated region
        $region49: #{bifpn_layer_forward.11} parent=47 // pred_check
          %p261 = pneg %p35
        $region50: #{bifpn_layer_forward.11} parent=47 // pred_check_branch
          %263 = sbr.rel (%p261) target = $region52
        $region51: #{bifpn_layer_forward.11} parent=47 // pred_region
          %265 = dma.done [#allocation3], 16
        $region52: #{bifpn_layer_forward.11} parent=47 // pred_fallthru
          _
        %266 = sfence
        %p267 = pneg %p35
        %p268 = pneg %p32
        %p269 = scmp.lt.s32.totalorder %s19, 1
        %s270 = scalar_select %p269, %s19, 1
        %s271 = smul.addr %s270, 8
        %s272 = smul.addr %s271, 8
        %s273 = scalar_lea.vmem %s1, %s272
        %p274 = pneg %p61
        %p275 = pneg %p58
        %p276 = scmp.lt.s32.totalorder %s19, 1
        %s277 = scalar_select %p276, %s19, 1
        %s278 = smul.addr %s277, 8
        %s279 = smul.addr %s278, 8
        %s280 = scalar_lea.vmem %s2, %s279
        %p281 = pneg %p87
        %p282 = pneg %p84
        %p283 = pneg %p108
        %p284 = pneg %p105
        %p285 = pneg %p129
        %p286 = pneg %p126
        %p287 = pneg %p150
        %p288 = pneg %p147
        %p289 = pneg %p171
        %p290 = pneg %p168
        %p291 = pneg %p197
        %p292 = pneg %p194
        %p293 = scmp.lt.s32.totalorder %s19, 1
        %s294 = scalar_select %p293, %s19, 1
        %s295 = smul.addr %s294, 8
        %s296 = smul.addr %s295, 8
        %s297 = scalar_lea.vmem %s7, %s296
        %p298 = scmp.lt.s32.totalorder %s19, 1
        %s299 = scalar_select %p298, %s19, 1
        %s300 = smul.addr %s299, 8
        %s301 = smul.addr %s300, 8
        %s302 = scalar_lea.vmem %s1, %s301
        %p303 = scmp.lt.s32.totalorder %s19, 1
        %s304 = scalar_select %p303, %s19, 1
        %s305 = smul.addr %s304, 8
        %s306 = smul.addr %s305, 8
        %s307 = scalar_lea.vmem %s2, %s306
        %p308 = scmp.lt.s32.totalorder %s19, 1
        %s309 = scalar_select %p308, %s19, 1
        %s310 = smul.addr %s309, 8
        %s311 = smul.addr %s310, 8
        %s312 = scalar_lea.vmem %s7, %s311
        %s313 = sld [smem:[#allocation2]]
        %v314 = vld [vmem:[%s302] sm:$0xff]
        %v315 = vld [vmem:[%s302 + $0x8] sm:$0xff]
        %v316 = vld [vmem:[%s302 + $0x10] sm:$0xff]
        %v317 = vld [vmem:[%s302 + $0x18] sm:$0xff]
        %v318 = vld [vmem:[%s302 + $0x20] sm:$0xff]
        %v319 = vld [vmem:[%s302 + $0x28] sm:$0xff]
        %v320 = vld [vmem:[%s302 + $0x30] sm:$0xff]
        %v321 = vld [vmem:[%s302 + $0x38] sm:$0xff]
        %v322 = vstv %s313
        %v323 = vmul.f32 %v322, %v314
        %v324 = vmul.f32 %v322, %v315
        %v325 = vmul.f32 %v322, %v316
        %v326 = vmul.f32 %v322, %v317
        %v327 = vmul.f32 %v322, %v318
        %v328 = vmul.f32 %v322, %v319
        %v329 = vmul.f32 %v322, %v320
        %v330 = vmul.f32 %v322, %v321
        %s331 = sld [smem:[#allocation2 + $0x1]]
        %v332 = vld [vmem:[%s307] sm:$0xff]
        %v333 = vld [vmem:[%s307 + $0x8] sm:$0xff]
        %v334 = vld [vmem:[%s307 + $0x10] sm:$0xff]
        %v335 = vld [vmem:[%s307 + $0x18] sm:$0xff]
        %v336 = vld [vmem:[%s307 + $0x20] sm:$0xff]
        %v337 = vld [vmem:[%s307 + $0x28] sm:$0xff]
        %v338 = vld [vmem:[%s307 + $0x30] sm:$0xff]
        %v339 = vld [vmem:[%s307 + $0x38] sm:$0xff]
        %v340 = vstv %s331
        %v341 = vmul.f32 %v340, %v332
        %v342 = vmul.f32 %v340, %v333
        %v343 = vmul.f32 %v340, %v334
        %v344 = vmul.f32 %v340, %v335
        %v345 = vmul.f32 %v340, %v336
        %v346 = vmul.f32 %v340, %v337
        %v347 = vmul.f32 %v340, %v338
        %v348 = vmul.f32 %v340, %v339
        %v349 = vadd.f32 %v323, %v341
        %v350 = vadd.f32 %v324, %v342
        %v351 = vadd.f32 %v325, %v343
        %v352 = vadd.f32 %v326, %v344
        %v353 = vadd.f32 %v327, %v345
        %v354 = vadd.f32 %v328, %v346
        %v355 = vadd.f32 %v329, %v347
        %v356 = vadd.f32 %v330, %v348
        %v357 = vxor.u32 %v349, 2147483648
        %v358 = vxor.u32 %v350, 2147483648
        %v359 = vxor.u32 %v351, 2147483648
        %v360 = vxor.u32 %v352, 2147483648
        %v361 = vxor.u32 %v353, 2147483648
        %v362 = vxor.u32 %v354, 2147483648
        %v363 = vxor.u32 %v355, 2147483648
        %v364 = vxor.u32 %v356, 2147483648
        %v365 = vmul.f32 %v357, 1.442695
        %v366 = vpow.pop %v365
        %v367 = vmul.f32 %v358, 1.442695
        %v368 = vpow.pop %v367
        %v369 = vmul.f32 %v359, 1.442695
        %v370 = vpow.pop %v369
        %v371 = vmul.f32 %v360, 1.442695
        %v372 = vpow.pop %v371
        %v373 = vmul.f32 %v361, 1.442695
        %v374 = vpow.pop %v373
        %v375 = vmul.f32 %v362, 1.442695
        %v376 = vpow.pop %v375
        %v377 = vmul.f32 %v363, 1.442695
        %v378 = vpow.pop %v377
        %v379 = vmul.f32 %v364, 1.442695
        %v380 = vpow.pop %v379
        %v381 = vadd.f32 %v366, 1.0
        %v382 = vadd.f32 %v368, 1.0
        %v383 = vadd.f32 %v370, 1.0
        %v384 = vadd.f32 %v372, 1.0
        %v385 = vadd.f32 %v374, 1.0
        %v386 = vadd.f32 %v376, 1.0
        %v387 = vadd.f32 %v378, 1.0
        %v388 = vadd.f32 %v380, 1.0
        %v389 = vrcp.pop %v381
        %v390 = vmul.f32 %v381, %v389
        %v391 = vsub.f32 1.0, %v390
        %v392 = vmul.f32 %v389, %v391
        %v393 = vadd.f32 %v389, %v392
        %vm394 = vweird.f32 %v381
        %vm395 = vweird.f32 %v389
        %vm396 = vmor %vm394, %vm395
        %v397 = vsel %vm396, %v389, %v393
        %v398 = vand.u32 2147483647, %v381
        %vm399 = vcmp.eq.f32.partialorder %v398, 8.507059e+37
        %v400 = vand.u32 %v381, 2147483648
        %v401 = vor.u32 1.1754944e-38, %v400
        %v402 = vsel %vm399, %v401, %v397
        %v403 = vmul.f32 1.0, %v402
        %v404 = vrcp.pop %v382
        %v405 = vmul.f32 %v382, %v404
        %v406 = vsub.f32 1.0, %v405
        %v407 = vmul.f32 %v404, %v406
        %v408 = vadd.f32 %v404, %v407
        %vm409 = vweird.f32 %v382
        %vm410 = vweird.f32 %v404
        %vm411 = vmor %vm409, %vm410
        %v412 = vsel %vm411, %v404, %v408
        %v413 = vand.u32 2147483647, %v382
        %vm414 = vcmp.eq.f32.partialorder %v413, 8.507059e+37
        %v415 = vand.u32 %v382, 2147483648
        %v416 = vor.u32 1.1754944e-38, %v415
        %v417 = vsel %vm414, %v416, %v412
        %v418 = vmul.f32 1.0, %v417
        %v419 = vrcp.pop %v383
        %v420 = vmul.f32 %v383, %v419
        %v421 = vsub.f32 1.0, %v420
        %v422 = vmul.f32 %v419, %v421
        %v423 = vadd.f32 %v419, %v422
        %vm424 = vweird.f32 %v383
        %vm425 = vweird.f32 %v419
        %vm426 = vmor %vm424, %vm425
        %v427 = vsel %vm426, %v419, %v423
        %v428 = vand.u32 2147483647, %v383
        %vm429 = vcmp.eq.f32.partialorder %v428, 8.507059e+37
        %v430 = vand.u32 %v383, 2147483648
        %v431 = vor.u32 1.1754944e-38, %v430
        %v432 = vsel %vm429, %v431, %v427
        %v433 = vmul.f32 1.0, %v432
        %v434 = vrcp.pop %v384
        %v435 = vmul.f32 %v384, %v434
        %v436 = vsub.f32 1.0, %v435
        %v437 = vmul.f32 %v434, %v436
        %v438 = vadd.f32 %v434, %v437
        %vm439 = vweird.f32 %v384
        %vm440 = vweird.f32 %v434
        %vm441 = vmor %vm439, %vm440
        %v442 = vsel %vm441, %v434, %v438
        %v443 = vand.u32 2147483647, %v384
        %vm444 = vcmp.eq.f32.partialorder %v443, 8.507059e+37
        %v445 = vand.u32 %v384, 2147483648
        %v446 = vor.u32 1.1754944e-38, %v445
        %v447 = vsel %vm444, %v446, %v442
        %v448 = vmul.f32 1.0, %v447
        %v449 = vrcp.pop %v385
        %v450 = vmul.f32 %v385, %v449
        %v451 = vsub.f32 1.0, %v450
        %v452 = vmul.f32 %v449, %v451
        %v453 = vadd.f32 %v449, %v452
        %vm454 = vweird.f32 %v385
        %vm455 = vweird.f32 %v449
        %vm456 = vmor %vm454, %vm455
        %v457 = vsel %vm456, %v449, %v453
        %v458 = vand.u32 2147483647, %v385
        %vm459 = vcmp.eq.f32.partialorder %v458, 8.507059e+37
        %v460 = vand.u32 %v385, 2147483648
        %v461 = vor.u32 1.1754944e-38, %v460
        %v462 = vsel %vm459, %v461, %v457
        %v463 = vmul.f32 1.0, %v462
        %v464 = vrcp.pop %v386
        %v465 = vmul.f32 %v386, %v464
        %v466 = vsub.f32 1.0, %v465
        %v467 = vmul.f32 %v464, %v466
        %v468 = vadd.f32 %v464, %v467
        %vm469 = vweird.f32 %v386
        %vm470 = vweird.f32 %v464
        %vm471 = vmor %vm469, %vm470
        %v472 = vsel %vm471, %v464, %v468
        %v473 = vand.u32 2147483647, %v386
        %vm474 = vcmp.eq.f32.partialorder %v473, 8.507059e+37
        %v475 = vand.u32 %v386, 2147483648
        %v476 = vor.u32 1.1754944e-38, %v475
        %v477 = vsel %vm474, %v476, %v472
        %v478 = vmul.f32 1.0, %v477
        %v479 = vrcp.pop %v387
        %v480 = vmul.f32 %v387, %v479
        %v481 = vsub.f32 1.0, %v480
        %v482 = vmul.f32 %v479, %v481
        %v483 = vadd.f32 %v479, %v482
        %vm484 = vweird.f32 %v387
        %vm485 = vweird.f32 %v479
        %vm486 = vmor %vm484, %vm485
        %v487 = vsel %vm486, %v479, %v483
        %v488 = vand.u32 2147483647, %v387
        %vm489 = vcmp.eq.f32.partialorder %v488, 8.507059e+37
        %v490 = vand.u32 %v387, 2147483648
        %v491 = vor.u32 1.1754944e-38, %v490
        %v492 = vsel %vm489, %v491, %v487
        %v493 = vmul.f32 1.0, %v492
        %v494 = vrcp.pop %v388
        %v495 = vmul.f32 %v388, %v494
        %v496 = vsub.f32 1.0, %v495
        %v497 = vmul.f32 %v494, %v496
        %v498 = vadd.f32 %v494, %v497
        %vm499 = vweird.f32 %v388
        %vm500 = vweird.f32 %v494
        %vm501 = vmor %vm499, %vm500
        %v502 = vsel %vm501, %v494, %v498
        %v503 = vand.u32 2147483647, %v388
        %vm504 = vcmp.eq.f32.partialorder %v503, 8.507059e+37
        %v505 = vand.u32 %v388, 2147483648
        %v506 = vor.u32 1.1754944e-38, %v505
        %v507 = vsel %vm504, %v506, %v502
        %v508 = vmul.f32 1.0, %v507
        %v509 = vmul.f32 %v349, %v403
        %v510 = vmul.f32 %v350, %v418
        %v511 = vmul.f32 %v351, %v433
        %v512 = vmul.f32 %v352, %v448
        %v513 = vmul.f32 %v353, %v463
        %v514 = vmul.f32 %v354, %v478
        %v515 = vmul.f32 %v355, %v493
        %v516 = vmul.f32 %v356, %v508
        %v517 = vlaneseq
        %v518 = vand.u32 %v517, 127
        %v519 = vadd.s32 %v518, 128
        %v520 = vadd.s32 %v518, 256
        %v521 = vadd.s32 %v518, 384
        %v522 = vadd.s32 %v518, 512
        %v523 = vadd.s32 %v518, 640
        %v524 = vadd.s32 %v518, 768
        %v525 = vadd.s32 %v518, 896
        %v526 = vld [vmem:[%s3] sm:$0xff]
        %vm527 = vcmp.ge.s32.totalorder %v518, 32
        %vm528 = vcmp.ge.s32.totalorder %v519, 32
        %vm529 = vcmp.ge.s32.totalorder %v520, 32
        %vm530 = vcmp.ge.s32.totalorder %v521, 32
        %vm531 = vcmp.ge.s32.totalorder %v522, 32
        %vm532 = vcmp.ge.s32.totalorder %v523, 32
        %vm533 = vcmp.ge.s32.totalorder %v524, 32
        %vm534 = vcmp.ge.s32.totalorder %v525, 32
        %vm535 = vcmp.lt.s32.totalorder %v518, 992
        %vm536 = vcmp.lt.s32.totalorder %v519, 992
        %vm537 = vcmp.lt.s32.totalorder %v520, 992
        %vm538 = vcmp.lt.s32.totalorder %v521, 992
        %vm539 = vcmp.lt.s32.totalorder %v522, 992
        %vm540 = vcmp.lt.s32.totalorder %v523, 992
        %vm541 = vcmp.lt.s32.totalorder %v524, 992
        %vm542 = vcmp.lt.s32.totalorder %v525, 992
        %vm543 = vcmp.ge.s32.totalorder %v526, 1
        %vm544 = vcmp.le.s32.totalorder %v526, 30
        %v545 = vld [vmem:[%s4] sm:$0xff]
        %547 = vrot.lane.b32.xlu0 %v516, 33
        %v548 = vpop.permute.xlu0 %547
        %557 = vrot.lane.b32.xlu0 %v509, 33
        %v558 = vpop.permute.xlu0 %557
        %559 = vrot.lane.b32.xlu0 %v510, 33
        %v560 = vpop.permute.xlu0 %559
        %561 = vrot.lane.b32.xlu0 %v511, 33
        %v562 = vpop.permute.xlu0 %561
        %563 = vrot.lane.b32.xlu0 %v512, 33
        %v564 = vpop.permute.xlu0 %563
        %565 = vrot.lane.b32.xlu0 %v513, 33
        %v566 = vpop.permute.xlu0 %565
        %567 = vrot.lane.b32.xlu0 %v514, 33
        %v568 = vpop.permute.xlu0 %567
        %569 = vrot.lane.b32.xlu0 %v515, 33
        %v570 = vpop.permute.xlu0 %569
        %vm571 = vcmask 269312
        %v572 = vsel %vm571, %v558, %v560
        %v573 = vsel %vm571, %v560, %v562
        %v574 = vsel %vm571, %v562, %v564
        %v575 = vsel %vm571, %v564, %v566
        %v576 = vsel %vm571, %v566, %v568
        %v577 = vsel %vm571, %v568, %v570
        %v578 = vsel %vm571, %v570, %v548
        %v587 = vsel %vm571, %v548, %v558
        %v588 = vsel %vm543, 1, 0
        %v589 = vperm.slane %v588, 0
        %v590 = vperm.slane %v588, 1
        %v591 = vperm.slane %v588, 2
        %v592 = vperm.slane %v588, 3
        %v593 = vperm.slane %v588, 4
        %v594 = vperm.slane %v588, 5
        %v595 = vperm.slane %v588, 6
        %v596 = vperm.slane %v588, 7
        %vm597 = vcmp.ne.s32.totalorder %v589, 0
        %vm598 = vcmp.ne.s32.totalorder %v590, 0
        %vm599 = vcmp.ne.s32.totalorder %v591, 0
        %vm600 = vcmp.ne.s32.totalorder %v592, 0
        %vm601 = vcmp.ne.s32.totalorder %v593, 0
        %vm602 = vcmp.ne.s32.totalorder %v594, 0
        %vm603 = vcmp.ne.s32.totalorder %v595, 0
        %vm604 = vcmp.ne.s32.totalorder %v596, 0
        %vm605 = vmand %vm527, %vm597
        %vm606 = vmand %vm528, %vm598
        %vm607 = vmand %vm529, %vm599
        %vm608 = vmand %vm530, %vm600
        %vm609 = vmand %vm531, %vm601
        %vm610 = vmand %vm532, %vm602
        %vm611 = vmand %vm533, %vm603
        %vm612 = vmand %vm534, %vm604
        %v613 = vsel %vm605, 1, 0
        %v614 = vsel %vm606, 1, 0
        %v615 = vsel %vm607, 1, 0
        %v616 = vsel %vm608, 1, 0
        %v617 = vsel %vm609, 1, 0
        %v618 = vsel %vm610, 1, 0
        %v619 = vsel %vm611, 1, 0
        %v620 = vsel %vm612, 1, 0
        %v621 = vperm.slane %v613, 0
        %v622 = vperm.slane %v614, 0
        %v623 = vperm.slane %v615, 0
        %v624 = vperm.slane %v616, 0
        %v625 = vperm.slane %v617, 0
        %v626 = vperm.slane %v618, 0
        %v627 = vperm.slane %v619, 0
        %v628 = vperm.slane %v620, 0
        %vm629 = vcmp.eq.s32.totalorder %v621, 1
        %vm630 = vcmp.eq.s32.totalorder %v622, 1
        %vm631 = vcmp.eq.s32.totalorder %v623, 1
        %vm632 = vcmp.eq.s32.totalorder %v624, 1
        %vm633 = vcmp.eq.s32.totalorder %v625, 1
        %vm634 = vcmp.eq.s32.totalorder %v626, 1
        %vm635 = vcmp.eq.s32.totalorder %v627, 1
        %vm636 = vcmp.eq.s32.totalorder %v628, 1
        %v637 = vsel %vm629, %v587, 0.0
        %v638 = vsel %vm630, %v572, 0.0
        %v639 = vsel %vm631, %v573, 0.0
        %v640 = vsel %vm632, %v574, 0.0
        %v641 = vsel %vm633, %v575, 0.0
        %v642 = vsel %vm634, %v576, 0.0
        %v643 = vsel %vm635, %v577, 0.0
        %v644 = vsel %vm636, %v578, 0.0
        %646 = vset.pattern.permute.xlu0 0
        %647 = vperm.xlu0 %646, %v545
        %v648 = vpop.permute.xlu0 %647
        %v650 = vmul.f32 %v637, %v648
        %v651 = vmul.f32 %v638, %v648
        %v652 = vmul.f32 %v639, %v648
        %v653 = vmul.f32 %v640, %v648
        %v654 = vmul.f32 %v641, %v648
        %v655 = vmul.f32 %v642, %v648
        %v656 = vmul.f32 %v643, %v648
        %v657 = vmul.f32 %v644, %v648
        %v658 = vadd.f32 %v650, 0.0
        %v659 = vadd.f32 %v651, 0.0
        %v660 = vadd.f32 %v652, 0.0
        %v661 = vadd.f32 %v653, 0.0
        %v662 = vadd.f32 %v654, 0.0
        %v663 = vadd.f32 %v655, 0.0
        %v664 = vadd.f32 %v656, 0.0
        %v665 = vadd.f32 %v657, 0.0
        %666 = vrot.lane.b32.xlu0 %v516, 32
        %v667 = vpop.permute.xlu0 %666
        %669 = vrot.lane.b32.xlu0 %v509, 32
        %v670 = vpop.permute.xlu0 %669
        %671 = vrot.lane.b32.xlu0 %v510, 32
        %v672 = vpop.permute.xlu0 %671
        %673 = vrot.lane.b32.xlu0 %v511, 32
        %v674 = vpop.permute.xlu0 %673
        %675 = vrot.lane.b32.xlu0 %v512, 32
        %v676 = vpop.permute.xlu0 %675
        %677 = vrot.lane.b32.xlu0 %v513, 32
        %v678 = vpop.permute.xlu0 %677
        %679 = vrot.lane.b32.xlu0 %v514, 32
        %v680 = vpop.permute.xlu0 %679
        %681 = vrot.lane.b32.xlu0 %v515, 32
        %v682 = vpop.permute.xlu0 %681
        %vm683 = vcmask 261120
        %v684 = vsel %vm683, %v670, %v672
        %v685 = vsel %vm683, %v672, %v674
        %v686 = vsel %vm683, %v674, %v676
        %v687 = vsel %vm683, %v676, %v678
        %v688 = vsel %vm683, %v678, %v680
        %v689 = vsel %vm683, %v680, %v682
        %v690 = vsel %vm683, %v682, %v667
        %v699 = vsel %vm683, %v667, %v670
        %v700 = vsel %vm527, 1, 0
        %v701 = vsel %vm528, 1, 0
        %v702 = vsel %vm529, 1, 0
        %v703 = vsel %vm530, 1, 0
        %v704 = vsel %vm531, 1, 0
        %v705 = vsel %vm532, 1, 0
        %v706 = vsel %vm533, 1, 0
        %v707 = vsel %vm534, 1, 0
        %vm708 = vcmp.eq.s32.totalorder %v700, 1
        %vm709 = vcmp.eq.s32.totalorder %v701, 1
        %vm710 = vcmp.eq.s32.totalorder %v702, 1
        %vm711 = vcmp.eq.s32.totalorder %v703, 1
        %vm712 = vcmp.eq.s32.totalorder %v704, 1
        %vm713 = vcmp.eq.s32.totalorder %v705, 1
        %vm714 = vcmp.eq.s32.totalorder %v706, 1
        %vm715 = vcmp.eq.s32.totalorder %v707, 1
        %v716 = vsel %vm708, %v699, 0.0
        %v717 = vsel %vm709, %v684, 0.0
        %v718 = vsel %vm710, %v685, 0.0
        %v719 = vsel %vm711, %v686, 0.0
        %v720 = vsel %vm712, %v687, 0.0
        %v721 = vsel %vm713, %v688, 0.0
        %v722 = vsel %vm714, %v689, 0.0
        %v723 = vsel %vm715, %v690, 0.0
        %724 = vset.pattern.permute.xlu0 1
        %725 = vperm.xlu0 %724, %v545
        %v726 = vpop.permute.xlu0 %725
        %v728 = vmul.f32 %v716, %v726
        %v729 = vmul.f32 %v717, %v726
        %v730 = vmul.f32 %v718, %v726
        %v731 = vmul.f32 %v719, %v726
        %v732 = vmul.f32 %v720, %v726
        %v733 = vmul.f32 %v721, %v726
        %v734 = vmul.f32 %v722, %v726
        %v735 = vmul.f32 %v723, %v726
        %v736 = vadd.f32 %v658, %v728
        %v737 = vadd.f32 %v659, %v729
        %v738 = vadd.f32 %v660, %v730
        %v739 = vadd.f32 %v661, %v731
        %v740 = vadd.f32 %v662, %v732
        %v741 = vadd.f32 %v663, %v733
        %v742 = vadd.f32 %v664, %v734
        %v743 = vadd.f32 %v665, %v735
        %744 = vrot.lane.b32.xlu0 %v516, 31
        %v745 = vpop.permute.xlu0 %744
        %747 = vrot.lane.b32.xlu0 %v509, 31
        %v748 = vpop.permute.xlu0 %747
        %749 = vrot.lane.b32.xlu0 %v510, 31
        %v750 = vpop.permute.xlu0 %749
        %751 = vrot.lane.b32.xlu0 %v511, 31
        %v752 = vpop.permute.xlu0 %751
        %753 = vrot.lane.b32.xlu0 %v512, 31
        %v754 = vpop.permute.xlu0 %753
        %755 = vrot.lane.b32.xlu0 %v513, 31
        %v756 = vpop.permute.xlu0 %755
        %757 = vrot.lane.b32.xlu0 %v514, 31
        %v758 = vpop.permute.xlu0 %757
        %759 = vrot.lane.b32.xlu0 %v515, 31
        %v760 = vpop.permute.xlu0 %759
        %vm761 = vcmask 252928
        %v762 = vsel %vm761, %v748, %v750
        %v763 = vsel %vm761, %v750, %v752
        %v764 = vsel %vm761, %v752, %v754
        %v765 = vsel %vm761, %v754, %v756
        %v766 = vsel %vm761, %v756, %v758
        %v767 = vsel %vm761, %v758, %v760
        %v768 = vsel %vm761, %v760, %v745
        %v777 = vsel %vm761, %v745, %v748
        %v778 = vsel %vm544, 1, 0
        %v779 = vperm.slane %v778, 0
        %v780 = vperm.slane %v778, 1
        %v781 = vperm.slane %v778, 2
        %v782 = vperm.slane %v778, 3
        %v783 = vperm.slane %v778, 4
        %v784 = vperm.slane %v778, 5
        %v785 = vperm.slane %v778, 6
        %v786 = vperm.slane %v778, 7
        %vm787 = vcmp.ne.s32.totalorder %v779, 0
        %vm788 = vcmp.ne.s32.totalorder %v780, 0
        %vm789 = vcmp.ne.s32.totalorder %v781, 0
        %vm790 = vcmp.ne.s32.totalorder %v782, 0
        %vm791 = vcmp.ne.s32.totalorder %v783, 0
        %vm792 = vcmp.ne.s32.totalorder %v784, 0
        %vm793 = vcmp.ne.s32.totalorder %v785, 0
        %vm794 = vcmp.ne.s32.totalorder %v786, 0
        %vm795 = vmand %vm527, %vm787
        %vm796 = vmand %vm528, %vm788
        %vm797 = vmand %vm529, %vm789
        %vm798 = vmand %vm530, %vm790
        %vm799 = vmand %vm531, %vm791
        %vm800 = vmand %vm532, %vm792
        %vm801 = vmand %vm533, %vm793
        %vm802 = vmand %vm534, %vm794
        %v803 = vsel %vm795, 1, 0
        %v804 = vsel %vm796, 1, 0
        %v805 = vsel %vm797, 1, 0
        %v806 = vsel %vm798, 1, 0
        %v807 = vsel %vm799, 1, 0
        %v808 = vsel %vm800, 1, 0
        %v809 = vsel %vm801, 1, 0
        %v810 = vsel %vm802, 1, 0
        %v811 = vperm.slane %v803, 0
        %v812 = vperm.slane %v804, 0
        %v813 = vperm.slane %v805, 0
        %v814 = vperm.slane %v806, 0
        %v815 = vperm.slane %v807, 0
        %v816 = vperm.slane %v808, 0
        %v817 = vperm.slane %v809, 0
        %v818 = vperm.slane %v810, 0
        %vm819 = vcmp.eq.s32.totalorder %v811, 1
        %vm820 = vcmp.eq.s32.totalorder %v812, 1
        %vm821 = vcmp.eq.s32.totalorder %v813, 1
        %vm822 = vcmp.eq.s32.totalorder %v814, 1
        %vm823 = vcmp.eq.s32.totalorder %v815, 1
        %vm824 = vcmp.eq.s32.totalorder %v816, 1
        %vm825 = vcmp.eq.s32.totalorder %v817, 1
        %vm826 = vcmp.eq.s32.totalorder %v818, 1
        %v827 = vsel %vm819, %v777, 0.0
        %v828 = vsel %vm820, %v762, 0.0
        %v829 = vsel %vm821, %v763, 0.0
        %v830 = vsel %vm822, %v764, 0.0
        %v831 = vsel %vm823, %v765, 0.0
        %v832 = vsel %vm824, %v766, 0.0
        %v833 = vsel %vm825, %v767, 0.0
        %v834 = vsel %vm826, %v768, 0.0
        %835 = vset.pattern.permute.xlu0 2
        %836 = vperm.xlu0 %835, %v545
        %v837 = vpop.permute.xlu0 %836
        %v839 = vmul.f32 %v827, %v837
        %v840 = vmul.f32 %v828, %v837
        %v841 = vmul.f32 %v829, %v837
        %v842 = vmul.f32 %v830, %v837
        %v843 = vmul.f32 %v831, %v837
        %v844 = vmul.f32 %v832, %v837
        %v845 = vmul.f32 %v833, %v837
        %v846 = vmul.f32 %v834, %v837
        %v847 = vadd.f32 %v736, %v839
        %v848 = vadd.f32 %v737, %v840
        %v849 = vadd.f32 %v738, %v841
        %v850 = vadd.f32 %v739, %v842
        %v851 = vadd.f32 %v740, %v843
        %v852 = vadd.f32 %v741, %v844
        %v853 = vadd.f32 %v742, %v845
        %v854 = vadd.f32 %v743, %v846
        %855 = vrot.lane.b32.xlu0 %v516, 1
        %v856 = vpop.permute.xlu0 %855
        %858 = vrot.lane.b32.xlu0 %v509, 1
        %v859 = vpop.permute.xlu0 %858
        %860 = vrot.lane.b32.xlu0 %v510, 1
        %v861 = vpop.permute.xlu0 %860
        %862 = vrot.lane.b32.xlu0 %v511, 1
        %v863 = vpop.permute.xlu0 %862
        %864 = vrot.lane.b32.xlu0 %v512, 1
        %v865 = vpop.permute.xlu0 %864
        %866 = vrot.lane.b32.xlu0 %v513, 1
        %v867 = vpop.permute.xlu0 %866
        %868 = vrot.lane.b32.xlu0 %v514, 1
        %v869 = vpop.permute.xlu0 %868
        %870 = vrot.lane.b32.xlu0 %v515, 1
        %v871 = vpop.permute.xlu0 %870
        %vm872 = vcmask 7168
        %v873 = vsel %vm872, %v859, %v861
        %v874 = vsel %vm872, %v861, %v863
        %v875 = vsel %vm872, %v863, %v865
        %v876 = vsel %vm872, %v865, %v867
        %v877 = vsel %vm872, %v867, %v869
        %v878 = vsel %vm872, %v869, %v871
        %v879 = vsel %vm872, %v871, %v856
        %v888 = vsel %vm872, %v856, %v859
        %vm889 = vcmp.eq.s32.totalorder %v589, 1
        %vm890 = vcmp.eq.s32.totalorder %v590, 1
        %vm891 = vcmp.eq.s32.totalorder %v591, 1
        %vm892 = vcmp.eq.s32.totalorder %v592, 1
        %vm893 = vcmp.eq.s32.totalorder %v593, 1
        %vm894 = vcmp.eq.s32.totalorder %v594, 1
        %vm895 = vcmp.eq.s32.totalorder %v595, 1
        %vm896 = vcmp.eq.s32.totalorder %v596, 1
        %v897 = vsel %vm889, %v888, 0.0
        %v898 = vsel %vm890, %v873, 0.0
        %v899 = vsel %vm891, %v874, 0.0
        %v900 = vsel %vm892, %v875, 0.0
        %v901 = vsel %vm893, %v876, 0.0
        %v902 = vsel %vm894, %v877, 0.0
        %v903 = vsel %vm895, %v878, 0.0
        %v904 = vsel %vm896, %v879, 0.0
        %905 = vset.pattern.permute.xlu0 3
        %906 = vperm.xlu0 %905, %v545
        %v907 = vpop.permute.xlu0 %906
        %v909 = vmul.f32 %v897, %v907
        %v910 = vmul.f32 %v898, %v907
        %v911 = vmul.f32 %v899, %v907
        %v912 = vmul.f32 %v900, %v907
        %v913 = vmul.f32 %v901, %v907
        %v914 = vmul.f32 %v902, %v907
        %v915 = vmul.f32 %v903, %v907
        %v916 = vmul.f32 %v904, %v907
        %v917 = vadd.f32 %v847, %v909
        %v918 = vadd.f32 %v848, %v910
        %v919 = vadd.f32 %v849, %v911
        %v920 = vadd.f32 %v850, %v912
        %v921 = vadd.f32 %v851, %v913
        %v922 = vadd.f32 %v852, %v914
        %v923 = vadd.f32 %v853, %v915
        %v924 = vadd.f32 %v854, %v916
        %925 = vset.pattern.permute.xlu0 4
        %926 = vperm.xlu0 %925, %v545
        %v927 = vpop.permute.xlu0 %926
        %v929 = vmul.f32 %v509, %v927
        %v930 = vmul.f32 %v510, %v927
        %v931 = vmul.f32 %v511, %v927
        %v932 = vmul.f32 %v512, %v927
        %v933 = vmul.f32 %v513, %v927
        %v934 = vmul.f32 %v514, %v927
        %v935 = vmul.f32 %v515, %v927
        %v936 = vmul.f32 %v516, %v927
        %v937 = vadd.f32 %v917, %v929
        %v938 = vadd.f32 %v918, %v930
        %v939 = vadd.f32 %v919, %v931
        %v940 = vadd.f32 %v920, %v932
        %v941 = vadd.f32 %v921, %v933
        %v942 = vadd.f32 %v922, %v934
        %v943 = vadd.f32 %v923, %v935
        %v944 = vadd.f32 %v924, %v936
        %945 = vrot.lane.b32.xlu0 %v509, 127
        %v946 = vpop.permute.xlu0 %945
        %947 = vrot.lane.b32.xlu0 %v510, 127
        %v948 = vpop.permute.xlu0 %947
        %949 = vrot.lane.b32.xlu0 %v511, 127
        %v950 = vpop.permute.xlu0 %949
        %951 = vrot.lane.b32.xlu0 %v512, 127
        %v952 = vpop.permute.xlu0 %951
        %953 = vrot.lane.b32.xlu0 %v513, 127
        %v954 = vpop.permute.xlu0 %953
        %955 = vrot.lane.b32.xlu0 %v514, 127
        %v956 = vpop.permute.xlu0 %955
        %957 = vrot.lane.b32.xlu0 %v515, 127
        %v958 = vpop.permute.xlu0 %957
        %959 = vrot.lane.b32.xlu0 %v516, 127
        %v960 = vpop.permute.xlu0 %959
        %vm961 = vcmask 1039360
        %v962 = vsel %vm961, %v946, %v948
        %v963 = vsel %vm961, %v948, %v950
        %v964 = vsel %vm961, %v950, %v952
        %v965 = vsel %vm961, %v952, %v954
        %v966 = vsel %vm961, %v954, %v956
        %v967 = vsel %vm961, %v956, %v958
        %v968 = vsel %vm961, %v958, %v960
        %v978 = vsel %vm961, %v960, %v946
        %vm979 = vcmp.eq.s32.totalorder %v779, 1
        %vm980 = vcmp.eq.s32.totalorder %v780, 1
        %vm981 = vcmp.eq.s32.totalorder %v781, 1
        %vm982 = vcmp.eq.s32.totalorder %v782, 1
        %vm983 = vcmp.eq.s32.totalorder %v783, 1
        %vm984 = vcmp.eq.s32.totalorder %v784, 1
        %vm985 = vcmp.eq.s32.totalorder %v785, 1
        %vm986 = vcmp.eq.s32.totalorder %v786, 1
        %v987 = vsel %vm979, %v962, 0.0
        %v988 = vsel %vm980, %v963, 0.0
        %v989 = vsel %vm981, %v964, 0.0
        %v990 = vsel %vm982, %v965, 0.0
        %v991 = vsel %vm983, %v966, 0.0
        %v992 = vsel %vm984, %v967, 0.0
        %v993 = vsel %vm985, %v968, 0.0
        %v994 = vsel %vm986, %v978, 0.0
        %995 = vset.pattern.permute.xlu0 5
        %996 = vperm.xlu0 %995, %v545
        %v997 = vpop.permute.xlu0 %996
        %v999 = vmul.f32 %v987, %v997
        %v1000 = vmul.f32 %v988, %v997
        %v1001 = vmul.f32 %v989, %v997
        %v1002 = vmul.f32 %v990, %v997
        %v1003 = vmul.f32 %v991, %v997
        %v1004 = vmul.f32 %v992, %v997
        %v1005 = vmul.f32 %v993, %v997
        %v1006 = vmul.f32 %v994, %v997
        %v1007 = vadd.f32 %v937, %v999
        %v1008 = vadd.f32 %v938, %v1000
        %v1009 = vadd.f32 %v939, %v1001
        %v1010 = vadd.f32 %v940, %v1002
        %v1011 = vadd.f32 %v941, %v1003
        %v1012 = vadd.f32 %v942, %v1004
        %v1013 = vadd.f32 %v943, %v1005
        %v1014 = vadd.f32 %v944, %v1006
        %1015 = vrot.lane.b32.xlu0 %v509, 97
        %v1016 = vpop.permute.xlu0 %1015
        %1017 = vrot.lane.b32.xlu0 %v510, 97
        %v1018 = vpop.permute.xlu0 %1017
        %1019 = vrot.lane.b32.xlu0 %v511, 97
        %v1020 = vpop.permute.xlu0 %1019
        %1021 = vrot.lane.b32.xlu0 %v512, 97
        %v1022 = vpop.permute.xlu0 %1021
        %1023 = vrot.lane.b32.xlu0 %v513, 97
        %v1024 = vpop.permute.xlu0 %1023
        %1025 = vrot.lane.b32.xlu0 %v514, 97
        %v1026 = vpop.permute.xlu0 %1025
        %1027 = vrot.lane.b32.xlu0 %v515, 97
        %v1028 = vpop.permute.xlu0 %1027
        %1029 = vrot.lane.b32.xlu0 %v516, 97
        %v1030 = vpop.permute.xlu0 %1029
        %vm1031 = vcmask 793600
        %v1032 = vsel %vm1031, %v1016, %v1018
        %v1033 = vsel %vm1031, %v1018, %v1020
        %v1034 = vsel %vm1031, %v1020, %v1022
        %v1035 = vsel %vm1031, %v1022, %v1024
        %v1036 = vsel %vm1031, %v1024, %v1026
        %v1037 = vsel %vm1031, %v1026, %v1028
        %v1038 = vsel %vm1031, %v1028, %v1030
        %v1048 = vsel %vm1031, %v1030, %v1016
        %vm1049 = vmand %vm535, %vm597
        %vm1050 = vmand %vm536, %vm598
        %vm1051 = vmand %vm537, %vm599
        %vm1052 = vmand %vm538, %vm600
        %vm1053 = vmand %vm539, %vm601
        %vm1054 = vmand %vm540, %vm602
        %vm1055 = vmand %vm541, %vm603
        %vm1056 = vmand %vm542, %vm604
        %v1057 = vsel %vm1049, 1, 0
        %v1058 = vsel %vm1050, 1, 0
        %v1059 = vsel %vm1051, 1, 0
        %v1060 = vsel %vm1052, 1, 0
        %v1061 = vsel %vm1053, 1, 0
        %v1062 = vsel %vm1054, 1, 0
        %v1063 = vsel %vm1055, 1, 0
        %v1064 = vsel %vm1056, 1, 0
        %v1065 = vperm.slane %v1057, 0
        %v1066 = vperm.slane %v1058, 0
        %v1067 = vperm.slane %v1059, 0
        %v1068 = vperm.slane %v1060, 0
        %v1069 = vperm.slane %v1061, 0
        %v1070 = vperm.slane %v1062, 0
        %v1071 = vperm.slane %v1063, 0
        %v1072 = vperm.slane %v1064, 0
        %vm1073 = vcmp.eq.s32.totalorder %v1065, 1
        %vm1074 = vcmp.eq.s32.totalorder %v1066, 1
        %vm1075 = vcmp.eq.s32.totalorder %v1067, 1
        %vm1076 = vcmp.eq.s32.totalorder %v1068, 1
        %vm1077 = vcmp.eq.s32.totalorder %v1069, 1
        %vm1078 = vcmp.eq.s32.totalorder %v1070, 1
        %vm1079 = vcmp.eq.s32.totalorder %v1071, 1
        %vm1080 = vcmp.eq.s32.totalorder %v1072, 1
        %v1081 = vsel %vm1073, %v1032, 0.0
        %v1082 = vsel %vm1074, %v1033, 0.0
        %v1083 = vsel %vm1075, %v1034, 0.0
        %v1084 = vsel %vm1076, %v1035, 0.0
        %v1085 = vsel %vm1077, %v1036, 0.0
        %v1086 = vsel %vm1078, %v1037, 0.0
        %v1087 = vsel %vm1079, %v1038, 0.0
        %v1088 = vsel %vm1080, %v1048, 0.0
        %1089 = vset.pattern.permute.xlu0 6
        %1090 = vperm.xlu0 %1089, %v545
        %v1091 = vpop.permute.xlu0 %1090
        %v1093 = vmul.f32 %v1081, %v1091
        %v1094 = vmul.f32 %v1082, %v1091
        %v1095 = vmul.f32 %v1083, %v1091
        %v1096 = vmul.f32 %v1084, %v1091
        %v1097 = vmul.f32 %v1085, %v1091
        %v1098 = vmul.f32 %v1086, %v1091
        %v1099 = vmul.f32 %v1087, %v1091
        %v1100 = vmul.f32 %v1088, %v1091
        %v1101 = vadd.f32 %v1007, %v1093
        %v1102 = vadd.f32 %v1008, %v1094
        %v1103 = vadd.f32 %v1009, %v1095
        %v1104 = vadd.f32 %v1010, %v1096
        %v1105 = vadd.f32 %v1011, %v1097
        %v1106 = vadd.f32 %v1012, %v1098
        %v1107 = vadd.f32 %v1013, %v1099
        %v1108 = vadd.f32 %v1014, %v1100
        %1109 = vrot.lane.b32.xlu0 %v509, 96
        %v1110 = vpop.permute.xlu0 %1109
        %1111 = vrot.lane.b32.xlu0 %v510, 96
        %v1112 = vpop.permute.xlu0 %1111
        %1113 = vrot.lane.b32.xlu0 %v511, 96
        %v1114 = vpop.permute.xlu0 %1113
        %1115 = vrot.lane.b32.xlu0 %v512, 96
        %v1116 = vpop.permute.xlu0 %1115
        %1117 = vrot.lane.b32.xlu0 %v513, 96
        %v1118 = vpop.permute.xlu0 %1117
        %1119 = vrot.lane.b32.xlu0 %v514, 96
        %v1120 = vpop.permute.xlu0 %1119
        %1121 = vrot.lane.b32.xlu0 %v515, 96
        %v1122 = vpop.permute.xlu0 %1121
        %1123 = vrot.lane.b32.xlu0 %v516, 96
        %v1124 = vpop.permute.xlu0 %1123
        %vm1125 = vcmask 785408
        %v1126 = vsel %vm1125, %v1110, %v1112
        %v1127 = vsel %vm1125, %v1112, %v1114
        %v1128 = vsel %vm1125, %v1114, %v1116
        %v1129 = vsel %vm1125, %v1116, %v1118
        %v1130 = vsel %vm1125, %v1118, %v1120
        %v1131 = vsel %vm1125, %v1120, %v1122
        %v1132 = vsel %vm1125, %v1122, %v1124
        %v1142 = vsel %vm1125, %v1124, %v1110
        %v1143 = vsel %vm535, 1, 0
        %v1144 = vsel %vm536, 1, 0
        %v1145 = vsel %vm537, 1, 0
        %v1146 = vsel %vm538, 1, 0
        %v1147 = vsel %vm539, 1, 0
        %v1148 = vsel %vm540, 1, 0
        %v1149 = vsel %vm541, 1, 0
        %v1150 = vsel %vm542, 1, 0
        %vm1151 = vcmp.eq.s32.totalorder %v1143, 1
        %vm1152 = vcmp.eq.s32.totalorder %v1144, 1
        %vm1153 = vcmp.eq.s32.totalorder %v1145, 1
        %vm1154 = vcmp.eq.s32.totalorder %v1146, 1
        %vm1155 = vcmp.eq.s32.totalorder %v1147, 1
        %vm1156 = vcmp.eq.s32.totalorder %v1148, 1
        %vm1157 = vcmp.eq.s32.totalorder %v1149, 1
        %vm1158 = vcmp.eq.s32.totalorder %v1150, 1
        %v1159 = vsel %vm1151, %v1126, 0.0
        %v1160 = vsel %vm1152, %v1127, 0.0
        %v1161 = vsel %vm1153, %v1128, 0.0
        %v1162 = vsel %vm1154, %v1129, 0.0
        %v1163 = vsel %vm1155, %v1130, 0.0
        %v1164 = vsel %vm1156, %v1131, 0.0
        %v1165 = vsel %vm1157, %v1132, 0.0
        %v1166 = vsel %vm1158, %v1142, 0.0
        %1167 = vset.pattern.permute.xlu0 7
        %1168 = vperm.xlu0 %1167, %v545
        %v1169 = vpop.permute.xlu0 %1168
        %v1171 = vmul.f32 %v1159, %v1169
        %v1172 = vmul.f32 %v1160, %v1169
        %v1173 = vmul.f32 %v1161, %v1169
        %v1174 = vmul.f32 %v1162, %v1169
        %v1175 = vmul.f32 %v1163, %v1169
        %v1176 = vmul.f32 %v1164, %v1169
        %v1177 = vmul.f32 %v1165, %v1169
        %v1178 = vmul.f32 %v1166, %v1169
        %v1179 = vadd.f32 %v1101, %v1171
        %v1180 = vadd.f32 %v1102, %v1172
        %v1181 = vadd.f32 %v1103, %v1173
        %v1182 = vadd.f32 %v1104, %v1174
        %v1183 = vadd.f32 %v1105, %v1175
        %v1184 = vadd.f32 %v1106, %v1176
        %v1185 = vadd.f32 %v1107, %v1177
        %v1186 = vadd.f32 %v1108, %v1178
        %1187 = vrot.lane.b32.xlu0 %v509, 95
        %v1188 = vpop.permute.xlu0 %1187
        %1189 = vrot.lane.b32.xlu0 %v510, 95
        %v1190 = vpop.permute.xlu0 %1189
        %1191 = vrot.lane.b32.xlu0 %v511, 95
        %v1192 = vpop.permute.xlu0 %1191
        %1193 = vrot.lane.b32.xlu0 %v512, 95
        %v1194 = vpop.permute.xlu0 %1193
        %1195 = vrot.lane.b32.xlu0 %v513, 95
        %v1196 = vpop.permute.xlu0 %1195
        %1197 = vrot.lane.b32.xlu0 %v514, 95
        %v1198 = vpop.permute.xlu0 %1197
        %1199 = vrot.lane.b32.xlu0 %v515, 95
        %v1200 = vpop.permute.xlu0 %1199
        %1201 = vrot.lane.b32.xlu0 %v516, 95
        %v1202 = vpop.permute.xlu0 %1201
        %vm1203 = vcmask 777216
        %v1204 = vsel %vm1203, %v1188, %v1190
        %v1205 = vsel %vm1203, %v1190, %v1192
        %v1206 = vsel %vm1203, %v1192, %v1194
        %v1207 = vsel %vm1203, %v1194, %v1196
        %v1208 = vsel %vm1203, %v1196, %v1198
        %v1209 = vsel %vm1203, %v1198, %v1200
        %v1210 = vsel %vm1203, %v1200, %v1202
        %v1220 = vsel %vm1203, %v1202, %v1188
        %vm1221 = vmand %vm535, %vm787
        %vm1222 = vmand %vm536, %vm788
        %vm1223 = vmand %vm537, %vm789
        %vm1224 = vmand %vm538, %vm790
        %vm1225 = vmand %vm539, %vm791
        %vm1226 = vmand %vm540, %vm792
        %vm1227 = vmand %vm541, %vm793
        %vm1228 = vmand %vm542, %vm794
        %v1229 = vsel %vm1221, 1, 0
        %v1230 = vsel %vm1222, 1, 0
        %v1231 = vsel %vm1223, 1, 0
        %v1232 = vsel %vm1224, 1, 0
        %v1233 = vsel %vm1225, 1, 0
        %v1234 = vsel %vm1226, 1, 0
        %v1235 = vsel %vm1227, 1, 0
        %v1236 = vsel %vm1228, 1, 0
        %v1237 = vperm.slane %v1229, 0
        %v1238 = vperm.slane %v1230, 0
        %v1239 = vperm.slane %v1231, 0
        %v1240 = vperm.slane %v1232, 0
        %v1241 = vperm.slane %v1233, 0
        %v1242 = vperm.slane %v1234, 0
        %v1243 = vperm.slane %v1235, 0
        %v1244 = vperm.slane %v1236, 0
        %vm1245 = vcmp.eq.s32.totalorder %v1237, 1
        %vm1246 = vcmp.eq.s32.totalorder %v1238, 1
        %vm1247 = vcmp.eq.s32.totalorder %v1239, 1
        %vm1248 = vcmp.eq.s32.totalorder %v1240, 1
        %vm1249 = vcmp.eq.s32.totalorder %v1241, 1
        %vm1250 = vcmp.eq.s32.totalorder %v1242, 1
        %vm1251 = vcmp.eq.s32.totalorder %v1243, 1
        %vm1252 = vcmp.eq.s32.totalorder %v1244, 1
        %v1253 = vsel %vm1245, %v1204, 0.0
        %v1254 = vsel %vm1246, %v1205, 0.0
        %v1255 = vsel %vm1247, %v1206, 0.0
        %v1256 = vsel %vm1248, %v1207, 0.0
        %v1257 = vsel %vm1249, %v1208, 0.0
        %v1258 = vsel %vm1250, %v1209, 0.0
        %v1259 = vsel %vm1251, %v1210, 0.0
        %v1260 = vsel %vm1252, %v1220, 0.0
        %1261 = vset.pattern.permute.xlu0 8
        %1262 = vperm.xlu0 %1261, %v545
        %v1263 = vpop.permute.xlu0 %1262
        %v1265 = vmul.f32 %v1253, %v1263
        %v1266 = vmul.f32 %v1254, %v1263
        %v1267 = vmul.f32 %v1255, %v1263
        %v1268 = vmul.f32 %v1256, %v1263
        %v1269 = vmul.f32 %v1257, %v1263
        %v1270 = vmul.f32 %v1258, %v1263
        %v1271 = vmul.f32 %v1259, %v1263
        %v1272 = vmul.f32 %v1260, %v1263
        %v1273 = vadd.f32 %v1179, %v1265
        %v1274 = vadd.f32 %v1180, %v1266
        %v1275 = vadd.f32 %v1181, %v1267
        %v1276 = vadd.f32 %v1182, %v1268
        %v1277 = vadd.f32 %v1183, %v1269
        %v1278 = vadd.f32 %v1184, %v1270
        %v1279 = vadd.f32 %v1185, %v1271
        %v1280 = vadd.f32 %v1186, %v1272
        %v1281 = vld [vmem:[%s5] sm:$0xff]
        %v1282 = vld [vmem:[%s6] sm:$0xff]
        %1284 = vset.pattern.permute.xlu0 0
        %1285 = vperm.xlu0 %1284, %v1282
        %v1286 = vpop.permute.xlu0 %1285
        %vm1288 = vcmask 64512
        %v1290 = vsel %vm1288, %v1281, 0
        %1292 = vmatpush.msra.mxu0 0.0
        %1293 = vmatpush.msra.mxu0 0.0
        %1294 = vmatpush.msra.mxu0 0.0
        %1295 = vmatpush.msra.mxu0 0.0
        %1296 = vmatpush.msra.mxu0 0.0
        %1297 = vmatpush.msra.mxu0 0.0
        %1298 = vmatpush.msra.mxu0 0.0
        %1299 = vmatpush.msra.mxu0 0.0
        %1300 = vmatpush.msra.mxu0 0.0
        %1301 = vmatpush.msra.mxu0 0.0
        %1302 = vmatpush.msra.mxu0 0.0
        %1303 = vmatpush.msra.mxu0 0.0
        %1304 = vmatpush.msra.mxu0 0.0
        %1305 = vmatpush.msra.mxu0 0.0
        %1306 = vmatpush.msra.mxu0 0.0
        %1307 = vmatpush.msra.mxu0 %v1273
        %1308 = vmatmul.f32.gmra.mxu0 %v1290
        %v1309 = vpop.f32.mrf.mxu0
        %v1310 = vadd.f32 %v1286, %v1309
        %1311 = vdwg.mxu0
        %1312 = vmatpush.msra.mxu0 0.0
        %1313 = vmatpush.msra.mxu0 0.0
        %1314 = vmatpush.msra.mxu0 0.0
        %1315 = vmatpush.msra.mxu0 0.0
        %1316 = vmatpush.msra.mxu0 0.0
        %1317 = vmatpush.msra.mxu0 0.0
        %1318 = vmatpush.msra.mxu0 0.0
        %1319 = vmatpush.msra.mxu0 0.0
        %1320 = vmatpush.msra.mxu0 0.0
        %1321 = vmatpush.msra.mxu0 0.0
        %1322 = vmatpush.msra.mxu0 0.0
        %1323 = vmatpush.msra.mxu0 0.0
        %1324 = vmatpush.msra.mxu0 0.0
        %1325 = vmatpush.msra.mxu0 0.0
        %1326 = vmatpush.msra.mxu0 0.0
        %1327 = vmatpush.msra.mxu0 %v1274
        %1328 = vmatmul.f32.gmra.mxu0 %v1290
        %v1329 = vpop.f32.mrf.mxu0
        %v1330 = vadd.f32 %v1286, %v1329
        %1331 = vdwg.mxu0
        %1332 = vmatpush.msra.mxu0 0.0
        %1333 = vmatpush.msra.mxu0 0.0
        %1334 = vmatpush.msra.mxu0 0.0
        %1335 = vmatpush.msra.mxu0 0.0
        %1336 = vmatpush.msra.mxu0 0.0
        %1337 = vmatpush.msra.mxu0 0.0
        %1338 = vmatpush.msra.mxu0 0.0
        %1339 = vmatpush.msra.mxu0 0.0
        %1340 = vmatpush.msra.mxu0 0.0
        %1341 = vmatpush.msra.mxu0 0.0
        %1342 = vmatpush.msra.mxu0 0.0
        %1343 = vmatpush.msra.mxu0 0.0
        %1344 = vmatpush.msra.mxu0 0.0
        %1345 = vmatpush.msra.mxu0 0.0
        %1346 = vmatpush.msra.mxu0 0.0
        %1347 = vmatpush.msra.mxu0 %v1275
        %1348 = vmatmul.f32.gmra.mxu0 %v1290
        %v1349 = vpop.f32.mrf.mxu0
        %v1350 = vadd.f32 %v1286, %v1349
        %1351 = vdwg.mxu0
        %1352 = vmatpush.msra.mxu0 0.0
        %1353 = vmatpush.msra.mxu0 0.0
        %1354 = vmatpush.msra.mxu0 0.0
        %1355 = vmatpush.msra.mxu0 0.0
        %1356 = vmatpush.msra.mxu0 0.0
        %1357 = vmatpush.msra.mxu0 0.0
        %1358 = vmatpush.msra.mxu0 0.0
        %1359 = vmatpush.msra.mxu0 0.0
        %1360 = vmatpush.msra.mxu0 0.0
        %1361 = vmatpush.msra.mxu0 0.0
        %1362 = vmatpush.msra.mxu0 0.0
        %1363 = vmatpush.msra.mxu0 0.0
        %1364 = vmatpush.msra.mxu0 0.0
        %1365 = vmatpush.msra.mxu0 0.0
        %1366 = vmatpush.msra.mxu0 0.0
        %1367 = vmatpush.msra.mxu0 %v1276
        %1368 = vmatmul.f32.gmra.mxu0 %v1290
        %v1369 = vpop.f32.mrf.mxu0
        %v1370 = vadd.f32 %v1286, %v1369
        %1371 = vdwg.mxu0
        %1372 = vmatpush.msra.mxu0 0.0
        %1373 = vmatpush.msra.mxu0 0.0
        %1374 = vmatpush.msra.mxu0 0.0
        %1375 = vmatpush.msra.mxu0 0.0
        %1376 = vmatpush.msra.mxu0 0.0
        %1377 = vmatpush.msra.mxu0 0.0
        %1378 = vmatpush.msra.mxu0 0.0
        %1379 = vmatpush.msra.mxu0 0.0
        %1380 = vmatpush.msra.mxu0 0.0
        %1381 = vmatpush.msra.mxu0 0.0
        %1382 = vmatpush.msra.mxu0 0.0
        %1383 = vmatpush.msra.mxu0 0.0
        %1384 = vmatpush.msra.mxu0 0.0
        %1385 = vmatpush.msra.mxu0 0.0
        %1386 = vmatpush.msra.mxu0 0.0
        %1387 = vmatpush.msra.mxu0 %v1277
        %1388 = vmatmul.f32.gmra.mxu0 %v1290
        %v1389 = vpop.f32.mrf.mxu0
        %v1390 = vadd.f32 %v1286, %v1389
        %1391 = vdwg.mxu0
        %1392 = vmatpush.msra.mxu0 0.0
        %1393 = vmatpush.msra.mxu0 0.0
        %1394 = vmatpush.msra.mxu0 0.0
        %1395 = vmatpush.msra.mxu0 0.0
        %1396 = vmatpush.msra.mxu0 0.0
        %1397 = vmatpush.msra.mxu0 0.0
        %1398 = vmatpush.msra.mxu0 0.0
        %1399 = vmatpush.msra.mxu0 0.0
        %1400 = vmatpush.msra.mxu0 0.0
        %1401 = vmatpush.msra.mxu0 0.0
        %1402 = vmatpush.msra.mxu0 0.0
        %1403 = vmatpush.msra.mxu0 0.0
        %1404 = vmatpush.msra.mxu0 0.0
        %1405 = vmatpush.msra.mxu0 0.0
        %1406 = vmatpush.msra.mxu0 0.0
        %1407 = vmatpush.msra.mxu0 %v1278
        %1408 = vmatmul.f32.gmra.mxu0 %v1290
        %v1409 = vpop.f32.mrf.mxu0
        %v1410 = vadd.f32 %v1286, %v1409
        %1411 = vdwg.mxu0
        %1412 = vmatpush.msra.mxu0 0.0
        %1413 = vmatpush.msra.mxu0 0.0
        %1414 = vmatpush.msra.mxu0 0.0
        %1415 = vmatpush.msra.mxu0 0.0
        %1416 = vmatpush.msra.mxu0 0.0
        %1417 = vmatpush.msra.mxu0 0.0
        %1418 = vmatpush.msra.mxu0 0.0
        %1419 = vmatpush.msra.mxu0 0.0
        %1420 = vmatpush.msra.mxu0 0.0
        %1421 = vmatpush.msra.mxu0 0.0
        %1422 = vmatpush.msra.mxu0 0.0
        %1423 = vmatpush.msra.mxu0 0.0
        %1424 = vmatpush.msra.mxu0 0.0
        %1425 = vmatpush.msra.mxu0 0.0
        %1426 = vmatpush.msra.mxu0 0.0
        %1427 = vmatpush.msra.mxu0 %v1279
        %1428 = vmatmul.f32.gmra.mxu0 %v1290
        %v1429 = vpop.f32.mrf.mxu0
        %v1430 = vadd.f32 %v1286, %v1429
        %1431 = vdwg.mxu0
        %1432 = vmatpush.msra.mxu0 0.0
        %1433 = vmatpush.msra.mxu0 0.0
        %1434 = vmatpush.msra.mxu0 0.0
        %1435 = vmatpush.msra.mxu0 0.0
        %1436 = vmatpush.msra.mxu0 0.0
        %1437 = vmatpush.msra.mxu0 0.0
        %1438 = vmatpush.msra.mxu0 0.0
        %1439 = vmatpush.msra.mxu0 0.0
        %1440 = vmatpush.msra.mxu0 0.0
        %1441 = vmatpush.msra.mxu0 0.0
        %1442 = vmatpush.msra.mxu0 0.0
        %1443 = vmatpush.msra.mxu0 0.0
        %1444 = vmatpush.msra.mxu0 0.0
        %1445 = vmatpush.msra.mxu0 0.0
        %1446 = vmatpush.msra.mxu0 0.0
        %1447 = vmatpush.msra.mxu0 %v1280
        %1448 = vmatmul.f32.gmra.mxu0 %v1290
        %v1449 = vpop.f32.mrf.mxu0
        %v1450 = vadd.f32 %v1286, %v1449
        %1451 = vdwg.mxu0
        %1452 = vst [vmem:[%s312] sm:$0xff] %v1310
        %1453 = vst [vmem:[%s312 + $0x8] sm:$0xff] %v1330
        %1454 = vst [vmem:[%s312 + $0x10] sm:$0xff] %v1350
        %1455 = vst [vmem:[%s312 + $0x18] sm:$0xff] %v1370
        %1456 = vst [vmem:[%s312 + $0x20] sm:$0xff] %v1390
        %1457 = vst [vmem:[%s312 + $0x28] sm:$0xff] %v1410
        %1458 = vst [vmem:[%s312 + $0x30] sm:$0xff] %v1430
        %1459 = vst [vmem:[%s312 + $0x38] sm:$0xff] %v1450
        %p1460 = scmp.lt.s32.totalorder %s19, 1
        %s1461 = scalar_select %p1460, %s19, 1
        %s1462 = smul.addr %s1461, 8
        %s1463 = smul.addr %s1462, 8
        %s1464 = scalar_lea.vmem %s7, %s1463
        // Predicated region
        $region53: #{bifpn_layer_forward.11} parent=47 // pred_check
          %p1465 = pneg %p194
        $region54: #{bifpn_layer_forward.11} parent=47 // pred_check_branch
          %1467 = sbr.rel (%p1465) target = $region56
        $region55: #{bifpn_layer_forward.11} parent=47 // pred_region
          _
        $region56: #{bifpn_layer_forward.11} parent=47 // pred_fallthru
          _
      $region48: #{bifpn_layer_forward.11} parent=5 // pred_fallthru
        _
      %p1468 = scmp.le.s32.totalorder 2, %s14
      // Predicated region
      $region57: #{bifpn_layer_forward.11} parent=5 // pred_check
        %p1469 = pneg %p1468
      $region58: #{bifpn_layer_forward.11} parent=5 // pred_check_branch
        %1471 = sbr.rel (%p1469) target = $region60
      $region59: #{bifpn_layer_forward.11} parent=5 // pred_region
        %s1472 = ssub.s32 %s14, 2
        // Predicated region
        $region61: #{bifpn_layer_forward.11} parent=59 // pred_check
          %p1473 = pneg %p200
        $region62: #{bifpn_layer_forward.11} parent=59 // pred_check_branch
          %1475 = sbr.rel (%p1473) target = $region64
        $region63: #{bifpn_layer_forward.11} parent=59 // pred_region
          %p1476 = scmp.lt.s32.totalorder %s20, 1
          %s1477 = scalar_select %p1476, %s20, 1
          %s1478 = smul.addr %s1477, 8
          %s1479 = smul.addr %s1478, 8
          %s1480 = scalar_lea.vmem %s7, %s1479
        $region64: #{bifpn_layer_forward.11} parent=59 // pred_fallthru
          _
      $region60: #{bifpn_layer_forward.11} parent=5 // pred_fallthru
        _
    $region6: #{bifpn_layer_forward.11} parent=1 // loop_footer
      %s18 = sadd.s32 1, %s14
    $region7: #{bifpn_layer_forward.11} parent=1 // loop_footer_branch
      %13 = sbr.rel target = $region3
    $region8: #{bifpn_layer_forward.11} parent=1 // loop_exit
      _
    %1481 = vsyncpa [#allocation3], 1
    %s1482 = scalar_lea.sflag [#allocation3], 1
    %1483 = vsyncpa %s1482, 1

// kernel: bifpn_layer_forward.12
$region0: #{bifpn_layer_forward.12}
  #allocation0 [shape = 'u32[]', space=smem, size = 0x4, offset = 0x4, fixed_abs, tag = 'smem constant byte address 0x4 - core index']
  #allocation1 [shape = 'u32[72,128]{1,0:T(1,128)}', space=vmem, size = 0x9000, scoped, tag = 'internal scratch']
  %s0 = inlined_call_operand.vmem [shape: f32[3], index: 0, kind: input, shape index: {}]
  %s1 = inlined_call_operand.vmem [shape: f32[2,8,256], index: 1, kind: input, shape index: {}]
  %s2 = inlined_call_operand.vmem [shape: f32[2,8,256], index: 2, kind: input, shape index: {}]
  %s3 = inlined_call_operand.vmem [shape: f32[2,8,256], index: 3, kind: input, shape index: {}]
  %s4 = inlined_call_operand.vmem [shape: s32[1,256], index: 4, kind: input, shape index: {}]
  %s5 = inlined_call_operand.vmem [shape: f32[8,9], index: 5, kind: input, shape index: {}]
  %s6 = inlined_call_operand.vmem [shape: f32[8,8], index: 6, kind: input, shape index: {}]
  %s7 = inlined_call_operand.vmem [shape: f32[8,1], index: 7, kind: input, shape index: {}]
  %s8 = inlined_call_operand.vmem [shape: f32[2,8,256], index: 8, kind: output, shape index: {}]
  %s9 = sld [smem:[#allocation0]]
  $region69: #{bifpn_layer_forward.12} parent=0
    _
  %s11 = ssub.s32 1, %s9
  %s12 = scalar_select 0, %s11, %s9
  $region1: #{bifpn_layer_forward.12} parent=0
    #allocation2 [shape = 'u8[512]{0}', space=smem, size = 0x200, scoped, tag = 'input window, operand 0, single buffered']
    #allocation3 [shape = 's32[2]{0}', space=sflag, size = 0x8, scoped, tag = 'scoped memory for bifpn_layer_forward.12']
    %13 = vsyncpa [#allocation3], 0
    loop: start=0, step=1, limit=4
    $region2: #{bifpn_layer_forward.12} parent=1 // loop_pre_header
      _
    $region3: #{bifpn_layer_forward.12} parent=1 // loop_header
      %s15 = sphi 0, %s19
      %p16 = scmp.ge.s32.totalorder %s15, 4
      %s23 = sphi 0, %s23
      %s25 = sphi 0, %s23
      %s26 = sphi 0, %s25
      %s40 = sphi 0, %s26
      %s46 = sphi 0, %s48
      %s49 = sphi 0, %s46
      %s50 = sphi 0, %s49
      %s66 = sphi 0, %s50
      %s72 = sphi 0, %s74
      %s75 = sphi 0, %s72
      %s76 = sphi 0, %s75
      %s92 = sphi 0, %s76
      %s98 = sphi 0, %s100
      %s101 = sphi 0, %s98
      %s102 = sphi 0, %s101
      %s118 = sphi 0, %s102
      %s122 = sphi 0, %s122
      %s124 = sphi 0, %s122
      %s125 = sphi 0, %s124
      %s139 = sphi 0, %s125
      %s143 = sphi 0, %s143
      %s145 = sphi 0, %s143
      %s146 = sphi 0, %s145
      %s160 = sphi 0, %s146
      %s164 = sphi 0, %s164
      %s166 = sphi 0, %s164
      %s167 = sphi 0, %s166
      %s181 = sphi 0, %s167
      %s185 = sphi 0, %s185
      %s187 = sphi 0, %s185
      %s188 = sphi 0, %s187
      %s202 = sphi 0, %s188
      %s208 = sphi 0, %s210
      %s211 = sphi 0, %s208
      %s212 = sphi 0, %s211
      %s228 = sphi 0, %s212
    $region4: #{bifpn_layer_forward.12} parent=1 // loop_header_branch
      %18 = sbr.rel (%p16) target = $region8
    $region5: #{bifpn_layer_forward.12} parent=1 // loop_body
      %s20 = ssub.s32 %s15, 1
      %s21 = ssub.s32 %s15, 2
      %s22 = sadd.s32 %s15, 1
      %s24 = sadd.s32 %s23, 1
      %p27 = scmp.eq.s32.totalorder %s15, 1
      %p28 = scmp.ne.s32.totalorder %s23, %s25
      %p29 = scmp.eq.s32.totalorder %s15, 0
      %p30 = por %p28, %p29
      %p31 = scmp.ne.s32.totalorder %s23, %s25
      %p32 = scmp.eq.s32.totalorder %s20, 1
      %p33 = por %p31, %p32
      %p34 = scmp.ne.s32.totalorder %s25, %s26
      %p35 = scmp.eq.s32.totalorder %s20, 0
      %p36 = por %p34, %p35
      %p37 = scmp.ne.s32.totalorder %s25, %s26
      %p38 = scmp.eq.s32.totalorder %s21, 1
      %p39 = por %p37, %p38
      %p41 = scmp.ne.s32.totalorder %s26, %s40
      %p42 = scmp.eq.s32.totalorder %s21, 0
      %p43 = por %p41, %p42
      %s44 = ssub.s32 %s15, %s22
      %p45 = scmp.eq.s32.totalorder %s44, 0
      %s47 = sadd.s32 %s46, 1
      %s48 = scalar_select %p45, %s46, %s47
      %p51 = pneg %p45
      %p52 = scmp.eq.s32.totalorder %s15, 1
      %p53 = por %p51, %p52
      %p54 = scmp.ne.s32.totalorder %s46, %s49
      %p55 = scmp.eq.s32.totalorder %s15, 0
      %p56 = por %p54, %p55
      %p57 = scmp.ne.s32.totalorder %s46, %s49
      %p58 = scmp.eq.s32.totalorder %s20, 1
      %p59 = por %p57, %p58
      %p60 = scmp.ne.s32.totalorder %s49, %s50
      %p61 = scmp.eq.s32.totalorder %s20, 0
      %p62 = por %p60, %p61
      %p63 = scmp.ne.s32.totalorder %s49, %s50
      %p64 = scmp.eq.s32.totalorder %s21, 1
      %p65 = por %p63, %p64
      %p67 = scmp.ne.s32.totalorder %s50, %s66
      %p68 = scmp.eq.s32.totalorder %s21, 0
      %p69 = por %p67, %p68
      %s70 = ssub.s32 %s15, %s22
      %p71 = scmp.eq.s32.totalorder %s70, 0
      %s73 = sadd.s32 %s72, 1
      %s74 = scalar_select %p71, %s72, %s73
      %p77 = pneg %p71
      %p78 = scmp.eq.s32.totalorder %s15, 1
      %p79 = por %p77, %p78
      %p80 = scmp.ne.s32.totalorder %s72, %s75
      %p81 = scmp.eq.s32.totalorder %s15, 0
      %p82 = por %p80, %p81
      %p83 = scmp.ne.s32.totalorder %s72, %s75
      %p84 = scmp.eq.s32.totalorder %s20, 1
      %p85 = por %p83, %p84
      %p86 = scmp.ne.s32.totalorder %s75, %s76
      %p87 = scmp.eq.s32.totalorder %s20, 0
      %p88 = por %p86, %p87
      %p89 = scmp.ne.s32.totalorder %s75, %s76
      %p90 = scmp.eq.s32.totalorder %s21, 1
      %p91 = por %p89, %p90
      %p93 = scmp.ne.s32.totalorder %s76, %s92
      %p94 = scmp.eq.s32.totalorder %s21, 0
      %p95 = por %p93, %p94
      %s96 = ssub.s32 %s15, %s22
      %p97 = scmp.eq.s32.totalorder %s96, 0
      %s99 = sadd.s32 %s98, 1
      %s100 = scalar_select %p97, %s98, %s99
      %p103 = pneg %p97
      %p104 = scmp.eq.s32.totalorder %s15, 1
      %p105 = por %p103, %p104
      %p106 = scmp.ne.s32.totalorder %s98, %s101
      %p107 = scmp.eq.s32.totalorder %s15, 0
      %p108 = por %p106, %p107
      %p109 = scmp.ne.s32.totalorder %s98, %s101
      %p110 = scmp.eq.s32.totalorder %s20, 1
      %p111 = por %p109, %p110
      %p112 = scmp.ne.s32.totalorder %s101, %s102
      %p113 = scmp.eq.s32.totalorder %s20, 0
      %p114 = por %p112, %p113
      %p115 = scmp.ne.s32.totalorder %s101, %s102
      %p116 = scmp.eq.s32.totalorder %s21, 1
      %p117 = por %p115, %p116
      %p119 = scmp.ne.s32.totalorder %s102, %s118
      %p120 = scmp.eq.s32.totalorder %s21, 0
      %p121 = por %p119, %p120
      %s123 = sadd.s32 %s122, 1
      %p126 = scmp.eq.s32.totalorder %s15, 1
      %p127 = scmp.ne.s32.totalorder %s122, %s124
      %p128 = scmp.eq.s32.totalorder %s15, 0
      %p129 = por %p127, %p128
      %p130 = scmp.ne.s32.totalorder %s122, %s124
      %p131 = scmp.eq.s32.totalorder %s20, 1
      %p132 = por %p130, %p131
      %p133 = scmp.ne.s32.totalorder %s124, %s125
      %p134 = scmp.eq.s32.totalorder %s20, 0
      %p135 = por %p133, %p134
      %p136 = scmp.ne.s32.totalorder %s124, %s125
      %p137 = scmp.eq.s32.totalorder %s21, 1
      %p138 = por %p136, %p137
      %p140 = scmp.ne.s32.totalorder %s125, %s139
      %p141 = scmp.eq.s32.totalorder %s21, 0
      %p142 = por %p140, %p141
      %s144 = sadd.s32 %s143, 1
      %p147 = scmp.eq.s32.totalorder %s15, 1
      %p148 = scmp.ne.s32.totalorder %s143, %s145
      %p149 = scmp.eq.s32.totalorder %s15, 0
      %p150 = por %p148, %p149
      %p151 = scmp.ne.s32.totalorder %s143, %s145
      %p152 = scmp.eq.s32.totalorder %s20, 1
      %p153 = por %p151, %p152
      %p154 = scmp.ne.s32.totalorder %s145, %s146
      %p155 = scmp.eq.s32.totalorder %s20, 0
      %p156 = por %p154, %p155
      %p157 = scmp.ne.s32.totalorder %s145, %s146
      %p158 = scmp.eq.s32.totalorder %s21, 1
      %p159 = por %p157, %p158
      %p161 = scmp.ne.s32.totalorder %s146, %s160
      %p162 = scmp.eq.s32.totalorder %s21, 0
      %p163 = por %p161, %p162
      %s165 = sadd.s32 %s164, 1
      %p168 = scmp.eq.s32.totalorder %s15, 1
      %p169 = scmp.ne.s32.totalorder %s164, %s166
      %p170 = scmp.eq.s32.totalorder %s15, 0
      %p171 = por %p169, %p170
      %p172 = scmp.ne.s32.totalorder %s164, %s166
      %p173 = scmp.eq.s32.totalorder %s20, 1
      %p174 = por %p172, %p173
      %p175 = scmp.ne.s32.totalorder %s166, %s167
      %p176 = scmp.eq.s32.totalorder %s20, 0
      %p177 = por %p175, %p176
      %p178 = scmp.ne.s32.totalorder %s166, %s167
      %p179 = scmp.eq.s32.totalorder %s21, 1
      %p180 = por %p178, %p179
      %p182 = scmp.ne.s32.totalorder %s167, %s181
      %p183 = scmp.eq.s32.totalorder %s21, 0
      %p184 = por %p182, %p183
      %s186 = sadd.s32 %s185, 1
      %p189 = scmp.eq.s32.totalorder %s15, 1
      %p190 = scmp.ne.s32.totalorder %s185, %s187
      %p191 = scmp.eq.s32.totalorder %s15, 0
      %p192 = por %p190, %p191
      %p193 = scmp.ne.s32.totalorder %s185, %s187
      %p194 = scmp.eq.s32.totalorder %s20, 1
      %p195 = por %p193, %p194
      %p196 = scmp.ne.s32.totalorder %s187, %s188
      %p197 = scmp.eq.s32.totalorder %s20, 0
      %p198 = por %p196, %p197
      %p199 = scmp.ne.s32.totalorder %s187, %s188
      %p200 = scmp.eq.s32.totalorder %s21, 1
      %p201 = por %p199, %p200
      %p203 = scmp.ne.s32.totalorder %s188, %s202
      %p204 = scmp.eq.s32.totalorder %s21, 0
      %p205 = por %p203, %p204
      %s206 = ssub.s32 %s15, %s22
      %p207 = scmp.eq.s32.totalorder %s206, 0
      %s209 = sadd.s32 %s208, 1
      %s210 = scalar_select %p207, %s208, %s209
      %p213 = pneg %p207
      %p214 = scmp.eq.s32.totalorder %s15, 1
      %p215 = por %p213, %p214
      %p216 = scmp.ne.s32.totalorder %s208, %s211
      %p217 = scmp.eq.s32.totalorder %s15, 0
      %p218 = por %p216, %p217
      %p219 = scmp.ne.s32.totalorder %s208, %s211
      %p220 = scmp.eq.s32.totalorder %s20, 1
      %p221 = por %p219, %p220
      %p222 = scmp.ne.s32.totalorder %s211, %s212
      %p223 = scmp.eq.s32.totalorder %s20, 0
      %p224 = por %p222, %p223
      %p225 = scmp.ne.s32.totalorder %s211, %s212
      %p226 = scmp.eq.s32.totalorder %s21, 1
      %p227 = por %p225, %p226
      %p229 = scmp.ne.s32.totalorder %s212, %s228
      %p230 = scmp.eq.s32.totalorder %s21, 0
      %p231 = por %p229, %p230
      %p232 = scmp.le.s32.totalorder 1, %s15
      %p233 = scmp.lt.s32.totalorder %s15, 3
      %p234 = pnand %p232, %p233
      %p235 = pneg %p234
      // Predicated region
      $region9: #{bifpn_layer_forward.12} parent=5 // pred_check
        _
      $region10: #{bifpn_layer_forward.12} parent=5 // pred_check_branch
        %237 = sbr.rel (%p234) target = $region12
      $region11: #{bifpn_layer_forward.12} parent=5 // pred_region
        %s238 = ssub.s32 %s15, 1
        // Predicated region
        $region13: #{bifpn_layer_forward.12} parent=11 // pred_check
          %p239 = pneg %p36
        $region14: #{bifpn_layer_forward.12} parent=11 // pred_check_branch
          %241 = sbr.rel (%p239) target = $region16
        $region15: #{bifpn_layer_forward.12} parent=11 // pred_region
          %243 = vsyncadd [#allocation3], 0
          %s245 = sshll.u32 %s0, 4
          %s246 = int_to_ptr.vmem [resolvable:$true] %s245
          %248 = dma.vmem_to_smem %s246, 16, [#allocation2], [#allocation3]
        $region16: #{bifpn_layer_forward.12} parent=11 // pred_fallthru
          _
        // Predicated region
        $region17: #{bifpn_layer_forward.12} parent=11 // pred_check
          %p249 = pneg %p135
        $region18: #{bifpn_layer_forward.12} parent=11 // pred_check_branch
          %251 = sbr.rel (%p249) target = $region20
        $region19: #{bifpn_layer_forward.12} parent=11 // pred_region
          _
        $region20: #{bifpn_layer_forward.12} parent=11 // pred_fallthru
          _
        // Predicated region
        $region21: #{bifpn_layer_forward.12} parent=11 // pred_check
          %p252 = pneg %p156
        $region22: #{bifpn_layer_forward.12} parent=11 // pred_check_branch
          %254 = sbr.rel (%p252) target = $region24
        $region23: #{bifpn_layer_forward.12} parent=11 // pred_region
          _
        $region24: #{bifpn_layer_forward.12} parent=11 // pred_fallthru
          _
        // Predicated region
        $region25: #{bifpn_layer_forward.12} parent=11 // pred_check
          %p255 = pneg %p177
        $region26: #{bifpn_layer_forward.12} parent=11 // pred_check_branch
          %257 = sbr.rel (%p255) target = $region28
        $region27: #{bifpn_layer_forward.12} parent=11 // pred_region
          _
        $region28: #{bifpn_layer_forward.12} parent=11 // pred_fallthru
          _
        // Predicated region
        $region29: #{bifpn_layer_forward.12} parent=11 // pred_check
          %p258 = pneg %p198
        $region30: #{bifpn_layer_forward.12} parent=11 // pred_check_branch
          %260 = sbr.rel (%p258) target = $region32
        $region31: #{bifpn_layer_forward.12} parent=11 // pred_region
          _
        $region32: #{bifpn_layer_forward.12} parent=11 // pred_fallthru
          _
      $region12: #{bifpn_layer_forward.12} parent=5 // pred_fallthru
        _
      %p261 = scmp.lt.s32.totalorder %s15, 2
      // Predicated region
      $region33: #{bifpn_layer_forward.12} parent=5 // pred_check
        %p262 = pneg %p261
      $region34: #{bifpn_layer_forward.12} parent=5 // pred_check_branch
        %264 = sbr.rel (%p262) target = $region36
      $region35: #{bifpn_layer_forward.12} parent=5 // pred_region
        // Predicated region
        $region37: #{bifpn_layer_forward.12} parent=35 // pred_check
          %p265 = pneg %p56
        $region38: #{bifpn_layer_forward.12} parent=35 // pred_check_branch
          %267 = sbr.rel (%p265) target = $region40
        $region39: #{bifpn_layer_forward.12} parent=35 // pred_region
          %p268 = scmp.lt.s32.totalorder %s15, 1
          %s269 = scalar_select %p268, %s15, 1
          %s270 = smul.addr %s269, 2
          %s271 = smul.addr %s270, 8
          %s272 = scalar_lea.vmem %s1, %s271
        $region40: #{bifpn_layer_forward.12} parent=35 // pred_fallthru
          _
        // Predicated region
        $region41: #{bifpn_layer_forward.12} parent=35 // pred_check
          %p273 = pneg %p82
        $region42: #{bifpn_layer_forward.12} parent=35 // pred_check_branch
          %275 = sbr.rel (%p273) target = $region44
        $region43: #{bifpn_layer_forward.12} parent=35 // pred_region
          %p276 = scmp.lt.s32.totalorder %s15, 1
          %s277 = scalar_select %p276, %s15, 1
          %s278 = smul.addr %s277, 2
          %s279 = smul.addr %s278, 8
          %s280 = scalar_lea.vmem %s2, %s279
        $region44: #{bifpn_layer_forward.12} parent=35 // pred_fallthru
          _
        // Predicated region
        $region45: #{bifpn_layer_forward.12} parent=35 // pred_check
          %p281 = pneg %p108
        $region46: #{bifpn_layer_forward.12} parent=35 // pred_check_branch
          %283 = sbr.rel (%p281) target = $region48
        $region47: #{bifpn_layer_forward.12} parent=35 // pred_region
          %p284 = scmp.lt.s32.totalorder %s15, 1
          %s285 = scalar_select %p284, %s15, 1
          %s286 = smul.addr %s285, 2
          %s287 = smul.addr %s286, 8
          %s288 = scalar_lea.vmem %s3, %s287
        $region48: #{bifpn_layer_forward.12} parent=35 // pred_fallthru
          _
      $region36: #{bifpn_layer_forward.12} parent=5 // pred_fallthru
        _
      %p289 = scmp.le.s32.totalorder 1, %s15
      %p290 = scmp.lt.s32.totalorder %s15, 3
      %p291 = pnand %p289, %p290
      %p292 = pneg %p291
      // Predicated region
      $region49: #{bifpn_layer_forward.12} parent=5 // pred_check
        _
      $region50: #{bifpn_layer_forward.12} parent=5 // pred_check_branch
        %294 = sbr.rel (%p291) target = $region52
      $region51: #{bifpn_layer_forward.12} parent=5 // pred_region
        %s295 = ssub.s32 %s15, 1
        // Predicated region
        $region53: #{bifpn_layer_forward.12} parent=51 // pred_check
          %p296 = pneg %p36
        $region54: #{bifpn_layer_forward.12} parent=51 // pred_check_branch
          %298 = sbr.rel (%p296) target = $region56
        $region55: #{bifpn_layer_forward.12} parent=51 // pred_region
          %300 = dma.done [#allocation3], 16
        $region56: #{bifpn_layer_forward.12} parent=51 // pred_fallthru
          _
        %301 = sfence
        %p302 = pneg %p36
        %p303 = pneg %p33
        %p304 = scmp.lt.s32.totalorder %s20, 1
        %s305 = scalar_select %p304, %s20, 1
        %s306 = smul.addr %s305, 2
        %s307 = smul.addr %s306, 8
        %s308 = scalar_lea.vmem %s1, %s307
        %p309 = pneg %p62
        %p310 = pneg %p59
        %p311 = scmp.lt.s32.totalorder %s20, 1
        %s312 = scalar_select %p311, %s20, 1
        %s313 = smul.addr %s312, 2
        %s314 = smul.addr %s313, 8
        %s315 = scalar_lea.vmem %s2, %s314
        %p316 = pneg %p88
        %p317 = pneg %p85
        %p318 = scmp.lt.s32.totalorder %s20, 1
        %s319 = scalar_select %p318, %s20, 1
        %s320 = smul.addr %s319, 2
        %s321 = smul.addr %s320, 8
        %s322 = scalar_lea.vmem %s3, %s321
        %p323 = pneg %p114
        %p324 = pneg %p111
        %p325 = pneg %p135
        %p326 = pneg %p132
        %p327 = pneg %p156
        %p328 = pneg %p153
        %p329 = pneg %p177
        %p330 = pneg %p174
        %p331 = pneg %p198
        %p332 = pneg %p195
        %p333 = pneg %p224
        %p334 = pneg %p221
        %p335 = scmp.lt.s32.totalorder %s20, 1
        %s336 = scalar_select %p335, %s20, 1
        %s337 = smul.addr %s336, 2
        %s338 = smul.addr %s337, 8
        %s339 = scalar_lea.vmem %s8, %s338
        %p340 = scmp.lt.s32.totalorder %s20, 1
        %s341 = scalar_select %p340, %s20, 1
        %s342 = smul.addr %s341, 2
        %s343 = smul.addr %s342, 8
        %s344 = scalar_lea.vmem %s1, %s343
        %p345 = scmp.lt.s32.totalorder %s20, 1
        %s346 = scalar_select %p345, %s20, 1
        %s347 = smul.addr %s346, 2
        %s348 = smul.addr %s347, 8
        %s349 = scalar_lea.vmem %s2, %s348
        %p350 = scmp.lt.s32.totalorder %s20, 1
        %s351 = scalar_select %p350, %s20, 1
        %s352 = smul.addr %s351, 2
        %s353 = smul.addr %s352, 8
        %s354 = scalar_lea.vmem %s3, %s353
        %p355 = scmp.lt.s32.totalorder %s20, 1
        %s356 = scalar_select %p355, %s20, 1
        %s357 = smul.addr %s356, 2
        %s358 = smul.addr %s357, 8
        %s359 = scalar_lea.vmem %s8, %s358
        %s360 = sld [smem:[#allocation2]]
        %v361 = vld [vmem:[%s344] sm:$0xff]
        %v362 = vld [vmem:[%s344 + $0x8] sm:$0xff]
        %v363 = vstv %s360
        %v364 = vmul.f32 %v363, %v361
        %v365 = vmul.f32 %v363, %v362
        %s366 = sld [smem:[#allocation2 + $0x1]]
        %v367 = vld [vmem:[%s349] sm:$0xff]
        %v368 = vld [vmem:[%s349 + $0x8] sm:$0xff]
        %v369 = vstv %s366
        %v370 = vmul.f32 %v369, %v367
        %v371 = vmul.f32 %v369, %v368
        %v372 = vadd.f32 %v364, %v370
        %v373 = vadd.f32 %v365, %v371
        %s374 = sld [smem:[#allocation2 + $0x2]]
        %v375 = vld [vmem:[%s354] sm:$0xff]
        %v376 = vld [vmem:[%s354 + $0x8] sm:$0xff]
        %v377 = vstv %s374
        %v378 = vmul.f32 %v377, %v375
        %v379 = vmul.f32 %v377, %v376
        %v380 = vadd.f32 %v372, %v378
        %v381 = vadd.f32 %v373, %v379
        %v382 = vxor.u32 %v380, 2147483648
        %v383 = vxor.u32 %v381, 2147483648
        %v384 = vmul.f32 %v382, 1.442695
        %v385 = vpow.pop %v384
        %v386 = vmul.f32 %v383, 1.442695
        %v387 = vpow.pop %v386
        %v388 = vadd.f32 %v385, 1.0
        %v389 = vadd.f32 %v387, 1.0
        %v390 = vrcp.pop %v388
        %v391 = vmul.f32 %v388, %v390
        %v392 = vsub.f32 1.0, %v391
        %v393 = vmul.f32 %v390, %v392
        %v394 = vadd.f32 %v390, %v393
        %vm395 = vweird.f32 %v388
        %vm396 = vweird.f32 %v390
        %vm397 = vmor %vm395, %vm396
        %v398 = vsel %vm397, %v390, %v394
        %v399 = vand.u32 2147483647, %v388
        %vm400 = vcmp.eq.f32.partialorder %v399, 8.507059e+37
        %v401 = vand.u32 %v388, 2147483648
        %v402 = vor.u32 1.1754944e-38, %v401
        %v403 = vsel %vm400, %v402, %v398
        %v404 = vmul.f32 1.0, %v403
        %v405 = vrcp.pop %v389
        %v406 = vmul.f32 %v389, %v405
        %v407 = vsub.f32 1.0, %v406
        %v408 = vmul.f32 %v405, %v407
        %v409 = vadd.f32 %v405, %v408
        %vm410 = vweird.f32 %v389
        %vm411 = vweird.f32 %v405
        %vm412 = vmor %vm410, %vm411
        %v413 = vsel %vm412, %v405, %v409
        %v414 = vand.u32 2147483647, %v389
        %vm415 = vcmp.eq.f32.partialorder %v414, 8.507059e+37
        %v416 = vand.u32 %v389, 2147483648
        %v417 = vor.u32 1.1754944e-38, %v416
        %v418 = vsel %vm415, %v417, %v413
        %v419 = vmul.f32 1.0, %v418
        %v420 = vmul.f32 %v380, %v404
        %v421 = vmul.f32 %v381, %v419
        %v422 = vlaneseq
        %v423 = vand.u32 %v422, 127
        %v424 = vadd.s32 %v423, 128
        %v425 = vld [vmem:[%s4] sm:$0x3]
        %vm426 = vcmp.ge.s32.totalorder %v423, 16
        %vm427 = vcmp.ge.s32.totalorder %v424, 16
        %vm428 = vcmp.lt.s32.totalorder %v423, 240
        %vm429 = vcmp.lt.s32.totalorder %v424, 240
        %vm430 = vcmp.ge.s32.totalorder %v425, 1
        %vm431 = vcmp.le.s32.totalorder %v425, 14
        %v432 = vld [vmem:[%s5] sm:$0xff]
        %434 = vrot.lane.b32.xlu0 %v421, 17
        %v435 = vpop.permute.xlu0 %434
        %438 = vrot.lane.b32.xlu0 %v420, 17
        %v439 = vpop.permute.xlu0 %438
        %vm440 = vcmask 138240
        %v441 = vsel %vm440, %v439, %v435
        %v444 = vsel %vm440, %v435, %v439
        %v445 = vsel %vm430, 1, 0
        %v446 = vperm.slane %v445, 0
        %v447 = vperm.slane %v445, 1
        %vm448 = vcmp.ne.s32.totalorder %v446, 0
        %vm449 = vcmp.ne.s32.totalorder %v447, 0
        %vm450 = vmand %vm426, %vm448
        %vm451 = vmand %vm427, %vm449
        %v452 = vsel %vm450, 1, 0
        %v453 = vsel %vm451, 1, 0
        %v454 = vperm.slane %v452, 0
        %v455 = vperm.slane %v453, 0
        %vm456 = vcmp.eq.s32.totalorder %v454, 1
        %vm457 = vcmp.eq.s32.totalorder %v455, 1
        %v458 = vsel %vm456, %v444, 0.0
        %v459 = vsel %vm457, %v441, 0.0
        %461 = vset.pattern.permute.xlu0 0
        %462 = vperm.xlu0 %461, %v432
        %v463 = vpop.permute.xlu0 %462
        %v465 = vmul.f32 %v458, %v463
        %v466 = vmul.f32 %v459, %v463
        %v467 = vadd.f32 %v465, 0.0
        %v468 = vadd.f32 %v466, 0.0
        %469 = vrot.lane.b32.xlu0 %v421, 16
        %v470 = vpop.permute.xlu0 %469
        %472 = vrot.lane.b32.xlu0 %v420, 16
        %v473 = vpop.permute.xlu0 %472
        %vm474 = vcmask 130048
        %v475 = vsel %vm474, %v473, %v470
        %v478 = vsel %vm474, %v470, %v473
        %v479 = vsel %vm426, 1, 0
        %v480 = vsel %vm427, 1, 0
        %vm481 = vcmp.eq.s32.totalorder %v479, 1
        %vm482 = vcmp.eq.s32.totalorder %v480, 1
        %v483 = vsel %vm481, %v478, 0.0
        %v484 = vsel %vm482, %v475, 0.0
        %485 = vset.pattern.permute.xlu0 1
        %486 = vperm.xlu0 %485, %v432
        %v487 = vpop.permute.xlu0 %486
        %v489 = vmul.f32 %v483, %v487
        %v490 = vmul.f32 %v484, %v487
        %v491 = vadd.f32 %v467, %v489
        %v492 = vadd.f32 %v468, %v490
        %493 = vrot.lane.b32.xlu0 %v421, 15
        %v494 = vpop.permute.xlu0 %493
        %496 = vrot.lane.b32.xlu0 %v420, 15
        %v497 = vpop.permute.xlu0 %496
        %vm498 = vcmask 121856
        %v499 = vsel %vm498, %v497, %v494
        %v502 = vsel %vm498, %v494, %v497
        %v503 = vsel %vm431, 1, 0
        %v504 = vperm.slane %v503, 0
        %v505 = vperm.slane %v503, 1
        %vm506 = vcmp.ne.s32.totalorder %v504, 0
        %vm507 = vcmp.ne.s32.totalorder %v505, 0
        %vm508 = vmand %vm426, %vm506
        %vm509 = vmand %vm427, %vm507
        %v510 = vsel %vm508, 1, 0
        %v511 = vsel %vm509, 1, 0
        %v512 = vperm.slane %v510, 0
        %v513 = vperm.slane %v511, 0
        %vm514 = vcmp.eq.s32.totalorder %v512, 1
        %vm515 = vcmp.eq.s32.totalorder %v513, 1
        %v516 = vsel %vm514, %v502, 0.0
        %v517 = vsel %vm515, %v499, 0.0
        %518 = vset.pattern.permute.xlu0 2
        %519 = vperm.xlu0 %518, %v432
        %v520 = vpop.permute.xlu0 %519
        %v522 = vmul.f32 %v516, %v520
        %v523 = vmul.f32 %v517, %v520
        %v524 = vadd.f32 %v491, %v522
        %v525 = vadd.f32 %v492, %v523
        %526 = vrot.lane.b32.xlu0 %v421, 1
        %v527 = vpop.permute.xlu0 %526
        %529 = vrot.lane.b32.xlu0 %v420, 1
        %v530 = vpop.permute.xlu0 %529
        %vm531 = vcmask 7168
        %v532 = vsel %vm531, %v530, %v527
        %v535 = vsel %vm531, %v527, %v530
        %vm536 = vcmp.eq.s32.totalorder %v446, 1
        %vm537 = vcmp.eq.s32.totalorder %v447, 1
        %v538 = vsel %vm536, %v535, 0.0
        %v539 = vsel %vm537, %v532, 0.0
        %540 = vset.pattern.permute.xlu0 3
        %541 = vperm.xlu0 %540, %v432
        %v542 = vpop.permute.xlu0 %541
        %v544 = vmul.f32 %v538, %v542
        %v545 = vmul.f32 %v539, %v542
        %v546 = vadd.f32 %v524, %v544
        %v547 = vadd.f32 %v525, %v545
        %548 = vset.pattern.permute.xlu0 4
        %549 = vperm.xlu0 %548, %v432
        %v550 = vpop.permute.xlu0 %549
        %v552 = vmul.f32 %v420, %v550
        %v553 = vmul.f32 %v421, %v550
        %v554 = vadd.f32 %v546, %v552
        %v555 = vadd.f32 %v547, %v553
        %556 = vrot.lane.b32.xlu0 %v420, 127
        %v557 = vpop.permute.xlu0 %556
        %558 = vrot.lane.b32.xlu0 %v421, 127
        %v559 = vpop.permute.xlu0 %558
        %vm560 = vcmask 1039360
        %v561 = vsel %vm560, %v557, %v559
        %v565 = vsel %vm560, %v559, %v557
        %vm566 = vcmp.eq.s32.totalorder %v504, 1
        %vm567 = vcmp.eq.s32.totalorder %v505, 1
        %v568 = vsel %vm566, %v561, 0.0
        %v569 = vsel %vm567, %v565, 0.0
        %570 = vset.pattern.permute.xlu0 5
        %571 = vperm.xlu0 %570, %v432
        %v572 = vpop.permute.xlu0 %571
        %v574 = vmul.f32 %v568, %v572
        %v575 = vmul.f32 %v569, %v572
        %v576 = vadd.f32 %v554, %v574
        %v577 = vadd.f32 %v555, %v575
        %578 = vrot.lane.b32.xlu0 %v420, 113
        %v579 = vpop.permute.xlu0 %578
        %580 = vrot.lane.b32.xlu0 %v421, 113
        %v581 = vpop.permute.xlu0 %580
        %vm582 = vcmask 924672
        %v583 = vsel %vm582, %v579, %v581
        %v587 = vsel %vm582, %v581, %v579
        %vm588 = vmand %vm428, %vm448
        %vm589 = vmand %vm429, %vm449
        %v590 = vsel %vm588, 1, 0
        %v591 = vsel %vm589, 1, 0
        %v592 = vperm.slane %v590, 0
        %v593 = vperm.slane %v591, 0
        %vm594 = vcmp.eq.s32.totalorder %v592, 1
        %vm595 = vcmp.eq.s32.totalorder %v593, 1
        %v596 = vsel %vm594, %v583, 0.0
        %v597 = vsel %vm595, %v587, 0.0
        %598 = vset.pattern.permute.xlu0 6
        %599 = vperm.xlu0 %598, %v432
        %v600 = vpop.permute.xlu0 %599
        %v602 = vmul.f32 %v596, %v600
        %v603 = vmul.f32 %v597, %v600
        %v604 = vadd.f32 %v576, %v602
        %v605 = vadd.f32 %v577, %v603
        %606 = vrot.lane.b32.xlu0 %v420, 112
        %v607 = vpop.permute.xlu0 %606
        %608 = vrot.lane.b32.xlu0 %v421, 112
        %v609 = vpop.permute.xlu0 %608
        %vm610 = vcmask 916480
        %v611 = vsel %vm610, %v607, %v609
        %v615 = vsel %vm610, %v609, %v607
        %v616 = vsel %vm428, 1, 0
        %v617 = vsel %vm429, 1, 0
        %vm618 = vcmp.eq.s32.totalorder %v616, 1
        %vm619 = vcmp.eq.s32.totalorder %v617, 1
        %v620 = vsel %vm618, %v611, 0.0
        %v621 = vsel %vm619, %v615, 0.0
        %622 = vset.pattern.permute.xlu0 7
        %623 = vperm.xlu0 %622, %v432
        %v624 = vpop.permute.xlu0 %623
        %v626 = vmul.f32 %v620, %v624
        %v627 = vmul.f32 %v621, %v624
        %v628 = vadd.f32 %v604, %v626
        %v629 = vadd.f32 %v605, %v627
        %630 = vrot.lane.b32.xlu0 %v420, 111
        %v631 = vpop.permute.xlu0 %630
        %632 = vrot.lane.b32.xlu0 %v421, 111
        %v633 = vpop.permute.xlu0 %632
        %vm634 = vcmask 908288
        %v635 = vsel %vm634, %v631, %v633
        %v639 = vsel %vm634, %v633, %v631
        %vm640 = vmand %vm428, %vm506
        %vm641 = vmand %vm429, %vm507
        %v642 = vsel %vm640, 1, 0
        %v643 = vsel %vm641, 1, 0
        %v644 = vperm.slane %v642, 0
        %v645 = vperm.slane %v643, 0
        %vm646 = vcmp.eq.s32.totalorder %v644, 1
        %vm647 = vcmp.eq.s32.totalorder %v645, 1
        %v648 = vsel %vm646, %v635, 0.0
        %v649 = vsel %vm647, %v639, 0.0
        %650 = vset.pattern.permute.xlu0 8
        %651 = vperm.xlu0 %650, %v432
        %v652 = vpop.permute.xlu0 %651
        %v654 = vmul.f32 %v648, %v652
        %v655 = vmul.f32 %v649, %v652
        %v656 = vadd.f32 %v628, %v654
        %v657 = vadd.f32 %v629, %v655
        %v658 = vld [vmem:[%s6] sm:$0xff]
        %v659 = vld [vmem:[%s7] sm:$0xff]
        %661 = vset.pattern.permute.xlu0 0
        %662 = vperm.xlu0 %661, %v659
        %v663 = vpop.permute.xlu0 %662
        %vm665 = vcmask 64512
        %v667 = vsel %vm665, %v658, 0
        %669 = vmatpush.msra.mxu0 0.0
        %670 = vmatpush.msra.mxu0 0.0
        %671 = vmatpush.msra.mxu0 0.0
        %672 = vmatpush.msra.mxu0 0.0
        %673 = vmatpush.msra.mxu0 0.0
        %674 = vmatpush.msra.mxu0 0.0
        %675 = vmatpush.msra.mxu0 0.0
        %676 = vmatpush.msra.mxu0 0.0
        %677 = vmatpush.msra.mxu0 0.0
        %678 = vmatpush.msra.mxu0 0.0
        %679 = vmatpush.msra.mxu0 0.0
        %680 = vmatpush.msra.mxu0 0.0
        %681 = vmatpush.msra.mxu0 0.0
        %682 = vmatpush.msra.mxu0 0.0
        %683 = vmatpush.msra.mxu0 0.0
        %684 = vmatpush.msra.mxu0 %v656
        %685 = vmatmul.f32.gmra.mxu0 %v667
        %v686 = vpop.f32.mrf.mxu0
        %v687 = vadd.f32 %v663, %v686
        %688 = vdwg.mxu0
        %689 = vmatpush.msra.mxu0 0.0
        %690 = vmatpush.msra.mxu0 0.0
        %691 = vmatpush.msra.mxu0 0.0
        %692 = vmatpush.msra.mxu0 0.0
        %693 = vmatpush.msra.mxu0 0.0
        %694 = vmatpush.msra.mxu0 0.0
        %695 = vmatpush.msra.mxu0 0.0
        %696 = vmatpush.msra.mxu0 0.0
        %697 = vmatpush.msra.mxu0 0.0
        %698 = vmatpush.msra.mxu0 0.0
        %699 = vmatpush.msra.mxu0 0.0
        %700 = vmatpush.msra.mxu0 0.0
        %701 = vmatpush.msra.mxu0 0.0
        %702 = vmatpush.msra.mxu0 0.0
        %703 = vmatpush.msra.mxu0 0.0
        %704 = vmatpush.msra.mxu0 %v657
        %705 = vmatmul.f32.gmra.mxu0 %v667
        %v706 = vpop.f32.mrf.mxu0
        %v707 = vadd.f32 %v663, %v706
        %708 = vdwg.mxu0
        %709 = vst [vmem:[%s359] sm:$0xff] %v687
        %710 = vst [vmem:[%s359 + $0x8] sm:$0xff] %v707
        %p711 = scmp.lt.s32.totalorder %s20, 1
        %s712 = scalar_select %p711, %s20, 1
        %s713 = smul.addr %s712, 2
        %s714 = smul.addr %s713, 8
        %s715 = scalar_lea.vmem %s8, %s714
        // Predicated region
        $region57: #{bifpn_layer_forward.12} parent=51 // pred_check
          %p716 = pneg %p221
        $region58: #{bifpn_layer_forward.12} parent=51 // pred_check_branch
          %718 = sbr.rel (%p716) target = $region60
        $region59: #{bifpn_layer_forward.12} parent=51 // pred_region
          _
        $region60: #{bifpn_layer_forward.12} parent=51 // pred_fallthru
          _
      $region52: #{bifpn_layer_forward.12} parent=5 // pred_fallthru
        _
      %p719 = scmp.le.s32.totalorder 2, %s15
      // Predicated region
      $region61: #{bifpn_layer_forward.12} parent=5 // pred_check
        %p720 = pneg %p719
      $region62: #{bifpn_layer_forward.12} parent=5 // pred_check_branch
        %722 = sbr.rel (%p720) target = $region64
      $region63: #{bifpn_layer_forward.12} parent=5 // pred_region
        %s723 = ssub.s32 %s15, 2
        // Predicated region
        $region65: #{bifpn_layer_forward.12} parent=63 // pred_check
          %p724 = pneg %p227
        $region66: #{bifpn_layer_forward.12} parent=63 // pred_check_branch
          %726 = sbr.rel (%p724) target = $region68
        $region67: #{bifpn_layer_forward.12} parent=63 // pred_region
          %p727 = scmp.lt.s32.totalorder %s21, 1
          %s728 = scalar_select %p727, %s21, 1
          %s729 = smul.addr %s728, 2
          %s730 = smul.addr %s729, 8
          %s731 = scalar_lea.vmem %s8, %s730
        $region68: #{bifpn_layer_forward.12} parent=63 // pred_fallthru
          _
      $region64: #{bifpn_layer_forward.12} parent=5 // pred_fallthru
        _
    $region6: #{bifpn_layer_forward.12} parent=1 // loop_footer
      %s19 = sadd.s32 1, %s15
    $region7: #{bifpn_layer_forward.12} parent=1 // loop_footer_branch
      %14 = sbr.rel target = $region3
    $region8: #{bifpn_layer_forward.12} parent=1 // loop_exit
      _
    %732 = vsyncpa [#allocation3], 1
    %s733 = scalar_lea.sflag [#allocation3], 1
    %734 = vsyncpa %s733, 1

// kernel: tile.79
$region0: #{tile.79}
  %s0 = inlined_call_operand.vmem [shape: s32[2,2], index: 0, kind: input, shape index: {}]
  %s1 = inlined_call_operand.vmem [shape: s32[1,4], index: 1, kind: output, shape index: {}]
  $region1: #{tile.79} parent=0
    #allocation0 [shape = 'u8[4096]{0}', space=vmem, size = 0x1000, scoped, tag = 'scoped mem for output reshape']
    #allocation1 [shape = 'u8[4096]{0}', space=vmem, size = 0x1000, scoped, tag = 'scoped mem for input reshape']
    %s3 = ssub.s32 4, 1
    %v4 = vld [vmem:[%s0] sm:%s3]
    %5 = vst [vmem:[#allocation1] sm:%s3] %v4
    %v6 = vld [vmem:[#allocation1] sm:$0x1]
    %vm7 = vcmask 15360
    %8 = vst.msk [vmem:[#allocation0] sm:$0x1] %vm7, %v6
    %s9 = scalar_lea.vmem [#allocation1], 1
    %v10 = vld [vmem:[%s9] sm:$0x1]
    %11 = vrot.lane.b32.xlu0 %v10, 2
    %v12 = vpop.permute.xlu0 %11
    %vm13 = vcmask 31760
    %14 = vst.msk [vmem:[#allocation0] sm:$0x1] %vm13, %v12
    %s16 = ssub.s32 2, 1
    %v17 = vld [vmem:[#allocation0] sm:%s16]
    %s19 = ssub.s32 2, 1
    %20 = vst [vmem:[%s1] sm:%s19] %v17

// kernel: bifpn_layer_forward.13
$region0: #{bifpn_layer_forward.13}
  #allocation0 [shape = 'u32[]', space=smem, size = 0x4, offset = 0x4, fixed_abs, tag = 'smem constant byte address 0x4 - core index']
  #allocation1 [shape = 'u32[72,128]{1,0:T(1,128)}', space=vmem, size = 0x9000, scoped, tag = 'internal scratch']
  %s0 = inlined_call_operand.vmem [shape: f32[3], index: 0, kind: input, shape index: {}]
  %s1 = inlined_call_operand.vmem [shape: f32[2,8,64], index: 1, kind: input, shape index: {}]
  %s2 = inlined_call_operand.vmem [shape: f32[2,8,64], index: 2, kind: input, shape index: {}]
  %s3 = inlined_call_operand.vmem [shape: f32[2,8,64], index: 3, kind: input, shape index: {}]
  %s4 = inlined_call_operand.vmem [shape: s32[1,64], index: 4, kind: input, shape index: {}]
  %s5 = inlined_call_operand.vmem [shape: f32[8,9], index: 5, kind: input, shape index: {}]
  %s6 = inlined_call_operand.vmem [shape: f32[8,8], index: 6, kind: input, shape index: {}]
  %s7 = inlined_call_operand.vmem [shape: f32[8,1], index: 7, kind: input, shape index: {}]
  %s8 = inlined_call_operand.vmem [shape: f32[2,8,64], index: 8, kind: output, shape index: {}]
  %s9 = sld [smem:[#allocation0]]
  $region69: #{bifpn_layer_forward.13} parent=0
    _
  %s11 = ssub.s32 1, %s9
  %s12 = scalar_select 0, %s11, %s9
  $region1: #{bifpn_layer_forward.13} parent=0
    #allocation2 [shape = 'u8[512]{0}', space=smem, size = 0x200, scoped, tag = 'input window, operand 0, single buffered']
    #allocation3 [shape = 's32[2]{0}', space=sflag, size = 0x8, scoped, tag = 'scoped memory for bifpn_layer_forward.13']
    %13 = vsyncpa [#allocation3], 0
    loop: start=0, step=1, limit=4
    $region2: #{bifpn_layer_forward.13} parent=1 // loop_pre_header
      _
    $region3: #{bifpn_layer_forward.13} parent=1 // loop_header
      %s15 = sphi 0, %s19
      %p16 = scmp.ge.s32.totalorder %s15, 4
      %s23 = sphi 0, %s23
      %s25 = sphi 0, %s23
      %s26 = sphi 0, %s25
      %s40 = sphi 0, %s26
      %s46 = sphi 0, %s48
      %s49 = sphi 0, %s46
      %s50 = sphi 0, %s49
      %s66 = sphi 0, %s50
      %s72 = sphi 0, %s74
      %s75 = sphi 0, %s72
      %s76 = sphi 0, %s75
      %s92 = sphi 0, %s76
      %s98 = sphi 0, %s100
      %s101 = sphi 0, %s98
      %s102 = sphi 0, %s101
      %s118 = sphi 0, %s102
      %s122 = sphi 0, %s122
      %s124 = sphi 0, %s122
      %s125 = sphi 0, %s124
      %s139 = sphi 0, %s125
      %s143 = sphi 0, %s143
      %s145 = sphi 0, %s143
      %s146 = sphi 0, %s145
      %s160 = sphi 0, %s146
      %s164 = sphi 0, %s164
      %s166 = sphi 0, %s164
      %s167 = sphi 0, %s166
      %s181 = sphi 0, %s167
      %s185 = sphi 0, %s185
      %s187 = sphi 0, %s185
      %s188 = sphi 0, %s187
      %s202 = sphi 0, %s188
      %s208 = sphi 0, %s210
      %s211 = sphi 0, %s208
      %s212 = sphi 0, %s211
      %s228 = sphi 0, %s212
    $region4: #{bifpn_layer_forward.13} parent=1 // loop_header_branch
      %18 = sbr.rel (%p16) target = $region8
    $region5: #{bifpn_layer_forward.13} parent=1 // loop_body
      %s20 = ssub.s32 %s15, 1
      %s21 = ssub.s32 %s15, 2
      %s22 = sadd.s32 %s15, 1
      %s24 = sadd.s32 %s23, 1
      %p27 = scmp.eq.s32.totalorder %s15, 1
      %p28 = scmp.ne.s32.totalorder %s23, %s25
      %p29 = scmp.eq.s32.totalorder %s15, 0
      %p30 = por %p28, %p29
      %p31 = scmp.ne.s32.totalorder %s23, %s25
      %p32 = scmp.eq.s32.totalorder %s20, 1
      %p33 = por %p31, %p32
      %p34 = scmp.ne.s32.totalorder %s25, %s26
      %p35 = scmp.eq.s32.totalorder %s20, 0
      %p36 = por %p34, %p35
      %p37 = scmp.ne.s32.totalorder %s25, %s26
      %p38 = scmp.eq.s32.totalorder %s21, 1
      %p39 = por %p37, %p38
      %p41 = scmp.ne.s32.totalorder %s26, %s40
      %p42 = scmp.eq.s32.totalorder %s21, 0
      %p43 = por %p41, %p42
      %s44 = ssub.s32 %s15, %s22
      %p45 = scmp.eq.s32.totalorder %s44, 0
      %s47 = sadd.s32 %s46, 1
      %s48 = scalar_select %p45, %s46, %s47
      %p51 = pneg %p45
      %p52 = scmp.eq.s32.totalorder %s15, 1
      %p53 = por %p51, %p52
      %p54 = scmp.ne.s32.totalorder %s46, %s49
      %p55 = scmp.eq.s32.totalorder %s15, 0
      %p56 = por %p54, %p55
      %p57 = scmp.ne.s32.totalorder %s46, %s49
      %p58 = scmp.eq.s32.totalorder %s20, 1
      %p59 = por %p57, %p58
      %p60 = scmp.ne.s32.totalorder %s49, %s50
      %p61 = scmp.eq.s32.totalorder %s20, 0
      %p62 = por %p60, %p61
      %p63 = scmp.ne.s32.totalorder %s49, %s50
      %p64 = scmp.eq.s32.totalorder %s21, 1
      %p65 = por %p63, %p64
      %p67 = scmp.ne.s32.totalorder %s50, %s66
      %p68 = scmp.eq.s32.totalorder %s21, 0
      %p69 = por %p67, %p68
      %s70 = ssub.s32 %s15, %s22
      %p71 = scmp.eq.s32.totalorder %s70, 0
      %s73 = sadd.s32 %s72, 1
      %s74 = scalar_select %p71, %s72, %s73
      %p77 = pneg %p71
      %p78 = scmp.eq.s32.totalorder %s15, 1
      %p79 = por %p77, %p78
      %p80 = scmp.ne.s32.totalorder %s72, %s75
      %p81 = scmp.eq.s32.totalorder %s15, 0
      %p82 = por %p80, %p81
      %p83 = scmp.ne.s32.totalorder %s72, %s75
      %p84 = scmp.eq.s32.totalorder %s20, 1
      %p85 = por %p83, %p84
      %p86 = scmp.ne.s32.totalorder %s75, %s76
      %p87 = scmp.eq.s32.totalorder %s20, 0
      %p88 = por %p86, %p87
      %p89 = scmp.ne.s32.totalorder %s75, %s76
      %p90 = scmp.eq.s32.totalorder %s21, 1
      %p91 = por %p89, %p90
      %p93 = scmp.ne.s32.totalorder %s76, %s92
      %p94 = scmp.eq.s32.totalorder %s21, 0
      %p95 = por %p93, %p94
      %s96 = ssub.s32 %s15, %s22
      %p97 = scmp.eq.s32.totalorder %s96, 0
      %s99 = sadd.s32 %s98, 1
      %s100 = scalar_select %p97, %s98, %s99
      %p103 = pneg %p97
      %p104 = scmp.eq.s32.totalorder %s15, 1
      %p105 = por %p103, %p104
      %p106 = scmp.ne.s32.totalorder %s98, %s101
      %p107 = scmp.eq.s32.totalorder %s15, 0
      %p108 = por %p106, %p107
      %p109 = scmp.ne.s32.totalorder %s98, %s101
      %p110 = scmp.eq.s32.totalorder %s20, 1
      %p111 = por %p109, %p110
      %p112 = scmp.ne.s32.totalorder %s101, %s102
      %p113 = scmp.eq.s32.totalorder %s20, 0
      %p114 = por %p112, %p113
      %p115 = scmp.ne.s32.totalorder %s101, %s102
      %p116 = scmp.eq.s32.totalorder %s21, 1
      %p117 = por %p115, %p116
      %p119 = scmp.ne.s32.totalorder %s102, %s118
      %p120 = scmp.eq.s32.totalorder %s21, 0
      %p121 = por %p119, %p120
      %s123 = sadd.s32 %s122, 1
      %p126 = scmp.eq.s32.totalorder %s15, 1
      %p127 = scmp.ne.s32.totalorder %s122, %s124
      %p128 = scmp.eq.s32.totalorder %s15, 0
      %p129 = por %p127, %p128
      %p130 = scmp.ne.s32.totalorder %s122, %s124
      %p131 = scmp.eq.s32.totalorder %s20, 1
      %p132 = por %p130, %p131
      %p133 = scmp.ne.s32.totalorder %s124, %s125
      %p134 = scmp.eq.s32.totalorder %s20, 0
      %p135 = por %p133, %p134
      %p136 = scmp.ne.s32.totalorder %s124, %s125
      %p137 = scmp.eq.s32.totalorder %s21, 1
      %p138 = por %p136, %p137
      %p140 = scmp.ne.s32.totalorder %s125, %s139
      %p141 = scmp.eq.s32.totalorder %s21, 0
      %p142 = por %p140, %p141
      %s144 = sadd.s32 %s143, 1
      %p147 = scmp.eq.s32.totalorder %s15, 1
      %p148 = scmp.ne.s32.totalorder %s143, %s145
      %p149 = scmp.eq.s32.totalorder %s15, 0
      %p150 = por %p148, %p149
      %p151 = scmp.ne.s32.totalorder %s143, %s145
      %p152 = scmp.eq.s32.totalorder %s20, 1
      %p153 = por %p151, %p152
      %p154 = scmp.ne.s32.totalorder %s145, %s146
      %p155 = scmp.eq.s32.totalorder %s20, 0
      %p156 = por %p154, %p155
      %p157 = scmp.ne.s32.totalorder %s145, %s146
      %p158 = scmp.eq.s32.totalorder %s21, 1
      %p159 = por %p157, %p158
      %p161 = scmp.ne.s32.totalorder %s146, %s160
      %p162 = scmp.eq.s32.totalorder %s21, 0
      %p163 = por %p161, %p162
      %s165 = sadd.s32 %s164, 1
      %p168 = scmp.eq.s32.totalorder %s15, 1
      %p169 = scmp.ne.s32.totalorder %s164, %s166
      %p170 = scmp.eq.s32.totalorder %s15, 0
      %p171 = por %p169, %p170
      %p172 = scmp.ne.s32.totalorder %s164, %s166
      %p173 = scmp.eq.s32.totalorder %s20, 1
      %p174 = por %p172, %p173
      %p175 = scmp.ne.s32.totalorder %s166, %s167
      %p176 = scmp.eq.s32.totalorder %s20, 0
      %p177 = por %p175, %p176
      %p178 = scmp.ne.s32.totalorder %s166, %s167
      %p179 = scmp.eq.s32.totalorder %s21, 1
      %p180 = por %p178, %p179
      %p182 = scmp.ne.s32.totalorder %s167, %s181
      %p183 = scmp.eq.s32.totalorder %s21, 0
      %p184 = por %p182, %p183
      %s186 = sadd.s32 %s185, 1
      %p189 = scmp.eq.s32.totalorder %s15, 1
      %p190 = scmp.ne.s32.totalorder %s185, %s187
      %p191 = scmp.eq.s32.totalorder %s15, 0
      %p192 = por %p190, %p191
      %p193 = scmp.ne.s32.totalorder %s185, %s187
      %p194 = scmp.eq.s32.totalorder %s20, 1
      %p195 = por %p193, %p194
      %p196 = scmp.ne.s32.totalorder %s187, %s188
      %p197 = scmp.eq.s32.totalorder %s20, 0
      %p198 = por %p196, %p197
      %p199 = scmp.ne.s32.totalorder %s187, %s188
      %p200 = scmp.eq.s32.totalorder %s21, 1
      %p201 = por %p199, %p200
      %p203 = scmp.ne.s32.totalorder %s188, %s202
      %p204 = scmp.eq.s32.totalorder %s21, 0
      %p205 = por %p203, %p204
      %s206 = ssub.s32 %s15, %s22
      %p207 = scmp.eq.s32.totalorder %s206, 0
      %s209 = sadd.s32 %s208, 1
      %s210 = scalar_select %p207, %s208, %s209
      %p213 = pneg %p207
      %p214 = scmp.eq.s32.totalorder %s15, 1
      %p215 = por %p213, %p214
      %p216 = scmp.ne.s32.totalorder %s208, %s211
      %p217 = scmp.eq.s32.totalorder %s15, 0
      %p218 = por %p216, %p217
      %p219 = scmp.ne.s32.totalorder %s208, %s211
      %p220 = scmp.eq.s32.totalorder %s20, 1
      %p221 = por %p219, %p220
      %p222 = scmp.ne.s32.totalorder %s211, %s212
      %p223 = scmp.eq.s32.totalorder %s20, 0
      %p224 = por %p222, %p223
      %p225 = scmp.ne.s32.totalorder %s211, %s212
      %p226 = scmp.eq.s32.totalorder %s21, 1
      %p227 = por %p225, %p226
      %p229 = scmp.ne.s32.totalorder %s212, %s228
      %p230 = scmp.eq.s32.totalorder %s21, 0
      %p231 = por %p229, %p230
      %p232 = scmp.le.s32.totalorder 1, %s15
      %p233 = scmp.lt.s32.totalorder %s15, 3
      %p234 = pnand %p232, %p233
      %p235 = pneg %p234
      // Predicated region
      $region9: #{bifpn_layer_forward.13} parent=5 // pred_check
        _
      $region10: #{bifpn_layer_forward.13} parent=5 // pred_check_branch
        %237 = sbr.rel (%p234) target = $region12
      $region11: #{bifpn_layer_forward.13} parent=5 // pred_region
        %s238 = ssub.s32 %s15, 1
        // Predicated region
        $region13: #{bifpn_layer_forward.13} parent=11 // pred_check
          %p239 = pneg %p36
        $region14: #{bifpn_layer_forward.13} parent=11 // pred_check_branch
          %241 = sbr.rel (%p239) target = $region16
        $region15: #{bifpn_layer_forward.13} parent=11 // pred_region
          %243 = vsyncadd [#allocation3], 0
          %s245 = sshll.u32 %s0, 4
          %s246 = int_to_ptr.vmem [resolvable:$true] %s245
          %248 = dma.vmem_to_smem %s246, 16, [#allocation2], [#allocation3]
        $region16: #{bifpn_layer_forward.13} parent=11 // pred_fallthru
          _
        // Predicated region
        $region17: #{bifpn_layer_forward.13} parent=11 // pred_check
          %p249 = pneg %p135
        $region18: #{bifpn_layer_forward.13} parent=11 // pred_check_branch
          %251 = sbr.rel (%p249) target = $region20
        $region19: #{bifpn_layer_forward.13} parent=11 // pred_region
          _
        $region20: #{bifpn_layer_forward.13} parent=11 // pred_fallthru
          _
        // Predicated region
        $region21: #{bifpn_layer_forward.13} parent=11 // pred_check
          %p252 = pneg %p156
        $region22: #{bifpn_layer_forward.13} parent=11 // pred_check_branch
          %254 = sbr.rel (%p252) target = $region24
        $region23: #{bifpn_layer_forward.13} parent=11 // pred_region
          _
        $region24: #{bifpn_layer_forward.13} parent=11 // pred_fallthru
          _
        // Predicated region
        $region25: #{bifpn_layer_forward.13} parent=11 // pred_check
          %p255 = pneg %p177
        $region26: #{bifpn_layer_forward.13} parent=11 // pred_check_branch
          %257 = sbr.rel (%p255) target = $region28
        $region27: #{bifpn_layer_forward.13} parent=11 // pred_region
          _
        $region28: #{bifpn_layer_forward.13} parent=11 // pred_fallthru
          _
        // Predicated region
        $region29: #{bifpn_layer_forward.13} parent=11 // pred_check
          %p258 = pneg %p198
        $region30: #{bifpn_layer_forward.13} parent=11 // pred_check_branch
          %260 = sbr.rel (%p258) target = $region32
        $region31: #{bifpn_layer_forward.13} parent=11 // pred_region
          _
        $region32: #{bifpn_layer_forward.13} parent=11 // pred_fallthru
          _
      $region12: #{bifpn_layer_forward.13} parent=5 // pred_fallthru
        _
      %p261 = scmp.lt.s32.totalorder %s15, 2
      // Predicated region
      $region33: #{bifpn_layer_forward.13} parent=5 // pred_check
        %p262 = pneg %p261
      $region34: #{bifpn_layer_forward.13} parent=5 // pred_check_branch
        %264 = sbr.rel (%p262) target = $region36
      $region35: #{bifpn_layer_forward.13} parent=5 // pred_region
        // Predicated region
        $region37: #{bifpn_layer_forward.13} parent=35 // pred_check
          %p265 = pneg %p56
        $region38: #{bifpn_layer_forward.13} parent=35 // pred_check_branch
          %267 = sbr.rel (%p265) target = $region40
        $region39: #{bifpn_layer_forward.13} parent=35 // pred_region
          %p268 = scmp.lt.s32.totalorder %s15, 1
          %s269 = scalar_select %p268, %s15, 1
          %s270 = smul.addr %s269, 8
          %s271 = scalar_lea.vmem %s1, %s270
        $region40: #{bifpn_layer_forward.13} parent=35 // pred_fallthru
          _
        // Predicated region
        $region41: #{bifpn_layer_forward.13} parent=35 // pred_check
          %p272 = pneg %p82
        $region42: #{bifpn_layer_forward.13} parent=35 // pred_check_branch
          %274 = sbr.rel (%p272) target = $region44
        $region43: #{bifpn_layer_forward.13} parent=35 // pred_region
          %p275 = scmp.lt.s32.totalorder %s15, 1
          %s276 = scalar_select %p275, %s15, 1
          %s277 = smul.addr %s276, 8
          %s278 = scalar_lea.vmem %s2, %s277
        $region44: #{bifpn_layer_forward.13} parent=35 // pred_fallthru
          _
        // Predicated region
        $region45: #{bifpn_layer_forward.13} parent=35 // pred_check
          %p279 = pneg %p108
        $region46: #{bifpn_layer_forward.13} parent=35 // pred_check_branch
          %281 = sbr.rel (%p279) target = $region48
        $region47: #{bifpn_layer_forward.13} parent=35 // pred_region
          %p282 = scmp.lt.s32.totalorder %s15, 1
          %s283 = scalar_select %p282, %s15, 1
          %s284 = smul.addr %s283, 8
          %s285 = scalar_lea.vmem %s3, %s284
        $region48: #{bifpn_layer_forward.13} parent=35 // pred_fallthru
          _
      $region36: #{bifpn_layer_forward.13} parent=5 // pred_fallthru
        _
      %p286 = scmp.le.s32.totalorder 1, %s15
      %p287 = scmp.lt.s32.totalorder %s15, 3
      %p288 = pnand %p286, %p287
      %p289 = pneg %p288
      // Predicated region
      $region49: #{bifpn_layer_forward.13} parent=5 // pred_check
        _
      $region50: #{bifpn_layer_forward.13} parent=5 // pred_check_branch
        %291 = sbr.rel (%p288) target = $region52
      $region51: #{bifpn_layer_forward.13} parent=5 // pred_region
        %s292 = ssub.s32 %s15, 1
        // Predicated region
        $region53: #{bifpn_layer_forward.13} parent=51 // pred_check
          %p293 = pneg %p36
        $region54: #{bifpn_layer_forward.13} parent=51 // pred_check_branch
          %295 = sbr.rel (%p293) target = $region56
        $region55: #{bifpn_layer_forward.13} parent=51 // pred_region
          %297 = dma.done [#allocation3], 16
        $region56: #{bifpn_layer_forward.13} parent=51 // pred_fallthru
          _
        %298 = sfence
        %p299 = pneg %p36
        %p300 = pneg %p33
        %p301 = scmp.lt.s32.totalorder %s20, 1
        %s302 = scalar_select %p301, %s20, 1
        %s303 = smul.addr %s302, 8
        %s304 = scalar_lea.vmem %s1, %s303
        %p305 = pneg %p62
        %p306 = pneg %p59
        %p307 = scmp.lt.s32.totalorder %s20, 1
        %s308 = scalar_select %p307, %s20, 1
        %s309 = smul.addr %s308, 8
        %s310 = scalar_lea.vmem %s2, %s309
        %p311 = pneg %p88
        %p312 = pneg %p85
        %p313 = scmp.lt.s32.totalorder %s20, 1
        %s314 = scalar_select %p313, %s20, 1
        %s315 = smul.addr %s314, 8
        %s316 = scalar_lea.vmem %s3, %s315
        %p317 = pneg %p114
        %p318 = pneg %p111
        %p319 = pneg %p135
        %p320 = pneg %p132
        %p321 = pneg %p156
        %p322 = pneg %p153
        %p323 = pneg %p177
        %p324 = pneg %p174
        %p325 = pneg %p198
        %p326 = pneg %p195
        %p327 = pneg %p224
        %p328 = pneg %p221
        %p329 = scmp.lt.s32.totalorder %s20, 1
        %s330 = scalar_select %p329, %s20, 1
        %s331 = smul.addr %s330, 8
        %s332 = scalar_lea.vmem %s8, %s331
        %p333 = scmp.lt.s32.totalorder %s20, 1
        %s334 = scalar_select %p333, %s20, 1
        %s335 = smul.addr %s334, 8
        %s336 = scalar_lea.vmem %s1, %s335
        %p337 = scmp.lt.s32.totalorder %s20, 1
        %s338 = scalar_select %p337, %s20, 1
        %s339 = smul.addr %s338, 8
        %s340 = scalar_lea.vmem %s2, %s339
        %p341 = scmp.lt.s32.totalorder %s20, 1
        %s342 = scalar_select %p341, %s20, 1
        %s343 = smul.addr %s342, 8
        %s344 = scalar_lea.vmem %s3, %s343
        %p345 = scmp.lt.s32.totalorder %s20, 1
        %s346 = scalar_select %p345, %s20, 1
        %s347 = smul.addr %s346, 8
        %s348 = scalar_lea.vmem %s8, %s347
        %s349 = sld [smem:[#allocation2]]
        %v350 = vld [vmem:[%s336] sm:$0xff]
        %v351 = vstv %s349
        %v352 = vmul.f32 %v351, %v350
        %s353 = sld [smem:[#allocation2 + $0x1]]
        %v354 = vld [vmem:[%s340] sm:$0xff]
        %v355 = vstv %s353
        %v356 = vmul.f32 %v355, %v354
        %v357 = vadd.f32 %v352, %v356
        %s358 = sld [smem:[#allocation2 + $0x2]]
        %v359 = vld [vmem:[%s344] sm:$0xff]
        %v360 = vstv %s358
        %v361 = vmul.f32 %v360, %v359
        %v362 = vadd.f32 %v357, %v361
        %v363 = vxor.u32 %v362, 2147483648
        %v364 = vmul.f32 %v363, 1.442695
        %v365 = vpow.pop %v364
        %v366 = vadd.f32 %v365, 1.0
        %v367 = vrcp.pop %v366
        %v368 = vmul.f32 %v366, %v367
        %v369 = vsub.f32 1.0, %v368
        %v370 = vmul.f32 %v367, %v369
        %v371 = vadd.f32 %v367, %v370
        %vm372 = vweird.f32 %v366
        %vm373 = vweird.f32 %v367
        %vm374 = vmor %vm372, %vm373
        %v375 = vsel %vm374, %v367, %v371
        %v376 = vand.u32 2147483647, %v366
        %vm377 = vcmp.eq.f32.partialorder %v376, 8.507059e+37
        %v378 = vand.u32 %v366, 2147483648
        %v379 = vor.u32 1.1754944e-38, %v378
        %v380 = vsel %vm377, %v379, %v375
        %v381 = vmul.f32 1.0, %v380
        %v382 = vmul.f32 %v362, %v381
        %v383 = vlaneseq
        %v384 = vand.u32 %v383, 127
        %v385 = vld [vmem:[%s4] sm:$0x1]
        %vm386 = vcmp.ge.s32.totalorder %v384, 8
        %vm387 = vcmp.lt.s32.totalorder %v384, 56
        %vm388 = vcmp.ge.s32.totalorder %v385, 1
        %vm389 = vcmp.le.s32.totalorder %v385, 6
        %v390 = vld [vmem:[%s5] sm:$0xff]
        %392 = vrot.lane.b32.xlu0 %v382, 73
        %v393 = vpop.permute.xlu0 %392
        %395 = vrot.lane.b32.xlu0 %v382, 9
        %v396 = vpop.permute.xlu0 %395
        %vm398 = vcmask 72704
        %v399 = vsel %vm398, %v393, %v396
        %vm400 = vmand %vm386, %vm388
        %v401 = vsel %vm400, 1, 0
        %v402 = vperm.slane %v401, 0
        %vm403 = vcmp.eq.s32.totalorder %v402, 1
        %v404 = vsel %vm403, %v399, 0.0
        %406 = vset.pattern.permute.xlu0 0
        %407 = vperm.xlu0 %406, %v390
        %v408 = vpop.permute.xlu0 %407
        %v410 = vmul.f32 %v404, %v408
        %v411 = vadd.f32 %v410, 0.0
        %412 = vrot.lane.b32.xlu0 %v382, 72
        %v413 = vpop.permute.xlu0 %412
        %415 = vrot.lane.b32.xlu0 %v382, 8
        %v416 = vpop.permute.xlu0 %415
        %vm418 = vcmask 64512
        %v419 = vsel %vm418, %v413, %v416
        %v420 = vsel %vm386, 1, 0
        %vm421 = vcmp.eq.s32.totalorder %v420, 1
        %v422 = vsel %vm421, %v419, 0.0
        %423 = vset.pattern.permute.xlu0 1
        %424 = vperm.xlu0 %423, %v390
        %v425 = vpop.permute.xlu0 %424
        %v427 = vmul.f32 %v422, %v425
        %v428 = vadd.f32 %v411, %v427
        %429 = vrot.lane.b32.xlu0 %v382, 71
        %v430 = vpop.permute.xlu0 %429
        %432 = vrot.lane.b32.xlu0 %v382, 7
        %v433 = vpop.permute.xlu0 %432
        %vm435 = vcmask 56320
        %v436 = vsel %vm435, %v430, %v433
        %vm437 = vmand %vm386, %vm389
        %v438 = vsel %vm437, 1, 0
        %v439 = vperm.slane %v438, 0
        %vm440 = vcmp.eq.s32.totalorder %v439, 1
        %v441 = vsel %vm440, %v436, 0.0
        %442 = vset.pattern.permute.xlu0 2
        %443 = vperm.xlu0 %442, %v390
        %v444 = vpop.permute.xlu0 %443
        %v446 = vmul.f32 %v441, %v444
        %v447 = vadd.f32 %v428, %v446
        %448 = vrot.lane.b32.xlu0 %v382, 65
        %v449 = vpop.permute.xlu0 %448
        %451 = vrot.lane.b32.xlu0 %v382, 1
        %v452 = vpop.permute.xlu0 %451
        %vm454 = vcmask 7168
        %v455 = vsel %vm454, %v449, %v452
        %v456 = vsel %vm388, 1, 0
        %v457 = vperm.slane %v456, 0
        %vm458 = vcmp.eq.s32.totalorder %v457, 1
        %v459 = vsel %vm458, %v455, 0.0
        %460 = vset.pattern.permute.xlu0 3
        %461 = vperm.xlu0 %460, %v390
        %v462 = vpop.permute.xlu0 %461
        %v464 = vmul.f32 %v459, %v462
        %v465 = vadd.f32 %v447, %v464
        %466 = vset.pattern.permute.xlu0 4
        %467 = vperm.xlu0 %466, %v390
        %v468 = vpop.permute.xlu0 %467
        %v470 = vmul.f32 %v382, %v468
        %v471 = vadd.f32 %v465, %v470
        %472 = vrot.lane.b32.xlu0 %v382, 127
        %v473 = vpop.permute.xlu0 %472
        %475 = vrot.lane.b32.xlu0 %v382, 63
        %v476 = vpop.permute.xlu0 %475
        %vm478 = vcmask 515072
        %v479 = vsel %vm478, %v473, %v476
        %v480 = vsel %vm389, 1, 0
        %v481 = vperm.slane %v480, 0
        %vm482 = vcmp.eq.s32.totalorder %v481, 1
        %v483 = vsel %vm482, %v479, 0.0
        %484 = vset.pattern.permute.xlu0 5
        %485 = vperm.xlu0 %484, %v390
        %v486 = vpop.permute.xlu0 %485
        %v488 = vmul.f32 %v483, %v486
        %v489 = vadd.f32 %v471, %v488
        %490 = vrot.lane.b32.xlu0 %v382, 121
        %v491 = vpop.permute.xlu0 %490
        %493 = vrot.lane.b32.xlu0 %v382, 57
        %v494 = vpop.permute.xlu0 %493
        %vm496 = vcmask 465920
        %v497 = vsel %vm496, %v491, %v494
        %vm498 = vmand %vm387, %vm388
        %v499 = vsel %vm498, 1, 0
        %v500 = vperm.slane %v499, 0
        %vm501 = vcmp.eq.s32.totalorder %v500, 1
        %v502 = vsel %vm501, %v497, 0.0
        %503 = vset.pattern.permute.xlu0 6
        %504 = vperm.xlu0 %503, %v390
        %v505 = vpop.permute.xlu0 %504
        %v507 = vmul.f32 %v502, %v505
        %v508 = vadd.f32 %v489, %v507
        %509 = vrot.lane.b32.xlu0 %v382, 120
        %v510 = vpop.permute.xlu0 %509
        %512 = vrot.lane.b32.xlu0 %v382, 56
        %v513 = vpop.permute.xlu0 %512
        %vm515 = vcmask 457728
        %v516 = vsel %vm515, %v510, %v513
        %v517 = vsel %vm387, 1, 0
        %vm518 = vcmp.eq.s32.totalorder %v517, 1
        %v519 = vsel %vm518, %v516, 0.0
        %520 = vset.pattern.permute.xlu0 7
        %521 = vperm.xlu0 %520, %v390
        %v522 = vpop.permute.xlu0 %521
        %v524 = vmul.f32 %v519, %v522
        %v525 = vadd.f32 %v508, %v524
        %526 = vrot.lane.b32.xlu0 %v382, 119
        %v527 = vpop.permute.xlu0 %526
        %529 = vrot.lane.b32.xlu0 %v382, 55
        %v530 = vpop.permute.xlu0 %529
        %vm532 = vcmask 449536
        %v533 = vsel %vm532, %v527, %v530
        %vm534 = vmand %vm387, %vm389
        %v535 = vsel %vm534, 1, 0
        %v536 = vperm.slane %v535, 0
        %vm537 = vcmp.eq.s32.totalorder %v536, 1
        %v538 = vsel %vm537, %v533, 0.0
        %539 = vset.pattern.permute.xlu0 8
        %540 = vperm.xlu0 %539, %v390
        %v541 = vpop.permute.xlu0 %540
        %v543 = vmul.f32 %v538, %v541
        %v544 = vadd.f32 %v525, %v543
        %v545 = vld [vmem:[%s6] sm:$0xff]
        %v546 = vld [vmem:[%s7] sm:$0xff]
        %548 = vset.pattern.permute.xlu0 0
        %549 = vperm.xlu0 %548, %v546
        %v550 = vpop.permute.xlu0 %549
        %v553 = vsel %vm418, %v545, 0
        %555 = vmatpush.msra.mxu0 0.0
        %556 = vmatpush.msra.mxu0 0.0
        %557 = vmatpush.msra.mxu0 0.0
        %558 = vmatpush.msra.mxu0 0.0
        %559 = vmatpush.msra.mxu0 0.0
        %560 = vmatpush.msra.mxu0 0.0
        %561 = vmatpush.msra.mxu0 0.0
        %562 = vmatpush.msra.mxu0 0.0
        %563 = vmatpush.msra.mxu0 0.0
        %564 = vmatpush.msra.mxu0 0.0
        %565 = vmatpush.msra.mxu0 0.0
        %566 = vmatpush.msra.mxu0 0.0
        %567 = vmatpush.msra.mxu0 0.0
        %568 = vmatpush.msra.mxu0 0.0
        %569 = vmatpush.msra.mxu0 0.0
        %570 = vmatpush.msra.mxu0 %v544
        %571 = vmatmul.f32.gmra.mxu0 %v553
        %v572 = vpop.f32.mrf.mxu0
        %v573 = vadd.f32 %v550, %v572
        %574 = vdwg.mxu0
        %vm575 = vcmask 523264
        %576 = vst.msk [vmem:[%s348] sm:$0xff] %vm575, %v573
        %p577 = scmp.lt.s32.totalorder %s20, 1
        %s578 = scalar_select %p577, %s20, 1
        %s579 = smul.addr %s578, 8
        %s580 = scalar_lea.vmem %s8, %s579
        // Predicated region
        $region57: #{bifpn_layer_forward.13} parent=51 // pred_check
          %p581 = pneg %p221
        $region58: #{bifpn_layer_forward.13} parent=51 // pred_check_branch
          %583 = sbr.rel (%p581) target = $region60
        $region59: #{bifpn_layer_forward.13} parent=51 // pred_region
          _
        $region60: #{bifpn_layer_forward.13} parent=51 // pred_fallthru
          _
      $region52: #{bifpn_layer_forward.13} parent=5 // pred_fallthru
        _
      %p584 = scmp.le.s32.totalorder 2, %s15
      // Predicated region
      $region61: #{bifpn_layer_forward.13} parent=5 // pred_check
        %p585 = pneg %p584
      $region62: #{bifpn_layer_forward.13} parent=5 // pred_check_branch
        %587 = sbr.rel (%p585) target = $region64
      $region63: #{bifpn_layer_forward.13} parent=5 // pred_region
        %s588 = ssub.s32 %s15, 2
        // Predicated region
        $region65: #{bifpn_layer_forward.13} parent=63 // pred_check
          %p589 = pneg %p227
        $region66: #{bifpn_layer_forward.13} parent=63 // pred_check_branch
          %591 = sbr.rel (%p589) target = $region68
        $region67: #{bifpn_layer_forward.13} parent=63 // pred_region
          %p592 = scmp.lt.s32.totalorder %s21, 1
          %s593 = scalar_select %p592, %s21, 1
          %s594 = smul.addr %s593, 8
          %s595 = scalar_lea.vmem %s8, %s594
        $region68: #{bifpn_layer_forward.13} parent=63 // pred_fallthru
          _
      $region64: #{bifpn_layer_forward.13} parent=5 // pred_fallthru
        _
    $region6: #{bifpn_layer_forward.13} parent=1 // loop_footer
      %s19 = sadd.s32 1, %s15
    $region7: #{bifpn_layer_forward.13} parent=1 // loop_footer_branch
      %14 = sbr.rel target = $region3
    $region8: #{bifpn_layer_forward.13} parent=1 // loop_exit
      _
    %596 = vsyncpa [#allocation3], 1
    %s597 = scalar_lea.sflag [#allocation3], 1
    %598 = vsyncpa %s597, 1

// kernel: bifpn_layer_forward.14
$region0: #{bifpn_layer_forward.14}
  #allocation0 [shape = 'u32[]', space=smem, size = 0x4, offset = 0x4, fixed_abs, tag = 'smem constant byte address 0x4 - core index']
  #allocation1 [shape = 'u32[72,128]{1,0:T(1,128)}', space=vmem, size = 0x9000, scoped, tag = 'internal scratch']
  %s0 = inlined_call_operand.vmem [shape: f32[3], index: 0, kind: input, shape index: {}]
  %s1 = inlined_call_operand.vmem [shape: f32[2,8,16], index: 1, kind: input, shape index: {}]
  %s2 = inlined_call_operand.vmem [shape: f32[2,8,16], index: 2, kind: input, shape index: {}]
  %s3 = inlined_call_operand.vmem [shape: f32[2,8,16], index: 3, kind: input, shape index: {}]
  %s4 = inlined_call_operand.vmem [shape: s32[1,16], index: 4, kind: input, shape index: {}]
  %s5 = inlined_call_operand.vmem [shape: f32[8,9], index: 5, kind: input, shape index: {}]
  %s6 = inlined_call_operand.vmem [shape: f32[8,8], index: 6, kind: input, shape index: {}]
  %s7 = inlined_call_operand.vmem [shape: f32[8,1], index: 7, kind: input, shape index: {}]
  %s8 = inlined_call_operand.vmem [shape: f32[2,8,16], index: 8, kind: output, shape index: {}]
  %s9 = sld [smem:[#allocation0]]
  $region69: #{bifpn_layer_forward.14} parent=0
    _
  %s11 = ssub.s32 1, %s9
  %s12 = scalar_select 0, %s11, %s9
  $region1: #{bifpn_layer_forward.14} parent=0
    #allocation2 [shape = 'u8[512]{0}', space=smem, size = 0x200, scoped, tag = 'input window, operand 0, single buffered']
    #allocation3 [shape = 's32[2]{0}', space=sflag, size = 0x8, scoped, tag = 'scoped memory for bifpn_layer_forward.14']
    %13 = vsyncpa [#allocation3], 0
    loop: start=0, step=1, limit=4
    $region2: #{bifpn_layer_forward.14} parent=1 // loop_pre_header
      _
    $region3: #{bifpn_layer_forward.14} parent=1 // loop_header
      %s15 = sphi 0, %s19
      %p16 = scmp.ge.s32.totalorder %s15, 4
      %s23 = sphi 0, %s23
      %s25 = sphi 0, %s23
      %s26 = sphi 0, %s25
      %s40 = sphi 0, %s26
      %s46 = sphi 0, %s48
      %s49 = sphi 0, %s46
      %s50 = sphi 0, %s49
      %s66 = sphi 0, %s50
      %s72 = sphi 0, %s74
      %s75 = sphi 0, %s72
      %s76 = sphi 0, %s75
      %s92 = sphi 0, %s76
      %s98 = sphi 0, %s100
      %s101 = sphi 0, %s98
      %s102 = sphi 0, %s101
      %s118 = sphi 0, %s102
      %s122 = sphi 0, %s122
      %s124 = sphi 0, %s122
      %s125 = sphi 0, %s124
      %s139 = sphi 0, %s125
      %s143 = sphi 0, %s143
      %s145 = sphi 0, %s143
      %s146 = sphi 0, %s145
      %s160 = sphi 0, %s146
      %s164 = sphi 0, %s164
      %s166 = sphi 0, %s164
      %s167 = sphi 0, %s166
      %s181 = sphi 0, %s167
      %s185 = sphi 0, %s185
      %s187 = sphi 0, %s185
      %s188 = sphi 0, %s187
      %s202 = sphi 0, %s188
      %s208 = sphi 0, %s210
      %s211 = sphi 0, %s208
      %s212 = sphi 0, %s211
      %s228 = sphi 0, %s212
    $region4: #{bifpn_layer_forward.14} parent=1 // loop_header_branch
      %18 = sbr.rel (%p16) target = $region8
    $region5: #{bifpn_layer_forward.14} parent=1 // loop_body
      %s20 = ssub.s32 %s15, 1
      %s21 = ssub.s32 %s15, 2
      %s22 = sadd.s32 %s15, 1
      %s24 = sadd.s32 %s23, 1
      %p27 = scmp.eq.s32.totalorder %s15, 1
      %p28 = scmp.ne.s32.totalorder %s23, %s25
      %p29 = scmp.eq.s32.totalorder %s15, 0
      %p30 = por %p28, %p29
      %p31 = scmp.ne.s32.totalorder %s23, %s25
      %p32 = scmp.eq.s32.totalorder %s20, 1
      %p33 = por %p31, %p32
      %p34 = scmp.ne.s32.totalorder %s25, %s26
      %p35 = scmp.eq.s32.totalorder %s20, 0
      %p36 = por %p34, %p35
      %p37 = scmp.ne.s32.totalorder %s25, %s26
      %p38 = scmp.eq.s32.totalorder %s21, 1
      %p39 = por %p37, %p38
      %p41 = scmp.ne.s32.totalorder %s26, %s40
      %p42 = scmp.eq.s32.totalorder %s21, 0
      %p43 = por %p41, %p42
      %s44 = ssub.s32 %s15, %s22
      %p45 = scmp.eq.s32.totalorder %s44, 0
      %s47 = sadd.s32 %s46, 1
      %s48 = scalar_select %p45, %s46, %s47
      %p51 = pneg %p45
      %p52 = scmp.eq.s32.totalorder %s15, 1
      %p53 = por %p51, %p52
      %p54 = scmp.ne.s32.totalorder %s46, %s49
      %p55 = scmp.eq.s32.totalorder %s15, 0
      %p56 = por %p54, %p55
      %p57 = scmp.ne.s32.totalorder %s46, %s49
      %p58 = scmp.eq.s32.totalorder %s20, 1
      %p59 = por %p57, %p58
      %p60 = scmp.ne.s32.totalorder %s49, %s50
      %p61 = scmp.eq.s32.totalorder %s20, 0
      %p62 = por %p60, %p61
      %p63 = scmp.ne.s32.totalorder %s49, %s50
      %p64 = scmp.eq.s32.totalorder %s21, 1
      %p65 = por %p63, %p64
      %p67 = scmp.ne.s32.totalorder %s50, %s66
      %p68 = scmp.eq.s32.totalorder %s21, 0
      %p69 = por %p67, %p68
      %s70 = ssub.s32 %s15, %s22
      %p71 = scmp.eq.s32.totalorder %s70, 0
      %s73 = sadd.s32 %s72, 1
      %s74 = scalar_select %p71, %s72, %s73
      %p77 = pneg %p71
      %p78 = scmp.eq.s32.totalorder %s15, 1
      %p79 = por %p77, %p78
      %p80 = scmp.ne.s32.totalorder %s72, %s75
      %p81 = scmp.eq.s32.totalorder %s15, 0
      %p82 = por %p80, %p81
      %p83 = scmp.ne.s32.totalorder %s72, %s75
      %p84 = scmp.eq.s32.totalorder %s20, 1
      %p85 = por %p83, %p84
      %p86 = scmp.ne.s32.totalorder %s75, %s76
      %p87 = scmp.eq.s32.totalorder %s20, 0
      %p88 = por %p86, %p87
      %p89 = scmp.ne.s32.totalorder %s75, %s76
      %p90 = scmp.eq.s32.totalorder %s21, 1
      %p91 = por %p89, %p90
      %p93 = scmp.ne.s32.totalorder %s76, %s92
      %p94 = scmp.eq.s32.totalorder %s21, 0
      %p95 = por %p93, %p94
      %s96 = ssub.s32 %s15, %s22
      %p97 = scmp.eq.s32.totalorder %s96, 0
      %s99 = sadd.s32 %s98, 1
      %s100 = scalar_select %p97, %s98, %s99
      %p103 = pneg %p97
      %p104 = scmp.eq.s32.totalorder %s15, 1
      %p105 = por %p103, %p104
      %p106 = scmp.ne.s32.totalorder %s98, %s101
      %p107 = scmp.eq.s32.totalorder %s15, 0
      %p108 = por %p106, %p107
      %p109 = scmp.ne.s32.totalorder %s98, %s101
      %p110 = scmp.eq.s32.totalorder %s20, 1
      %p111 = por %p109, %p110
      %p112 = scmp.ne.s32.totalorder %s101, %s102
      %p113 = scmp.eq.s32.totalorder %s20, 0
      %p114 = por %p112, %p113
      %p115 = scmp.ne.s32.totalorder %s101, %s102
      %p116 = scmp.eq.s32.totalorder %s21, 1
      %p117 = por %p115, %p116
      %p119 = scmp.ne.s32.totalorder %s102, %s118
      %p120 = scmp.eq.s32.totalorder %s21, 0
      %p121 = por %p119, %p120
      %s123 = sadd.s32 %s122, 1
      %p126 = scmp.eq.s32.totalorder %s15, 1
      %p127 = scmp.ne.s32.totalorder %s122, %s124
      %p128 = scmp.eq.s32.totalorder %s15, 0
      %p129 = por %p127, %p128
      %p130 = scmp.ne.s32.totalorder %s122, %s124
      %p131 = scmp.eq.s32.totalorder %s20, 1
      %p132 = por %p130, %p131
      %p133 = scmp.ne.s32.totalorder %s124, %s125
      %p134 = scmp.eq.s32.totalorder %s20, 0
      %p135 = por %p133, %p134
      %p136 = scmp.ne.s32.totalorder %s124, %s125
      %p137 = scmp.eq.s32.totalorder %s21, 1
      %p138 = por %p136, %p137
      %p140 = scmp.ne.s32.totalorder %s125, %s139
      %p141 = scmp.eq.s32.totalorder %s21, 0
      %p142 = por %p140, %p141
      %s144 = sadd.s32 %s143, 1
      %p147 = scmp.eq.s32.totalorder %s15, 1
      %p148 = scmp.ne.s32.totalorder %s143, %s145
      %p149 = scmp.eq.s32.totalorder %s15, 0
      %p150 = por %p148, %p149
      %p151 = scmp.ne.s32.totalorder %s143, %s145
      %p152 = scmp.eq.s32.totalorder %s20, 1
      %p153 = por %p151, %p152
      %p154 = scmp.ne.s32.totalorder %s145, %s146
      %p155 = scmp.eq.s32.totalorder %s20, 0
      %p156 = por %p154, %p155
      %p157 = scmp.ne.s32.totalorder %s145, %s146
      %p158 = scmp.eq.s32.totalorder %s21, 1
      %p159 = por %p157, %p158
      %p161 = scmp.ne.s32.totalorder %s146, %s160
      %p162 = scmp.eq.s32.totalorder %s21, 0
      %p163 = por %p161, %p162
      %s165 = sadd.s32 %s164, 1
      %p168 = scmp.eq.s32.totalorder %s15, 1
      %p169 = scmp.ne.s32.totalorder %s164, %s166
      %p170 = scmp.eq.s32.totalorder %s15, 0
      %p171 = por %p169, %p170
      %p172 = scmp.ne.s32.totalorder %s164, %s166
      %p173 = scmp.eq.s32.totalorder %s20, 1
      %p174 = por %p172, %p173
      %p175 = scmp.ne.s32.totalorder %s166, %s167
      %p176 = scmp.eq.s32.totalorder %s20, 0
      %p177 = por %p175, %p176
      %p178 = scmp.ne.s32.totalorder %s166, %s167
      %p179 = scmp.eq.s32.totalorder %s21, 1
      %p180 = por %p178, %p179
      %p182 = scmp.ne.s32.totalorder %s167, %s181
      %p183 = scmp.eq.s32.totalorder %s21, 0
      %p184 = por %p182, %p183
      %s186 = sadd.s32 %s185, 1
      %p189 = scmp.eq.s32.totalorder %s15, 1
      %p190 = scmp.ne.s32.totalorder %s185, %s187
      %p191 = scmp.eq.s32.totalorder %s15, 0
      %p192 = por %p190, %p191
      %p193 = scmp.ne.s32.totalorder %s185, %s187
      %p194 = scmp.eq.s32.totalorder %s20, 1
      %p195 = por %p193, %p194
      %p196 = scmp.ne.s32.totalorder %s187, %s188
      %p197 = scmp.eq.s32.totalorder %s20, 0
      %p198 = por %p196, %p197
      %p199 = scmp.ne.s32.totalorder %s187, %s188
      %p200 = scmp.eq.s32.totalorder %s21, 1
      %p201 = por %p199, %p200
      %p203 = scmp.ne.s32.totalorder %s188, %s202
      %p204 = scmp.eq.s32.totalorder %s21, 0
      %p205 = por %p203, %p204
      %s206 = ssub.s32 %s15, %s22
      %p207 = scmp.eq.s32.totalorder %s206, 0
      %s209 = sadd.s32 %s208, 1
      %s210 = scalar_select %p207, %s208, %s209
      %p213 = pneg %p207
      %p214 = scmp.eq.s32.totalorder %s15, 1
      %p215 = por %p213, %p214
      %p216 = scmp.ne.s32.totalorder %s208, %s211
      %p217 = scmp.eq.s32.totalorder %s15, 0
      %p218 = por %p216, %p217
      %p219 = scmp.ne.s32.totalorder %s208, %s211
      %p220 = scmp.eq.s32.totalorder %s20, 1
      %p221 = por %p219, %p220
      %p222 = scmp.ne.s32.totalorder %s211, %s212
      %p223 = scmp.eq.s32.totalorder %s20, 0
      %p224 = por %p222, %p223
      %p225 = scmp.ne.s32.totalorder %s211, %s212
      %p226 = scmp.eq.s32.totalorder %s21, 1
      %p227 = por %p225, %p226
      %p229 = scmp.ne.s32.totalorder %s212, %s228
      %p230 = scmp.eq.s32.totalorder %s21, 0
      %p231 = por %p229, %p230
      %p232 = scmp.le.s32.totalorder 1, %s15
      %p233 = scmp.lt.s32.totalorder %s15, 3
      %p234 = pnand %p232, %p233
      %p235 = pneg %p234
      // Predicated region
      $region9: #{bifpn_layer_forward.14} parent=5 // pred_check
        _
      $region10: #{bifpn_layer_forward.14} parent=5 // pred_check_branch
        %237 = sbr.rel (%p234) target = $region12
      $region11: #{bifpn_layer_forward.14} parent=5 // pred_region
        %s238 = ssub.s32 %s15, 1
        // Predicated region
        $region13: #{bifpn_layer_forward.14} parent=11 // pred_check
          %p239 = pneg %p36
        $region14: #{bifpn_layer_forward.14} parent=11 // pred_check_branch
          %241 = sbr.rel (%p239) target = $region16
        $region15: #{bifpn_layer_forward.14} parent=11 // pred_region
          %243 = vsyncadd [#allocation3], 0
          %s245 = sshll.u32 %s0, 4
          %s246 = int_to_ptr.vmem [resolvable:$true] %s245
          %248 = dma.vmem_to_smem %s246, 16, [#allocation2], [#allocation3]
        $region16: #{bifpn_layer_forward.14} parent=11 // pred_fallthru
          _
        // Predicated region
        $region17: #{bifpn_layer_forward.14} parent=11 // pred_check
          %p249 = pneg %p135
        $region18: #{bifpn_layer_forward.14} parent=11 // pred_check_branch
          %251 = sbr.rel (%p249) target = $region20
        $region19: #{bifpn_layer_forward.14} parent=11 // pred_region
          _
        $region20: #{bifpn_layer_forward.14} parent=11 // pred_fallthru
          _
        // Predicated region
        $region21: #{bifpn_layer_forward.14} parent=11 // pred_check
          %p252 = pneg %p156
        $region22: #{bifpn_layer_forward.14} parent=11 // pred_check_branch
          %254 = sbr.rel (%p252) target = $region24
        $region23: #{bifpn_layer_forward.14} parent=11 // pred_region
          _
        $region24: #{bifpn_layer_forward.14} parent=11 // pred_fallthru
          _
        // Predicated region
        $region25: #{bifpn_layer_forward.14} parent=11 // pred_check
          %p255 = pneg %p177
        $region26: #{bifpn_layer_forward.14} parent=11 // pred_check_branch
          %257 = sbr.rel (%p255) target = $region28
        $region27: #{bifpn_layer_forward.14} parent=11 // pred_region
          _
        $region28: #{bifpn_layer_forward.14} parent=11 // pred_fallthru
          _
        // Predicated region
        $region29: #{bifpn_layer_forward.14} parent=11 // pred_check
          %p258 = pneg %p198
        $region30: #{bifpn_layer_forward.14} parent=11 // pred_check_branch
          %260 = sbr.rel (%p258) target = $region32
        $region31: #{bifpn_layer_forward.14} parent=11 // pred_region
          _
        $region32: #{bifpn_layer_forward.14} parent=11 // pred_fallthru
          _
      $region12: #{bifpn_layer_forward.14} parent=5 // pred_fallthru
        _
      %p261 = scmp.lt.s32.totalorder %s15, 2
      // Predicated region
      $region33: #{bifpn_layer_forward.14} parent=5 // pred_check
        %p262 = pneg %p261
      $region34: #{bifpn_layer_forward.14} parent=5 // pred_check_branch
        %264 = sbr.rel (%p262) target = $region36
      $region35: #{bifpn_layer_forward.14} parent=5 // pred_region
        // Predicated region
        $region37: #{bifpn_layer_forward.14} parent=35 // pred_check
          %p265 = pneg %p56
        $region38: #{bifpn_layer_forward.14} parent=35 // pred_check_branch
          %267 = sbr.rel (%p265) target = $region40
        $region39: #{bifpn_layer_forward.14} parent=35 // pred_region
          %p268 = scmp.lt.s32.totalorder %s15, 1
          %s269 = scalar_select %p268, %s15, 1
          %s270 = smul.addr %s269, 8
          %s271 = scalar_lea.vmem %s1, %s270
        $region40: #{bifpn_layer_forward.14} parent=35 // pred_fallthru
          _
        // Predicated region
        $region41: #{bifpn_layer_forward.14} parent=35 // pred_check
          %p272 = pneg %p82
        $region42: #{bifpn_layer_forward.14} parent=35 // pred_check_branch
          %274 = sbr.rel (%p272) target = $region44
        $region43: #{bifpn_layer_forward.14} parent=35 // pred_region
          %p275 = scmp.lt.s32.totalorder %s15, 1
          %s276 = scalar_select %p275, %s15, 1
          %s277 = smul.addr %s276, 8
          %s278 = scalar_lea.vmem %s2, %s277
        $region44: #{bifpn_layer_forward.14} parent=35 // pred_fallthru
          _
        // Predicated region
        $region45: #{bifpn_layer_forward.14} parent=35 // pred_check
          %p279 = pneg %p108
        $region46: #{bifpn_layer_forward.14} parent=35 // pred_check_branch
          %281 = sbr.rel (%p279) target = $region48
        $region47: #{bifpn_layer_forward.14} parent=35 // pred_region
          %p282 = scmp.lt.s32.totalorder %s15, 1
          %s283 = scalar_select %p282, %s15, 1
          %s284 = smul.addr %s283, 8
          %s285 = scalar_lea.vmem %s3, %s284
        $region48: #{bifpn_layer_forward.14} parent=35 // pred_fallthru
          _
      $region36: #{bifpn_layer_forward.14} parent=5 // pred_fallthru
        _
      %p286 = scmp.le.s32.totalorder 1, %s15
      %p287 = scmp.lt.s32.totalorder %s15, 3
      %p288 = pnand %p286, %p287
      %p289 = pneg %p288
      // Predicated region
      $region49: #{bifpn_layer_forward.14} parent=5 // pred_check
        _
      $region50: #{bifpn_layer_forward.14} parent=5 // pred_check_branch
        %291 = sbr.rel (%p288) target = $region52
      $region51: #{bifpn_layer_forward.14} parent=5 // pred_region
        %s292 = ssub.s32 %s15, 1
        // Predicated region
        $region53: #{bifpn_layer_forward.14} parent=51 // pred_check
          %p293 = pneg %p36
        $region54: #{bifpn_layer_forward.14} parent=51 // pred_check_branch
          %295 = sbr.rel (%p293) target = $region56
        $region55: #{bifpn_layer_forward.14} parent=51 // pred_region
          %297 = dma.done [#allocation3], 16
        $region56: #{bifpn_layer_forward.14} parent=51 // pred_fallthru
          _
        %298 = sfence
        %p299 = pneg %p36
        %p300 = pneg %p33
        %p301 = scmp.lt.s32.totalorder %s20, 1
        %s302 = scalar_select %p301, %s20, 1
        %s303 = smul.addr %s302, 8
        %s304 = scalar_lea.vmem %s1, %s303
        %p305 = pneg %p62
        %p306 = pneg %p59
        %p307 = scmp.lt.s32.totalorder %s20, 1
        %s308 = scalar_select %p307, %s20, 1
        %s309 = smul.addr %s308, 8
        %s310 = scalar_lea.vmem %s2, %s309
        %p311 = pneg %p88
        %p312 = pneg %p85
        %p313 = scmp.lt.s32.totalorder %s20, 1
        %s314 = scalar_select %p313, %s20, 1
        %s315 = smul.addr %s314, 8
        %s316 = scalar_lea.vmem %s3, %s315
        %p317 = pneg %p114
        %p318 = pneg %p111
        %p319 = pneg %p135
        %p320 = pneg %p132
        %p321 = pneg %p156
        %p322 = pneg %p153
        %p323 = pneg %p177
        %p324 = pneg %p174
        %p325 = pneg %p198
        %p326 = pneg %p195
        %p327 = pneg %p224
        %p328 = pneg %p221
        %p329 = scmp.lt.s32.totalorder %s20, 1
        %s330 = scalar_select %p329, %s20, 1
        %s331 = smul.addr %s330, 8
        %s332 = scalar_lea.vmem %s8, %s331
        %p333 = scmp.lt.s32.totalorder %s20, 1
        %s334 = scalar_select %p333, %s20, 1
        %s335 = smul.addr %s334, 8
        %s336 = scalar_lea.vmem %s1, %s335
        %p337 = scmp.lt.s32.totalorder %s20, 1
        %s338 = scalar_select %p337, %s20, 1
        %s339 = smul.addr %s338, 8
        %s340 = scalar_lea.vmem %s2, %s339
        %p341 = scmp.lt.s32.totalorder %s20, 1
        %s342 = scalar_select %p341, %s20, 1
        %s343 = smul.addr %s342, 8
        %s344 = scalar_lea.vmem %s3, %s343
        %p345 = scmp.lt.s32.totalorder %s20, 1
        %s346 = scalar_select %p345, %s20, 1
        %s347 = smul.addr %s346, 8
        %s348 = scalar_lea.vmem %s8, %s347
        %s349 = sld [smem:[#allocation2]]
        %v350 = vld [vmem:[%s336] sm:$0xff]
        %v351 = vstv %s349
        %v352 = vmul.f32 %v351, %v350
        %s353 = sld [smem:[#allocation2 + $0x1]]
        %v354 = vld [vmem:[%s340] sm:$0xff]
        %v355 = vstv %s353
        %v356 = vmul.f32 %v355, %v354
        %v357 = vadd.f32 %v352, %v356
        %s358 = sld [smem:[#allocation2 + $0x2]]
        %v359 = vld [vmem:[%s344] sm:$0xff]
        %v360 = vstv %s358
        %v361 = vmul.f32 %v360, %v359
        %v362 = vadd.f32 %v357, %v361
        %v363 = vxor.u32 %v362, 2147483648
        %v364 = vmul.f32 %v363, 1.442695
        %v365 = vpow.pop %v364
        %v366 = vadd.f32 %v365, 1.0
        %v367 = vrcp.pop %v366
        %v368 = vmul.f32 %v366, %v367
        %v369 = vsub.f32 1.0, %v368
        %v370 = vmul.f32 %v367, %v369
        %v371 = vadd.f32 %v367, %v370
        %vm372 = vweird.f32 %v366
        %vm373 = vweird.f32 %v367
        %vm374 = vmor %vm372, %vm373
        %v375 = vsel %vm374, %v367, %v371
        %v376 = vand.u32 2147483647, %v366
        %vm377 = vcmp.eq.f32.partialorder %v376, 8.507059e+37
        %v378 = vand.u32 %v366, 2147483648
        %v379 = vor.u32 1.1754944e-38, %v378
        %v380 = vsel %vm377, %v379, %v375
        %v381 = vmul.f32 1.0, %v380
        %v382 = vmul.f32 %v362, %v381
        %v383 = vlaneseq
        %v384 = vand.u32 %v383, 127
        %v385 = vld [vmem:[%s4] sm:$0x1]
        %vm386 = vcmp.ge.s32.totalorder %v384, 4
        %vm387 = vcmp.lt.s32.totalorder %v384, 12
        %vm388 = vcmp.ge.s32.totalorder %v385, 1
        %vm389 = vcmp.le.s32.totalorder %v385, 2
        %v390 = vld [vmem:[%s5] sm:$0xff]
        %392 = vrot.lane.b32.xlu0 %v382, 117
        %v393 = vpop.permute.xlu0 %392
        %395 = vrot.lane.b32.xlu0 %v382, 5
        %v396 = vpop.permute.xlu0 %395
        %vm398 = vcmask 39936
        %v399 = vsel %vm398, %v393, %v396
        %vm400 = vmand %vm386, %vm388
        %v401 = vsel %vm400, 1, 0
        %v402 = vperm.slane %v401, 0
        %vm403 = vcmp.eq.s32.totalorder %v402, 1
        %v404 = vsel %vm403, %v399, 0.0
        %406 = vset.pattern.permute.xlu0 0
        %407 = vperm.xlu0 %406, %v390
        %v408 = vpop.permute.xlu0 %407
        %v410 = vmul.f32 %v404, %v408
        %v411 = vadd.f32 %v410, 0.0
        %412 = vrot.lane.b32.xlu0 %v382, 116
        %v413 = vpop.permute.xlu0 %412
        %415 = vrot.lane.b32.xlu0 %v382, 4
        %v416 = vpop.permute.xlu0 %415
        %vm418 = vcmask 31744
        %v419 = vsel %vm418, %v413, %v416
        %v420 = vsel %vm386, 1, 0
        %vm421 = vcmp.eq.s32.totalorder %v420, 1
        %v422 = vsel %vm421, %v419, 0.0
        %423 = vset.pattern.permute.xlu0 1
        %424 = vperm.xlu0 %423, %v390
        %v425 = vpop.permute.xlu0 %424
        %v427 = vmul.f32 %v422, %v425
        %v428 = vadd.f32 %v411, %v427
        %429 = vrot.lane.b32.xlu0 %v382, 115
        %v430 = vpop.permute.xlu0 %429
        %432 = vrot.lane.b32.xlu0 %v382, 3
        %v433 = vpop.permute.xlu0 %432
        %vm435 = vcmask 23552
        %v436 = vsel %vm435, %v430, %v433
        %vm437 = vmand %vm386, %vm389
        %v438 = vsel %vm437, 1, 0
        %v439 = vperm.slane %v438, 0
        %vm440 = vcmp.eq.s32.totalorder %v439, 1
        %v441 = vsel %vm440, %v436, 0.0
        %442 = vset.pattern.permute.xlu0 2
        %443 = vperm.xlu0 %442, %v390
        %v444 = vpop.permute.xlu0 %443
        %v446 = vmul.f32 %v441, %v444
        %v447 = vadd.f32 %v428, %v446
        %448 = vrot.lane.b32.xlu0 %v382, 113
        %v449 = vpop.permute.xlu0 %448
        %451 = vrot.lane.b32.xlu0 %v382, 1
        %v452 = vpop.permute.xlu0 %451
        %vm454 = vcmask 7168
        %v455 = vsel %vm454, %v449, %v452
        %v456 = vsel %vm388, 1, 0
        %v457 = vperm.slane %v456, 0
        %vm458 = vcmp.eq.s32.totalorder %v457, 1
        %v459 = vsel %vm458, %v455, 0.0
        %460 = vset.pattern.permute.xlu0 3
        %461 = vperm.xlu0 %460, %v390
        %v462 = vpop.permute.xlu0 %461
        %v464 = vmul.f32 %v459, %v462
        %v465 = vadd.f32 %v447, %v464
        %466 = vset.pattern.permute.xlu0 4
        %467 = vperm.xlu0 %466, %v390
        %v468 = vpop.permute.xlu0 %467
        %v470 = vmul.f32 %v382, %v468
        %v471 = vadd.f32 %v465, %v470
        %472 = vrot.lane.b32.xlu0 %v382, 127
        %v473 = vpop.permute.xlu0 %472
        %475 = vrot.lane.b32.xlu0 %v382, 15
        %v476 = vpop.permute.xlu0 %475
        %vm478 = vcmask 121856
        %v479 = vsel %vm478, %v473, %v476
        %v480 = vsel %vm389, 1, 0
        %v481 = vperm.slane %v480, 0
        %vm482 = vcmp.eq.s32.totalorder %v481, 1
        %v483 = vsel %vm482, %v479, 0.0
        %484 = vset.pattern.permute.xlu0 5
        %485 = vperm.xlu0 %484, %v390
        %v486 = vpop.permute.xlu0 %485
        %v488 = vmul.f32 %v483, %v486
        %v489 = vadd.f32 %v471, %v488
        %490 = vrot.lane.b32.xlu0 %v382, 125
        %v491 = vpop.permute.xlu0 %490
        %493 = vrot.lane.b32.xlu0 %v382, 13
        %v494 = vpop.permute.xlu0 %493
        %vm496 = vcmask 105472
        %v497 = vsel %vm496, %v491, %v494
        %vm498 = vmand %vm387, %vm388
        %v499 = vsel %vm498, 1, 0
        %v500 = vperm.slane %v499, 0
        %vm501 = vcmp.eq.s32.totalorder %v500, 1
        %v502 = vsel %vm501, %v497, 0.0
        %503 = vset.pattern.permute.xlu0 6
        %504 = vperm.xlu0 %503, %v390
        %v505 = vpop.permute.xlu0 %504
        %v507 = vmul.f32 %v502, %v505
        %v508 = vadd.f32 %v489, %v507
        %509 = vrot.lane.b32.xlu0 %v382, 124
        %v510 = vpop.permute.xlu0 %509
        %512 = vrot.lane.b32.xlu0 %v382, 12
        %v513 = vpop.permute.xlu0 %512
        %vm515 = vcmask 97280
        %v516 = vsel %vm515, %v510, %v513
        %v517 = vsel %vm387, 1, 0
        %vm518 = vcmp.eq.s32.totalorder %v517, 1
        %v519 = vsel %vm518, %v516, 0.0
        %520 = vset.pattern.permute.xlu0 7
        %521 = vperm.xlu0 %520, %v390
        %v522 = vpop.permute.xlu0 %521
        %v524 = vmul.f32 %v519, %v522
        %v525 = vadd.f32 %v508, %v524
        %526 = vrot.lane.b32.xlu0 %v382, 123
        %v527 = vpop.permute.xlu0 %526
        %529 = vrot.lane.b32.xlu0 %v382, 11
        %v530 = vpop.permute.xlu0 %529
        %vm532 = vcmask 89088
        %v533 = vsel %vm532, %v527, %v530
        %vm534 = vmand %vm387, %vm389
        %v535 = vsel %vm534, 1, 0
        %v536 = vperm.slane %v535, 0
        %vm537 = vcmp.eq.s32.totalorder %v536, 1
        %v538 = vsel %vm537, %v533, 0.0
        %539 = vset.pattern.permute.xlu0 8
        %540 = vperm.xlu0 %539, %v390
        %v541 = vpop.permute.xlu0 %540
        %v543 = vmul.f32 %v538, %v541
        %v544 = vadd.f32 %v525, %v543
        %v545 = vld [vmem:[%s6] sm:$0xff]
        %v546 = vld [vmem:[%s7] sm:$0xff]
        %548 = vset.pattern.permute.xlu0 0
        %549 = vperm.xlu0 %548, %v546
        %v550 = vpop.permute.xlu0 %549
        %vm552 = vcmask 64512
        %v554 = vsel %vm552, %v545, 0
        %556 = vmatpush.msra.mxu0 0.0
        %557 = vmatpush.msra.mxu0 0.0
        %558 = vmatpush.msra.mxu0 0.0
        %559 = vmatpush.msra.mxu0 0.0
        %560 = vmatpush.msra.mxu0 0.0
        %561 = vmatpush.msra.mxu0 0.0
        %562 = vmatpush.msra.mxu0 0.0
        %563 = vmatpush.msra.mxu0 0.0
        %564 = vmatpush.msra.mxu0 0.0
        %565 = vmatpush.msra.mxu0 0.0
        %566 = vmatpush.msra.mxu0 0.0
        %567 = vmatpush.msra.mxu0 0.0
        %568 = vmatpush.msra.mxu0 0.0
        %569 = vmatpush.msra.mxu0 0.0
        %570 = vmatpush.msra.mxu0 0.0
        %571 = vmatpush.msra.mxu0 %v544
        %572 = vmatmul.f32.gmra.mxu0 %v554
        %v573 = vpop.f32.mrf.mxu0
        %v574 = vadd.f32 %v550, %v573
        %575 = vdwg.mxu0
        %vm576 = vcmask 130048
        %577 = vst.msk [vmem:[%s348] sm:$0xff] %vm576, %v574
        %p578 = scmp.lt.s32.totalorder %s20, 1
        %s579 = scalar_select %p578, %s20, 1
        %s580 = smul.addr %s579, 8
        %s581 = scalar_lea.vmem %s8, %s580
        // Predicated region
        $region57: #{bifpn_layer_forward.14} parent=51 // pred_check
          %p582 = pneg %p221
        $region58: #{bifpn_layer_forward.14} parent=51 // pred_check_branch
          %584 = sbr.rel (%p582) target = $region60
        $region59: #{bifpn_layer_forward.14} parent=51 // pred_region
          _
        $region60: #{bifpn_layer_forward.14} parent=51 // pred_fallthru
          _
      $region52: #{bifpn_layer_forward.14} parent=5 // pred_fallthru
        _
      %p585 = scmp.le.s32.totalorder 2, %s15
      // Predicated region
      $region61: #{bifpn_layer_forward.14} parent=5 // pred_check
        %p586 = pneg %p585
      $region62: #{bifpn_layer_forward.14} parent=5 // pred_check_branch
        %588 = sbr.rel (%p586) target = $region64
      $region63: #{bifpn_layer_forward.14} parent=5 // pred_region
        %s589 = ssub.s32 %s15, 2
        // Predicated region
        $region65: #{bifpn_layer_forward.14} parent=63 // pred_check
          %p590 = pneg %p227
        $region66: #{bifpn_layer_forward.14} parent=63 // pred_check_branch
          %592 = sbr.rel (%p590) target = $region68
        $region67: #{bifpn_layer_forward.14} parent=63 // pred_region
          %p593 = scmp.lt.s32.totalorder %s21, 1
          %s594 = scalar_select %p593, %s21, 1
          %s595 = smul.addr %s594, 8
          %s596 = scalar_lea.vmem %s8, %s595
        $region68: #{bifpn_layer_forward.14} parent=63 // pred_fallthru
          _
      $region64: #{bifpn_layer_forward.14} parent=5 // pred_fallthru
        _
    $region6: #{bifpn_layer_forward.14} parent=1 // loop_footer
      %s19 = sadd.s32 1, %s15
    $region7: #{bifpn_layer_forward.14} parent=1 // loop_footer_branch
      %14 = sbr.rel target = $region3
    $region8: #{bifpn_layer_forward.14} parent=1 // loop_exit
      _
    %597 = vsyncpa [#allocation3], 1
    %s598 = scalar_lea.sflag [#allocation3], 1
    %599 = vsyncpa %s598, 1

// kernel: bifpn_layer_forward.15
$region0: #{bifpn_layer_forward.15}
  #allocation0 [shape = 'u32[]', space=smem, size = 0x4, offset = 0x4, fixed_abs, tag = 'smem constant byte address 0x4 - core index']
  #allocation1 [shape = 'u32[72,128]{1,0:T(1,128)}', space=vmem, size = 0x9000, scoped, tag = 'internal scratch']
  %s0 = inlined_call_operand.vmem [shape: f32[2], index: 0, kind: input, shape index: {}]
  %s1 = inlined_call_operand.vmem [shape: f32[2,8,4], index: 1, kind: input, shape index: {}]
  %s2 = inlined_call_operand.vmem [shape: f32[2,8,4], index: 2, kind: input, shape index: {}]
  %s3 = inlined_call_operand.vmem [shape: s32[1,4], index: 3, kind: input, shape index: {}]
  %s4 = inlined_call_operand.vmem [shape: f32[8,9], index: 4, kind: input, shape index: {}]
  %s5 = inlined_call_operand.vmem [shape: f32[8,8], index: 5, kind: input, shape index: {}]
  %s6 = inlined_call_operand.vmem [shape: f32[8,1], index: 6, kind: input, shape index: {}]
  %s7 = inlined_call_operand.vmem [shape: f32[2,8,4], index: 7, kind: output, shape index: {}]
  %s8 = sld [smem:[#allocation0]]
  $region65: #{bifpn_layer_forward.15} parent=0
    _
  %s10 = ssub.s32 1, %s8
  %s11 = scalar_select 0, %s10, %s8
  $region1: #{bifpn_layer_forward.15} parent=0
    #allocation2 [shape = 'u8[512]{0}', space=smem, size = 0x200, scoped, tag = 'input window, operand 0, single buffered']
    #allocation3 [shape = 's32[2]{0}', space=sflag, size = 0x8, scoped, tag = 'scoped memory for bifpn_layer_forward.15']
    %12 = vsyncpa [#allocation3], 0
    loop: start=0, step=1, limit=4
    $region2: #{bifpn_layer_forward.15} parent=1 // loop_pre_header
      _
    $region3: #{bifpn_layer_forward.15} parent=1 // loop_header
      %s14 = sphi 0, %s18
      %p15 = scmp.ge.s32.totalorder %s14, 4
      %s22 = sphi 0, %s22
      %s24 = sphi 0, %s22
      %s25 = sphi 0, %s24
      %s39 = sphi 0, %s25
      %s45 = sphi 0, %s47
      %s48 = sphi 0, %s45
      %s49 = sphi 0, %s48
      %s65 = sphi 0, %s49
      %s71 = sphi 0, %s73
      %s74 = sphi 0, %s71
      %s75 = sphi 0, %s74
      %s91 = sphi 0, %s75
      %s95 = sphi 0, %s95
      %s97 = sphi 0, %s95
      %s98 = sphi 0, %s97
      %s112 = sphi 0, %s98
      %s116 = sphi 0, %s116
      %s118 = sphi 0, %s116
      %s119 = sphi 0, %s118
      %s133 = sphi 0, %s119
      %s137 = sphi 0, %s137
      %s139 = sphi 0, %s137
      %s140 = sphi 0, %s139
      %s154 = sphi 0, %s140
      %s158 = sphi 0, %s158
      %s160 = sphi 0, %s158
      %s161 = sphi 0, %s160
      %s175 = sphi 0, %s161
      %s181 = sphi 0, %s183
      %s184 = sphi 0, %s181
      %s185 = sphi 0, %s184
      %s201 = sphi 0, %s185
    $region4: #{bifpn_layer_forward.15} parent=1 // loop_header_branch
      %17 = sbr.rel (%p15) target = $region8
    $region5: #{bifpn_layer_forward.15} parent=1 // loop_body
      %s19 = ssub.s32 %s14, 1
      %s20 = ssub.s32 %s14, 2
      %s21 = sadd.s32 %s14, 1
      %s23 = sadd.s32 %s22, 1
      %p26 = scmp.eq.s32.totalorder %s14, 1
      %p27 = scmp.ne.s32.totalorder %s22, %s24
      %p28 = scmp.eq.s32.totalorder %s14, 0
      %p29 = por %p27, %p28
      %p30 = scmp.ne.s32.totalorder %s22, %s24
      %p31 = scmp.eq.s32.totalorder %s19, 1
      %p32 = por %p30, %p31
      %p33 = scmp.ne.s32.totalorder %s24, %s25
      %p34 = scmp.eq.s32.totalorder %s19, 0
      %p35 = por %p33, %p34
      %p36 = scmp.ne.s32.totalorder %s24, %s25
      %p37 = scmp.eq.s32.totalorder %s20, 1
      %p38 = por %p36, %p37
      %p40 = scmp.ne.s32.totalorder %s25, %s39
      %p41 = scmp.eq.s32.totalorder %s20, 0
      %p42 = por %p40, %p41
      %s43 = ssub.s32 %s14, %s21
      %p44 = scmp.eq.s32.totalorder %s43, 0
      %s46 = sadd.s32 %s45, 1
      %s47 = scalar_select %p44, %s45, %s46
      %p50 = pneg %p44
      %p51 = scmp.eq.s32.totalorder %s14, 1
      %p52 = por %p50, %p51
      %p53 = scmp.ne.s32.totalorder %s45, %s48
      %p54 = scmp.eq.s32.totalorder %s14, 0
      %p55 = por %p53, %p54
      %p56 = scmp.ne.s32.totalorder %s45, %s48
      %p57 = scmp.eq.s32.totalorder %s19, 1
      %p58 = por %p56, %p57
      %p59 = scmp.ne.s32.totalorder %s48, %s49
      %p60 = scmp.eq.s32.totalorder %s19, 0
      %p61 = por %p59, %p60
      %p62 = scmp.ne.s32.totalorder %s48, %s49
      %p63 = scmp.eq.s32.totalorder %s20, 1
      %p64 = por %p62, %p63
      %p66 = scmp.ne.s32.totalorder %s49, %s65
      %p67 = scmp.eq.s32.totalorder %s20, 0
      %p68 = por %p66, %p67
      %s69 = ssub.s32 %s14, %s21
      %p70 = scmp.eq.s32.totalorder %s69, 0
      %s72 = sadd.s32 %s71, 1
      %s73 = scalar_select %p70, %s71, %s72
      %p76 = pneg %p70
      %p77 = scmp.eq.s32.totalorder %s14, 1
      %p78 = por %p76, %p77
      %p79 = scmp.ne.s32.totalorder %s71, %s74
      %p80 = scmp.eq.s32.totalorder %s14, 0
      %p81 = por %p79, %p80
      %p82 = scmp.ne.s32.totalorder %s71, %s74
      %p83 = scmp.eq.s32.totalorder %s19, 1
      %p84 = por %p82, %p83
      %p85 = scmp.ne.s32.totalorder %s74, %s75
      %p86 = scmp.eq.s32.totalorder %s19, 0
      %p87 = por %p85, %p86
      %p88 = scmp.ne.s32.totalorder %s74, %s75
      %p89 = scmp.eq.s32.totalorder %s20, 1
      %p90 = por %p88, %p89
      %p92 = scmp.ne.s32.totalorder %s75, %s91
      %p93 = scmp.eq.s32.totalorder %s20, 0
      %p94 = por %p92, %p93
      %s96 = sadd.s32 %s95, 1
      %p99 = scmp.eq.s32.totalorder %s14, 1
      %p100 = scmp.ne.s32.totalorder %s95, %s97
      %p101 = scmp.eq.s32.totalorder %s14, 0
      %p102 = por %p100, %p101
      %p103 = scmp.ne.s32.totalorder %s95, %s97
      %p104 = scmp.eq.s32.totalorder %s19, 1
      %p105 = por %p103, %p104
      %p106 = scmp.ne.s32.totalorder %s97, %s98
      %p107 = scmp.eq.s32.totalorder %s19, 0
      %p108 = por %p106, %p107
      %p109 = scmp.ne.s32.totalorder %s97, %s98
      %p110 = scmp.eq.s32.totalorder %s20, 1
      %p111 = por %p109, %p110
      %p113 = scmp.ne.s32.totalorder %s98, %s112
      %p114 = scmp.eq.s32.totalorder %s20, 0
      %p115 = por %p113, %p114
      %s117 = sadd.s32 %s116, 1
      %p120 = scmp.eq.s32.totalorder %s14, 1
      %p121 = scmp.ne.s32.totalorder %s116, %s118
      %p122 = scmp.eq.s32.totalorder %s14, 0
      %p123 = por %p121, %p122
      %p124 = scmp.ne.s32.totalorder %s116, %s118
      %p125 = scmp.eq.s32.totalorder %s19, 1
      %p126 = por %p124, %p125
      %p127 = scmp.ne.s32.totalorder %s118, %s119
      %p128 = scmp.eq.s32.totalorder %s19, 0
      %p129 = por %p127, %p128
      %p130 = scmp.ne.s32.totalorder %s118, %s119
      %p131 = scmp.eq.s32.totalorder %s20, 1
      %p132 = por %p130, %p131
      %p134 = scmp.ne.s32.totalorder %s119, %s133
      %p135 = scmp.eq.s32.totalorder %s20, 0
      %p136 = por %p134, %p135
      %s138 = sadd.s32 %s137, 1
      %p141 = scmp.eq.s32.totalorder %s14, 1
      %p142 = scmp.ne.s32.totalorder %s137, %s139
      %p143 = scmp.eq.s32.totalorder %s14, 0
      %p144 = por %p142, %p143
      %p145 = scmp.ne.s32.totalorder %s137, %s139
      %p146 = scmp.eq.s32.totalorder %s19, 1
      %p147 = por %p145, %p146
      %p148 = scmp.ne.s32.totalorder %s139, %s140
      %p149 = scmp.eq.s32.totalorder %s19, 0
      %p150 = por %p148, %p149
      %p151 = scmp.ne.s32.totalorder %s139, %s140
      %p152 = scmp.eq.s32.totalorder %s20, 1
      %p153 = por %p151, %p152
      %p155 = scmp.ne.s32.totalorder %s140, %s154
      %p156 = scmp.eq.s32.totalorder %s20, 0
      %p157 = por %p155, %p156
      %s159 = sadd.s32 %s158, 1
      %p162 = scmp.eq.s32.totalorder %s14, 1
      %p163 = scmp.ne.s32.totalorder %s158, %s160
      %p164 = scmp.eq.s32.totalorder %s14, 0
      %p165 = por %p163, %p164
      %p166 = scmp.ne.s32.totalorder %s158, %s160
      %p167 = scmp.eq.s32.totalorder %s19, 1
      %p168 = por %p166, %p167
      %p169 = scmp.ne.s32.totalorder %s160, %s161
      %p170 = scmp.eq.s32.totalorder %s19, 0
      %p171 = por %p169, %p170
      %p172 = scmp.ne.s32.totalorder %s160, %s161
      %p173 = scmp.eq.s32.totalorder %s20, 1
      %p174 = por %p172, %p173
      %p176 = scmp.ne.s32.totalorder %s161, %s175
      %p177 = scmp.eq.s32.totalorder %s20, 0
      %p178 = por %p176, %p177
      %s179 = ssub.s32 %s14, %s21
      %p180 = scmp.eq.s32.totalorder %s179, 0
      %s182 = sadd.s32 %s181, 1
      %s183 = scalar_select %p180, %s181, %s182
      %p186 = pneg %p180
      %p187 = scmp.eq.s32.totalorder %s14, 1
      %p188 = por %p186, %p187
      %p189 = scmp.ne.s32.totalorder %s181, %s184
      %p190 = scmp.eq.s32.totalorder %s14, 0
      %p191 = por %p189, %p190
      %p192 = scmp.ne.s32.totalorder %s181, %s184
      %p193 = scmp.eq.s32.totalorder %s19, 1
      %p194 = por %p192, %p193
      %p195 = scmp.ne.s32.totalorder %s184, %s185
      %p196 = scmp.eq.s32.totalorder %s19, 0
      %p197 = por %p195, %p196
      %p198 = scmp.ne.s32.totalorder %s184, %s185
      %p199 = scmp.eq.s32.totalorder %s20, 1
      %p200 = por %p198, %p199
      %p202 = scmp.ne.s32.totalorder %s185, %s201
      %p203 = scmp.eq.s32.totalorder %s20, 0
      %p204 = por %p202, %p203
      %p205 = scmp.le.s32.totalorder 1, %s14
      %p206 = scmp.lt.s32.totalorder %s14, 3
      %p207 = pnand %p205, %p206
      %p208 = pneg %p207
      // Predicated region
      $region9: #{bifpn_layer_forward.15} parent=5 // pred_check
        _
      $region10: #{bifpn_layer_forward.15} parent=5 // pred_check_branch
        %210 = sbr.rel (%p207) target = $region12
      $region11: #{bifpn_layer_forward.15} parent=5 // pred_region
        %s211 = ssub.s32 %s14, 1
        // Predicated region
        $region13: #{bifpn_layer_forward.15} parent=11 // pred_check
          %p212 = pneg %p35
        $region14: #{bifpn_layer_forward.15} parent=11 // pred_check_branch
          %214 = sbr.rel (%p212) target = $region16
        $region15: #{bifpn_layer_forward.15} parent=11 // pred_region
          %216 = vsyncadd [#allocation3], 0
          %s218 = sshll.u32 %s0, 4
          %s219 = int_to_ptr.vmem [resolvable:$true] %s218
          %221 = dma.vmem_to_smem %s219, 16, [#allocation2], [#allocation3]
        $region16: #{bifpn_layer_forward.15} parent=11 // pred_fallthru
          _
        // Predicated region
        $region17: #{bifpn_layer_forward.15} parent=11 // pred_check
          %p222 = pneg %p108
        $region18: #{bifpn_layer_forward.15} parent=11 // pred_check_branch
          %224 = sbr.rel (%p222) target = $region20
        $region19: #{bifpn_layer_forward.15} parent=11 // pred_region
          _
        $region20: #{bifpn_layer_forward.15} parent=11 // pred_fallthru
          _
        // Predicated region
        $region21: #{bifpn_layer_forward.15} parent=11 // pred_check
          %p225 = pneg %p129
        $region22: #{bifpn_layer_forward.15} parent=11 // pred_check_branch
          %227 = sbr.rel (%p225) target = $region24
        $region23: #{bifpn_layer_forward.15} parent=11 // pred_region
          _
        $region24: #{bifpn_layer_forward.15} parent=11 // pred_fallthru
          _
        // Predicated region
        $region25: #{bifpn_layer_forward.15} parent=11 // pred_check
          %p228 = pneg %p150
        $region26: #{bifpn_layer_forward.15} parent=11 // pred_check_branch
          %230 = sbr.rel (%p228) target = $region28
        $region27: #{bifpn_layer_forward.15} parent=11 // pred_region
          _
        $region28: #{bifpn_layer_forward.15} parent=11 // pred_fallthru
          _
        // Predicated region
        $region29: #{bifpn_layer_forward.15} parent=11 // pred_check
          %p231 = pneg %p171
        $region30: #{bifpn_layer_forward.15} parent=11 // pred_check_branch
          %233 = sbr.rel (%p231) target = $region32
        $region31: #{bifpn_layer_forward.15} parent=11 // pred_region
          _
        $region32: #{bifpn_layer_forward.15} parent=11 // pred_fallthru
          _
      $region12: #{bifpn_layer_forward.15} parent=5 // pred_fallthru
        _
      %p234 = scmp.lt.s32.totalorder %s14, 2
      // Predicated region
      $region33: #{bifpn_layer_forward.15} parent=5 // pred_check
        %p235 = pneg %p234
      $region34: #{bifpn_layer_forward.15} parent=5 // pred_check_branch
        %237 = sbr.rel (%p235) target = $region36
      $region35: #{bifpn_layer_forward.15} parent=5 // pred_region
        // Predicated region
        $region37: #{bifpn_layer_forward.15} parent=35 // pred_check
          %p238 = pneg %p55
        $region38: #{bifpn_layer_forward.15} parent=35 // pred_check_branch
          %240 = sbr.rel (%p238) target = $region40
        $region39: #{bifpn_layer_forward.15} parent=35 // pred_region
          %p241 = scmp.lt.s32.totalorder %s14, 1
          %s242 = scalar_select %p241, %s14, 1
          %s243 = smul.addr %s242, 8
          %s244 = scalar_lea.vmem %s1, %s243
        $region40: #{bifpn_layer_forward.15} parent=35 // pred_fallthru
          _
        // Predicated region
        $region41: #{bifpn_layer_forward.15} parent=35 // pred_check
          %p245 = pneg %p81
        $region42: #{bifpn_layer_forward.15} parent=35 // pred_check_branch
          %247 = sbr.rel (%p245) target = $region44
        $region43: #{bifpn_layer_forward.15} parent=35 // pred_region
          %p248 = scmp.lt.s32.totalorder %s14, 1
          %s249 = scalar_select %p248, %s14, 1
          %s250 = smul.addr %s249, 8
          %s251 = scalar_lea.vmem %s2, %s250
        $region44: #{bifpn_layer_forward.15} parent=35 // pred_fallthru
          _
      $region36: #{bifpn_layer_forward.15} parent=5 // pred_fallthru
        _
      %p252 = scmp.le.s32.totalorder 1, %s14
      %p253 = scmp.lt.s32.totalorder %s14, 3
      %p254 = pnand %p252, %p253
      %p255 = pneg %p254
      // Predicated region
      $region45: #{bifpn_layer_forward.15} parent=5 // pred_check
        _
      $region46: #{bifpn_layer_forward.15} parent=5 // pred_check_branch
        %257 = sbr.rel (%p254) target = $region48
      $region47: #{bifpn_layer_forward.15} parent=5 // pred_region
        %s258 = ssub.s32 %s14, 1
        // Predicated region
        $region49: #{bifpn_layer_forward.15} parent=47 // pred_check
          %p259 = pneg %p35
        $region50: #{bifpn_layer_forward.15} parent=47 // pred_check_branch
          %261 = sbr.rel (%p259) target = $region52
        $region51: #{bifpn_layer_forward.15} parent=47 // pred_region
          %263 = dma.done [#allocation3], 16
        $region52: #{bifpn_layer_forward.15} parent=47 // pred_fallthru
          _
        %264 = sfence
        %p265 = pneg %p35
        %p266 = pneg %p32
        %p267 = scmp.lt.s32.totalorder %s19, 1
        %s268 = scalar_select %p267, %s19, 1
        %s269 = smul.addr %s268, 8
        %s270 = scalar_lea.vmem %s1, %s269
        %p271 = pneg %p61
        %p272 = pneg %p58
        %p273 = scmp.lt.s32.totalorder %s19, 1
        %s274 = scalar_select %p273, %s19, 1
        %s275 = smul.addr %s274, 8
        %s276 = scalar_lea.vmem %s2, %s275
        %p277 = pneg %p87
        %p278 = pneg %p84
        %p279 = pneg %p108
        %p280 = pneg %p105
        %p281 = pneg %p129
        %p282 = pneg %p126
        %p283 = pneg %p150
        %p284 = pneg %p147
        %p285 = pneg %p171
        %p286 = pneg %p168
        %p287 = pneg %p197
        %p288 = pneg %p194
        %p289 = scmp.lt.s32.totalorder %s19, 1
        %s290 = scalar_select %p289, %s19, 1
        %s291 = smul.addr %s290, 8
        %s292 = scalar_lea.vmem %s7, %s291
        %p293 = scmp.lt.s32.totalorder %s19, 1
        %s294 = scalar_select %p293, %s19, 1
        %s295 = smul.addr %s294, 8
        %s296 = scalar_lea.vmem %s1, %s295
        %p297 = scmp.lt.s32.totalorder %s19, 1
        %s298 = scalar_select %p297, %s19, 1
        %s299 = smul.addr %s298, 8
        %s300 = scalar_lea.vmem %s2, %s299
        %p301 = scmp.lt.s32.totalorder %s19, 1
        %s302 = scalar_select %p301, %s19, 1
        %s303 = smul.addr %s302, 8
        %s304 = scalar_lea.vmem %s7, %s303
        %s305 = sld [smem:[#allocation2]]
        %v306 = vld [vmem:[%s296] sm:$0xff]
        %v307 = vstv %s305
        %v308 = vmul.f32 %v307, %v306
        %s309 = sld [smem:[#allocation2 + $0x1]]
        %v310 = vld [vmem:[%s300] sm:$0xff]
        %v311 = vstv %s309
        %v312 = vmul.f32 %v311, %v310
        %v313 = vadd.f32 %v308, %v312
        %v314 = vxor.u32 %v313, 2147483648
        %v315 = vmul.f32 %v314, 1.442695
        %v316 = vpow.pop %v315
        %v317 = vadd.f32 %v316, 1.0
        %v318 = vrcp.pop %v317
        %v319 = vmul.f32 %v317, %v318
        %v320 = vsub.f32 1.0, %v319
        %v321 = vmul.f32 %v318, %v320
        %v322 = vadd.f32 %v318, %v321
        %vm323 = vweird.f32 %v317
        %vm324 = vweird.f32 %v318
        %vm325 = vmor %vm323, %vm324
        %v326 = vsel %vm325, %v318, %v322
        %v327 = vand.u32 2147483647, %v317
        %vm328 = vcmp.eq.f32.partialorder %v327, 8.507059e+37
        %v329 = vand.u32 %v317, 2147483648
        %v330 = vor.u32 1.1754944e-38, %v329
        %v331 = vsel %vm328, %v330, %v326
        %v332 = vmul.f32 1.0, %v331
        %v333 = vmul.f32 %v313, %v332
        %v334 = vlaneseq
        %v335 = vand.u32 %v334, 127
        %v336 = vld [vmem:[%s3] sm:$0x1]
        %vm337 = vcmp.ge.s32.totalorder %v335, 2
        %vm338 = vcmp.lt.s32.totalorder %v335, 2
        %vm339 = vcmp.ge.s32.totalorder %v336, 1
        %vm340 = vcmp.le.s32.totalorder %v336, 0
        %v341 = vld [vmem:[%s4] sm:$0xff]
        %343 = vrot.lane.b32.xlu0 %v333, 127
        %v344 = vpop.permute.xlu0 %343
        %346 = vrot.lane.b32.xlu0 %v333, 3
        %v347 = vpop.permute.xlu0 %346
        %vm349 = vcmask 23552
        %v350 = vsel %vm349, %v344, %v347
        %vm351 = vmand %vm337, %vm339
        %v352 = vsel %vm351, 1, 0
        %v353 = vperm.slane %v352, 0
        %vm354 = vcmp.eq.s32.totalorder %v353, 1
        %v355 = vsel %vm354, %v350, 0.0
        %357 = vset.pattern.permute.xlu0 0
        %358 = vperm.xlu0 %357, %v341
        %v359 = vpop.permute.xlu0 %358
        %v361 = vmul.f32 %v355, %v359
        %v362 = vadd.f32 %v361, 0.0
        %363 = vrot.lane.b32.xlu0 %v333, 126
        %v364 = vpop.permute.xlu0 %363
        %366 = vrot.lane.b32.xlu0 %v333, 2
        %v367 = vpop.permute.xlu0 %366
        %vm369 = vcmask 15360
        %v370 = vsel %vm369, %v364, %v367
        %v371 = vsel %vm337, 1, 0
        %vm372 = vcmp.eq.s32.totalorder %v371, 1
        %v373 = vsel %vm372, %v370, 0.0
        %374 = vset.pattern.permute.xlu0 1
        %375 = vperm.xlu0 %374, %v341
        %v376 = vpop.permute.xlu0 %375
        %v378 = vmul.f32 %v373, %v376
        %v379 = vadd.f32 %v362, %v378
        %380 = vrot.lane.b32.xlu0 %v333, 125
        %v381 = vpop.permute.xlu0 %380
        %383 = vrot.lane.b32.xlu0 %v333, 1
        %v384 = vpop.permute.xlu0 %383
        %vm386 = vcmask 7168
        %v387 = vsel %vm386, %v381, %v384
        %vm388 = vmand %vm337, %vm340
        %v389 = vsel %vm388, 1, 0
        %v390 = vperm.slane %v389, 0
        %vm391 = vcmp.eq.s32.totalorder %v390, 1
        %v392 = vsel %vm391, %v387, 0.0
        %393 = vset.pattern.permute.xlu0 2
        %394 = vperm.xlu0 %393, %v341
        %v395 = vpop.permute.xlu0 %394
        %v397 = vmul.f32 %v392, %v395
        %v398 = vadd.f32 %v379, %v397
        %v399 = vsel %vm339, 1, 0
        %v400 = vperm.slane %v399, 0
        %vm401 = vcmp.eq.s32.totalorder %v400, 1
        %v402 = vsel %vm401, %v387, 0.0
        %403 = vset.pattern.permute.xlu0 3
        %404 = vperm.xlu0 %403, %v341
        %v405 = vpop.permute.xlu0 %404
        %v407 = vmul.f32 %v402, %v405
        %v408 = vadd.f32 %v398, %v407
        %409 = vset.pattern.permute.xlu0 4
        %410 = vperm.xlu0 %409, %v341
        %v411 = vpop.permute.xlu0 %410
        %v413 = vmul.f32 %v333, %v411
        %v414 = vadd.f32 %v408, %v413
        %v415 = vsel %vm340, 1, 0
        %v416 = vperm.slane %v415, 0
        %vm417 = vcmp.eq.s32.totalorder %v416, 1
        %v418 = vsel %vm417, %v350, 0.0
        %419 = vset.pattern.permute.xlu0 5
        %420 = vperm.xlu0 %419, %v341
        %v421 = vpop.permute.xlu0 %420
        %v423 = vmul.f32 %v418, %v421
        %v424 = vadd.f32 %v414, %v423
        %vm425 = vmand %vm338, %vm339
        %v426 = vsel %vm425, 1, 0
        %v427 = vperm.slane %v426, 0
        %vm428 = vcmp.eq.s32.totalorder %v427, 1
        %v429 = vsel %vm428, %v350, 0.0
        %430 = vset.pattern.permute.xlu0 6
        %431 = vperm.xlu0 %430, %v341
        %v432 = vpop.permute.xlu0 %431
        %v434 = vmul.f32 %v429, %v432
        %v435 = vadd.f32 %v424, %v434
        %v436 = vsel %vm338, 1, 0
        %vm437 = vcmp.eq.s32.totalorder %v436, 1
        %v438 = vsel %vm437, %v370, 0.0
        %439 = vset.pattern.permute.xlu0 7
        %440 = vperm.xlu0 %439, %v341
        %v441 = vpop.permute.xlu0 %440
        %v443 = vmul.f32 %v438, %v441
        %v444 = vadd.f32 %v435, %v443
        %vm445 = vmand %vm338, %vm340
        %v446 = vsel %vm445, 1, 0
        %v447 = vperm.slane %v446, 0
        %vm448 = vcmp.eq.s32.totalorder %v447, 1
        %v449 = vsel %vm448, %v387, 0.0
        %450 = vset.pattern.permute.xlu0 8
        %451 = vperm.xlu0 %450, %v341
        %v452 = vpop.permute.xlu0 %451
        %v454 = vmul.f32 %v449, %v452
        %v455 = vadd.f32 %v444, %v454
        %v456 = vld [vmem:[%s5] sm:$0xff]
        %v457 = vld [vmem:[%s6] sm:$0xff]
        %459 = vset.pattern.permute.xlu0 0
        %460 = vperm.xlu0 %459, %v457
        %v461 = vpop.permute.xlu0 %460
        %vm463 = vcmask 64512
        %v465 = vsel %vm463, %v456, 0
        %467 = vmatpush.msra.mxu0 0.0
        %468 = vmatpush.msra.mxu0 0.0
        %469 = vmatpush.msra.mxu0 0.0
        %470 = vmatpush.msra.mxu0 0.0
        %471 = vmatpush.msra.mxu0 0.0
        %472 = vmatpush.msra.mxu0 0.0
        %473 = vmatpush.msra.mxu0 0.0
        %474 = vmatpush.msra.mxu0 0.0
        %475 = vmatpush.msra.mxu0 0.0
        %476 = vmatpush.msra.mxu0 0.0
        %477 = vmatpush.msra.mxu0 0.0
        %478 = vmatpush.msra.mxu0 0.0
        %479 = vmatpush.msra.mxu0 0.0
        %480 = vmatpush.msra.mxu0 0.0
        %481 = vmatpush.msra.mxu0 0.0
        %482 = vmatpush.msra.mxu0 %v455
        %483 = vmatmul.f32.gmra.mxu0 %v465
        %v484 = vpop.f32.mrf.mxu0
        %v485 = vadd.f32 %v461, %v484
        %486 = vdwg.mxu0
        %vm487 = vcmask 31744
        %488 = vst.msk [vmem:[%s304] sm:$0xff] %vm487, %v485
        %p489 = scmp.lt.s32.totalorder %s19, 1
        %s490 = scalar_select %p489, %s19, 1
        %s491 = smul.addr %s490, 8
        %s492 = scalar_lea.vmem %s7, %s491
        // Predicated region
        $region53: #{bifpn_layer_forward.15} parent=47 // pred_check
          %p493 = pneg %p194
        $region54: #{bifpn_layer_forward.15} parent=47 // pred_check_branch
          %495 = sbr.rel (%p493) target = $region56
        $region55: #{bifpn_layer_forward.15} parent=47 // pred_region
          _
        $region56: #{bifpn_layer_forward.15} parent=47 // pred_fallthru
          _
      $region48: #{bifpn_layer_forward.15} parent=5 // pred_fallthru
        _
      %p496 = scmp.le.s32.totalorder 2, %s14
      // Predicated region
      $region57: #{bifpn_layer_forward.15} parent=5 // pred_check
        %p497 = pneg %p496
      $region58: #{bifpn_layer_forward.15} parent=5 // pred_check_branch
        %499 = sbr.rel (%p497) target = $region60
      $region59: #{bifpn_layer_forward.15} parent=5 // pred_region
        %s500 = ssub.s32 %s14, 2
        // Predicated region
        $region61: #{bifpn_layer_forward.15} parent=59 // pred_check
          %p501 = pneg %p200
        $region62: #{bifpn_layer_forward.15} parent=59 // pred_check_branch
          %503 = sbr.rel (%p501) target = $region64
        $region63: #{bifpn_layer_forward.15} parent=59 // pred_region
          %p504 = scmp.lt.s32.totalorder %s20, 1
          %s505 = scalar_select %p504, %s20, 1
          %s506 = smul.addr %s505, 8
          %s507 = scalar_lea.vmem %s7, %s506
        $region64: #{bifpn_layer_forward.15} parent=59 // pred_fallthru
          _
      $region60: #{bifpn_layer_forward.15} parent=5 // pred_fallthru
        _
    $region6: #{bifpn_layer_forward.15} parent=1 // loop_footer
      %s18 = sadd.s32 1, %s14
    $region7: #{bifpn_layer_forward.15} parent=1 // loop_footer_branch
      %13 = sbr.rel target = $region3
    $region8: #{bifpn_layer_forward.15} parent=1 // loop_exit
      _
    %508 = vsyncpa [#allocation3], 1
    %s509 = scalar_lea.sflag [#allocation3], 1
    %510 = vsyncpa %s509, 1

</llo_original>
